<compile_context>
chip_gen: v7x
topology: tpu7x:2x2x1
jax: 0.10.0
libtpu: 0.0.40
codegen_flags: <defaults>
</compile_context>

<pallas_src>
import functools
import math

import jax
import jax.numpy as jnp
from jax.experimental import pallas as pl
from jax.experimental.pallas import tpu as pltpu

_VMEM_LIMIT = 32 * 1024 * 1024   # safe on v5e/v6e/v7x; tiles+weights stay far below
_EPS = 1e-5                      # nn.LayerNorm default


def _cparams():
    return pltpu.CompilerParams(
        dimension_semantics=("parallel",),
        vmem_limit_bytes=_VMEM_LIMIT)


def _row_tile(m, target=256):
    """Largest row tile <= target that is a multiple of 8 and divides m."""
    t = min(m, target)
    t -= t % 8
    while t >= 8 and m % t != 0:
        t -= 8
    return t if t >= 8 else m


def _layernorm(x, g, b):
    mu = jnp.mean(x, axis=-1, keepdims=True)
    xc = x - mu
    var = jnp.mean(xc * xc, axis=-1, keepdims=True)        # biased var (torch LN)
    return xc * jax.lax.rsqrt(var + _EPS) * g + b


def _gelu_exact(x):
    # exact erf-GELU; erf via Abramowitz-Stegun 7.1.26 (|err| <= 1.5e-7), built
    # only from exp/mul/select so it lowers inside Mosaic (EUP slot).
    # TODO(synk): switch to lax.erf if its Mosaic lowering is guaranteed.
    z = x * (1.0 / math.sqrt(2.0))
    az = jnp.abs(z)
    t = 1.0 / (1.0 + 0.3275911 * az)
    poly = ((((1.061405429 * t - 1.453152027) * t + 1.421413741) * t
             - 0.284496736) * t + 0.254829592) * t
    erf_abs = 1.0 - poly * jnp.exp(-az * az)
    erf_z = jnp.where(z >= 0.0, erf_abs, -erf_abs)
    return 0.5 * x * (1.0 + erf_z)


# ----------------------------- Pallas kernels -----------------------------

def _input_kernel(x_ref, m_ref, w_ref, b_ref, o_ref):
    # Batch.__init__ apply_mask -> Linear (Dropout p=0) -> Apply re-mask
    m = m_ref[...]
    x = x_ref[...] * m
    y = jnp.dot(x.astype(jnp.bfloat16), w_ref[...],
                preferred_element_type=jnp.float32) + b_ref[...]
    o_ref[...] = y * m


def input_linear(x, w, b, mcol):
    M, K = x.shape
    N = w.shape[1]
    tm = _row_tile(M)
    return pl.pallas_call(
        _input_kernel,
        grid=(M // tm,),
        in_specs=[
            pl.BlockSpec((tm, K), lambda i: (i, 0)),
            pl.BlockSpec((tm, 1), lambda i: (i, 0)),
            pl.BlockSpec((K, N), lambda i: (0, 0)),     # weight stays resident
            pl.BlockSpec((1, N), lambda i: (0, 0)),
        ],
        out_specs=pl.BlockSpec((tm, N), lambda i: (i, 0)),
        out_shape=jax.ShapeDtypeStruct((M, N), jnp.float32),
        compiler_params=_cparams(),
    )(x, mcol, w.astype(jnp.bfloat16), b)


def _ffn_kernel(x_ref, m_ref, g_ref, bln_ref, w1_ref, b1_ref, w2_ref, b2_ref,
                o_ref):
    # out = x + mask( Linear2(GELU(Linear1(LN(x)))) )    (fused FFN + residual)
    x = x_ref[...]
    h = _layernorm(x, g_ref[...], bln_ref[...])
    f = jnp.dot(h.astype(jnp.bfloat16), w1_ref[...],
                preferred_element_type=jnp.float32) + b1_ref[...]
    f = _gelu_exact(f)
    f = jnp.dot(f.astype(jnp.bfloat16), w2_ref[...],
                preferred_element_type=jnp.float32) + b2_ref[...]
    o_ref[...] = x + f * m_ref[...]


def ffn_block(x, lp, mcol):
    M, D = x.shape
    F = lp["ff1_w"].shape[1]
    tm = _row_tile(M)
    return pl.pallas_call(
        _ffn_kernel,
        grid=(M // tm,),
        in_specs=[
            pl.BlockSpec((tm, D), lambda i: (i, 0)),
            pl.BlockSpec((tm, 1), lambda i: (i, 0)),
            pl.BlockSpec((1, D), lambda i: (0, 0)),
            pl.BlockSpec((1, D), lambda i: (0, 0)),
            pl.BlockSpec((D, F), lambda i: (0, 0)),
            pl.BlockSpec((1, F), lambda i: (0, 0)),
            pl.BlockSpec((F, D), lambda i: (0, 0)),
            pl.BlockSpec((1, D), lambda i: (0, 0)),
        ],
        out_specs=pl.BlockSpec((tm, D), lambda i: (i, 0)),
        out_shape=jax.ShapeDtypeStruct((M, D), jnp.float32),
        compiler_params=_cparams(),
    )(x, mcol, lp["ln2_g"], lp["ln2_b"],
      lp["ff1_w"].astype(jnp.bfloat16), lp["ff1_b"],
      lp["ff2_w"].astype(jnp.bfloat16), lp["ff2_b"])


def _out_head_kernel(x_ref, m_ref, g_ref, bln_ref, w_ref, b_ref, o_ref):
    h = _layernorm(x_ref[...], g_ref[...], bln_ref[...])
    y = jnp.dot(h.astype(jnp.bfloat16), w_ref[...],
                preferred_element_type=jnp.float32) + b_ref[...]
    o_ref[...] = y * m_ref[...]


def output_head(x, g, bln, w, b, mcol):
    M, D = x.shape
    N = w.shape[1]
    Np = ((N + 127) // 128) * 128        # lane-dense store; slice back outside
    w_p = jnp.zeros((D, Np), jnp.float32).at[:, :N].set(w).astype(jnp.bfloat16)
    b_p = jnp.zeros((1, Np), jnp.float32).at[:, :N].set(b)
    tm = _row_tile(M)
    return pl.pallas_call(
        _out_head_kernel,
        grid=(M // tm,),
        in_specs=[
            pl.BlockSpec((tm, D), lambda i: (i, 0)),
            pl.BlockSpec((tm, 1), lambda i: (i, 0)),
            pl.BlockSpec((1, D), lambda i: (0, 0)),
            pl.BlockSpec((1, D), lambda i: (0, 0)),
            pl.BlockSpec((D, Np), lambda i: (0, 0)),
            pl.BlockSpec((1, Np), lambda i: (0, 0)),
        ],
        out_specs=pl.BlockSpec((tm, Np), lambda i: (i, 0)),
        out_shape=jax.ShapeDtypeStruct((M, Np), jnp.float32),
        compiler_params=_cparams(),
    )(x, mcol, g, bln, w_p, b_p)


def _attn_impl(x_ref, mcol_ref, mrow_ref, g_ref, bln_ref,
               wqk_ref, bqk_ref, wv_ref, bv_ref, wo_ref, bo_ref,
               out_ref, score_ref, n_heads, d_qk, d_v):
    bf16, f32 = jnp.bfloat16, jnp.float32
    x = x_ref[...]                                    # (E, D) f32 residual in
    mcol = mcol_ref[...]                              # (E, 1) {0,1}
    # LN1 (Apply -> re-mask): padded rows become exactly 0, matching reference.
    h = _layernorm(x, g_ref[...], bln_ref[...]) * mcol
    hb = h.astype(bf16)
    # Fused all-head Q|K and V projections (one MXU pass each, bf16 operands).
    qk = jnp.dot(hb, wqk_ref[...], preferred_element_type=f32) + bqk_ref[...]
    v = (jnp.dot(hb, wv_ref[...], preferred_element_type=f32) + bv_ref[...]) * mcol
    # Additive key mask (equivalent to masked_fill(~mask, -1e9) after softmax);
    # scale folded into Q.
    bias = (mrow_ref[...] - 1.0) * 1e9                # (1, E)
    scale = 1.0 / math.sqrt(d_qk)
    koff = n_heads * d_qk
    E = x.shape[0]
    attn_out = None
    for hh in range(n_heads):                         # static unroll over heads
        q = qk[:, hh * d_qk:(hh + 1) * d_qk] * scale
        k = qk[:, koff + hh * d_qk:koff + (hh + 1) * d_qk]
        s = jax.lax.dot_general(q.astype(bf16), k.astype(bf16),
                                (((1,), (1,)), ((), ())),
                                preferred_element_type=f32) + bias
        s = s - jnp.max(s, axis=-1, keepdims=True)
        p = jnp.exp(s)
        p = p * pl.reciprocal(jnp.sum(p, axis=-1, keepdims=True), approx=True)
        if score_ref is not None:
            score_ref[hh * E:(hh + 1) * E, :] = p     # packed [H*E, E] block
        ctx = jnp.dot(p.astype(bf16),
                      v[:, hh * d_v:(hh + 1) * d_v].astype(bf16),
                      preferred_element_type=f32)
        part = jnp.dot(ctx.astype(bf16), wo_ref[hh * d_v:(hh + 1) * d_v, :],
                       preferred_element_type=f32)
        attn_out = part if attn_out is None else attn_out + part
    attn_out = (attn_out + bo_ref[...]) * mcol        # fc_out bias + Apply mask
    out_ref[...] = x + attn_out                       # residual Add


def _attn_kernel(x_ref, mcol_ref, mrow_ref, g_ref, bln_ref, wqk_ref, bqk_ref,
                 wv_ref, bv_ref, wo_ref, bo_ref, out_ref, *,
                 n_heads, d_qk, d_v):
    _attn_impl(x_ref, mcol_ref, mrow_ref, g_ref, bln_ref, wqk_ref, bqk_ref,
               wv_ref, bv_ref, wo_ref, bo_ref, out_ref, None,
               n_heads, d_qk, d_v)


def _attn_kernel_score(x_ref, mcol_ref, mrow_ref, g_ref, bln_ref, wqk_ref,
                       bqk_ref, wv_ref, bv_ref, wo_ref, bo_ref, out_ref,
                       score_ref, *, n_heads, d_qk, d_v):
    _attn_impl(x_ref, mcol_ref, mrow_ref, g_ref, bln_ref, wqk_ref, bqk_ref,
               wv_ref, bv_ref, wo_ref, bo_ref, out_ref, score_ref,
               n_heads, d_qk, d_v)


def attn_block(x, lp, mcol, mrow, B, E, d_qk, d_v, with_score):
    M, D = x.shape
    H = lp["n_heads"]
    in_specs = [
        pl.BlockSpec((E, D), lambda b: (b, 0)),              # residual rows of batch b
        pl.BlockSpec((E, 1), lambda b: (b, 0)),              # row (value) mask
        pl.BlockSpec((None, 1, E), lambda b: (b, 0, 0)),     # key mask
        pl.BlockSpec((1, D), lambda b: (0, 0)),              # ln1 gamma
        pl.BlockSpec((1, D), lambda b: (0, 0)),              # ln1 beta
        pl.BlockSpec((D, 2 * H * d_qk), lambda b: (0, 0)),   # W_qk (resident)
        pl.BlockSpec((1, 2 * H * d_qk), lambda b: (0, 0)),
        pl.BlockSpec((D, H * d_v), lambda b: (0, 0)),        # W_v
        pl.BlockSpec((1, H * d_v), lambda b: (0, 0)),
        pl.BlockSpec((H * d_v, D), lambda b: (0, 0)),        # W_out
        pl.BlockSpec((1, D), lambda b: (0, 0)),
    ]
    out_specs = [pl.BlockSpec((E, D), lambda b: (b, 0))]
    out_shape = [jax.ShapeDtypeStruct((M, D), jnp.float32)]
    if with_score:
        kern = functools.partial(_attn_kernel_score, n_heads=H, d_qk=d_qk, d_v=d_v)
        out_specs.append(pl.BlockSpec((None, H * E, E), lambda b: (b, 0, 0)))
        out_shape.append(jax.ShapeDtypeStruct((B, H * E, E), jnp.float32))
    else:
        kern = functools.partial(_attn_kernel, n_heads=H, d_qk=d_qk, d_v=d_v)
    res = pl.pallas_call(
        kern,
        grid=(B,),
        in_specs=in_specs,
        out_specs=out_specs,
        out_shape=out_shape,
        compiler_params=_cparams(),
    )(x, mcol, mrow, lp["ln1_g"], lp["ln1_b"],
      lp["fc1_w"].astype(jnp.bfloat16), lp["fc1_b"],
      lp["fcv_w"].astype(jnp.bfloat16), lp["fcv_b"],
      lp["fco_w"].astype(jnp.bfloat16), lp["fco_b"])
    if with_score:
        return res[0], res[1]
    return res[0], None


# ----------------------------- parameters ---------------------------------

def _init_linear(key, fan_in, fan_out):
    # nn.Linear default: kaiming_uniform(a=sqrt(5)) == U(-1/sqrt(fan_in), 1/sqrt(fan_in))
    kw, kb = jax.random.split(key)
    bound = 1.0 / math.sqrt(fan_in)
    w = jax.random.uniform(kw, (fan_in, fan_out), jnp.float32, -bound, bound)
    b = jax.random.uniform(kb, (1, fan_out), jnp.float32, -bound, bound)
    return w, b


def init_encoder_params(key, n_layers, dim_in, dim_out, dim_hidden,
                        dim_qk, dim_v, dim_ff, n_heads, last_layer_n_heads):
    assert last_layer_n_heads >= 16
    params = {"dim_qk": dim_qk, "dim_v": dim_v}
    key, k = jax.random.split(key)
    params["in_w"], params["in_b"] = _init_linear(k, dim_in, dim_hidden)
    layers = []
    for H in [n_heads] * n_layers + [last_layer_n_heads]:
        lp = {"n_heads": H,
              "ln1_g": jnp.ones((1, dim_hidden), jnp.float32),
              "ln1_b": jnp.zeros((1, dim_hidden), jnp.float32),
              "ln2_g": jnp.ones((1, dim_hidden), jnp.float32),
              "ln2_b": jnp.zeros((1, dim_hidden), jnp.float32)}
        key, k = jax.random.split(key)
        lp["fc1_w"], lp["fc1_b"] = _init_linear(k, dim_hidden, 2 * H * dim_qk)
        key, k = jax.random.split(key)
        lp["fcv_w"], lp["fcv_b"] = _init_linear(k, dim_hidden, H * dim_v)
        key, k = jax.random.split(key)
        lp["fco_w"], lp["fco_b"] = _init_linear(k, H * dim_v, dim_hidden)
        key, k = jax.random.split(key)
        lp["ff1_w"], lp["ff1_b"] = _init_linear(k, dim_hidden, dim_ff)
        key, k = jax.random.split(key)
        lp["ff2_w"], lp["ff2_b"] = _init_linear(k, dim_ff, dim_hidden)
        layers.append(lp)
    params["layers"] = layers
    params["out_ln_g"] = jnp.ones((1, dim_hidden), jnp.float32)
    params["out_ln_b"] = jnp.zeros((1, dim_hidden), jnp.float32)
    key, k = jax.random.split(key)
    params["out_w"], params["out_b"] = _init_linear(k, dim_hidden, dim_out)
    return params


# ----------------------------- forward pass -------------------------------

def encoder_forward(values, node_mask, params):
    """values: [B, E, dim_in], node_mask: [B, E] bool. Returns (attn_score, out)."""
    B, E, _ = values.shape
    d_qk, d_v = params["dim_qk"], params["dim_v"]
    maskf = node_mask.astype(jnp.float32)
    mcol = maskf.reshape(B * E, 1)          # per-row {0,1} mask (value masking)
    mrow = maskf.reshape(B, 1, E)           # per-batch key mask (attention)
    # input: zero-mask (Batch.__init__) -> Linear (+Dropout p=0) -> mask; fused
    x = input_linear(values.reshape(B * E, -1), params["in_w"], params["in_b"], mcol)
    attn_score = None
    n_total = len(params["layers"])
    for li, lp in enumerate(params["layers"]):
        with_score = li == n_total - 1      # only the last layer returns scores
        x, score = attn_block(x, lp, mcol, mrow, B, E, d_qk, d_v, with_score)
        x = ffn_block(x, lp, mcol)
        if with_score:
            H = lp["n_heads"]
            attn_score = score.reshape(B, H, E, E)
    out = output_head(x, params["out_ln_g"], params["out_ln_b"],
                      params["out_w"], params["out_b"], mcol)
    dim_out = params["out_w"].shape[1]
    return attn_score, out[:, :dim_out].reshape(B, E, dim_out)


# ----------------------------- main ----------------------------------------

if __name__ == "__main__":
    B, E = 2, 8
    dim_in, dim_out, dim_hidden = 16, 8, 32
    dim_qk, dim_v, dim_ff = 16, 16, 64
    n_layers, n_heads, last_layer_n_heads = 1, 4, 16

    key = jax.random.PRNGKey(0)
    key, kv, kp = jax.random.split(key, 3)
    values = jax.random.normal(kv, (B, E, dim_in), jnp.float32)
    n_nodes = jnp.array([8, 5], dtype=jnp.int32)
    node_mask = jnp.arange(E)[None, :] < n_nodes[:, None]          # get_mask

    params = init_encoder_params(kp, n_layers, dim_in, dim_out, dim_hidden,
                                 dim_qk, dim_v, dim_ff, n_heads,
                                 last_layer_n_heads)

    fwd = jax.jit(lambda v, m: encoder_forward(v, m, params))
    attn_score, out = fwd(values, node_mask)
    jax.block_until_ready((attn_score, out))
    assert attn_score.shape == (B, last_layer_n_heads, E, E)
    assert out.shape == (B, E, dim_out)
    print("KERNEL_OK")
</pallas_src>

<mosaic_0001>
module attributes {stable_mosaic.version = 11 : i64} {
  func.func @_input_kernel(%arg0: i32, %arg1: memref<16x16xf32, #tpu.memory_space<vmem>>, %arg2: memref<16x1xf32, #tpu.memory_space<vmem>>, %arg3: memref<16x32xbf16, #tpu.memory_space<vmem>>, %arg4: memref<1x32xf32, #tpu.memory_space<vmem>>, %arg5: memref<16x32xf32, #tpu.memory_space<vmem>>) attributes {dimension_semantics = [#tpu.dimension_semantics<parallel>], iteration_bounds = array<i64: 1>, scalar_prefetch = 0 : i64, scratch_operands = 0 : i64, tpu.core_type = #tpu.core_type<tc>, window_params = [{transform_indices = @transform_0, window_bounds = array<i64: 16, 16>}, {transform_indices = @transform_1, window_bounds = array<i64: 16, 1>}, {pipeline_mode = #tpu.pipeline_mode<synchronous>, transform_indices = @transform_2, window_bounds = array<i64: 16, 32>}, {pipeline_mode = #tpu.pipeline_mode<synchronous>, transform_indices = @transform_3, window_bounds = array<i64: 1, 32>}, {transform_indices = @transform_4, window_bounds = array<i64: 16, 32>}]} {
    %c0 = arith.constant 0 : index
    %c0_0 = arith.constant 0 : index
    %0 = vector.load %arg2[%c0, %c0_0] : memref<16x1xf32, #tpu.memory_space<vmem>>, vector<16x1xf32>
    %c0_1 = arith.constant 0 : index
    %c0_2 = arith.constant 0 : index
    %1 = vector.load %arg1[%c0_1, %c0_2] : memref<16x16xf32, #tpu.memory_space<vmem>>, vector<16x16xf32>
    %2 = vector.broadcast %0 : vector<16x1xf32> to vector<16x16xf32>
    %3 = arith.mulf %1, %2 : vector<16x16xf32>
    %4 = arith.truncf %3 : vector<16x16xf32> to vector<16x16xbf16>
    %c0_3 = arith.constant 0 : index
    %c0_4 = arith.constant 0 : index
    %5 = vector.load %arg3[%c0_3, %c0_4] : memref<16x32xbf16, #tpu.memory_space<vmem>>, vector<16x32xbf16>
    %cst = arith.constant dense<0.000000e+00> : vector<16x32xf32>
    %6 = tpu.matmul %4, %5, %cst {dimension_numbers = #tpu.dot_dimension_numbers<[1], [0], [0], [1], [0, 0, 1, 1], [], []>} : vector<16x16xbf16>, vector<16x32xbf16>, vector<16x32xf32> -> vector<16x32xf32>
    %c0_5 = arith.constant 0 : index
    %c0_6 = arith.constant 0 : index
    %7 = vector.load %arg4[%c0_5, %c0_6] : memref<1x32xf32, #tpu.memory_space<vmem>>, vector<1x32xf32>
    %8 = vector.broadcast %7 : vector<1x32xf32> to vector<16x32xf32>
    %9 = arith.addf %6, %8 : vector<16x32xf32>
    %10 = vector.broadcast %0 : vector<16x1xf32> to vector<16x32xf32>
    %11 = arith.mulf %9, %10 : vector<16x32xf32>
    %c0_7 = arith.constant 0 : index
    %c0_8 = arith.constant 0 : index
    %12 = vector.load %arg5[%c0_7, %c0_8] : memref<16x32xf32, #tpu.memory_space<vmem>>, vector<16x32xf32>
    tpu.vector_store %arg5[%c0_7, %c0_8], %11 {strides = array<i32>} : memref<16x32xf32, #tpu.memory_space<vmem>>, vector<16x32xf32>,
    return
  }
  func.func @transform_0(%arg0: i32) -> (i32, i32) {
    %c0_i32 = arith.constant 0 : i32
    %c0_i32_0 = arith.constant 0 : i32
    return %arg0, %c0_i32 : i32, i32
  }
  func.func @transform_1(%arg0: i32) -> (i32, i32) {
    %c0_i32 = arith.constant 0 : i32
    %c0_i32_0 = arith.constant 0 : i32
    return %arg0, %c0_i32 : i32, i32
  }
  func.func @transform_2(%arg0: i32) -> (i32, i32) {
    %c0_i32 = arith.constant 0 : i32
    %c0_i32_0 = arith.constant 0 : i32
    %c0_i32_1 = arith.constant 0 : i32
    return %c0_i32, %c0_i32_0 : i32, i32
  }
  func.func @transform_3(%arg0: i32) -> (i32, i32) {
    %c0_i32 = arith.constant 0 : i32
    %c0_i32_0 = arith.constant 0 : i32
    %c0_i32_1 = arith.constant 0 : i32
    return %c0_i32, %c0_i32_0 : i32, i32
  }
  func.func @transform_4(%arg0: i32) -> (i32, i32) {
    %c0_i32 = arith.constant 0 : i32
    %c0_i32_0 = arith.constant 0 : i32
    return %arg0, %c0_i32 : i32, i32
  }
}

module attributes {stable_mosaic.version = 11 : i64} {
  func.func @_ffn_kernel(%arg0: i32, %arg1: memref<16x32xf32, #tpu.memory_space<vmem>>, %arg2: memref<16x1xf32, #tpu.memory_space<vmem>>, %arg3: memref<1x32xf32, #tpu.memory_space<vmem>>, %arg4: memref<1x32xf32, #tpu.memory_space<vmem>>, %arg5: memref<32x64xbf16, #tpu.memory_space<vmem>>, %arg6: memref<1x64xf32, #tpu.memory_space<vmem>>, %arg7: memref<64x32xbf16, #tpu.memory_space<vmem>>, %arg8: memref<1x32xf32, #tpu.memory_space<vmem>>, %arg9: memref<16x32xf32, #tpu.memory_space<vmem>>) attributes {dimension_semantics = [#tpu.dimension_semantics<parallel>], iteration_bounds = array<i64: 1>, scalar_prefetch = 0 : i64, scratch_operands = 0 : i64, tpu.core_type = #tpu.core_type<tc>, window_params = [{transform_indices = @transform_0, window_bounds = array<i64: 16, 32>}, {transform_indices = @transform_1, window_bounds = array<i64: 16, 1>}, {pipeline_mode = #tpu.pipeline_mode<synchronous>, transform_indices = @transform_2, window_bounds = array<i64: 1, 32>}, {pipeline_mode = #tpu.pipeline_mode<synchronous>, transform_indices = @transform_3, window_bounds = array<i64: 1, 32>}, {pipeline_mode = #tpu.pipeline_mode<synchronous>, transform_indices = @transform_4, window_bounds = array<i64: 32, 64>}, {pipeline_mode = #tpu.pipeline_mode<synchronous>, transform_indices = @transform_5, window_bounds = array<i64: 1, 64>}, {pipeline_mode = #tpu.pipeline_mode<synchronous>, transform_indices = @transform_6, window_bounds = array<i64: 64, 32>}, {pipeline_mode = #tpu.pipeline_mode<synchronous>, transform_indices = @transform_7, window_bounds = array<i64: 1, 32>}, {transform_indices = @transform_8, window_bounds = array<i64: 16, 32>}]} {
    %c0 = arith.constant 0 : index
    %c0_0 = arith.constant 0 : index
    %0 = vector.load %arg1[%c0, %c0_0] : memref<16x32xf32, #tpu.memory_space<vmem>>, vector<16x32xf32>
    %c0_1 = arith.constant 0 : index
    %c0_2 = arith.constant 0 : index
    %1 = vector.load %arg3[%c0_1, %c0_2] : memref<1x32xf32, #tpu.memory_space<vmem>>, vector<1x32xf32>
    %c0_3 = arith.constant 0 : index
    %c0_4 = arith.constant 0 : index
    %2 = vector.load %arg4[%c0_3, %c0_4] : memref<1x32xf32, #tpu.memory_space<vmem>>, vector<1x32xf32>
    %cst = arith.constant dense<0.000000e+00> : vector<16xf32>
    %3 = vector.multi_reduction <add>, %0, %cst [1] : vector<16x32xf32> to vector<16xf32>
    %4 = vector.shape_cast %3 : vector<16xf32> to vector<16x1xf32>
    %cst_5 = arith.constant 3.200000e+01 : f32
    %5 = vector.broadcast %cst_5 : f32 to vector<16x1xf32>
    %6 = arith.divf %4, %5 : vector<16x1xf32>
    %7 = vector.broadcast %6 : vector<16x1xf32> to vector<16x32xf32>
    %8 = arith.subf %0, %7 : vector<16x32xf32>
    %9 = arith.mulf %8, %8 : vector<16x32xf32>
    %cst_6 = arith.constant dense<0.000000e+00> : vector<16xf32>
    %10 = vector.multi_reduction <add>, %9, %cst_6 [1] : vector<16x32xf32> to vector<16xf32>
    %11 = vector.shape_cast %10 : vector<16xf32> to vector<16x1xf32>
    %cst_7 = arith.constant 3.200000e+01 : f32
    %12 = vector.broadcast %cst_7 : f32 to vector<16x1xf32>
    %13 = arith.divf %11, %12 : vector<16x1xf32>
    %cst_8 = arith.constant 9.99999974E-6 : f32
    %14 = vector.broadcast %cst_8 : f32 to vector<16x1xf32>
    %15 = arith.addf %13, %14 : vector<16x1xf32>
    %16 = math.rsqrt %15 : vector<16x1xf32>
    %17 = vector.broadcast %16 : vector<16x1xf32> to vector<16x32xf32>
    %18 = arith.mulf %8, %17 : vector<16x32xf32>
    %19 = vector.broadcast %1 : vector<1x32xf32> to vector<16x32xf32>
    %20 = arith.mulf %18, %19 : vector<16x32xf32>
    %21 = vector.broadcast %2 : vector<1x32xf32> to vector<16x32xf32>
    %22 = arith.addf %20, %21 : vector<16x32xf32>
    %23 = arith.truncf %22 : vector<16x32xf32> to vector<16x32xbf16>
    %c0_9 = arith.constant 0 : index
    %c0_10 = arith.constant 0 : index
    %24 = vector.load %arg5[%c0_9, %c0_10] : memref<32x64xbf16, #tpu.memory_space<vmem>>, vector<32x64xbf16>
    %cst_11 = arith.constant dense<0.000000e+00> : vector<16x64xf32>
    %25 = tpu.matmul %23, %24, %cst_11 {dimension_numbers = #tpu.dot_dimension_numbers<[1], [0], [0], [1], [0, 0, 1, 1], [], []>} : vector<16x32xbf16>, vector<32x64xbf16>, vector<16x64xf32> -> vector<16x64xf32>
    %c0_12 = arith.constant 0 : index
    %c0_13 = arith.constant 0 : index
    %26 = vector.load %arg6[%c0_12, %c0_13] : memref<1x64xf32, #tpu.memory_space<vmem>>, vector<1x64xf32>
    %27 = vector.broadcast %26 : vector<1x64xf32> to vector<16x64xf32>
    %28 = arith.addf %25, %27 : vector<16x64xf32>
    %cst_14 = arith.constant 0.707106769 : f32
    %29 = vector.broadcast %cst_14 : f32 to vector<16x64xf32>
    %30 = arith.mulf %28, %29 : vector<16x64xf32>
    %31 = math.absf %30 : vector<16x64xf32>
    %cst_15 = arith.constant 0.327591091 : f32
    %32 = vector.broadcast %cst_15 : f32 to vector<16x64xf32>
    %33 = arith.mulf %32, %31 : vector<16x64xf32>
    %cst_16 = arith.constant 1.000000e+00 : f32
    %34 = vector.broadcast %cst_16 : f32 to vector<16x64xf32>
    %35 = arith.addf %34, %33 : vector<16x64xf32>
    %cst_17 = arith.constant 1.000000e+00 : f32
    %36 = vector.broadcast %cst_17 : f32 to vector<16x64xf32>
    %37 = arith.divf %36, %35 : vector<16x64xf32>
    %cst_18 = arith.constant 1.06140542 : f32
    %38 = vector.broadcast %cst_18 : f32 to vector<16x64xf32>
    %39 = arith.mulf %38, %37 : vector<16x64xf32>
    %cst_19 = arith.constant 1.45315206 : f32
    %40 = vector.broadcast %cst_19 : f32 to vector<16x64xf32>
    %41 = arith.subf %39, %40 : vector<16x64xf32>
    %42 = arith.mulf %41, %37 : vector<16x64xf32>
    %cst_20 = arith.constant 1.42141378 : f32
    %43 = vector.broadcast %cst_20 : f32 to vector<16x64xf32>
    %44 = arith.addf %42, %43 : vector<16x64xf32>
    %45 = arith.mulf %44, %37 : vector<16x64xf32>
    %cst_21 = arith.constant 0.284496725 : f32
    %46 = vector.broadcast %cst_21 : f32 to vector<16x64xf32>
    %47 = arith.subf %45, %46 : vector<16x64xf32>
    %48 = arith.mulf %47, %37 : vector<16x64xf32>
    %cst_22 = arith.constant 0.254829586 : f32
    %49 = vector.broadcast %cst_22 : f32 to vector<16x64xf32>
    %50 = arith.addf %48, %49 : vector<16x64xf32>
    %51 = arith.mulf %50, %37 : vector<16x64xf32>
    %cst_23 = arith.constant 0.000000e+00 : f32
    %52 = vector.broadcast %cst_23 : f32 to vector<16x64xf32>
    %53 = arith.subf %52, %31 : vector<16x64xf32>
    %54 = arith.mulf %53, %31 : vector<16x64xf32>
    %55 = math.exp %54 : vector<16x64xf32>
    %56 = arith.mulf %51, %55 : vector<16x64xf32>
    %cst_24 = arith.constant 1.000000e+00 : f32
    %57 = vector.broadcast %cst_24 : f32 to vector<16x64xf32>
    %58 = arith.subf %57, %56 : vector<16x64xf32>
    %cst_25 = arith.constant 0.000000e+00 : f32
    %59 = vector.broadcast %cst_25 : f32 to vector<16x64xf32>
    %60 = arith.cmpf oge, %30, %59 : vector<16x64xf32>
    %cst_26 = arith.constant 0.000000e+00 : f32
    %61 = vector.broadcast %cst_26 : f32 to vector<16x64xf32>
    %62 = arith.subf %61, %58 : vector<16x64xf32>
    %63 = arith.select %60, %58, %62 : vector<16x64xi1>, vector<16x64xf32>
    %cst_27 = arith.constant 5.000000e-01 : f32
    %64 = vector.broadcast %cst_27 : f32 to vector<16x64xf32>
    %65 = arith.mulf %64, %28 : vector<16x64xf32>
    %cst_28 = arith.constant 1.000000e+00 : f32
    %66 = vector.broadcast %cst_28 : f32 to vector<16x64xf32>
    %67 = arith.addf %66, %63 : vector<16x64xf32>
    %68 = arith.mulf %65, %67 : vector<16x64xf32>
    %69 = arith.truncf %68 : vector<16x64xf32> to vector<16x64xbf16>
    %c0_29 = arith.constant 0 : index
    %c0_30 = arith.constant 0 : index
    %70 = vector.load %arg7[%c0_29, %c0_30] : memref<64x32xbf16, #tpu.memory_space<vmem>>, vector<64x32xbf16>
    %cst_31 = arith.constant dense<0.000000e+00> : vector<16x32xf32>
    %71 = tpu.matmul %69, %70, %cst_31 {dimension_numbers = #tpu.dot_dimension_numbers<[1], [0], [0], [1], [0, 0, 1, 1], [], []>} : vector<16x64xbf16>, vector<64x32xbf16>, vector<16x32xf32> -> vector<16x32xf32>
    %c0_32 = arith.constant 0 : index
    %c0_33 = arith.constant 0 : index
    %72 = vector.load %arg8[%c0_32, %c0_33] : memref<1x32xf32, #tpu.memory_space<vmem>>, vector<1x32xf32>
    %73 = vector.broadcast %72 : vector<1x32xf32> to vector<16x32xf32>
    %74 = arith.addf %71, %73 : vector<16x32xf32>
    %c0_34 = arith.constant 0 : index
    %c0_35 = arith.constant 0 : index
    %75 = vector.load %arg2[%c0_34, %c0_35] : memref<16x1xf32, #tpu.memory_space<vmem>>, vector<16x1xf32>
    %76 = vector.broadcast %75 : vector<16x1xf32> to vector<16x32xf32>
    %77 = arith.mulf %74, %76 : vector<16x32xf32>
    %78 = arith.addf %0, %77 : vector<16x32xf32>
    %c0_36 = arith.constant 0 : index
    %c0_37 = arith.constant 0 : index
    %79 = vector.load %arg9[%c0_36, %c0_37] : memref<16x32xf32, #tpu.memory_space<vmem>>, vector<16x32xf32>
    tpu.vector_store %arg9[%c0_36, %c0_37], %78 {strides = array<i32>} : memref<16x32xf32, #tpu.memory_space<vmem>>, vector<16x32xf32>,
    return
  }
  func.func @transform_0(%arg0: i32) -> (i32, i32) {
    %c0_i32 = arith.constant 0 : i32
    %c0_i32_0 = arith.constant 0 : i32
    return %arg0, %c0_i32 : i32, i32
  }
  func.func @transform_1(%arg0: i32) -> (i32, i32) {
    %c0_i32 = arith.constant 0 : i32
    %c0_i32_0 = arith.constant 0 : i32
    return %arg0, %c0_i32 : i32, i32
  }
  func.func @transform_2(%arg0: i32) -> (i32, i32) {
    %c0_i32 = arith.constant 0 : i32
    %c0_i32_0 = arith.constant 0 : i32
    %c0_i32_1 = arith.constant 0 : i32
    return %c0_i32, %c0_i32_0 : i32, i32
  }
  func.func @transform_3(%arg0: i32) -> (i32, i32) {
    %c0_i32 = arith.constant 0 : i32
    %c0_i32_0 = arith.constant 0 : i32
    %c0_i32_1 = arith.constant 0 : i32
    return %c0_i32, %c0_i32_0 : i32, i32
  }
  func.func @transform_4(%arg0: i32) -> (i32, i32) {
    %c0_i32 = arith.constant 0 : i32
    %c0_i32_0 = arith.constant 0 : i32
    %c0_i32_1 = arith.constant 0 : i32
    return %c0_i32, %c0_i32_0 : i32, i32
  }
  func.func @transform_5(%arg0: i32) -> (i32, i32) {
    %c0_i32 = arith.constant 0 : i32
    %c0_i32_0 = arith.constant 0 : i32
    %c0_i32_1 = arith.constant 0 : i32
    return %c0_i32, %c0_i32_0 : i32, i32
  }
  func.func @transform_6(%arg0: i32) -> (i32, i32) {
    %c0_i32 = arith.constant 0 : i32
    %c0_i32_0 = arith.constant 0 : i32
    %c0_i32_1 = arith.constant 0 : i32
    return %c0_i32, %c0_i32_0 : i32, i32
  }
  func.func @transform_7(%arg0: i32) -> (i32, i32) {
    %c0_i32 = arith.constant 0 : i32
    %c0_i32_0 = arith.constant 0 : i32
    %c0_i32_1 = arith.constant 0 : i32
    return %c0_i32, %c0_i32_0 : i32, i32
  }
  func.func @transform_8(%arg0: i32) -> (i32, i32) {
    %c0_i32 = arith.constant 0 : i32
    %c0_i32_0 = arith.constant 0 : i32
    return %arg0, %c0_i32 : i32, i32
  }
}

module attributes {stable_mosaic.version = 11 : i64} {
  func.func @_attn_kernel(%arg0: i32, %arg1: memref<8x32xf32, #tpu.memory_space<vmem>>, %arg2: memref<8x1xf32, #tpu.memory_space<vmem>>, %arg3: memref<1x1x8xf32, #tpu.memory_space<vmem>>, %arg4: memref<1x32xf32, #tpu.memory_space<vmem>>, %arg5: memref<1x32xf32, #tpu.memory_space<vmem>>, %arg6: memref<32x128xbf16, #tpu.memory_space<vmem>>, %arg7: memref<1x128xf32, #tpu.memory_space<vmem>>, %arg8: memref<32x64xbf16, #tpu.memory_space<vmem>>, %arg9: memref<1x64xf32, #tpu.memory_space<vmem>>, %arg10: memref<64x32xbf16, #tpu.memory_space<vmem>>, %arg11: memref<1x32xf32, #tpu.memory_space<vmem>>, %arg12: memref<8x32xf32, #tpu.memory_space<vmem>>) attributes {dimension_semantics = [#tpu.dimension_semantics<parallel>], iteration_bounds = array<i64: 2>, scalar_prefetch = 0 : i64, scratch_operands = 0 : i64, tpu.core_type = #tpu.core_type<tc>, window_params = [{transform_indices = @transform_0, window_bounds = array<i64: 8, 32>}, {transform_indices = @transform_1, window_bounds = array<i64: 8, 1>}, {transform_indices = @transform_2, window_bounds = array<i64: 1, 1, 8>}, {pipeline_mode = #tpu.pipeline_mode<synchronous>, transform_indices = @transform_3, window_bounds = array<i64: 1, 32>}, {pipeline_mode = #tpu.pipeline_mode<synchronous>, transform_indices = @transform_4, window_bounds = array<i64: 1, 32>}, {pipeline_mode = #tpu.pipeline_mode<synchronous>, transform_indices = @transform_5, window_bounds = array<i64: 32, 128>}, {pipeline_mode = #tpu.pipeline_mode<synchronous>, transform_indices = @transform_6, window_bounds = array<i64: 1, 128>}, {pipeline_mode = #tpu.pipeline_mode<synchronous>, transform_indices = @transform_7, window_bounds = array<i64: 32, 64>}, {pipeline_mode = #tpu.pipeline_mode<synchronous>, transform_indices = @transform_8, window_bounds = array<i64: 1, 64>}, {pipeline_mode = #tpu.pipeline_mode<synchronous>, transform_indices = @transform_9, window_bounds = array<i64: 64, 32>}, {pipeline_mode = #tpu.pipeline_mode<synchronous>, transform_indices = @transform_10, window_bounds = array<i64: 1, 32>}, {transform_indices = @transform_11, window_bounds = array<i64: 8, 32>}]} {
    %c0 = arith.constant 0 : index
    %c0_0 = arith.constant 0 : index
    %0 = vector.load %arg1[%c0, %c0_0] : memref<8x32xf32, #tpu.memory_space<vmem>>, vector<8x32xf32>
    %c0_1 = arith.constant 0 : index
    %c0_2 = arith.constant 0 : index
    %1 = vector.load %arg2[%c0_1, %c0_2] : memref<8x1xf32, #tpu.memory_space<vmem>>, vector<8x1xf32>
    %c0_3 = arith.constant 0 : index
    %c0_4 = arith.constant 0 : index
    %2 = vector.load %arg4[%c0_3, %c0_4] : memref<1x32xf32, #tpu.memory_space<vmem>>, vector<1x32xf32>
    %c0_5 = arith.constant 0 : index
    %c0_6 = arith.constant 0 : index
    %3 = vector.load %arg5[%c0_5, %c0_6] : memref<1x32xf32, #tpu.memory_space<vmem>>, vector<1x32xf32>
    %cst = arith.constant dense<0.000000e+00> : vector<8xf32>
    %4 = vector.multi_reduction <add>, %0, %cst [1] : vector<8x32xf32> to vector<8xf32>
    %5 = vector.shape_cast %4 : vector<8xf32> to vector<8x1xf32>
    %cst_7 = arith.constant 3.200000e+01 : f32
    %6 = vector.broadcast %cst_7 : f32 to vector<8x1xf32>
    %7 = arith.divf %5, %6 : vector<8x1xf32>
    %8 = vector.broadcast %7 : vector<8x1xf32> to vector<8x32xf32>
    %9 = arith.subf %0, %8 : vector<8x32xf32>
    %10 = arith.mulf %9, %9 : vector<8x32xf32>
    %cst_8 = arith.constant dense<0.000000e+00> : vector<8xf32>
    %11 = vector.multi_reduction <add>, %10, %cst_8 [1] : vector<8x32xf32> to vector<8xf32>
    %12 = vector.shape_cast %11 : vector<8xf32> to vector<8x1xf32>
    %cst_9 = arith.constant 3.200000e+01 : f32
    %13 = vector.broadcast %cst_9 : f32 to vector<8x1xf32>
    %14 = arith.divf %12, %13 : vector<8x1xf32>
    %cst_10 = arith.constant 9.99999974E-6 : f32
    %15 = vector.broadcast %cst_10 : f32 to vector<8x1xf32>
    %16 = arith.addf %14, %15 : vector<8x1xf32>
    %17 = math.rsqrt %16 : vector<8x1xf32>
    %18 = vector.broadcast %17 : vector<8x1xf32> to vector<8x32xf32>
    %19 = arith.mulf %9, %18 : vector<8x32xf32>
    %20 = vector.broadcast %2 : vector<1x32xf32> to vector<8x32xf32>
    %21 = arith.mulf %19, %20 : vector<8x32xf32>
    %22 = vector.broadcast %3 : vector<1x32xf32> to vector<8x32xf32>
    %23 = arith.addf %21, %22 : vector<8x32xf32>
    %24 = vector.broadcast %1 : vector<8x1xf32> to vector<8x32xf32>
    %25 = arith.mulf %23, %24 : vector<8x32xf32>
    %26 = arith.truncf %25 : vector<8x32xf32> to vector<8x32xbf16>
    %c0_11 = arith.constant 0 : index
    %c0_12 = arith.constant 0 : index
    %27 = vector.load %arg6[%c0_11, %c0_12] : memref<32x128xbf16, #tpu.memory_space<vmem>>, vector<32x128xbf16>
    %cst_13 = arith.constant dense<0.000000e+00> : vector<8x128xf32>
    %28 = tpu.matmul %26, %27, %cst_13 {dimension_numbers = #tpu.dot_dimension_numbers<[1], [0], [0], [1], [0, 0, 1, 1], [], []>} : vector<8x32xbf16>, vector<32x128xbf16>, vector<8x128xf32> -> vector<8x128xf32>
    %c0_14 = arith.constant 0 : index
    %c0_15 = arith.constant 0 : index
    %29 = vector.load %arg7[%c0_14, %c0_15] : memref<1x128xf32, #tpu.memory_space<vmem>>, vector<1x128xf32>
    %30 = vector.broadcast %29 : vector<1x128xf32> to vector<8x128xf32>
    %31 = arith.addf %28, %30 : vector<8x128xf32>
    %c0_16 = arith.constant 0 : index
    %c0_17 = arith.constant 0 : index
    %32 = vector.load %arg8[%c0_16, %c0_17] : memref<32x64xbf16, #tpu.memory_space<vmem>>, vector<32x64xbf16>
    %cst_18 = arith.constant dense<0.000000e+00> : vector<8x64xf32>
    %33 = tpu.matmul %26, %32, %cst_18 {dimension_numbers = #tpu.dot_dimension_numbers<[1], [0], [0], [1], [0, 0, 1, 1], [], []>} : vector<8x32xbf16>, vector<32x64xbf16>, vector<8x64xf32> -> vector<8x64xf32>
    %c0_19 = arith.constant 0 : index
    %c0_20 = arith.constant 0 : index
    %34 = vector.load %arg9[%c0_19, %c0_20] : memref<1x64xf32, #tpu.memory_space<vmem>>, vector<1x64xf32>
    %35 = vector.broadcast %34 : vector<1x64xf32> to vector<8x64xf32>
    %36 = arith.addf %33, %35 : vector<8x64xf32>
    %37 = vector.broadcast %1 : vector<8x1xf32> to vector<8x64xf32>
    %38 = arith.mulf %36, %37 : vector<8x64xf32>
    %c0_21 = arith.constant 0 : index
    %c0_22 = arith.constant 0 : index
    %c0_23 = arith.constant 0 : index
    %39 = vector.load %arg3[%c0_21, %c0_22, %c0_23] : memref<1x1x8xf32, #tpu.memory_space<vmem>>, vector<1x1x8xf32>
    %40 = vector.shape_cast %39 : vector<1x1x8xf32> to vector<1x8xf32>
    %cst_24 = arith.constant 1.000000e+00 : f32
    %41 = vector.broadcast %cst_24 : f32 to vector<1x8xf32>
    %42 = arith.subf %40, %41 : vector<1x8xf32>
    %cst_25 = arith.constant 1.000000e+09 : f32
    %43 = vector.broadcast %cst_25 : f32 to vector<1x8xf32>
    %44 = arith.mulf %42, %43 : vector<1x8xf32>
    %45 = vector.extract_strided_slice %31 {offsets = [0, 0], sizes = [8, 16], strides = [1, 1]} : vector<8x128xf32> to vector<8x16xf32>
    %cst_26 = arith.constant 2.500000e-01 : f32
    %46 = vector.broadcast %cst_26 : f32 to vector<8x16xf32>
    %47 = arith.mulf %45, %46 : vector<8x16xf32>
    %48 = vector.extract_strided_slice %31 {offsets = [0, 64], sizes = [8, 16], strides = [1, 1]} : vector<8x128xf32> to vector<8x16xf32>
    %49 = arith.truncf %47 : vector<8x16xf32> to vector<8x16xbf16>
    %50 = arith.truncf %48 : vector<8x16xf32> to vector<8x16xbf16>
    %cst_27 = arith.constant dense<0.000000e+00> : vector<8x8xf32>
    %51 = tpu.matmul %49, %50, %cst_27 {dimension_numbers = #tpu.dot_dimension_numbers<[1], [1], [0], [0], [0, 0, 1, 0], [], []>} : vector<8x16xbf16>, vector<8x16xbf16>, vector<8x8xf32> -> vector<8x8xf32>
    %52 = vector.broadcast %44 : vector<1x8xf32> to vector<8x8xf32>
    %53 = arith.addf %51, %52 : vector<8x8xf32>
    %cst_28 = arith.constant dense<0xFF800000> : vector<8xf32>
    %54 = vector.multi_reduction <maximumf>, %53, %cst_28 [1] : vector<8x8xf32> to vector<8xf32>
    %55 = vector.shape_cast %54 : vector<8xf32> to vector<8x1xf32>
    %56 = vector.broadcast %55 : vector<8x1xf32> to vector<8x8xf32>
    %57 = arith.subf %53, %56 : vector<8x8xf32>
    %58 = math.exp %57 : vector<8x8xf32>
    %cst_29 = arith.constant dense<0.000000e+00> : vector<8xf32>
    %59 = vector.multi_reduction <add>, %58, %cst_29 [1] : vector<8x8xf32> to vector<8xf32>
    %60 = vector.shape_cast %59 : vector<8xf32> to vector<8x1xf32>
    %61 = tpu.reciprocal %60 {approx = true} : vector<8x1xf32> -> vector<8x1xf32>
    %62 = vector.broadcast %61 : vector<8x1xf32> to vector<8x8xf32>
    %63 = arith.mulf %58, %62 : vector<8x8xf32>
    %64 = arith.truncf %63 : vector<8x8xf32> to vector<8x8xbf16>
    %65 = vector.extract_strided_slice %38 {offsets = [0, 0], sizes = [8, 16], strides = [1, 1]} : vector<8x64xf32> to vector<8x16xf32>
    %66 = arith.truncf %65 : vector<8x16xf32> to vector<8x16xbf16>
    %cst_30 = arith.constant dense<0.000000e+00> : vector<8x16xf32>
    %67 = tpu.matmul %64, %66, %cst_30 {dimension_numbers = #tpu.dot_dimension_numbers<[1], [0], [0], [1], [0, 0, 1, 1], [], []>} : vector<8x8xbf16>, vector<8x16xbf16>, vector<8x16xf32> -> vector<8x16xf32>
    %68 = arith.truncf %67 : vector<8x16xf32> to vector<8x16xbf16>
    %c0_31 = arith.constant 0 : index
    %c0_32 = arith.constant 0 : index
    %69 = vector.load %arg10[%c0_31, %c0_32] : memref<64x32xbf16, #tpu.memory_space<vmem>>, vector<16x32xbf16>
    %cst_33 = arith.constant dense<0.000000e+00> : vector<8x32xf32>
    %70 = tpu.matmul %68, %69, %cst_33 {dimension_numbers = #tpu.dot_dimension_numbers<[1], [0], [0], [1], [0, 0, 1, 1], [], []>} : vector<8x16xbf16>, vector<16x32xbf16>, vector<8x32xf32> -> vector<8x32xf32>
    %71 = vector.extract_strided_slice %31 {offsets = [0, 16], sizes = [8, 16], strides = [1, 1]} : vector<8x128xf32> to vector<8x16xf32>
    %cst_34 = arith.constant 2.500000e-01 : f32
    %72 = vector.broadcast %cst_34 : f32 to vector<8x16xf32>
    %73 = arith.mulf %71, %72 : vector<8x16xf32>
    %74 = vector.extract_strided_slice %31 {offsets = [0, 80], sizes = [8, 16], strides = [1, 1]} : vector<8x128xf32> to vector<8x16xf32>
    %75 = arith.truncf %73 : vector<8x16xf32> to vector<8x16xbf16>
    %76 = arith.truncf %74 : vector<8x16xf32> to vector<8x16xbf16>
    %cst_35 = arith.constant dense<0.000000e+00> : vector<8x8xf32>
    %77 = tpu.matmul %75, %76, %cst_35 {dimension_numbers = #tpu.dot_dimension_numbers<[1], [1], [0], [0], [0, 0, 1, 0], [], []>} : vector<8x16xbf16>, vector<8x16xbf16>, vector<8x8xf32> -> vector<8x8xf32>
    %78 = vector.broadcast %44 : vector<1x8xf32> to vector<8x8xf32>
    %79 = arith.addf %77, %78 : vector<8x8xf32>
    %cst_36 = arith.constant dense<0xFF800000> : vector<8xf32>
    %80 = vector.multi_reduction <maximumf>, %79, %cst_36 [1] : vector<8x8xf32> to vector<8xf32>
    %81 = vector.shape_cast %80 : vector<8xf32> to vector<8x1xf32>
    %82 = vector.broadcast %81 : vector<8x1xf32> to vector<8x8xf32>
    %83 = arith.subf %79, %82 : vector<8x8xf32>
    %84 = math.exp %83 : vector<8x8xf32>
    %cst_37 = arith.constant dense<0.000000e+00> : vector<8xf32>
    %85 = vector.multi_reduction <add>, %84, %cst_37 [1] : vector<8x8xf32> to vector<8xf32>
    %86 = vector.shape_cast %85 : vector<8xf32> to vector<8x1xf32>
    %87 = tpu.reciprocal %86 {approx = true} : vector<8x1xf32> -> vector<8x1xf32>
    %88 = vector.broadcast %87 : vector<8x1xf32> to vector<8x8xf32>
    %89 = arith.mulf %84, %88 : vector<8x8xf32>
    %90 = arith.truncf %89 : vector<8x8xf32> to vector<8x8xbf16>
    %91 = vector.extract_strided_slice %38 {offsets = [0, 16], sizes = [8, 16], strides = [1, 1]} : vector<8x64xf32> to vector<8x16xf32>
    %92 = arith.truncf %91 : vector<8x16xf32> to vector<8x16xbf16>
    %cst_38 = arith.constant dense<0.000000e+00> : vector<8x16xf32>
    %93 = tpu.matmul %90, %92, %cst_38 {dimension_numbers = #tpu.dot_dimension_numbers<[1], [0], [0], [1], [0, 0, 1, 1], [], []>} : vector<8x8xbf16>, vector<8x16xbf16>, vector<8x16xf32> -> vector<8x16xf32>
    %94 = arith.truncf %93 : vector<8x16xf32> to vector<8x16xbf16>
    %c16 = arith.constant 16 : index
    %c0_39 = arith.constant 0 : index
    %95 = vector.load %arg10[%c16, %c0_39] : memref<64x32xbf16, #tpu.memory_space<vmem>>, vector<16x32xbf16>
    %cst_40 = arith.constant dense<0.000000e+00> : vector<8x32xf32>
    %96 = tpu.matmul %94, %95, %cst_40 {dimension_numbers = #tpu.dot_dimension_numbers<[1], [0], [0], [1], [0, 0, 1, 1], [], []>} : vector<8x16xbf16>, vector<16x32xbf16>, vector<8x32xf32> -> vector<8x32xf32>
    %97 = arith.addf %70, %96 : vector<8x32xf32>
    %98 = vector.extract_strided_slice %31 {offsets = [0, 32], sizes = [8, 16], strides = [1, 1]} : vector<8x128xf32> to vector<8x16xf32>
    %cst_41 = arith.constant 2.500000e-01 : f32
    %99 = vector.broadcast %cst_41 : f32 to vector<8x16xf32>
    %100 = arith.mulf %98, %99 : vector<8x16xf32>
    %101 = vector.extract_strided_slice %31 {offsets = [0, 96], sizes = [8, 16], strides = [1, 1]} : vector<8x128xf32> to vector<8x16xf32>
    %102 = arith.truncf %100 : vector<8x16xf32> to vector<8x16xbf16>
    %103 = arith.truncf %101 : vector<8x16xf32> to vector<8x16xbf16>
    %cst_42 = arith.constant dense<0.000000e+00> : vector<8x8xf32>
    %104 = tpu.matmul %102, %103, %cst_42 {dimension_numbers = #tpu.dot_dimension_numbers<[1], [1], [0], [0], [0, 0, 1, 0], [], []>} : vector<8x16xbf16>, vector<8x16xbf16>, vector<8x8xf32> -> vector<8x8xf32>
    %105 = vector.broadcast %44 : vector<1x8xf32> to vector<8x8xf32>
    %106 = arith.addf %104, %105 : vector<8x8xf32>
    %cst_43 = arith.constant dense<0xFF800000> : vector<8xf32>
    %107 = vector.multi_reduction <maximumf>, %106, %cst_43 [1] : vector<8x8xf32> to vector<8xf32>
    %108 = vector.shape_cast %107 : vector<8xf32> to vector<8x1xf32>
    %109 = vector.broadcast %108 : vector<8x1xf32> to vector<8x8xf32>
    %110 = arith.subf %106, %109 : vector<8x8xf32>
    %111 = math.exp %110 : vector<8x8xf32>
    %cst_44 = arith.constant dense<0.000000e+00> : vector<8xf32>
    %112 = vector.multi_reduction <add>, %111, %cst_44 [1] : vector<8x8xf32> to vector<8xf32>
    %113 = vector.shape_cast %112 : vector<8xf32> to vector<8x1xf32>
    %114 = tpu.reciprocal %113 {approx = true} : vector<8x1xf32> -> vector<8x1xf32>
    %115 = vector.broadcast %114 : vector<8x1xf32> to vector<8x8xf32>
    %116 = arith.mulf %111, %115 : vector<8x8xf32>
    %117 = arith.truncf %116 : vector<8x8xf32> to vector<8x8xbf16>
    %118 = vector.extract_strided_slice %38 {offsets = [0, 32], sizes = [8, 16], strides = [1, 1]} : vector<8x64xf32> to vector<8x16xf32>
    %119 = arith.truncf %118 : vector<8x16xf32> to vector<8x16xbf16>
    %cst_45 = arith.constant dense<0.000000e+00> : vector<8x16xf32>
    %120 = tpu.matmul %117, %119, %cst_45 {dimension_numbers = #tpu.dot_dimension_numbers<[1], [0], [0], [1], [0, 0, 1, 1], [], []>} : vector<8x8xbf16>, vector<8x16xbf16>, vector<8x16xf32> -> vector<8x16xf32>
    %121 = arith.truncf %120 : vector<8x16xf32> to vector<8x16xbf16>
    %c32 = arith.constant 32 : index
    %c0_46 = arith.constant 0 : index
    %122 = vector.load %arg10[%c32, %c0_46] : memref<64x32xbf16, #tpu.memory_space<vmem>>, vector<16x32xbf16>
    %cst_47 = arith.constant dense<0.000000e+00> : vector<8x32xf32>
    %123 = tpu.matmul %121, %122, %cst_47 {dimension_numbers = #tpu.dot_dimension_numbers<[1], [0], [0], [1], [0, 0, 1, 1], [], []>} : vector<8x16xbf16>, vector<16x32xbf16>, vector<8x32xf32> -> vector<8x32xf32>
    %124 = arith.addf %97, %123 : vector<8x32xf32>
    %125 = vector.extract_strided_slice %31 {offsets = [0, 48], sizes = [8, 16], strides = [1, 1]} : vector<8x128xf32> to vector<8x16xf32>
    %cst_48 = arith.constant 2.500000e-01 : f32
    %126 = vector.broadcast %cst_48 : f32 to vector<8x16xf32>
    %127 = arith.mulf %125, %126 : vector<8x16xf32>
    %128 = vector.extract_strided_slice %31 {offsets = [0, 112], sizes = [8, 16], strides = [1, 1]} : vector<8x128xf32> to vector<8x16xf32>
    %129 = arith.truncf %127 : vector<8x16xf32> to vector<8x16xbf16>
    %130 = arith.truncf %128 : vector<8x16xf32> to vector<8x16xbf16>
    %cst_49 = arith.constant dense<0.000000e+00> : vector<8x8xf32>
    %131 = tpu.matmul %129, %130, %cst_49 {dimension_numbers = #tpu.dot_dimension_numbers<[1], [1], [0], [0], [0, 0, 1, 0], [], []>} : vector<8x16xbf16>, vector<8x16xbf16>, vector<8x8xf32> -> vector<8x8xf32>
    %132 = vector.broadcast %44 : vector<1x8xf32> to vector<8x8xf32>
    %133 = arith.addf %131, %132 : vector<8x8xf32>
    %cst_50 = arith.constant dense<0xFF800000> : vector<8xf32>
    %134 = vector.multi_reduction <maximumf>, %133, %cst_50 [1] : vector<8x8xf32> to vector<8xf32>
    %135 = vector.shape_cast %134 : vector<8xf32> to vector<8x1xf32>
    %136 = vector.broadcast %135 : vector<8x1xf32> to vector<8x8xf32>
    %137 = arith.subf %133, %136 : vector<8x8xf32>
    %138 = math.exp %137 : vector<8x8xf32>
    %cst_51 = arith.constant dense<0.000000e+00> : vector<8xf32>
    %139 = vector.multi_reduction <add>, %138, %cst_51 [1] : vector<8x8xf32> to vector<8xf32>
    %140 = vector.shape_cast %139 : vector<8xf32> to vector<8x1xf32>
    %141 = tpu.reciprocal %140 {approx = true} : vector<8x1xf32> -> vector<8x1xf32>
    %142 = vector.broadcast %141 : vector<8x1xf32> to vector<8x8xf32>
    %143 = arith.mulf %138, %142 : vector<8x8xf32>
    %144 = arith.truncf %143 : vector<8x8xf32> to vector<8x8xbf16>
    %145 = vector.extract_strided_slice %38 {offsets = [0, 48], sizes = [8, 16], strides = [1, 1]} : vector<8x64xf32> to vector<8x16xf32>
    %146 = arith.truncf %145 : vector<8x16xf32> to vector<8x16xbf16>
    %cst_52 = arith.constant dense<0.000000e+00> : vector<8x16xf32>
    %147 = tpu.matmul %144, %146, %cst_52 {dimension_numbers = #tpu.dot_dimension_numbers<[1], [0], [0], [1], [0, 0, 1, 1], [], []>} : vector<8x8xbf16>, vector<8x16xbf16>, vector<8x16xf32> -> vector<8x16xf32>
    %148 = arith.truncf %147 : vector<8x16xf32> to vector<8x16xbf16>
    %c48 = arith.constant 48 : index
    %c0_53 = arith.constant 0 : index
    %149 = vector.load %arg10[%c48, %c0_53] : memref<64x32xbf16, #tpu.memory_space<vmem>>, vector<16x32xbf16>
    %cst_54 = arith.constant dense<0.000000e+00> : vector<8x32xf32>
    %150 = tpu.matmul %148, %149, %cst_54 {dimension_numbers = #tpu.dot_dimension_numbers<[1], [0], [0], [1], [0, 0, 1, 1], [], []>} : vector<8x16xbf16>, vector<16x32xbf16>, vector<8x32xf32> -> vector<8x32xf32>
    %151 = arith.addf %124, %150 : vector<8x32xf32>
    %c0_55 = arith.constant 0 : index
    %c0_56 = arith.constant 0 : index
    %152 = vector.load %arg11[%c0_55, %c0_56] : memref<1x32xf32, #tpu.memory_space<vmem>>, vector<1x32xf32>
    %153 = vector.broadcast %152 : vector<1x32xf32> to vector<8x32xf32>
    %154 = arith.addf %151, %153 : vector<8x32xf32>
    %155 = vector.broadcast %1 : vector<8x1xf32> to vector<8x32xf32>
    %156 = arith.mulf %154, %155 : vector<8x32xf32>
    %157 = arith.addf %0, %156 : vector<8x32xf32>
    %c0_57 = arith.constant 0 : index
    %c0_58 = arith.constant 0 : index
    %158 = vector.load %arg12[%c0_57, %c0_58] : memref<8x32xf32, #tpu.memory_space<vmem>>, vector<8x32xf32>
    tpu.vector_store %arg12[%c0_57, %c0_58], %157 {strides = array<i32>} : memref<8x32xf32, #tpu.memory_space<vmem>>, vector<8x32xf32>,
    return
  }
  func.func @transform_0(%arg0: i32) -> (i32, i32) {
    %c0_i32 = arith.constant 0 : i32
    %c0_i32_0 = arith.constant 0 : i32
    return %arg0, %c0_i32 : i32, i32
  }
  func.func @transform_1(%arg0: i32) -> (i32, i32) {
    %c0_i32 = arith.constant 0 : i32
    %c0_i32_0 = arith.constant 0 : i32
    return %arg0, %c0_i32 : i32, i32
  }
  func.func @transform_2(%arg0: i32) -> (i32, i32, i32) {
    %c0_i32 = arith.constant 0 : i32
    %c0_i32_0 = arith.constant 0 : i32
    %c0_i32_1 = arith.constant 0 : i32
    return %arg0, %c0_i32, %c0_i32_0 : i32, i32, i32
  }
  func.func @transform_3(%arg0: i32) -> (i32, i32) {
    %c0_i32 = arith.constant 0 : i32
    %c0_i32_0 = arith.constant 0 : i32
    %c0_i32_1 = arith.constant 0 : i32
    return %c0_i32, %c0_i32_0 : i32, i32
  }
  func.func @transform_4(%arg0: i32) -> (i32, i32) {
    %c0_i32 = arith.constant 0 : i32
    %c0_i32_0 = arith.constant 0 : i32
    %c0_i32_1 = arith.constant 0 : i32
    return %c0_i32, %c0_i32_0 : i32, i32
  }
  func.func @transform_5(%arg0: i32) -> (i32, i32) {
    %c0_i32 = arith.constant 0 : i32
    %c0_i32_0 = arith.constant 0 : i32
    %c0_i32_1 = arith.constant 0 : i32
    return %c0_i32, %c0_i32_0 : i32, i32
  }
  func.func @transform_6(%arg0: i32) -> (i32, i32) {
    %c0_i32 = arith.constant 0 : i32
    %c0_i32_0 = arith.constant 0 : i32
    %c0_i32_1 = arith.constant 0 : i32
    return %c0_i32, %c0_i32_0 : i32, i32
  }
  func.func @transform_7(%arg0: i32) -> (i32, i32) {
    %c0_i32 = arith.constant 0 : i32
    %c0_i32_0 = arith.constant 0 : i32
    %c0_i32_1 = arith.constant 0 : i32
    return %c0_i32, %c0_i32_0 : i32, i32
  }
  func.func @transform_8(%arg0: i32) -> (i32, i32) {
    %c0_i32 = arith.constant 0 : i32
    %c0_i32_0 = arith.constant 0 : i32
    %c0_i32_1 = arith.constant 0 : i32
    return %c0_i32, %c0_i32_0 : i32, i32
  }
  func.func @transform_9(%arg0: i32) -> (i32, i32) {
    %c0_i32 = arith.constant 0 : i32
    %c0_i32_0 = arith.constant 0 : i32
    %c0_i32_1 = arith.constant 0 : i32
    return %c0_i32, %c0_i32_0 : i32, i32
  }
  func.func @transform_10(%arg0: i32) -> (i32, i32) {
    %c0_i32 = arith.constant 0 : i32
    %c0_i32_0 = arith.constant 0 : i32
    %c0_i32_1 = arith.constant 0 : i32
    return %c0_i32, %c0_i32_0 : i32, i32
  }
  func.func @transform_11(%arg0: i32) -> (i32, i32) {
    %c0_i32 = arith.constant 0 : i32
    %c0_i32_0 = arith.constant 0 : i32
    return %arg0, %c0_i32 : i32, i32
  }
}

module attributes {stable_mosaic.version = 11 : i64} {
  func.func @_attn_kernel_score(%arg0: i32, %arg1: memref<8x32xf32, #tpu.memory_space<vmem>>, %arg2: memref<8x1xf32, #tpu.memory_space<vmem>>, %arg3: memref<1x1x8xf32, #tpu.memory_space<vmem>>, %arg4: memref<1x32xf32, #tpu.memory_space<vmem>>, %arg5: memref<1x32xf32, #tpu.memory_space<vmem>>, %arg6: memref<32x512xbf16, #tpu.memory_space<vmem>>, %arg7: memref<1x512xf32, #tpu.memory_space<vmem>>, %arg8: memref<32x256xbf16, #tpu.memory_space<vmem>>, %arg9: memref<1x256xf32, #tpu.memory_space<vmem>>, %arg10: memref<256x32xbf16, #tpu.memory_space<vmem>>, %arg11: memref<1x32xf32, #tpu.memory_space<vmem>>, %arg12: memref<8x32xf32, #tpu.memory_space<vmem>>, %arg13: memref<1x128x8xf32, #tpu.memory_space<vmem>>) attributes {dimension_semantics = [#tpu.dimension_semantics<parallel>], iteration_bounds = array<i64: 2>, scalar_prefetch = 0 : i64, scratch_operands = 0 : i64, tpu.core_type = #tpu.core_type<tc>, window_params = [{transform_indices = @transform_0, window_bounds = array<i64: 8, 32>}, {transform_indices = @transform_1, window_bounds = array<i64: 8, 1>}, {transform_indices = @transform_2, window_bounds = array<i64: 1, 1, 8>}, {pipeline_mode = #tpu.pipeline_mode<synchronous>, transform_indices = @transform_3, window_bounds = array<i64: 1, 32>}, {pipeline_mode = #tpu.pipeline_mode<synchronous>, transform_indices = @transform_4, window_bounds = array<i64: 1, 32>}, {pipeline_mode = #tpu.pipeline_mode<synchronous>, transform_indices = @transform_5, window_bounds = array<i64: 32, 512>}, {pipeline_mode = #tpu.pipeline_mode<synchronous>, transform_indices = @transform_6, window_bounds = array<i64: 1, 512>}, {pipeline_mode = #tpu.pipeline_mode<synchronous>, transform_indices = @transform_7, window_bounds = array<i64: 32, 256>}, {pipeline_mode = #tpu.pipeline_mode<synchronous>, transform_indices = @transform_8, window_bounds = array<i64: 1, 256>}, {pipeline_mode = #tpu.pipeline_mode<synchronous>, transform_indices = @transform_9, window_bounds = array<i64: 256, 32>}, {pipeline_mode = #tpu.pipeline_mode<synchronous>, transform_indices = @transform_10, window_bounds = array<i64: 1, 32>}, {transform_indices = @transform_11, window_bounds = array<i64: 8, 32>}, {transform_indices = @transform_12, window_bounds = array<i64: 1, 128, 8>}]} {
    %c0 = arith.constant 0 : index
    %c0_0 = arith.constant 0 : index
    %0 = vector.load %arg1[%c0, %c0_0] : memref<8x32xf32, #tpu.memory_space<vmem>>, vector<8x32xf32>
    %c0_1 = arith.constant 0 : index
    %c0_2 = arith.constant 0 : index
    %1 = vector.load %arg2[%c0_1, %c0_2] : memref<8x1xf32, #tpu.memory_space<vmem>>, vector<8x1xf32>
    %c0_3 = arith.constant 0 : index
    %c0_4 = arith.constant 0 : index
    %2 = vector.load %arg4[%c0_3, %c0_4] : memref<1x32xf32, #tpu.memory_space<vmem>>, vector<1x32xf32>
    %c0_5 = arith.constant 0 : index
    %c0_6 = arith.constant 0 : index
    %3 = vector.load %arg5[%c0_5, %c0_6] : memref<1x32xf32, #tpu.memory_space<vmem>>, vector<1x32xf32>
    %cst = arith.constant dense<0.000000e+00> : vector<8xf32>
    %4 = vector.multi_reduction <add>, %0, %cst [1] : vector<8x32xf32> to vector<8xf32>
    %5 = vector.shape_cast %4 : vector<8xf32> to vector<8x1xf32>
    %cst_7 = arith.constant 3.200000e+01 : f32
    %6 = vector.broadcast %cst_7 : f32 to vector<8x1xf32>
    %7 = arith.divf %5, %6 : vector<8x1xf32>
    %8 = vector.broadcast %7 : vector<8x1xf32> to vector<8x32xf32>
    %9 = arith.subf %0, %8 : vector<8x32xf32>
    %10 = arith.mulf %9, %9 : vector<8x32xf32>
    %cst_8 = arith.constant dense<0.000000e+00> : vector<8xf32>
    %11 = vector.multi_reduction <add>, %10, %cst_8 [1] : vector<8x32xf32> to vector<8xf32>
    %12 = vector.shape_cast %11 : vector<8xf32> to vector<8x1xf32>
    %cst_9 = arith.constant 3.200000e+01 : f32
    %13 = vector.broadcast %cst_9 : f32 to vector<8x1xf32>
    %14 = arith.divf %12, %13 : vector<8x1xf32>
    %cst_10 = arith.constant 9.99999974E-6 : f32
    %15 = vector.broadcast %cst_10 : f32 to vector<8x1xf32>
    %16 = arith.addf %14, %15 : vector<8x1xf32>
    %17 = math.rsqrt %16 : vector<8x1xf32>
    %18 = vector.broadcast %17 : vector<8x1xf32> to vector<8x32xf32>
    %19 = arith.mulf %9, %18 : vector<8x32xf32>
    %20 = vector.broadcast %2 : vector<1x32xf32> to vector<8x32xf32>
    %21 = arith.mulf %19, %20 : vector<8x32xf32>
    %22 = vector.broadcast %3 : vector<1x32xf32> to vector<8x32xf32>
    %23 = arith.addf %21, %22 : vector<8x32xf32>
    %24 = vector.broadcast %1 : vector<8x1xf32> to vector<8x32xf32>
    %25 = arith.mulf %23, %24 : vector<8x32xf32>
    %26 = arith.truncf %25 : vector<8x32xf32> to vector<8x32xbf16>
    %c0_11 = arith.constant 0 : index
    %c0_12 = arith.constant 0 : index
    %27 = vector.load %arg6[%c0_11, %c0_12] : memref<32x512xbf16, #tpu.memory_space<vmem>>, vector<32x512xbf16>
    %cst_13 = arith.constant dense<0.000000e+00> : vector<8x512xf32>
    %28 = tpu.matmul %26, %27, %cst_13 {dimension_numbers = #tpu.dot_dimension_numbers<[1], [0], [0], [1], [0, 0, 1, 1], [], []>} : vector<8x32xbf16>, vector<32x512xbf16>, vector<8x512xf32> -> vector<8x512xf32>
    %c0_14 = arith.constant 0 : index
    %c0_15 = arith.constant 0 : index
    %29 = vector.load %arg7[%c0_14, %c0_15] : memref<1x512xf32, #tpu.memory_space<vmem>>, vector<1x512xf32>
    %30 = vector.broadcast %29 : vector<1x512xf32> to vector<8x512xf32>
    %31 = arith.addf %28, %30 : vector<8x512xf32>
    %c0_16 = arith.constant 0 : index
    %c0_17 = arith.constant 0 : index
    %32 = vector.load %arg8[%c0_16, %c0_17] : memref<32x256xbf16, #tpu.memory_space<vmem>>, vector<32x256xbf16>
    %cst_18 = arith.constant dense<0.000000e+00> : vector<8x256xf32>
    %33 = tpu.matmul %26, %32, %cst_18 {dimension_numbers = #tpu.dot_dimension_numbers<[1], [0], [0], [1], [0, 0, 1, 1], [], []>} : vector<8x32xbf16>, vector<32x256xbf16>, vector<8x256xf32> -> vector<8x256xf32>
    %c0_19 = arith.constant 0 : index
    %c0_20 = arith.constant 0 : index
    %34 = vector.load %arg9[%c0_19, %c0_20] : memref<1x256xf32, #tpu.memory_space<vmem>>, vector<1x256xf32>
    %35 = vector.broadcast %34 : vector<1x256xf32> to vector<8x256xf32>
    %36 = arith.addf %33, %35 : vector<8x256xf32>
    %37 = vector.broadcast %1 : vector<8x1xf32> to vector<8x256xf32>
    %38 = arith.mulf %36, %37 : vector<8x256xf32>
    %c0_21 = arith.constant 0 : index
    %c0_22 = arith.constant 0 : index
    %c0_23 = arith.constant 0 : index
    %39 = vector.load %arg3[%c0_21, %c0_22, %c0_23] : memref<1x1x8xf32, #tpu.memory_space<vmem>>, vector<1x1x8xf32>
    %40 = vector.shape_cast %39 : vector<1x1x8xf32> to vector<1x8xf32>
    %cst_24 = arith.constant 1.000000e+00 : f32
    %41 = vector.broadcast %cst_24 : f32 to vector<1x8xf32>
    %42 = arith.subf %40, %41 : vector<1x8xf32>
    %cst_25 = arith.constant 1.000000e+09 : f32
    %43 = vector.broadcast %cst_25 : f32 to vector<1x8xf32>
    %44 = arith.mulf %42, %43 : vector<1x8xf32>
    %45 = vector.extract_strided_slice %31 {offsets = [0, 0], sizes = [8, 16], strides = [1, 1]} : vector<8x512xf32> to vector<8x16xf32>
    %cst_26 = arith.constant 2.500000e-01 : f32
    %46 = vector.broadcast %cst_26 : f32 to vector<8x16xf32>
    %47 = arith.mulf %45, %46 : vector<8x16xf32>
    %48 = vector.extract_strided_slice %31 {offsets = [0, 256], sizes = [8, 16], strides = [1, 1]} : vector<8x512xf32> to vector<8x16xf32>
    %49 = arith.truncf %47 : vector<8x16xf32> to vector<8x16xbf16>
    %50 = arith.truncf %48 : vector<8x16xf32> to vector<8x16xbf16>
    %cst_27 = arith.constant dense<0.000000e+00> : vector<8x8xf32>
    %51 = tpu.matmul %49, %50, %cst_27 {dimension_numbers = #tpu.dot_dimension_numbers<[1], [1], [0], [0], [0, 0, 1, 0], [], []>} : vector<8x16xbf16>, vector<8x16xbf16>, vector<8x8xf32> -> vector<8x8xf32>
    %52 = vector.broadcast %44 : vector<1x8xf32> to vector<8x8xf32>
    %53 = arith.addf %51, %52 : vector<8x8xf32>
    %cst_28 = arith.constant dense<0xFF800000> : vector<8xf32>
    %54 = vector.multi_reduction <maximumf>, %53, %cst_28 [1] : vector<8x8xf32> to vector<8xf32>
    %55 = vector.shape_cast %54 : vector<8xf32> to vector<8x1xf32>
    %56 = vector.broadcast %55 : vector<8x1xf32> to vector<8x8xf32>
    %57 = arith.subf %53, %56 : vector<8x8xf32>
    %58 = math.exp %57 : vector<8x8xf32>
    %cst_29 = arith.constant dense<0.000000e+00> : vector<8xf32>
    %59 = vector.multi_reduction <add>, %58, %cst_29 [1] : vector<8x8xf32> to vector<8xf32>
    %60 = vector.shape_cast %59 : vector<8xf32> to vector<8x1xf32>
    %61 = tpu.reciprocal %60 {approx = true} : vector<8x1xf32> -> vector<8x1xf32>
    %62 = vector.broadcast %61 : vector<8x1xf32> to vector<8x8xf32>
    %63 = arith.mulf %58, %62 : vector<8x8xf32>
    %c0_30 = arith.constant 0 : index
    %c0_31 = arith.constant 0 : index
    %c0_32 = arith.constant 0 : index
    %64 = vector.load %arg13[%c0_30, %c0_31, %c0_32] : memref<1x128x8xf32, #tpu.memory_space<vmem>>, vector<1x8x8xf32>
    %65 = vector.shape_cast %64 : vector<1x8x8xf32> to vector<8x8xf32>
    %66 = vector.shape_cast %63 : vector<8x8xf32> to vector<1x8x8xf32>
    tpu.vector_store %arg13[%c0_30, %c0_31, %c0_32], %66 {strides = array<i32>} : memref<1x128x8xf32, #tpu.memory_space<vmem>>, vector<1x8x8xf32>,
    %67 = arith.truncf %63 : vector<8x8xf32> to vector<8x8xbf16>
    %68 = vector.extract_strided_slice %38 {offsets = [0, 0], sizes = [8, 16], strides = [1, 1]} : vector<8x256xf32> to vector<8x16xf32>
    %69 = arith.truncf %68 : vector<8x16xf32> to vector<8x16xbf16>
    %cst_33 = arith.constant dense<0.000000e+00> : vector<8x16xf32>
    %70 = tpu.matmul %67, %69, %cst_33 {dimension_numbers = #tpu.dot_dimension_numbers<[1], [0], [0], [1], [0, 0, 1, 1], [], []>} : vector<8x8xbf16>, vector<8x16xbf16>, vector<8x16xf32> -> vector<8x16xf32>
    %71 = arith.truncf %70 : vector<8x16xf32> to vector<8x16xbf16>
    %c0_34 = arith.constant 0 : index
    %c0_35 = arith.constant 0 : index
    %72 = vector.load %arg10[%c0_34, %c0_35] : memref<256x32xbf16, #tpu.memory_space<vmem>>, vector<16x32xbf16>
    %cst_36 = arith.constant dense<0.000000e+00> : vector<8x32xf32>
    %73 = tpu.matmul %71, %72, %cst_36 {dimension_numbers = #tpu.dot_dimension_numbers<[1], [0], [0], [1], [0, 0, 1, 1], [], []>} : vector<8x16xbf16>, vector<16x32xbf16>, vector<8x32xf32> -> vector<8x32xf32>
    %74 = vector.extract_strided_slice %31 {offsets = [0, 16], sizes = [8, 16], strides = [1, 1]} : vector<8x512xf32> to vector<8x16xf32>
    %cst_37 = arith.constant 2.500000e-01 : f32
    %75 = vector.broadcast %cst_37 : f32 to vector<8x16xf32>
    %76 = arith.mulf %74, %75 : vector<8x16xf32>
    %77 = vector.extract_strided_slice %31 {offsets = [0, 272], sizes = [8, 16], strides = [1, 1]} : vector<8x512xf32> to vector<8x16xf32>
    %78 = arith.truncf %76 : vector<8x16xf32> to vector<8x16xbf16>
    %79 = arith.truncf %77 : vector<8x16xf32> to vector<8x16xbf16>
    %cst_38 = arith.constant dense<0.000000e+00> : vector<8x8xf32>
    %80 = tpu.matmul %78, %79, %cst_38 {dimension_numbers = #tpu.dot_dimension_numbers<[1], [1], [0], [0], [0, 0, 1, 0], [], []>} : vector<8x16xbf16>, vector<8x16xbf16>, vector<8x8xf32> -> vector<8x8xf32>
    %81 = vector.broadcast %44 : vector<1x8xf32> to vector<8x8xf32>
    %82 = arith.addf %80, %81 : vector<8x8xf32>
    %cst_39 = arith.constant dense<0xFF800000> : vector<8xf32>
    %83 = vector.multi_reduction <maximumf>, %82, %cst_39 [1] : vector<8x8xf32> to vector<8xf32>
    %84 = vector.shape_cast %83 : vector<8xf32> to vector<8x1xf32>
    %85 = vector.broadcast %84 : vector<8x1xf32> to vector<8x8xf32>
    %86 = arith.subf %82, %85 : vector<8x8xf32>
    %87 = math.exp %86 : vector<8x8xf32>
    %cst_40 = arith.constant dense<0.000000e+00> : vector<8xf32>
    %88 = vector.multi_reduction <add>, %87, %cst_40 [1] : vector<8x8xf32> to vector<8xf32>
    %89 = vector.shape_cast %88 : vector<8xf32> to vector<8x1xf32>
    %90 = tpu.reciprocal %89 {approx = true} : vector<8x1xf32> -> vector<8x1xf32>
    %91 = vector.broadcast %90 : vector<8x1xf32> to vector<8x8xf32>
    %92 = arith.mulf %87, %91 : vector<8x8xf32>
    %c0_41 = arith.constant 0 : index
    %c8 = arith.constant 8 : index
    %c0_42 = arith.constant 0 : index
    %93 = vector.load %arg13[%c0_41, %c8, %c0_42] : memref<1x128x8xf32, #tpu.memory_space<vmem>>, vector<1x8x8xf32>
    %94 = vector.shape_cast %93 : vector<1x8x8xf32> to vector<8x8xf32>
    %95 = vector.shape_cast %92 : vector<8x8xf32> to vector<1x8x8xf32>
    tpu.vector_store %arg13[%c0_41, %c8, %c0_42], %95 {strides = array<i32>} : memref<1x128x8xf32, #tpu.memory_space<vmem>>, vector<1x8x8xf32>,
    %96 = arith.truncf %92 : vector<8x8xf32> to vector<8x8xbf16>
    %97 = vector.extract_strided_slice %38 {offsets = [0, 16], sizes = [8, 16], strides = [1, 1]} : vector<8x256xf32> to vector<8x16xf32>
    %98 = arith.truncf %97 : vector<8x16xf32> to vector<8x16xbf16>
    %cst_43 = arith.constant dense<0.000000e+00> : vector<8x16xf32>
    %99 = tpu.matmul %96, %98, %cst_43 {dimension_numbers = #tpu.dot_dimension_numbers<[1], [0], [0], [1], [0, 0, 1, 1], [], []>} : vector<8x8xbf16>, vector<8x16xbf16>, vector<8x16xf32> -> vector<8x16xf32>
    %100 = arith.truncf %99 : vector<8x16xf32> to vector<8x16xbf16>
    %c16 = arith.constant 16 : index
    %c0_44 = arith.constant 0 : index
    %101 = vector.load %arg10[%c16, %c0_44] : memref<256x32xbf16, #tpu.memory_space<vmem>>, vector<16x32xbf16>
    %cst_45 = arith.constant dense<0.000000e+00> : vector<8x32xf32>
    %102 = tpu.matmul %100, %101, %cst_45 {dimension_numbers = #tpu.dot_dimension_numbers<[1], [0], [0], [1], [0, 0, 1, 1], [], []>} : vector<8x16xbf16>, vector<16x32xbf16>, vector<8x32xf32> -> vector<8x32xf32>
    %103 = arith.addf %73, %102 : vector<8x32xf32>
    %104 = vector.extract_strided_slice %31 {offsets = [0, 32], sizes = [8, 16], strides = [1, 1]} : vector<8x512xf32> to vector<8x16xf32>
    %cst_46 = arith.constant 2.500000e-01 : f32
    %105 = vector.broadcast %cst_46 : f32 to vector<8x16xf32>
    %106 = arith.mulf %104, %105 : vector<8x16xf32>
    %107 = vector.extract_strided_slice %31 {offsets = [0, 288], sizes = [8, 16], strides = [1, 1]} : vector<8x512xf32> to vector<8x16xf32>
    %108 = arith.truncf %106 : vector<8x16xf32> to vector<8x16xbf16>
    %109 = arith.truncf %107 : vector<8x16xf32> to vector<8x16xbf16>
    %cst_47 = arith.constant dense<0.000000e+00> : vector<8x8xf32>
    %110 = tpu.matmul %108, %109, %cst_47 {dimension_numbers = #tpu.dot_dimension_numbers<[1], [1], [0], [0], [0, 0, 1, 0], [], []>} : vector<8x16xbf16>, vector<8x16xbf16>, vector<8x8xf32> -> vector<8x8xf32>
    %111 = vector.broadcast %44 : vector<1x8xf32> to vector<8x8xf32>
    %112 = arith.addf %110, %111 : vector<8x8xf32>
    %cst_48 = arith.constant dense<0xFF800000> : vector<8xf32>
    %113 = vector.multi_reduction <maximumf>, %112, %cst_48 [1] : vector<8x8xf32> to vector<8xf32>
    %114 = vector.shape_cast %113 : vector<8xf32> to vector<8x1xf32>
    %115 = vector.broadcast %114 : vector<8x1xf32> to vector<8x8xf32>
    %116 = arith.subf %112, %115 : vector<8x8xf32>
    %117 = math.exp %116 : vector<8x8xf32>
    %cst_49 = arith.constant dense<0.000000e+00> : vector<8xf32>
    %118 = vector.multi_reduction <add>, %117, %cst_49 [1] : vector<8x8xf32> to vector<8xf32>
    %119 = vector.shape_cast %118 : vector<8xf32> to vector<8x1xf32>
    %120 = tpu.reciprocal %119 {approx = true} : vector<8x1xf32> -> vector<8x1xf32>
    %121 = vector.broadcast %120 : vector<8x1xf32> to vector<8x8xf32>
    %122 = arith.mulf %117, %121 : vector<8x8xf32>
    %c0_50 = arith.constant 0 : index
    %c16_51 = arith.constant 16 : index
    %c0_52 = arith.constant 0 : index
    %123 = vector.load %arg13[%c0_50, %c16_51, %c0_52] : memref<1x128x8xf32, #tpu.memory_space<vmem>>, vector<1x8x8xf32>
    %124 = vector.shape_cast %123 : vector<1x8x8xf32> to vector<8x8xf32>
    %125 = vector.shape_cast %122 : vector<8x8xf32> to vector<1x8x8xf32>
    tpu.vector_store %arg13[%c0_50, %c16_51, %c0_52], %125 {strides = array<i32>} : memref<1x128x8xf32, #tpu.memory_space<vmem>>, vector<1x8x8xf32>,
    %126 = arith.truncf %122 : vector<8x8xf32> to vector<8x8xbf16>
    %127 = vector.extract_strided_slice %38 {offsets = [0, 32], sizes = [8, 16], strides = [1, 1]} : vector<8x256xf32> to vector<8x16xf32>
    %128 = arith.truncf %127 : vector<8x16xf32> to vector<8x16xbf16>
    %cst_53 = arith.constant dense<0.000000e+00> : vector<8x16xf32>
    %129 = tpu.matmul %126, %128, %cst_53 {dimension_numbers = #tpu.dot_dimension_numbers<[1], [0], [0], [1], [0, 0, 1, 1], [], []>} : vector<8x8xbf16>, vector<8x16xbf16>, vector<8x16xf32> -> vector<8x16xf32>
    %130 = arith.truncf %129 : vector<8x16xf32> to vector<8x16xbf16>
    %c32 = arith.constant 32 : index
    %c0_54 = arith.constant 0 : index
    %131 = vector.load %arg10[%c32, %c0_54] : memref<256x32xbf16, #tpu.memory_space<vmem>>, vector<16x32xbf16>
    %cst_55 = arith.constant dense<0.000000e+00> : vector<8x32xf32>
    %132 = tpu.matmul %130, %131, %cst_55 {dimension_numbers = #tpu.dot_dimension_numbers<[1], [0], [0], [1], [0, 0, 1, 1], [], []>} : vector<8x16xbf16>, vector<16x32xbf16>, vector<8x32xf32> -> vector<8x32xf32>
    %133 = arith.addf %103, %132 : vector<8x32xf32>
    %134 = vector.extract_strided_slice %31 {offsets = [0, 48], sizes = [8, 16], strides = [1, 1]} : vector<8x512xf32> to vector<8x16xf32>
    %cst_56 = arith.constant 2.500000e-01 : f32
    %135 = vector.broadcast %cst_56 : f32 to vector<8x16xf32>
    %136 = arith.mulf %134, %135 : vector<8x16xf32>
    %137 = vector.extract_strided_slice %31 {offsets = [0, 304], sizes = [8, 16], strides = [1, 1]} : vector<8x512xf32> to vector<8x16xf32>
    %138 = arith.truncf %136 : vector<8x16xf32> to vector<8x16xbf16>
    %139 = arith.truncf %137 : vector<8x16xf32> to vector<8x16xbf16>
    %cst_57 = arith.constant dense<0.000000e+00> : vector<8x8xf32>
    %140 = tpu.matmul %138, %139, %cst_57 {dimension_numbers = #tpu.dot_dimension_numbers<[1], [1], [0], [0], [0, 0, 1, 0], [], []>} : vector<8x16xbf16>, vector<8x16xbf16>, vector<8x8xf32> -> vector<8x8xf32>
    %141 = vector.broadcast %44 : vector<1x8xf32> to vector<8x8xf32>
    %142 = arith.addf %140, %141 : vector<8x8xf32>
    %cst_58 = arith.constant dense<0xFF800000> : vector<8xf32>
    %143 = vector.multi_reduction <maximumf>, %142, %cst_58 [1] : vector<8x8xf32> to vector<8xf32>
    %144 = vector.shape_cast %143 : vector<8xf32> to vector<8x1xf32>
    %145 = vector.broadcast %144 : vector<8x1xf32> to vector<8x8xf32>
    %146 = arith.subf %142, %145 : vector<8x8xf32>
    %147 = math.exp %146 : vector<8x8xf32>
    %cst_59 = arith.constant dense<0.000000e+00> : vector<8xf32>
    %148 = vector.multi_reduction <add>, %147, %cst_59 [1] : vector<8x8xf32> to vector<8xf32>
    %149 = vector.shape_cast %148 : vector<8xf32> to vector<8x1xf32>
    %150 = tpu.reciprocal %149 {approx = true} : vector<8x1xf32> -> vector<8x1xf32>
    %151 = vector.broadcast %150 : vector<8x1xf32> to vector<8x8xf32>
    %152 = arith.mulf %147, %151 : vector<8x8xf32>
    %c0_60 = arith.constant 0 : index
    %c24 = arith.constant 24 : index
    %c0_61 = arith.constant 0 : index
    %153 = vector.load %arg13[%c0_60, %c24, %c0_61] : memref<1x128x8xf32, #tpu.memory_space<vmem>>, vector<1x8x8xf32>
    %154 = vector.shape_cast %153 : vector<1x8x8xf32> to vector<8x8xf32>
    %155 = vector.shape_cast %152 : vector<8x8xf32> to vector<1x8x8xf32>
    tpu.vector_store %arg13[%c0_60, %c24, %c0_61], %155 {strides = array<i32>} : memref<1x128x8xf32, #tpu.memory_space<vmem>>, vector<1x8x8xf32>,
    %156 = arith.truncf %152 : vector<8x8xf32> to vector<8x8xbf16>
    %157 = vector.extract_strided_slice %38 {offsets = [0, 48], sizes = [8, 16], strides = [1, 1]} : vector<8x256xf32> to vector<8x16xf32>
    %158 = arith.truncf %157 : vector<8x16xf32> to vector<8x16xbf16>
    %cst_62 = arith.constant dense<0.000000e+00> : vector<8x16xf32>
    %159 = tpu.matmul %156, %158, %cst_62 {dimension_numbers = #tpu.dot_dimension_numbers<[1], [0], [0], [1], [0, 0, 1, 1], [], []>} : vector<8x8xbf16>, vector<8x16xbf16>, vector<8x16xf32> -> vector<8x16xf32>
    %160 = arith.truncf %159 : vector<8x16xf32> to vector<8x16xbf16>
    %c48 = arith.constant 48 : index
    %c0_63 = arith.constant 0 : index
    %161 = vector.load %arg10[%c48, %c0_63] : memref<256x32xbf16, #tpu.memory_space<vmem>>, vector<16x32xbf16>
    %cst_64 = arith.constant dense<0.000000e+00> : vector<8x32xf32>
    %162 = tpu.matmul %160, %161, %cst_64 {dimension_numbers = #tpu.dot_dimension_numbers<[1], [0], [0], [1], [0, 0, 1, 1], [], []>} : vector<8x16xbf16>, vector<16x32xbf16>, vector<8x32xf32> -> vector<8x32xf32>
    %163 = arith.addf %133, %162 : vector<8x32xf32>
    %164 = vector.extract_strided_slice %31 {offsets = [0, 64], sizes = [8, 16], strides = [1, 1]} : vector<8x512xf32> to vector<8x16xf32>
    %cst_65 = arith.constant 2.500000e-01 : f32
    %165 = vector.broadcast %cst_65 : f32 to vector<8x16xf32>
    %166 = arith.mulf %164, %165 : vector<8x16xf32>
    %167 = vector.extract_strided_slice %31 {offsets = [0, 320], sizes = [8, 16], strides = [1, 1]} : vector<8x512xf32> to vector<8x16xf32>
    %168 = arith.truncf %166 : vector<8x16xf32> to vector<8x16xbf16>
    %169 = arith.truncf %167 : vector<8x16xf32> to vector<8x16xbf16>
    %cst_66 = arith.constant dense<0.000000e+00> : vector<8x8xf32>
    %170 = tpu.matmul %168, %169, %cst_66 {dimension_numbers = #tpu.dot_dimension_numbers<[1], [1], [0], [0], [0, 0, 1, 0], [], []>} : vector<8x16xbf16>, vector<8x16xbf16>, vector<8x8xf32> -> vector<8x8xf32>
    %171 = vector.broadcast %44 : vector<1x8xf32> to vector<8x8xf32>
    %172 = arith.addf %170, %171 : vector<8x8xf32>
    %cst_67 = arith.constant dense<0xFF800000> : vector<8xf32>
    %173 = vector.multi_reduction <maximumf>, %172, %cst_67 [1] : vector<8x8xf32> to vector<8xf32>
    %174 = vector.shape_cast %173 : vector<8xf32> to vector<8x1xf32>
    %175 = vector.broadcast %174 : vector<8x1xf32> to vector<8x8xf32>
    %176 = arith.subf %172, %175 : vector<8x8xf32>
    %177 = math.exp %176 : vector<8x8xf32>
    %cst_68 = arith.constant dense<0.000000e+00> : vector<8xf32>
    %178 = vector.multi_reduction <add>, %177, %cst_68 [1] : vector<8x8xf32> to vector<8xf32>
    %179 = vector.shape_cast %178 : vector<8xf32> to vector<8x1xf32>
    %180 = tpu.reciprocal %179 {approx = true} : vector<8x1xf32> -> vector<8x1xf32>
    %181 = vector.broadcast %180 : vector<8x1xf32> to vector<8x8xf32>
    %182 = arith.mulf %177, %181 : vector<8x8xf32>
    %c0_69 = arith.constant 0 : index
    %c32_70 = arith.constant 32 : index
    %c0_71 = arith.constant 0 : index
    %183 = vector.load %arg13[%c0_69, %c32_70, %c0_71] : memref<1x128x8xf32, #tpu.memory_space<vmem>>, vector<1x8x8xf32>
    %184 = vector.shape_cast %183 : vector<1x8x8xf32> to vector<8x8xf32>
    %185 = vector.shape_cast %182 : vector<8x8xf32> to vector<1x8x8xf32>
    tpu.vector_store %arg13[%c0_69, %c32_70, %c0_71], %185 {strides = array<i32>} : memref<1x128x8xf32, #tpu.memory_space<vmem>>, vector<1x8x8xf32>,
    %186 = arith.truncf %182 : vector<8x8xf32> to vector<8x8xbf16>
    %187 = vector.extract_strided_slice %38 {offsets = [0, 64], sizes = [8, 16], strides = [1, 1]} : vector<8x256xf32> to vector<8x16xf32>
    %188 = arith.truncf %187 : vector<8x16xf32> to vector<8x16xbf16>
    %cst_72 = arith.constant dense<0.000000e+00> : vector<8x16xf32>
    %189 = tpu.matmul %186, %188, %cst_72 {dimension_numbers = #tpu.dot_dimension_numbers<[1], [0], [0], [1], [0, 0, 1, 1], [], []>} : vector<8x8xbf16>, vector<8x16xbf16>, vector<8x16xf32> -> vector<8x16xf32>
    %190 = arith.truncf %189 : vector<8x16xf32> to vector<8x16xbf16>
    %c64 = arith.constant 64 : index
    %c0_73 = arith.constant 0 : index
    %191 = vector.load %arg10[%c64, %c0_73] : memref<256x32xbf16, #tpu.memory_space<vmem>>, vector<16x32xbf16>
    %cst_74 = arith.constant dense<0.000000e+00> : vector<8x32xf32>
    %192 = tpu.matmul %190, %191, %cst_74 {dimension_numbers = #tpu.dot_dimension_numbers<[1], [0], [0], [1], [0, 0, 1, 1], [], []>} : vector<8x16xbf16>, vector<16x32xbf16>, vector<8x32xf32> -> vector<8x32xf32>
    %193 = arith.addf %163, %192 : vector<8x32xf32>
    %194 = vector.extract_strided_slice %31 {offsets = [0, 80], sizes = [8, 16], strides = [1, 1]} : vector<8x512xf32> to vector<8x16xf32>
    %cst_75 = arith.constant 2.500000e-01 : f32
    %195 = vector.broadcast %cst_75 : f32 to vector<8x16xf32>
    %196 = arith.mulf %194, %195 : vector<8x16xf32>
    %197 = vector.extract_strided_slice %31 {offsets = [0, 336], sizes = [8, 16], strides = [1, 1]} : vector<8x512xf32> to vector<8x16xf32>
    %198 = arith.truncf %196 : vector<8x16xf32> to vector<8x16xbf16>
    %199 = arith.truncf %197 : vector<8x16xf32> to vector<8x16xbf16>
    %cst_76 = arith.constant dense<0.000000e+00> : vector<8x8xf32>
    %200 = tpu.matmul %198, %199, %cst_76 {dimension_numbers = #tpu.dot_dimension_numbers<[1], [1], [0], [0], [0, 0, 1, 0], [], []>} : vector<8x16xbf16>, vector<8x16xbf16>, vector<8x8xf32> -> vector<8x8xf32>
    %201 = vector.broadcast %44 : vector<1x8xf32> to vector<8x8xf32>
    %202 = arith.addf %200, %201 : vector<8x8xf32>
    %cst_77 = arith.constant dense<0xFF800000> : vector<8xf32>
    %203 = vector.multi_reduction <maximumf>, %202, %cst_77 [1] : vector<8x8xf32> to vector<8xf32>
    %204 = vector.shape_cast %203 : vector<8xf32> to vector<8x1xf32>
    %205 = vector.broadcast %204 : vector<8x1xf32> to vector<8x8xf32>
    %206 = arith.subf %202, %205 : vector<8x8xf32>
    %207 = math.exp %206 : vector<8x8xf32>
    %cst_78 = arith.constant dense<0.000000e+00> : vector<8xf32>
    %208 = vector.multi_reduction <add>, %207, %cst_78 [1] : vector<8x8xf32> to vector<8xf32>
    %209 = vector.shape_cast %208 : vector<8xf32> to vector<8x1xf32>
    %210 = tpu.reciprocal %209 {approx = true} : vector<8x1xf32> -> vector<8x1xf32>
    %211 = vector.broadcast %210 : vector<8x1xf32> to vector<8x8xf32>
    %212 = arith.mulf %207, %211 : vector<8x8xf32>
    %c0_79 = arith.constant 0 : index
    %c40 = arith.constant 40 : index
    %c0_80 = arith.constant 0 : index
    %213 = vector.load %arg13[%c0_79, %c40, %c0_80] : memref<1x128x8xf32, #tpu.memory_space<vmem>>, vector<1x8x8xf32>
    %214 = vector.shape_cast %213 : vector<1x8x8xf32> to vector<8x8xf32>
    %215 = vector.shape_cast %212 : vector<8x8xf32> to vector<1x8x8xf32>
    tpu.vector_store %arg13[%c0_79, %c40, %c0_80], %215 {strides = array<i32>} : memref<1x128x8xf32, #tpu.memory_space<vmem>>, vector<1x8x8xf32>,
    %216 = arith.truncf %212 : vector<8x8xf32> to vector<8x8xbf16>
    %217 = vector.extract_strided_slice %38 {offsets = [0, 80], sizes = [8, 16], strides = [1, 1]} : vector<8x256xf32> to vector<8x16xf32>
    %218 = arith.truncf %217 : vector<8x16xf32> to vector<8x16xbf16>
    %cst_81 = arith.constant dense<0.000000e+00> : vector<8x16xf32>
    %219 = tpu.matmul %216, %218, %cst_81 {dimension_numbers = #tpu.dot_dimension_numbers<[1], [0], [0], [1], [0, 0, 1, 1], [], []>} : vector<8x8xbf16>, vector<8x16xbf16>, vector<8x16xf32> -> vector<8x16xf32>
    %220 = arith.truncf %219 : vector<8x16xf32> to vector<8x16xbf16>
    %c80 = arith.constant 80 : index
    %c0_82 = arith.constant 0 : index
    %221 = vector.load %arg10[%c80, %c0_82] : memref<256x32xbf16, #tpu.memory_space<vmem>>, vector<16x32xbf16>
    %cst_83 = arith.constant dense<0.000000e+00> : vector<8x32xf32>
    %222 = tpu.matmul %220, %221, %cst_83 {dimension_numbers = #tpu.dot_dimension_numbers<[1], [0], [0], [1], [0, 0, 1, 1], [], []>} : vector<8x16xbf16>, vector<16x32xbf16>, vector<8x32xf32> -> vector<8x32xf32>
    %223 = arith.addf %193, %222 : vector<8x32xf32>
    %224 = vector.extract_strided_slice %31 {offsets = [0, 96], sizes = [8, 16], strides = [1, 1]} : vector<8x512xf32> to vector<8x16xf32>
    %cst_84 = arith.constant 2.500000e-01 : f32
    %225 = vector.broadcast %cst_84 : f32 to vector<8x16xf32>
    %226 = arith.mulf %224, %225 : vector<8x16xf32>
    %227 = vector.extract_strided_slice %31 {offsets = [0, 352], sizes = [8, 16], strides = [1, 1]} : vector<8x512xf32> to vector<8x16xf32>
    %228 = arith.truncf %226 : vector<8x16xf32> to vector<8x16xbf16>
    %229 = arith.truncf %227 : vector<8x16xf32> to vector<8x16xbf16>
    %cst_85 = arith.constant dense<0.000000e+00> : vector<8x8xf32>
    %230 = tpu.matmul %228, %229, %cst_85 {dimension_numbers = #tpu.dot_dimension_numbers<[1], [1], [0], [0], [0, 0, 1, 0], [], []>} : vector<8x16xbf16>, vector<8x16xbf16>, vector<8x8xf32> -> vector<8x8xf32>
    %231 = vector.broadcast %44 : vector<1x8xf32> to vector<8x8xf32>
    %232 = arith.addf %230, %231 : vector<8x8xf32>
    %cst_86 = arith.constant dense<0xFF800000> : vector<8xf32>
    %233 = vector.multi_reduction <maximumf>, %232, %cst_86 [1] : vector<8x8xf32> to vector<8xf32>
    %234 = vector.shape_cast %233 : vector<8xf32> to vector<8x1xf32>
    %235 = vector.broadcast %234 : vector<8x1xf32> to vector<8x8xf32>
    %236 = arith.subf %232, %235 : vector<8x8xf32>
    %237 = math.exp %236 : vector<8x8xf32>
    %cst_87 = arith.constant dense<0.000000e+00> : vector<8xf32>
    %238 = vector.multi_reduction <add>, %237, %cst_87 [1] : vector<8x8xf32> to vector<8xf32>
    %239 = vector.shape_cast %238 : vector<8xf32> to vector<8x1xf32>
    %240 = tpu.reciprocal %239 {approx = true} : vector<8x1xf32> -> vector<8x1xf32>
    %241 = vector.broadcast %240 : vector<8x1xf32> to vector<8x8xf32>
    %242 = arith.mulf %237, %241 : vector<8x8xf32>
    %c0_88 = arith.constant 0 : index
    %c48_89 = arith.constant 48 : index
    %c0_90 = arith.constant 0 : index
    %243 = vector.load %arg13[%c0_88, %c48_89, %c0_90] : memref<1x128x8xf32, #tpu.memory_space<vmem>>, vector<1x8x8xf32>
    %244 = vector.shape_cast %243 : vector<1x8x8xf32> to vector<8x8xf32>
    %245 = vector.shape_cast %242 : vector<8x8xf32> to vector<1x8x8xf32>
    tpu.vector_store %arg13[%c0_88, %c48_89, %c0_90], %245 {strides = array<i32>} : memref<1x128x8xf32, #tpu.memory_space<vmem>>, vector<1x8x8xf32>,
    %246 = arith.truncf %242 : vector<8x8xf32> to vector<8x8xbf16>
    %247 = vector.extract_strided_slice %38 {offsets = [0, 96], sizes = [8, 16], strides = [1, 1]} : vector<8x256xf32> to vector<8x16xf32>
    %248 = arith.truncf %247 : vector<8x16xf32> to vector<8x16xbf16>
    %cst_91 = arith.constant dense<0.000000e+00> : vector<8x16xf32>
    %249 = tpu.matmul %246, %248, %cst_91 {dimension_numbers = #tpu.dot_dimension_numbers<[1], [0], [0], [1], [0, 0, 1, 1], [], []>} : vector<8x8xbf16>, vector<8x16xbf16>, vector<8x16xf32> -> vector<8x16xf32>
    %250 = arith.truncf %249 : vector<8x16xf32> to vector<8x16xbf16>
    %c96 = arith.constant 96 : index
    %c0_92 = arith.constant 0 : index
    %251 = vector.load %arg10[%c96, %c0_92] : memref<256x32xbf16, #tpu.memory_space<vmem>>, vector<16x32xbf16>
    %cst_93 = arith.constant dense<0.000000e+00> : vector<8x32xf32>
    %252 = tpu.matmul %250, %251, %cst_93 {dimension_numbers = #tpu.dot_dimension_numbers<[1], [0], [0], [1], [0, 0, 1, 1], [], []>} : vector<8x16xbf16>, vector<16x32xbf16>, vector<8x32xf32> -> vector<8x32xf32>
    %253 = arith.addf %223, %252 : vector<8x32xf32>
    %254 = vector.extract_strided_slice %31 {offsets = [0, 112], sizes = [8, 16], strides = [1, 1]} : vector<8x512xf32> to vector<8x16xf32>
    %cst_94 = arith.constant 2.500000e-01 : f32
    %255 = vector.broadcast %cst_94 : f32 to vector<8x16xf32>
    %256 = arith.mulf %254, %255 : vector<8x16xf32>
    %257 = vector.extract_strided_slice %31 {offsets = [0, 368], sizes = [8, 16], strides = [1, 1]} : vector<8x512xf32> to vector<8x16xf32>
    %258 = arith.truncf %256 : vector<8x16xf32> to vector<8x16xbf16>
    %259 = arith.truncf %257 : vector<8x16xf32> to vector<8x16xbf16>
    %cst_95 = arith.constant dense<0.000000e+00> : vector<8x8xf32>
    %260 = tpu.matmul %258, %259, %cst_95 {dimension_numbers = #tpu.dot_dimension_numbers<[1], [1], [0], [0], [0, 0, 1, 0], [], []>} : vector<8x16xbf16>, vector<8x16xbf16>, vector<8x8xf32> -> vector<8x8xf32>
    %261 = vector.broadcast %44 : vector<1x8xf32> to vector<8x8xf32>
    %262 = arith.addf %260, %261 : vector<8x8xf32>
    %cst_96 = arith.constant dense<0xFF800000> : vector<8xf32>
    %263 = vector.multi_reduction <maximumf>, %262, %cst_96 [1] : vector<8x8xf32> to vector<8xf32>
    %264 = vector.shape_cast %263 : vector<8xf32> to vector<8x1xf32>
    %265 = vector.broadcast %264 : vector<8x1xf32> to vector<8x8xf32>
    %266 = arith.subf %262, %265 : vector<8x8xf32>
    %267 = math.exp %266 : vector<8x8xf32>
    %cst_97 = arith.constant dense<0.000000e+00> : vector<8xf32>
    %268 = vector.multi_reduction <add>, %267, %cst_97 [1] : vector<8x8xf32> to vector<8xf32>
    %269 = vector.shape_cast %268 : vector<8xf32> to vector<8x1xf32>
    %270 = tpu.reciprocal %269 {approx = true} : vector<8x1xf32> -> vector<8x1xf32>
    %271 = vector.broadcast %270 : vector<8x1xf32> to vector<8x8xf32>
    %272 = arith.mulf %267, %271 : vector<8x8xf32>
    %c0_98 = arith.constant 0 : index
    %c56 = arith.constant 56 : index
    %c0_99 = arith.constant 0 : index
    %273 = vector.load %arg13[%c0_98, %c56, %c0_99] : memref<1x128x8xf32, #tpu.memory_space<vmem>>, vector<1x8x8xf32>
    %274 = vector.shape_cast %273 : vector<1x8x8xf32> to vector<8x8xf32>
    %275 = vector.shape_cast %272 : vector<8x8xf32> to vector<1x8x8xf32>
    tpu.vector_store %arg13[%c0_98, %c56, %c0_99], %275 {strides = array<i32>} : memref<1x128x8xf32, #tpu.memory_space<vmem>>, vector<1x8x8xf32>,
    %276 = arith.truncf %272 : vector<8x8xf32> to vector<8x8xbf16>
    %277 = vector.extract_strided_slice %38 {offsets = [0, 112], sizes = [8, 16], strides = [1, 1]} : vector<8x256xf32> to vector<8x16xf32>
    %278 = arith.truncf %277 : vector<8x16xf32> to vector<8x16xbf16>
    %cst_100 = arith.constant dense<0.000000e+00> : vector<8x16xf32>
    %279 = tpu.matmul %276, %278, %cst_100 {dimension_numbers = #tpu.dot_dimension_numbers<[1], [0], [0], [1], [0, 0, 1, 1], [], []>} : vector<8x8xbf16>, vector<8x16xbf16>, vector<8x16xf32> -> vector<8x16xf32>
    %280 = arith.truncf %279 : vector<8x16xf32> to vector<8x16xbf16>
    %c112 = arith.constant 112 : index
    %c0_101 = arith.constant 0 : index
    %281 = vector.load %arg10[%c112, %c0_101] : memref<256x32xbf16, #tpu.memory_space<vmem>>, vector<16x32xbf16>
    %cst_102 = arith.constant dense<0.000000e+00> : vector<8x32xf32>
    %282 = tpu.matmul %280, %281, %cst_102 {dimension_numbers = #tpu.dot_dimension_numbers<[1], [0], [0], [1], [0, 0, 1, 1], [], []>} : vector<8x16xbf16>, vector<16x32xbf16>, vector<8x32xf32> -> vector<8x32xf32>
    %283 = arith.addf %253, %282 : vector<8x32xf32>
    %284 = vector.extract_strided_slice %31 {offsets = [0, 128], sizes = [8, 16], strides = [1, 1]} : vector<8x512xf32> to vector<8x16xf32>
    %cst_103 = arith.constant 2.500000e-01 : f32
    %285 = vector.broadcast %cst_103 : f32 to vector<8x16xf32>
    %286 = arith.mulf %284, %285 : vector<8x16xf32>
    %287 = vector.extract_strided_slice %31 {offsets = [0, 384], sizes = [8, 16], strides = [1, 1]} : vector<8x512xf32> to vector<8x16xf32>
    %288 = arith.truncf %286 : vector<8x16xf32> to vector<8x16xbf16>
    %289 = arith.truncf %287 : vector<8x16xf32> to vector<8x16xbf16>
    %cst_104 = arith.constant dense<0.000000e+00> : vector<8x8xf32>
    %290 = tpu.matmul %288, %289, %cst_104 {dimension_numbers = #tpu.dot_dimension_numbers<[1], [1], [0], [0], [0, 0, 1, 0], [], []>} : vector<8x16xbf16>, vector<8x16xbf16>, vector<8x8xf32> -> vector<8x8xf32>
    %291 = vector.broadcast %44 : vector<1x8xf32> to vector<8x8xf32>
    %292 = arith.addf %290, %291 : vector<8x8xf32>
    %cst_105 = arith.constant dense<0xFF800000> : vector<8xf32>
    %293 = vector.multi_reduction <maximumf>, %292, %cst_105 [1] : vector<8x8xf32> to vector<8xf32>
    %294 = vector.shape_cast %293 : vector<8xf32> to vector<8x1xf32>
    %295 = vector.broadcast %294 : vector<8x1xf32> to vector<8x8xf32>
    %296 = arith.subf %292, %295 : vector<8x8xf32>
    %297 = math.exp %296 : vector<8x8xf32>
    %cst_106 = arith.constant dense<0.000000e+00> : vector<8xf32>
    %298 = vector.multi_reduction <add>, %297, %cst_106 [1] : vector<8x8xf32> to vector<8xf32>
    %299 = vector.shape_cast %298 : vector<8xf32> to vector<8x1xf32>
    %300 = tpu.reciprocal %299 {approx = true} : vector<8x1xf32> -> vector<8x1xf32>
    %301 = vector.broadcast %300 : vector<8x1xf32> to vector<8x8xf32>
    %302 = arith.mulf %297, %301 : vector<8x8xf32>
    %c0_107 = arith.constant 0 : index
    %c64_108 = arith.constant 64 : index
    %c0_109 = arith.constant 0 : index
    %303 = vector.load %arg13[%c0_107, %c64_108, %c0_109] : memref<1x128x8xf32, #tpu.memory_space<vmem>>, vector<1x8x8xf32>
    %304 = vector.shape_cast %303 : vector<1x8x8xf32> to vector<8x8xf32>
    %305 = vector.shape_cast %302 : vector<8x8xf32> to vector<1x8x8xf32>
    tpu.vector_store %arg13[%c0_107, %c64_108, %c0_109], %305 {strides = array<i32>} : memref<1x128x8xf32, #tpu.memory_space<vmem>>, vector<1x8x8xf32>,
    %306 = arith.truncf %302 : vector<8x8xf32> to vector<8x8xbf16>
    %307 = vector.extract_strided_slice %38 {offsets = [0, 128], sizes = [8, 16], strides = [1, 1]} : vector<8x256xf32> to vector<8x16xf32>
    %308 = arith.truncf %307 : vector<8x16xf32> to vector<8x16xbf16>
    %cst_110 = arith.constant dense<0.000000e+00> : vector<8x16xf32>
    %309 = tpu.matmul %306, %308, %cst_110 {dimension_numbers = #tpu.dot_dimension_numbers<[1], [0], [0], [1], [0, 0, 1, 1], [], []>} : vector<8x8xbf16>, vector<8x16xbf16>, vector<8x16xf32> -> vector<8x16xf32>
    %310 = arith.truncf %309 : vector<8x16xf32> to vector<8x16xbf16>
    %c128 = arith.constant 128 : index
    %c0_111 = arith.constant 0 : index
    %311 = vector.load %arg10[%c128, %c0_111] : memref<256x32xbf16, #tpu.memory_space<vmem>>, vector<16x32xbf16>
    %cst_112 = arith.constant dense<0.000000e+00> : vector<8x32xf32>
    %312 = tpu.matmul %310, %311, %cst_112 {dimension_numbers = #tpu.dot_dimension_numbers<[1], [0], [0], [1], [0, 0, 1, 1], [], []>} : vector<8x16xbf16>, vector<16x32xbf16>, vector<8x32xf32> -> vector<8x32xf32>
    %313 = arith.addf %283, %312 : vector<8x32xf32>
    %314 = vector.extract_strided_slice %31 {offsets = [0, 144], sizes = [8, 16], strides = [1, 1]} : vector<8x512xf32> to vector<8x16xf32>
    %cst_113 = arith.constant 2.500000e-01 : f32
    %315 = vector.broadcast %cst_113 : f32 to vector<8x16xf32>
    %316 = arith.mulf %314, %315 : vector<8x16xf32>
    %317 = vector.extract_strided_slice %31 {offsets = [0, 400], sizes = [8, 16], strides = [1, 1]} : vector<8x512xf32> to vector<8x16xf32>
    %318 = arith.truncf %316 : vector<8x16xf32> to vector<8x16xbf16>
    %319 = arith.truncf %317 : vector<8x16xf32> to vector<8x16xbf16>
    %cst_114 = arith.constant dense<0.000000e+00> : vector<8x8xf32>
    %320 = tpu.matmul %318, %319, %cst_114 {dimension_numbers = #tpu.dot_dimension_numbers<[1], [1], [0], [0], [0, 0, 1, 0], [], []>} : vector<8x16xbf16>, vector<8x16xbf16>, vector<8x8xf32> -> vector<8x8xf32>
    %321 = vector.broadcast %44 : vector<1x8xf32> to vector<8x8xf32>
    %322 = arith.addf %320, %321 : vector<8x8xf32>
    %cst_115 = arith.constant dense<0xFF800000> : vector<8xf32>
    %323 = vector.multi_reduction <maximumf>, %322, %cst_115 [1] : vector<8x8xf32> to vector<8xf32>
    %324 = vector.shape_cast %323 : vector<8xf32> to vector<8x1xf32>
    %325 = vector.broadcast %324 : vector<8x1xf32> to vector<8x8xf32>
    %326 = arith.subf %322, %325 : vector<8x8xf32>
    %327 = math.exp %326 : vector<8x8xf32>
    %cst_116 = arith.constant dense<0.000000e+00> : vector<8xf32>
    %328 = vector.multi_reduction <add>, %327, %cst_116 [1] : vector<8x8xf32> to vector<8xf32>
    %329 = vector.shape_cast %328 : vector<8xf32> to vector<8x1xf32>
    %330 = tpu.reciprocal %329 {approx = true} : vector<8x1xf32> -> vector<8x1xf32>
    %331 = vector.broadcast %330 : vector<8x1xf32> to vector<8x8xf32>
    %332 = arith.mulf %327, %331 : vector<8x8xf32>
    %c0_117 = arith.constant 0 : index
    %c72 = arith.constant 72 : index
    %c0_118 = arith.constant 0 : index
    %333 = vector.load %arg13[%c0_117, %c72, %c0_118] : memref<1x128x8xf32, #tpu.memory_space<vmem>>, vector<1x8x8xf32>
    %334 = vector.shape_cast %333 : vector<1x8x8xf32> to vector<8x8xf32>
    %335 = vector.shape_cast %332 : vector<8x8xf32> to vector<1x8x8xf32>
    tpu.vector_store %arg13[%c0_117, %c72, %c0_118], %335 {strides = array<i32>} : memref<1x128x8xf32, #tpu.memory_space<vmem>>, vector<1x8x8xf32>,
    %336 = arith.truncf %332 : vector<8x8xf32> to vector<8x8xbf16>
    %337 = vector.extract_strided_slice %38 {offsets = [0, 144], sizes = [8, 16], strides = [1, 1]} : vector<8x256xf32> to vector<8x16xf32>
    %338 = arith.truncf %337 : vector<8x16xf32> to vector<8x16xbf16>
    %cst_119 = arith.constant dense<0.000000e+00> : vector<8x16xf32>
    %339 = tpu.matmul %336, %338, %cst_119 {dimension_numbers = #tpu.dot_dimension_numbers<[1], [0], [0], [1], [0, 0, 1, 1], [], []>} : vector<8x8xbf16>, vector<8x16xbf16>, vector<8x16xf32> -> vector<8x16xf32>
    %340 = arith.truncf %339 : vector<8x16xf32> to vector<8x16xbf16>
    %c144 = arith.constant 144 : index
    %c0_120 = arith.constant 0 : index
    %341 = vector.load %arg10[%c144, %c0_120] : memref<256x32xbf16, #tpu.memory_space<vmem>>, vector<16x32xbf16>
    %cst_121 = arith.constant dense<0.000000e+00> : vector<8x32xf32>
    %342 = tpu.matmul %340, %341, %cst_121 {dimension_numbers = #tpu.dot_dimension_numbers<[1], [0], [0], [1], [0, 0, 1, 1], [], []>} : vector<8x16xbf16>, vector<16x32xbf16>, vector<8x32xf32> -> vector<8x32xf32>
    %343 = arith.addf %313, %342 : vector<8x32xf32>
    %344 = vector.extract_strided_slice %31 {offsets = [0, 160], sizes = [8, 16], strides = [1, 1]} : vector<8x512xf32> to vector<8x16xf32>
    %cst_122 = arith.constant 2.500000e-01 : f32
    %345 = vector.broadcast %cst_122 : f32 to vector<8x16xf32>
    %346 = arith.mulf %344, %345 : vector<8x16xf32>
    %347 = vector.extract_strided_slice %31 {offsets = [0, 416], sizes = [8, 16], strides = [1, 1]} : vector<8x512xf32> to vector<8x16xf32>
    %348 = arith.truncf %346 : vector<8x16xf32> to vector<8x16xbf16>
    %349 = arith.truncf %347 : vector<8x16xf32> to vector<8x16xbf16>
    %cst_123 = arith.constant dense<0.000000e+00> : vector<8x8xf32>
    %350 = tpu.matmul %348, %349, %cst_123 {dimension_numbers = #tpu.dot_dimension_numbers<[1], [1], [0], [0], [0, 0, 1, 0], [], []>} : vector<8x16xbf16>, vector<8x16xbf16>, vector<8x8xf32> -> vector<8x8xf32>
    %351 = vector.broadcast %44 : vector<1x8xf32> to vector<8x8xf32>
    %352 = arith.addf %350, %351 : vector<8x8xf32>
    %cst_124 = arith.constant dense<0xFF800000> : vector<8xf32>
    %353 = vector.multi_reduction <maximumf>, %352, %cst_124 [1] : vector<8x8xf32> to vector<8xf32>
    %354 = vector.shape_cast %353 : vector<8xf32> to vector<8x1xf32>
    %355 = vector.broadcast %354 : vector<8x1xf32> to vector<8x8xf32>
    %356 = arith.subf %352, %355 : vector<8x8xf32>
    %357 = math.exp %356 : vector<8x8xf32>
    %cst_125 = arith.constant dense<0.000000e+00> : vector<8xf32>
    %358 = vector.multi_reduction <add>, %357, %cst_125 [1] : vector<8x8xf32> to vector<8xf32>
    %359 = vector.shape_cast %358 : vector<8xf32> to vector<8x1xf32>
    %360 = tpu.reciprocal %359 {approx = true} : vector<8x1xf32> -> vector<8x1xf32>
    %361 = vector.broadcast %360 : vector<8x1xf32> to vector<8x8xf32>
    %362 = arith.mulf %357, %361 : vector<8x8xf32>
    %c0_126 = arith.constant 0 : index
    %c80_127 = arith.constant 80 : index
    %c0_128 = arith.constant 0 : index
    %363 = vector.load %arg13[%c0_126, %c80_127, %c0_128] : memref<1x128x8xf32, #tpu.memory_space<vmem>>, vector<1x8x8xf32>
    %364 = vector.shape_cast %363 : vector<1x8x8xf32> to vector<8x8xf32>
    %365 = vector.shape_cast %362 : vector<8x8xf32> to vector<1x8x8xf32>
    tpu.vector_store %arg13[%c0_126, %c80_127, %c0_128], %365 {strides = array<i32>} : memref<1x128x8xf32, #tpu.memory_space<vmem>>, vector<1x8x8xf32>,
    %366 = arith.truncf %362 : vector<8x8xf32> to vector<8x8xbf16>
    %367 = vector.extract_strided_slice %38 {offsets = [0, 160], sizes = [8, 16], strides = [1, 1]} : vector<8x256xf32> to vector<8x16xf32>
    %368 = arith.truncf %367 : vector<8x16xf32> to vector<8x16xbf16>
    %cst_129 = arith.constant dense<0.000000e+00> : vector<8x16xf32>
    %369 = tpu.matmul %366, %368, %cst_129 {dimension_numbers = #tpu.dot_dimension_numbers<[1], [0], [0], [1], [0, 0, 1, 1], [], []>} : vector<8x8xbf16>, vector<8x16xbf16>, vector<8x16xf32> -> vector<8x16xf32>
    %370 = arith.truncf %369 : vector<8x16xf32> to vector<8x16xbf16>
    %c160 = arith.constant 160 : index
    %c0_130 = arith.constant 0 : index
    %371 = vector.load %arg10[%c160, %c0_130] : memref<256x32xbf16, #tpu.memory_space<vmem>>, vector<16x32xbf16>
    %cst_131 = arith.constant dense<0.000000e+00> : vector<8x32xf32>
    %372 = tpu.matmul %370, %371, %cst_131 {dimension_numbers = #tpu.dot_dimension_numbers<[1], [0], [0], [1], [0, 0, 1, 1], [], []>} : vector<8x16xbf16>, vector<16x32xbf16>, vector<8x32xf32> -> vector<8x32xf32>
    %373 = arith.addf %343, %372 : vector<8x32xf32>
    %374 = vector.extract_strided_slice %31 {offsets = [0, 176], sizes = [8, 16], strides = [1, 1]} : vector<8x512xf32> to vector<8x16xf32>
    %cst_132 = arith.constant 2.500000e-01 : f32
    %375 = vector.broadcast %cst_132 : f32 to vector<8x16xf32>
    %376 = arith.mulf %374, %375 : vector<8x16xf32>
    %377 = vector.extract_strided_slice %31 {offsets = [0, 432], sizes = [8, 16], strides = [1, 1]} : vector<8x512xf32> to vector<8x16xf32>
    %378 = arith.truncf %376 : vector<8x16xf32> to vector<8x16xbf16>
    %379 = arith.truncf %377 : vector<8x16xf32> to vector<8x16xbf16>
    %cst_133 = arith.constant dense<0.000000e+00> : vector<8x8xf32>
    %380 = tpu.matmul %378, %379, %cst_133 {dimension_numbers = #tpu.dot_dimension_numbers<[1], [1], [0], [0], [0, 0, 1, 0], [], []>} : vector<8x16xbf16>, vector<8x16xbf16>, vector<8x8xf32> -> vector<8x8xf32>
    %381 = vector.broadcast %44 : vector<1x8xf32> to vector<8x8xf32>
    %382 = arith.addf %380, %381 : vector<8x8xf32>
    %cst_134 = arith.constant dense<0xFF800000> : vector<8xf32>
    %383 = vector.multi_reduction <maximumf>, %382, %cst_134 [1] : vector<8x8xf32> to vector<8xf32>
    %384 = vector.shape_cast %383 : vector<8xf32> to vector<8x1xf32>
    %385 = vector.broadcast %384 : vector<8x1xf32> to vector<8x8xf32>
    %386 = arith.subf %382, %385 : vector<8x8xf32>
    %387 = math.exp %386 : vector<8x8xf32>
    %cst_135 = arith.constant dense<0.000000e+00> : vector<8xf32>
    %388 = vector.multi_reduction <add>, %387, %cst_135 [1] : vector<8x8xf32> to vector<8xf32>
    %389 = vector.shape_cast %388 : vector<8xf32> to vector<8x1xf32>
    %390 = tpu.reciprocal %389 {approx = true} : vector<8x1xf32> -> vector<8x1xf32>
    %391 = vector.broadcast %390 : vector<8x1xf32> to vector<8x8xf32>
    %392 = arith.mulf %387, %391 : vector<8x8xf32>
    %c0_136 = arith.constant 0 : index
    %c88 = arith.constant 88 : index
    %c0_137 = arith.constant 0 : index
    %393 = vector.load %arg13[%c0_136, %c88, %c0_137] : memref<1x128x8xf32, #tpu.memory_space<vmem>>, vector<1x8x8xf32>
    %394 = vector.shape_cast %393 : vector<1x8x8xf32> to vector<8x8xf32>
    %395 = vector.shape_cast %392 : vector<8x8xf32> to vector<1x8x8xf32>
    tpu.vector_store %arg13[%c0_136, %c88, %c0_137], %395 {strides = array<i32>} : memref<1x128x8xf32, #tpu.memory_space<vmem>>, vector<1x8x8xf32>,
    %396 = arith.truncf %392 : vector<8x8xf32> to vector<8x8xbf16>
    %397 = vector.extract_strided_slice %38 {offsets = [0, 176], sizes = [8, 16], strides = [1, 1]} : vector<8x256xf32> to vector<8x16xf32>
    %398 = arith.truncf %397 : vector<8x16xf32> to vector<8x16xbf16>
    %cst_138 = arith.constant dense<0.000000e+00> : vector<8x16xf32>
    %399 = tpu.matmul %396, %398, %cst_138 {dimension_numbers = #tpu.dot_dimension_numbers<[1], [0], [0], [1], [0, 0, 1, 1], [], []>} : vector<8x8xbf16>, vector<8x16xbf16>, vector<8x16xf32> -> vector<8x16xf32>
    %400 = arith.truncf %399 : vector<8x16xf32> to vector<8x16xbf16>
    %c176 = arith.constant 176 : index
    %c0_139 = arith.constant 0 : index
    %401 = vector.load %arg10[%c176, %c0_139] : memref<256x32xbf16, #tpu.memory_space<vmem>>, vector<16x32xbf16>
    %cst_140 = arith.constant dense<0.000000e+00> : vector<8x32xf32>
    %402 = tpu.matmul %400, %401, %cst_140 {dimension_numbers = #tpu.dot_dimension_numbers<[1], [0], [0], [1], [0, 0, 1, 1], [], []>} : vector<8x16xbf16>, vector<16x32xbf16>, vector<8x32xf32> -> vector<8x32xf32>
    %403 = arith.addf %373, %402 : vector<8x32xf32>
    %404 = vector.extract_strided_slice %31 {offsets = [0, 192], sizes = [8, 16], strides = [1, 1]} : vector<8x512xf32> to vector<8x16xf32>
    %cst_141 = arith.constant 2.500000e-01 : f32
    %405 = vector.broadcast %cst_141 : f32 to vector<8x16xf32>
    %406 = arith.mulf %404, %405 : vector<8x16xf32>
    %407 = vector.extract_strided_slice %31 {offsets = [0, 448], sizes = [8, 16], strides = [1, 1]} : vector<8x512xf32> to vector<8x16xf32>
    %408 = arith.truncf %406 : vector<8x16xf32> to vector<8x16xbf16>
    %409 = arith.truncf %407 : vector<8x16xf32> to vector<8x16xbf16>
    %cst_142 = arith.constant dense<0.000000e+00> : vector<8x8xf32>
    %410 = tpu.matmul %408, %409, %cst_142 {dimension_numbers = #tpu.dot_dimension_numbers<[1], [1], [0], [0], [0, 0, 1, 0], [], []>} : vector<8x16xbf16>, vector<8x16xbf16>, vector<8x8xf32> -> vector<8x8xf32>
    %411 = vector.broadcast %44 : vector<1x8xf32> to vector<8x8xf32>
    %412 = arith.addf %410, %411 : vector<8x8xf32>
    %cst_143 = arith.constant dense<0xFF800000> : vector<8xf32>
    %413 = vector.multi_reduction <maximumf>, %412, %cst_143 [1] : vector<8x8xf32> to vector<8xf32>
    %414 = vector.shape_cast %413 : vector<8xf32> to vector<8x1xf32>
    %415 = vector.broadcast %414 : vector<8x1xf32> to vector<8x8xf32>
    %416 = arith.subf %412, %415 : vector<8x8xf32>
    %417 = math.exp %416 : vector<8x8xf32>
    %cst_144 = arith.constant dense<0.000000e+00> : vector<8xf32>
    %418 = vector.multi_reduction <add>, %417, %cst_144 [1] : vector<8x8xf32> to vector<8xf32>
    %419 = vector.shape_cast %418 : vector<8xf32> to vector<8x1xf32>
    %420 = tpu.reciprocal %419 {approx = true} : vector<8x1xf32> -> vector<8x1xf32>
    %421 = vector.broadcast %420 : vector<8x1xf32> to vector<8x8xf32>
    %422 = arith.mulf %417, %421 : vector<8x8xf32>
    %c0_145 = arith.constant 0 : index
    %c96_146 = arith.constant 96 : index
    %c0_147 = arith.constant 0 : index
    %423 = vector.load %arg13[%c0_145, %c96_146, %c0_147] : memref<1x128x8xf32, #tpu.memory_space<vmem>>, vector<1x8x8xf32>
    %424 = vector.shape_cast %423 : vector<1x8x8xf32> to vector<8x8xf32>
    %425 = vector.shape_cast %422 : vector<8x8xf32> to vector<1x8x8xf32>
    tpu.vector_store %arg13[%c0_145, %c96_146, %c0_147], %425 {strides = array<i32>} : memref<1x128x8xf32, #tpu.memory_space<vmem>>, vector<1x8x8xf32>,
    %426 = arith.truncf %422 : vector<8x8xf32> to vector<8x8xbf16>
    %427 = vector.extract_strided_slice %38 {offsets = [0, 192], sizes = [8, 16], strides = [1, 1]} : vector<8x256xf32> to vector<8x16xf32>
    %428 = arith.truncf %427 : vector<8x16xf32> to vector<8x16xbf16>
    %cst_148 = arith.constant dense<0.000000e+00> : vector<8x16xf32>
    %429 = tpu.matmul %426, %428, %cst_148 {dimension_numbers = #tpu.dot_dimension_numbers<[1], [0], [0], [1], [0, 0, 1, 1], [], []>} : vector<8x8xbf16>, vector<8x16xbf16>, vector<8x16xf32> -> vector<8x16xf32>
    %430 = arith.truncf %429 : vector<8x16xf32> to vector<8x16xbf16>
    %c192 = arith.constant 192 : index
    %c0_149 = arith.constant 0 : index
    %431 = vector.load %arg10[%c192, %c0_149] : memref<256x32xbf16, #tpu.memory_space<vmem>>, vector<16x32xbf16>
    %cst_150 = arith.constant dense<0.000000e+00> : vector<8x32xf32>
    %432 = tpu.matmul %430, %431, %cst_150 {dimension_numbers = #tpu.dot_dimension_numbers<[1], [0], [0], [1], [0, 0, 1, 1], [], []>} : vector<8x16xbf16>, vector<16x32xbf16>, vector<8x32xf32> -> vector<8x32xf32>
    %433 = arith.addf %403, %432 : vector<8x32xf32>
    %434 = vector.extract_strided_slice %31 {offsets = [0, 208], sizes = [8, 16], strides = [1, 1]} : vector<8x512xf32> to vector<8x16xf32>
    %cst_151 = arith.constant 2.500000e-01 : f32
    %435 = vector.broadcast %cst_151 : f32 to vector<8x16xf32>
    %436 = arith.mulf %434, %435 : vector<8x16xf32>
    %437 = vector.extract_strided_slice %31 {offsets = [0, 464], sizes = [8, 16], strides = [1, 1]} : vector<8x512xf32> to vector<8x16xf32>
    %438 = arith.truncf %436 : vector<8x16xf32> to vector<8x16xbf16>
    %439 = arith.truncf %437 : vector<8x16xf32> to vector<8x16xbf16>
    %cst_152 = arith.constant dense<0.000000e+00> : vector<8x8xf32>
    %440 = tpu.matmul %438, %439, %cst_152 {dimension_numbers = #tpu.dot_dimension_numbers<[1], [1], [0], [0], [0, 0, 1, 0], [], []>} : vector<8x16xbf16>, vector<8x16xbf16>, vector<8x8xf32> -> vector<8x8xf32>
    %441 = vector.broadcast %44 : vector<1x8xf32> to vector<8x8xf32>
    %442 = arith.addf %440, %441 : vector<8x8xf32>
    %cst_153 = arith.constant dense<0xFF800000> : vector<8xf32>
    %443 = vector.multi_reduction <maximumf>, %442, %cst_153 [1] : vector<8x8xf32> to vector<8xf32>
    %444 = vector.shape_cast %443 : vector<8xf32> to vector<8x1xf32>
    %445 = vector.broadcast %444 : vector<8x1xf32> to vector<8x8xf32>
    %446 = arith.subf %442, %445 : vector<8x8xf32>
    %447 = math.exp %446 : vector<8x8xf32>
    %cst_154 = arith.constant dense<0.000000e+00> : vector<8xf32>
    %448 = vector.multi_reduction <add>, %447, %cst_154 [1] : vector<8x8xf32> to vector<8xf32>
    %449 = vector.shape_cast %448 : vector<8xf32> to vector<8x1xf32>
    %450 = tpu.reciprocal %449 {approx = true} : vector<8x1xf32> -> vector<8x1xf32>
    %451 = vector.broadcast %450 : vector<8x1xf32> to vector<8x8xf32>
    %452 = arith.mulf %447, %451 : vector<8x8xf32>
    %c0_155 = arith.constant 0 : index
    %c104 = arith.constant 104 : index
    %c0_156 = arith.constant 0 : index
    %453 = vector.load %arg13[%c0_155, %c104, %c0_156] : memref<1x128x8xf32, #tpu.memory_space<vmem>>, vector<1x8x8xf32>
    %454 = vector.shape_cast %453 : vector<1x8x8xf32> to vector<8x8xf32>
    %455 = vector.shape_cast %452 : vector<8x8xf32> to vector<1x8x8xf32>
    tpu.vector_store %arg13[%c0_155, %c104, %c0_156], %455 {strides = array<i32>} : memref<1x128x8xf32, #tpu.memory_space<vmem>>, vector<1x8x8xf32>,
    %456 = arith.truncf %452 : vector<8x8xf32> to vector<8x8xbf16>
    %457 = vector.extract_strided_slice %38 {offsets = [0, 208], sizes = [8, 16], strides = [1, 1]} : vector<8x256xf32> to vector<8x16xf32>
    %458 = arith.truncf %457 : vector<8x16xf32> to vector<8x16xbf16>
    %cst_157 = arith.constant dense<0.000000e+00> : vector<8x16xf32>
    %459 = tpu.matmul %456, %458, %cst_157 {dimension_numbers = #tpu.dot_dimension_numbers<[1], [0], [0], [1], [0, 0, 1, 1], [], []>} : vector<8x8xbf16>, vector<8x16xbf16>, vector<8x16xf32> -> vector<8x16xf32>
    %460 = arith.truncf %459 : vector<8x16xf32> to vector<8x16xbf16>
    %c208 = arith.constant 208 : index
    %c0_158 = arith.constant 0 : index
    %461 = vector.load %arg10[%c208, %c0_158] : memref<256x32xbf16, #tpu.memory_space<vmem>>, vector<16x32xbf16>
    %cst_159 = arith.constant dense<0.000000e+00> : vector<8x32xf32>
    %462 = tpu.matmul %460, %461, %cst_159 {dimension_numbers = #tpu.dot_dimension_numbers<[1], [0], [0], [1], [0, 0, 1, 1], [], []>} : vector<8x16xbf16>, vector<16x32xbf16>, vector<8x32xf32> -> vector<8x32xf32>
    %463 = arith.addf %433, %462 : vector<8x32xf32>
    %464 = vector.extract_strided_slice %31 {offsets = [0, 224], sizes = [8, 16], strides = [1, 1]} : vector<8x512xf32> to vector<8x16xf32>
    %cst_160 = arith.constant 2.500000e-01 : f32
    %465 = vector.broadcast %cst_160 : f32 to vector<8x16xf32>
    %466 = arith.mulf %464, %465 : vector<8x16xf32>
    %467 = vector.extract_strided_slice %31 {offsets = [0, 480], sizes = [8, 16], strides = [1, 1]} : vector<8x512xf32> to vector<8x16xf32>
    %468 = arith.truncf %466 : vector<8x16xf32> to vector<8x16xbf16>
    %469 = arith.truncf %467 : vector<8x16xf32> to vector<8x16xbf16>
    %cst_161 = arith.constant dense<0.000000e+00> : vector<8x8xf32>
    %470 = tpu.matmul %468, %469, %cst_161 {dimension_numbers = #tpu.dot_dimension_numbers<[1], [1], [0], [0], [0, 0, 1, 0], [], []>} : vector<8x16xbf16>, vector<8x16xbf16>, vector<8x8xf32> -> vector<8x8xf32>
    %471 = vector.broadcast %44 : vector<1x8xf32> to vector<8x8xf32>
    %472 = arith.addf %470, %471 : vector<8x8xf32>
    %cst_162 = arith.constant dense<0xFF800000> : vector<8xf32>
    %473 = vector.multi_reduction <maximumf>, %472, %cst_162 [1] : vector<8x8xf32> to vector<8xf32>
    %474 = vector.shape_cast %473 : vector<8xf32> to vector<8x1xf32>
    %475 = vector.broadcast %474 : vector<8x1xf32> to vector<8x8xf32>
    %476 = arith.subf %472, %475 : vector<8x8xf32>
    %477 = math.exp %476 : vector<8x8xf32>
    %cst_163 = arith.constant dense<0.000000e+00> : vector<8xf32>
    %478 = vector.multi_reduction <add>, %477, %cst_163 [1] : vector<8x8xf32> to vector<8xf32>
    %479 = vector.shape_cast %478 : vector<8xf32> to vector<8x1xf32>
    %480 = tpu.reciprocal %479 {approx = true} : vector<8x1xf32> -> vector<8x1xf32>
    %481 = vector.broadcast %480 : vector<8x1xf32> to vector<8x8xf32>
    %482 = arith.mulf %477, %481 : vector<8x8xf32>
    %c0_164 = arith.constant 0 : index
    %c112_165 = arith.constant 112 : index
    %c0_166 = arith.constant 0 : index
    %483 = vector.load %arg13[%c0_164, %c112_165, %c0_166] : memref<1x128x8xf32, #tpu.memory_space<vmem>>, vector<1x8x8xf32>
    %484 = vector.shape_cast %483 : vector<1x8x8xf32> to vector<8x8xf32>
    %485 = vector.shape_cast %482 : vector<8x8xf32> to vector<1x8x8xf32>
    tpu.vector_store %arg13[%c0_164, %c112_165, %c0_166], %485 {strides = array<i32>} : memref<1x128x8xf32, #tpu.memory_space<vmem>>, vector<1x8x8xf32>,
    %486 = arith.truncf %482 : vector<8x8xf32> to vector<8x8xbf16>
    %487 = vector.extract_strided_slice %38 {offsets = [0, 224], sizes = [8, 16], strides = [1, 1]} : vector<8x256xf32> to vector<8x16xf32>
    %488 = arith.truncf %487 : vector<8x16xf32> to vector<8x16xbf16>
    %cst_167 = arith.constant dense<0.000000e+00> : vector<8x16xf32>
    %489 = tpu.matmul %486, %488, %cst_167 {dimension_numbers = #tpu.dot_dimension_numbers<[1], [0], [0], [1], [0, 0, 1, 1], [], []>} : vector<8x8xbf16>, vector<8x16xbf16>, vector<8x16xf32> -> vector<8x16xf32>
    %490 = arith.truncf %489 : vector<8x16xf32> to vector<8x16xbf16>
    %c224 = arith.constant 224 : index
    %c0_168 = arith.constant 0 : index
    %491 = vector.load %arg10[%c224, %c0_168] : memref<256x32xbf16, #tpu.memory_space<vmem>>, vector<16x32xbf16>
    %cst_169 = arith.constant dense<0.000000e+00> : vector<8x32xf32>
    %492 = tpu.matmul %490, %491, %cst_169 {dimension_numbers = #tpu.dot_dimension_numbers<[1], [0], [0], [1], [0, 0, 1, 1], [], []>} : vector<8x16xbf16>, vector<16x32xbf16>, vector<8x32xf32> -> vector<8x32xf32>
    %493 = arith.addf %463, %492 : vector<8x32xf32>
    %494 = vector.extract_strided_slice %31 {offsets = [0, 240], sizes = [8, 16], strides = [1, 1]} : vector<8x512xf32> to vector<8x16xf32>
    %cst_170 = arith.constant 2.500000e-01 : f32
    %495 = vector.broadcast %cst_170 : f32 to vector<8x16xf32>
    %496 = arith.mulf %494, %495 : vector<8x16xf32>
    %497 = vector.extract_strided_slice %31 {offsets = [0, 496], sizes = [8, 16], strides = [1, 1]} : vector<8x512xf32> to vector<8x16xf32>
    %498 = arith.truncf %496 : vector<8x16xf32> to vector<8x16xbf16>
    %499 = arith.truncf %497 : vector<8x16xf32> to vector<8x16xbf16>
    %cst_171 = arith.constant dense<0.000000e+00> : vector<8x8xf32>
    %500 = tpu.matmul %498, %499, %cst_171 {dimension_numbers = #tpu.dot_dimension_numbers<[1], [1], [0], [0], [0, 0, 1, 0], [], []>} : vector<8x16xbf16>, vector<8x16xbf16>, vector<8x8xf32> -> vector<8x8xf32>
    %501 = vector.broadcast %44 : vector<1x8xf32> to vector<8x8xf32>
    %502 = arith.addf %500, %501 : vector<8x8xf32>
    %cst_172 = arith.constant dense<0xFF800000> : vector<8xf32>
    %503 = vector.multi_reduction <maximumf>, %502, %cst_172 [1] : vector<8x8xf32> to vector<8xf32>
    %504 = vector.shape_cast %503 : vector<8xf32> to vector<8x1xf32>
    %505 = vector.broadcast %504 : vector<8x1xf32> to vector<8x8xf32>
    %506 = arith.subf %502, %505 : vector<8x8xf32>
    %507 = math.exp %506 : vector<8x8xf32>
    %cst_173 = arith.constant dense<0.000000e+00> : vector<8xf32>
    %508 = vector.multi_reduction <add>, %507, %cst_173 [1] : vector<8x8xf32> to vector<8xf32>
    %509 = vector.shape_cast %508 : vector<8xf32> to vector<8x1xf32>
    %510 = tpu.reciprocal %509 {approx = true} : vector<8x1xf32> -> vector<8x1xf32>
    %511 = vector.broadcast %510 : vector<8x1xf32> to vector<8x8xf32>
    %512 = arith.mulf %507, %511 : vector<8x8xf32>
    %c0_174 = arith.constant 0 : index
    %c120 = arith.constant 120 : index
    %c0_175 = arith.constant 0 : index
    %513 = vector.load %arg13[%c0_174, %c120, %c0_175] : memref<1x128x8xf32, #tpu.memory_space<vmem>>, vector<1x8x8xf32>
    %514 = vector.shape_cast %513 : vector<1x8x8xf32> to vector<8x8xf32>
    %515 = vector.shape_cast %512 : vector<8x8xf32> to vector<1x8x8xf32>
    tpu.vector_store %arg13[%c0_174, %c120, %c0_175], %515 {strides = array<i32>} : memref<1x128x8xf32, #tpu.memory_space<vmem>>, vector<1x8x8xf32>,
    %516 = arith.truncf %512 : vector<8x8xf32> to vector<8x8xbf16>
    %517 = vector.extract_strided_slice %38 {offsets = [0, 240], sizes = [8, 16], strides = [1, 1]} : vector<8x256xf32> to vector<8x16xf32>
    %518 = arith.truncf %517 : vector<8x16xf32> to vector<8x16xbf16>
    %cst_176 = arith.constant dense<0.000000e+00> : vector<8x16xf32>
    %519 = tpu.matmul %516, %518, %cst_176 {dimension_numbers = #tpu.dot_dimension_numbers<[1], [0], [0], [1], [0, 0, 1, 1], [], []>} : vector<8x8xbf16>, vector<8x16xbf16>, vector<8x16xf32> -> vector<8x16xf32>
    %520 = arith.truncf %519 : vector<8x16xf32> to vector<8x16xbf16>
    %c240 = arith.constant 240 : index
    %c0_177 = arith.constant 0 : index
    %521 = vector.load %arg10[%c240, %c0_177] : memref<256x32xbf16, #tpu.memory_space<vmem>>, vector<16x32xbf16>
    %cst_178 = arith.constant dense<0.000000e+00> : vector<8x32xf32>
    %522 = tpu.matmul %520, %521, %cst_178 {dimension_numbers = #tpu.dot_dimension_numbers<[1], [0], [0], [1], [0, 0, 1, 1], [], []>} : vector<8x16xbf16>, vector<16x32xbf16>, vector<8x32xf32> -> vector<8x32xf32>
    %523 = arith.addf %493, %522 : vector<8x32xf32>
    %c0_179 = arith.constant 0 : index
    %c0_180 = arith.constant 0 : index
    %524 = vector.load %arg11[%c0_179, %c0_180] : memref<1x32xf32, #tpu.memory_space<vmem>>, vector<1x32xf32>
    %525 = vector.broadcast %524 : vector<1x32xf32> to vector<8x32xf32>
    %526 = arith.addf %523, %525 : vector<8x32xf32>
    %527 = vector.broadcast %1 : vector<8x1xf32> to vector<8x32xf32>
    %528 = arith.mulf %526, %527 : vector<8x32xf32>
    %529 = arith.addf %0, %528 : vector<8x32xf32>
    %c0_181 = arith.constant 0 : index
    %c0_182 = arith.constant 0 : index
    %530 = vector.load %arg12[%c0_181, %c0_182] : memref<8x32xf32, #tpu.memory_space<vmem>>, vector<8x32xf32>
    tpu.vector_store %arg12[%c0_181, %c0_182], %529 {strides = array<i32>} : memref<8x32xf32, #tpu.memory_space<vmem>>, vector<8x32xf32>,
    return
  }
  func.func @transform_0(%arg0: i32) -> (i32, i32) {
    %c0_i32 = arith.constant 0 : i32
    %c0_i32_0 = arith.constant 0 : i32
    return %arg0, %c0_i32 : i32, i32
  }
  func.func @transform_1(%arg0: i32) -> (i32, i32) {
    %c0_i32 = arith.constant 0 : i32
    %c0_i32_0 = arith.constant 0 : i32
    return %arg0, %c0_i32 : i32, i32
  }
  func.func @transform_2(%arg0: i32) -> (i32, i32, i32) {
    %c0_i32 = arith.constant 0 : i32
    %c0_i32_0 = arith.constant 0 : i32
    %c0_i32_1 = arith.constant 0 : i32
    return %arg0, %c0_i32, %c0_i32_0 : i32, i32, i32
  }
  func.func @transform_3(%arg0: i32) -> (i32, i32) {
    %c0_i32 = arith.constant 0 : i32
    %c0_i32_0 = arith.constant 0 : i32
    %c0_i32_1 = arith.constant 0 : i32
    return %c0_i32, %c0_i32_0 : i32, i32
  }
  func.func @transform_4(%arg0: i32) -> (i32, i32) {
    %c0_i32 = arith.constant 0 : i32
    %c0_i32_0 = arith.constant 0 : i32
    %c0_i32_1 = arith.constant 0 : i32
    return %c0_i32, %c0_i32_0 : i32, i32
  }
  func.func @transform_5(%arg0: i32) -> (i32, i32) {
    %c0_i32 = arith.constant 0 : i32
    %c0_i32_0 = arith.constant 0 : i32
    %c0_i32_1 = arith.constant 0 : i32
    return %c0_i32, %c0_i32_0 : i32, i32
  }
  func.func @transform_6(%arg0: i32) -> (i32, i32) {
    %c0_i32 = arith.constant 0 : i32
    %c0_i32_0 = arith.constant 0 : i32
    %c0_i32_1 = arith.constant 0 : i32
    return %c0_i32, %c0_i32_0 : i32, i32
  }
  func.func @transform_7(%arg0: i32) -> (i32, i32) {
    %c0_i32 = arith.constant 0 : i32
    %c0_i32_0 = arith.constant 0 : i32
    %c0_i32_1 = arith.constant 0 : i32
    return %c0_i32, %c0_i32_0 : i32, i32
  }
  func.func @transform_8(%arg0: i32) -> (i32, i32) {
    %c0_i32 = arith.constant 0 : i32
    %c0_i32_0 = arith.constant 0 : i32
    %c0_i32_1 = arith.constant 0 : i32
    return %c0_i32, %c0_i32_0 : i32, i32
  }
  func.func @transform_9(%arg0: i32) -> (i32, i32) {
    %c0_i32 = arith.constant 0 : i32
    %c0_i32_0 = arith.constant 0 : i32
    %c0_i32_1 = arith.constant 0 : i32
    return %c0_i32, %c0_i32_0 : i32, i32
  }
  func.func @transform_10(%arg0: i32) -> (i32, i32) {
    %c0_i32 = arith.constant 0 : i32
    %c0_i32_0 = arith.constant 0 : i32
    %c0_i32_1 = arith.constant 0 : i32
    return %c0_i32, %c0_i32_0 : i32, i32
  }
  func.func @transform_11(%arg0: i32) -> (i32, i32) {
    %c0_i32 = arith.constant 0 : i32
    %c0_i32_0 = arith.constant 0 : i32
    return %arg0, %c0_i32 : i32, i32
  }
  func.func @transform_12(%arg0: i32) -> (i32, i32, i32) {
    %c0_i32 = arith.constant 0 : i32
    %c0_i32_0 = arith.constant 0 : i32
    %c0_i32_1 = arith.constant 0 : i32
    return %arg0, %c0_i32, %c0_i32_0 : i32, i32, i32
  }
}

module attributes {stable_mosaic.version = 11 : i64} {
  func.func @_out_head_kernel(%arg0: i32, %arg1: memref<16x32xf32, #tpu.memory_space<vmem>>, %arg2: memref<16x1xf32, #tpu.memory_space<vmem>>, %arg3: memref<1x32xf32, #tpu.memory_space<vmem>>, %arg4: memref<1x32xf32, #tpu.memory_space<vmem>>, %arg5: memref<32x128xbf16, #tpu.memory_space<vmem>>, %arg6: memref<1x128xf32, #tpu.memory_space<vmem>>, %arg7: memref<16x128xf32, #tpu.memory_space<vmem>>) attributes {dimension_semantics = [#tpu.dimension_semantics<parallel>], iteration_bounds = array<i64: 1>, scalar_prefetch = 0 : i64, scratch_operands = 0 : i64, tpu.core_type = #tpu.core_type<tc>, window_params = [{transform_indices = @transform_0, window_bounds = array<i64: 16, 32>}, {transform_indices = @transform_1, window_bounds = array<i64: 16, 1>}, {pipeline_mode = #tpu.pipeline_mode<synchronous>, transform_indices = @transform_2, window_bounds = array<i64: 1, 32>}, {pipeline_mode = #tpu.pipeline_mode<synchronous>, transform_indices = @transform_3, window_bounds = array<i64: 1, 32>}, {pipeline_mode = #tpu.pipeline_mode<synchronous>, transform_indices = @transform_4, window_bounds = array<i64: 32, 128>}, {pipeline_mode = #tpu.pipeline_mode<synchronous>, transform_indices = @transform_5, window_bounds = array<i64: 1, 128>}, {transform_indices = @transform_6, window_bounds = array<i64: 16, 128>}]} {
    %c0 = arith.constant 0 : index
    %c0_0 = arith.constant 0 : index
    %0 = vector.load %arg1[%c0, %c0_0] : memref<16x32xf32, #tpu.memory_space<vmem>>, vector<16x32xf32>
    %c0_1 = arith.constant 0 : index
    %c0_2 = arith.constant 0 : index
    %1 = vector.load %arg3[%c0_1, %c0_2] : memref<1x32xf32, #tpu.memory_space<vmem>>, vector<1x32xf32>
    %c0_3 = arith.constant 0 : index
    %c0_4 = arith.constant 0 : index
    %2 = vector.load %arg4[%c0_3, %c0_4] : memref<1x32xf32, #tpu.memory_space<vmem>>, vector<1x32xf32>
    %cst = arith.constant dense<0.000000e+00> : vector<16xf32>
    %3 = vector.multi_reduction <add>, %0, %cst [1] : vector<16x32xf32> to vector<16xf32>
    %4 = vector.shape_cast %3 : vector<16xf32> to vector<16x1xf32>
    %cst_5 = arith.constant 3.200000e+01 : f32
    %5 = vector.broadcast %cst_5 : f32 to vector<16x1xf32>
    %6 = arith.divf %4, %5 : vector<16x1xf32>
    %7 = vector.broadcast %6 : vector<16x1xf32> to vector<16x32xf32>
    %8 = arith.subf %0, %7 : vector<16x32xf32>
    %9 = arith.mulf %8, %8 : vector<16x32xf32>
    %cst_6 = arith.constant dense<0.000000e+00> : vector<16xf32>
    %10 = vector.multi_reduction <add>, %9, %cst_6 [1] : vector<16x32xf32> to vector<16xf32>
    %11 = vector.shape_cast %10 : vector<16xf32> to vector<16x1xf32>
    %cst_7 = arith.constant 3.200000e+01 : f32
    %12 = vector.broadcast %cst_7 : f32 to vector<16x1xf32>
    %13 = arith.divf %11, %12 : vector<16x1xf32>
    %cst_8 = arith.constant 9.99999974E-6 : f32
    %14 = vector.broadcast %cst_8 : f32 to vector<16x1xf32>
    %15 = arith.addf %13, %14 : vector<16x1xf32>
    %16 = math.rsqrt %15 : vector<16x1xf32>
    %17 = vector.broadcast %16 : vector<16x1xf32> to vector<16x32xf32>
    %18 = arith.mulf %8, %17 : vector<16x32xf32>
    %19 = vector.broadcast %1 : vector<1x32xf32> to vector<16x32xf32>
    %20 = arith.mulf %18, %19 : vector<16x32xf32>
    %21 = vector.broadcast %2 : vector<1x32xf32> to vector<16x32xf32>
    %22 = arith.addf %20, %21 : vector<16x32xf32>
    %23 = arith.truncf %22 : vector<16x32xf32> to vector<16x32xbf16>
    %c0_9 = arith.constant 0 : index
    %c0_10 = arith.constant 0 : index
    %24 = vector.load %arg5[%c0_9, %c0_10] : memref<32x128xbf16, #tpu.memory_space<vmem>>, vector<32x128xbf16>
    %cst_11 = arith.constant dense<0.000000e+00> : vector<16x128xf32>
    %25 = tpu.matmul %23, %24, %cst_11 {dimension_numbers = #tpu.dot_dimension_numbers<[1], [0], [0], [1], [0, 0, 1, 1], [], []>} : vector<16x32xbf16>, vector<32x128xbf16>, vector<16x128xf32> -> vector<16x128xf32>
    %c0_12 = arith.constant 0 : index
    %c0_13 = arith.constant 0 : index
    %26 = vector.load %arg6[%c0_12, %c0_13] : memref<1x128xf32, #tpu.memory_space<vmem>>, vector<1x128xf32>
    %27 = vector.broadcast %26 : vector<1x128xf32> to vector<16x128xf32>
    %28 = arith.addf %25, %27 : vector<16x128xf32>
    %c0_14 = arith.constant 0 : index
    %c0_15 = arith.constant 0 : index
    %29 = vector.load %arg2[%c0_14, %c0_15] : memref<16x1xf32, #tpu.memory_space<vmem>>, vector<16x1xf32>
    %30 = vector.broadcast %29 : vector<16x1xf32> to vector<16x128xf32>
    %31 = arith.mulf %28, %30 : vector<16x128xf32>
    %c0_16 = arith.constant 0 : index
    %c0_17 = arith.constant 0 : index
    %32 = vector.load %arg7[%c0_16, %c0_17] : memref<16x128xf32, #tpu.memory_space<vmem>>, vector<16x128xf32>
    tpu.vector_store %arg7[%c0_16, %c0_17], %31 {strides = array<i32>} : memref<16x128xf32, #tpu.memory_space<vmem>>, vector<16x128xf32>,
    return
  }
  func.func @transform_0(%arg0: i32) -> (i32, i32) {
    %c0_i32 = arith.constant 0 : i32
    %c0_i32_0 = arith.constant 0 : i32
    return %arg0, %c0_i32 : i32, i32
  }
  func.func @transform_1(%arg0: i32) -> (i32, i32) {
    %c0_i32 = arith.constant 0 : i32
    %c0_i32_0 = arith.constant 0 : i32
    return %arg0, %c0_i32 : i32, i32
  }
  func.func @transform_2(%arg0: i32) -> (i32, i32) {
    %c0_i32 = arith.constant 0 : i32
    %c0_i32_0 = arith.constant 0 : i32
    %c0_i32_1 = arith.constant 0 : i32
    return %c0_i32, %c0_i32_0 : i32, i32
  }
  func.func @transform_3(%arg0: i32) -> (i32, i32) {
    %c0_i32 = arith.constant 0 : i32
    %c0_i32_0 = arith.constant 0 : i32
    %c0_i32_1 = arith.constant 0 : i32
    return %c0_i32, %c0_i32_0 : i32, i32
  }
  func.func @transform_4(%arg0: i32) -> (i32, i32) {
    %c0_i32 = arith.constant 0 : i32
    %c0_i32_0 = arith.constant 0 : i32
    %c0_i32_1 = arith.constant 0 : i32
    return %c0_i32, %c0_i32_0 : i32, i32
  }
  func.func @transform_5(%arg0: i32) -> (i32, i32) {
    %c0_i32 = arith.constant 0 : i32
    %c0_i32_0 = arith.constant 0 : i32
    %c0_i32_1 = arith.constant 0 : i32
    return %c0_i32, %c0_i32_0 : i32, i32
  }
  func.func @transform_6(%arg0: i32) -> (i32, i32) {
    %c0_i32 = arith.constant 0 : i32
    %c0_i32_0 = arith.constant 0 : i32
    return %arg0, %c0_i32 : i32, i32
  }
}

</mosaic_0001>

<llo_original>
// kernel: _lambda_.6
$region0: #{_lambda_.6}
  #allocation0 [shape = 'u32[]', space=smem, size = 0x4, offset = 0x4, fixed_abs, tag = 'smem constant byte address 0x4 - core index']
  #allocation1 [shape = 'u32[144,128]{1,0:T(1,128)}', space=vmem, size = 0x12000, scoped, tag = 'internal scratch']
  %s0 = inlined_call_operand.vmem [shape: f32[16,16], index: 0, kind: input, shape index: {}]
  %s1 = inlined_call_operand.vmem [shape: f32[16,1], index: 1, kind: input, shape index: {}]
  %s2 = inlined_call_operand.vmem [shape: bf16[16,32], index: 2, kind: input, shape index: {}]
  %s3 = inlined_call_operand.vmem [shape: f32[1,32], index: 3, kind: input, shape index: {}]
  %s4 = inlined_call_operand.vmem [shape: f32[16,32], index: 4, kind: output, shape index: {}]
  %s5 = sld [smem:[#allocation0]]
  $region26: #{_lambda_.6} parent=0
    _
  %s7 = ssub.s32 1, %s5
  %s8 = scalar_select 0, %s7, %s5
  // Predicated region
  $region2: #{_lambda_.6} parent=0 // pred_check
    _
  $region3: #{_lambda_.6} parent=0 // pred_check_branch
    %10 = sbr.rel (0) target = $region5
  $region4: #{_lambda_.6} parent=0 // pred_region
    _
  $region5: #{_lambda_.6} parent=0 // pred_fallthru
    _
  // Predicated region
  $region6: #{_lambda_.6} parent=0 // pred_check
    _
  $region7: #{_lambda_.6} parent=0 // pred_check_branch
    %12 = sbr.rel (0) target = $region9
  $region8: #{_lambda_.6} parent=0 // pred_region
    _
  $region9: #{_lambda_.6} parent=0 // pred_fallthru
    _
  // Predicated region
  $region10: #{_lambda_.6} parent=0 // pred_check
    _
  $region11: #{_lambda_.6} parent=0 // pred_check_branch
    %14 = sbr.rel (0) target = $region13
  $region12: #{_lambda_.6} parent=0 // pred_region
    _
  $region13: #{_lambda_.6} parent=0 // pred_fallthru
    _
  // Predicated region
  $region14: #{_lambda_.6} parent=0 // pred_check
    _
  $region15: #{_lambda_.6} parent=0 // pred_check_branch
    %16 = sbr.rel (0) target = $region17
  $region16: #{_lambda_.6} parent=0 // pred_region
    _
  $region17: #{_lambda_.6} parent=0 // pred_fallthru
    _
  %v18 = vld [vmem:[%s1] sm:$0xff]
  %v19 = vld [vmem:[%s1 + $0x8] sm:$0xff]
  %v20 = vld [vmem:[%s0] sm:$0xff]
  %v21 = vld [vmem:[%s0 + $0x8] sm:$0xff]
  %23 = vset.pattern.permute.xlu0 0
  %24 = vperm.xlu0 %23, %v18
  %v25 = vpop.permute.xlu0 %24
  %28 = vset.pattern.permute.xlu0 0
  %29 = vperm.xlu0 %28, %v19
  %v30 = vpop.permute.xlu0 %29
  %v32 = vmul.f32 %v20, %v25
  %v33 = vmul.f32 %v21, %v30
  %v34 = vpack.c.bf16 %v33, %v32
  %v35 = vld [vmem:[%s2] sm:$0xf]
  %v36 = vld [vmem:[%s2 + $0x4] sm:$0xf]
  %v37 = vld [vmem:[%s3] sm:$0x1]
  %v39 = vlaneseq
  %v40 = vshrl.u32 %v39, 7
  %v41 = vsub.s32 0, %v40
  %v42 = vrot.slane %v37, %v41
  %v46 = vunpack.c.l.b16 %v35
  %v47 = vunpack.c.l.b16 %v36
  %v48 = vpack.c.b16 %v47, %v46
  %vm50 = vcmask 130048
  %v52 = vsel %vm50, %v34, 0
  %54 = vmatprep.subr.bf16.mxu0 0
  %55 = vmatpush1.bf16.msra.mxu0 %v48
  %56 = vmatprep.subr.bf16.mxu0 0
  %57 = vmatpush1.bf16.msra.mxu0 0
  %58 = vmatprep.subr.bf16.mxu0 0
  %59 = vmatpush1.bf16.msra.mxu0 0
  %60 = vmatprep.subr.bf16.mxu0 0
  %61 = vmatpush1.bf16.msra.mxu0 0
  %62 = vmatprep.subr.bf16.mxu0 0
  %63 = vmatpush1.bf16.msra.mxu0 0
  %64 = vmatprep.subr.bf16.mxu0 0
  %65 = vmatpush1.bf16.msra.mxu0 0
  %66 = vmatprep.subr.bf16.mxu0 0
  %67 = vmatpush1.bf16.msra.mxu0 0
  %68 = vmatprep.subr.bf16.mxu0 0
  %69 = vmatpush1.bf16.msra.mxu0 0
  %70 = vmatprep.subr.bf16.mxu0 0
  %71 = vmatpush1.bf16.msra.mxu0 0
  %72 = vmatprep.subr.bf16.mxu0 0
  %73 = vmatpush1.bf16.msra.mxu0 0
  %74 = vmatprep.subr.bf16.mxu0 0
  %75 = vmatpush1.bf16.msra.mxu0 0
  %76 = vmatprep.subr.bf16.mxu0 0
  %77 = vmatpush1.bf16.msra.mxu0 0
  %78 = vmatprep.subr.bf16.mxu0 0
  %79 = vmatpush1.bf16.msra.mxu0 0
  %80 = vmatprep.subr.bf16.mxu0 0
  %81 = vmatpush1.bf16.msra.mxu0 0
  %82 = vmatprep.subr.bf16.mxu0 0
  %83 = vmatpush1.bf16.msra.mxu0 0
  %84 = vmatprep.subr.bf16.mxu0 0
  %85 = vmatpush1.bf16.msra.mxu0 0
  %86 = vmatprep.mubr.bf16.mxu0 0
  %87 = vmatmul.mubr.bf16.gmra.mrb[0].mxu0 %v52
  %v88 = vpop.f32.mrb[0].mxu0
  %v89 = vadd.f32 %v42, %v88
  %v90 = vpop.f32.mrb[0].mxu0
  %v91 = vpop.f32.mrb[0].mxu0
  %v92 = vadd.f32 %v42, %v91
  %v93 = vpop.f32.mrb[0].mxu0
  %94 = vdwg.mxu0
  %v95 = vmul.f32 %v89, %v25
  %v96 = vmul.f32 %v92, %v30
  %vm97 = vcmask 261120
  %98 = vst.msk [vmem:[%s4] sm:$0xff] %vm97, %v95
  %99 = vst.msk [vmem:[%s4 + $0x8] sm:$0xff] %vm97, %v96
  // Predicated region
  $region18: #{_lambda_.6} parent=0 // pred_check
    _
  $region19: #{_lambda_.6} parent=0 // pred_check_branch
    %101 = sbr.rel (0) target = $region21
  $region20: #{_lambda_.6} parent=0 // pred_region
    _
  $region21: #{_lambda_.6} parent=0 // pred_fallthru
    _
  // Predicated region
  $region22: #{_lambda_.6} parent=0 // pred_check
    _
  $region23: #{_lambda_.6} parent=0 // pred_check_branch
    %103 = sbr.rel (0) target = $region25
  $region24: #{_lambda_.6} parent=0 // pred_region
    _
  $region25: #{_lambda_.6} parent=0 // pred_fallthru
    _

// kernel: _lambda_.8
$region0: #{_lambda_.8}
  #allocation0 [shape = 'u32[]', space=smem, size = 0x4, offset = 0x4, fixed_abs, tag = 'smem constant byte address 0x4 - core index']
  #allocation1 [shape = 'u32[144,128]{1,0:T(1,128)}', space=vmem, size = 0x12000, scoped, tag = 'internal scratch']
  %s0 = inlined_call_operand.vmem [shape: f32[16,32], index: 0, kind: input, shape index: {}]
  %s1 = inlined_call_operand.vmem [shape: f32[16,1], index: 1, kind: input, shape index: {}]
  %s2 = inlined_call_operand.vmem [shape: f32[1,32], index: 2, kind: input, shape index: {}]
  %s3 = inlined_call_operand.vmem [shape: f32[1,32], index: 3, kind: input, shape index: {}]
  %s4 = inlined_call_operand.vmem [shape: bf16[32,64], index: 4, kind: input, shape index: {}]
  %s5 = inlined_call_operand.vmem [shape: f32[1,64], index: 5, kind: input, shape index: {}]
  %s6 = inlined_call_operand.vmem [shape: bf16[64,32], index: 6, kind: input, shape index: {}]
  %s7 = inlined_call_operand.vmem [shape: f32[1,32], index: 7, kind: input, shape index: {}]
  %s8 = inlined_call_operand.vmem [shape: f32[16,32], index: 8, kind: output, shape index: {}]
  %s9 = sld [smem:[#allocation0]]
  $region42: #{_lambda_.8} parent=0
    _
  %s11 = ssub.s32 1, %s9
  %s12 = scalar_select 0, %s11, %s9
  // Predicated region
  $region2: #{_lambda_.8} parent=0 // pred_check
    _
  $region3: #{_lambda_.8} parent=0 // pred_check_branch
    %14 = sbr.rel (0) target = $region5
  $region4: #{_lambda_.8} parent=0 // pred_region
    _
  $region5: #{_lambda_.8} parent=0 // pred_fallthru
    _
  // Predicated region
  $region6: #{_lambda_.8} parent=0 // pred_check
    _
  $region7: #{_lambda_.8} parent=0 // pred_check_branch
    %16 = sbr.rel (0) target = $region9
  $region8: #{_lambda_.8} parent=0 // pred_region
    _
  $region9: #{_lambda_.8} parent=0 // pred_fallthru
    _
  // Predicated region
  $region10: #{_lambda_.8} parent=0 // pred_check
    _
  $region11: #{_lambda_.8} parent=0 // pred_check_branch
    %18 = sbr.rel (0) target = $region13
  $region12: #{_lambda_.8} parent=0 // pred_region
    _
  $region13: #{_lambda_.8} parent=0 // pred_fallthru
    _
  // Predicated region
  $region14: #{_lambda_.8} parent=0 // pred_check
    _
  $region15: #{_lambda_.8} parent=0 // pred_check_branch
    %20 = sbr.rel (0) target = $region17
  $region16: #{_lambda_.8} parent=0 // pred_region
    _
  $region17: #{_lambda_.8} parent=0 // pred_fallthru
    _
  // Predicated region
  $region18: #{_lambda_.8} parent=0 // pred_check
    _
  $region19: #{_lambda_.8} parent=0 // pred_check_branch
    %22 = sbr.rel (0) target = $region21
  $region20: #{_lambda_.8} parent=0 // pred_region
    _
  $region21: #{_lambda_.8} parent=0 // pred_fallthru
    _
  // Predicated region
  $region22: #{_lambda_.8} parent=0 // pred_check
    _
  $region23: #{_lambda_.8} parent=0 // pred_check_branch
    %24 = sbr.rel (0) target = $region25
  $region24: #{_lambda_.8} parent=0 // pred_region
    _
  $region25: #{_lambda_.8} parent=0 // pred_fallthru
    _
  // Predicated region
  $region26: #{_lambda_.8} parent=0 // pred_check
    _
  $region27: #{_lambda_.8} parent=0 // pred_check_branch
    %26 = sbr.rel (0) target = $region29
  $region28: #{_lambda_.8} parent=0 // pred_region
    _
  $region29: #{_lambda_.8} parent=0 // pred_fallthru
    _
  // Predicated region
  $region30: #{_lambda_.8} parent=0 // pred_check
    _
  $region31: #{_lambda_.8} parent=0 // pred_check_branch
    %28 = sbr.rel (0) target = $region33
  $region32: #{_lambda_.8} parent=0 // pred_region
    _
  $region33: #{_lambda_.8} parent=0 // pred_fallthru
    _
  %v30 = vld [vmem:[%s0] sm:$0xff]
  %v31 = vld [vmem:[%s0 + $0x8] sm:$0xff]
  %v32 = vld [vmem:[%s2] sm:$0x1]
  %v33 = vld [vmem:[%s3] sm:$0x1]
  %vm34 = vcmask 261120
  %v35 = vsel %vm34, %v30, 0.0
  %36 = vadd.xlane.f32.xlu0 %v35
  %v37 = vpop.xlane.xlu0 %36
  %v38 = vsel %vm34, %v31, 0.0
  %39 = vadd.xlane.f32.xlu0 %v38
  %v40 = vpop.xlane.xlu0 %39
  %v41 = vrcp.pop 32.0
  %v42 = vmul.f32 %v37, %v41
  %v43 = vmul.f32 %v40, %v41
  %v44 = vsub.f32 %v30, %v42
  %v45 = vsub.f32 %v31, %v43
  %v46 = vmul.f32 %v44, %v44
  %v47 = vmul.f32 %v45, %v45
  %v48 = vsel %vm34, %v46, 0.0
  %49 = vadd.xlane.f32.xlu0 %v48
  %v50 = vpop.xlane.xlu0 %49
  %v51 = vsel %vm34, %v47, 0.0
  %52 = vadd.xlane.f32.xlu0 %v51
  %v53 = vpop.xlane.xlu0 %52
  %v54 = vmul.f32 %v50, %v41
  %v55 = vmul.f32 %v53, %v41
  %v56 = vadd.f32 %v54, 1e-05
  %v57 = vadd.f32 %v55, 1e-05
  %v58 = vrsqrt.pop %v56
  %v59 = vrsqrt.pop %v57
  %v60 = vmul.f32 %v44, %v58
  %v61 = vmul.f32 %v45, %v59
  %v63 = vlaneseq
  %v64 = vshrl.u32 %v63, 7
  %v65 = vsub.s32 0, %v64
  %v66 = vrot.slane %v32, %v65
  %v68 = vmul.f32 %v60, %v66
  %v69 = vmul.f32 %v61, %v66
  %v71 = vlaneseq
  %v72 = vshrl.u32 %v71, 7
  %v73 = vsub.s32 0, %v72
  %v74 = vrot.slane %v33, %v73
  %v76 = vadd.f32 %v68, %v74
  %v77 = vadd.f32 %v69, %v74
  %v78 = vpack.c.bf16 %v77, %v76
  %v79 = vld [vmem:[%s4] sm:$0xf]
  %v80 = vld [vmem:[%s4 + $0x4] sm:$0xf]
  %v81 = vld [vmem:[%s4 + $0x8] sm:$0xf]
  %v82 = vld [vmem:[%s4 + $0xc] sm:$0xf]
  %v83 = vld [vmem:[%s5] sm:$0x1]
  %v85 = vlaneseq
  %v86 = vshrl.u32 %v85, 7
  %v87 = vsub.s32 0, %v86
  %v88 = vrot.slane %v83, %v87
  %v94 = vunpack.c.l.b16 %v79
  %v95 = vunpack.c.l.b16 %v80
  %v96 = vunpack.c.l.b16 %v81
  %v97 = vunpack.c.l.b16 %v82
  %v98 = vpack.c.b16 %v95, %v94
  %v99 = vpack.c.b16 %v97, %v96
  %v103 = vsel %vm34, %v78, 0
  %105 = vmatprep.subr.bf16.mxu0 0
  %106 = vmatpush1.bf16.msra.mxu0 %v98
  %107 = vmatprep.subr.bf16.mxu0 0
  %108 = vmatpush1.bf16.msra.mxu0 %v99
  %109 = vmatprep.subr.bf16.mxu0 0
  %110 = vmatpush1.bf16.msra.mxu0 0
  %111 = vmatprep.subr.bf16.mxu0 0
  %112 = vmatpush1.bf16.msra.mxu0 0
  %113 = vmatprep.subr.bf16.mxu0 0
  %114 = vmatpush1.bf16.msra.mxu0 0
  %115 = vmatprep.subr.bf16.mxu0 0
  %116 = vmatpush1.bf16.msra.mxu0 0
  %117 = vmatprep.subr.bf16.mxu0 0
  %118 = vmatpush1.bf16.msra.mxu0 0
  %119 = vmatprep.subr.bf16.mxu0 0
  %120 = vmatpush1.bf16.msra.mxu0 0
  %121 = vmatprep.subr.bf16.mxu0 0
  %122 = vmatpush1.bf16.msra.mxu0 0
  %123 = vmatprep.subr.bf16.mxu0 0
  %124 = vmatpush1.bf16.msra.mxu0 0
  %125 = vmatprep.subr.bf16.mxu0 0
  %126 = vmatpush1.bf16.msra.mxu0 0
  %127 = vmatprep.subr.bf16.mxu0 0
  %128 = vmatpush1.bf16.msra.mxu0 0
  %129 = vmatprep.subr.bf16.mxu0 0
  %130 = vmatpush1.bf16.msra.mxu0 0
  %131 = vmatprep.subr.bf16.mxu0 0
  %132 = vmatpush1.bf16.msra.mxu0 0
  %133 = vmatprep.subr.bf16.mxu0 0
  %134 = vmatpush1.bf16.msra.mxu0 0
  %135 = vmatprep.subr.bf16.mxu0 0
  %136 = vmatpush1.bf16.msra.mxu0 0
  %137 = vmatprep.mubr.bf16.mxu0 0
  %138 = vmatmul.mubr.bf16.gmra.mrb[0].mxu0 %v103
  %v139 = vpop.f32.mrb[0].mxu0
  %v140 = vadd.f32 %v88, %v139
  %v141 = vpop.f32.mrb[0].mxu0
  %v142 = vpop.f32.mrb[0].mxu0
  %v143 = vadd.f32 %v88, %v142
  %v144 = vpop.f32.mrb[0].mxu0
  %145 = vdwg.mxu0
  %v146 = vmul.f32 %v140, 0.70710677
  %v147 = vmul.f32 %v143, 0.70710677
  %v148 = vand.u32 2147483647, %v146
  %v149 = vand.u32 2147483647, %v147
  %v150 = vmul.f32 %v148, 0.3275911
  %v151 = vmul.f32 %v149, 0.3275911
  %v152 = vadd.f32 %v150, 1.0
  %v153 = vadd.f32 %v151, 1.0
  %v154 = vrcp.pop %v152
  %v155 = vmul.f32 1.0, %v154
  %v156 = vrcp.pop %v153
  %v157 = vmul.f32 1.0, %v156
  %v158 = vmul.f32 %v155, 1.0614054
  %v159 = vmul.f32 %v157, 1.0614054
  %v160 = vsub.f32 %v158, 1.4531521
  %v161 = vsub.f32 %v159, 1.4531521
  %v162 = vmul.f32 %v160, %v155
  %v163 = vmul.f32 %v161, %v157
  %v164 = vadd.f32 %v162, 1.4214138
  %v165 = vadd.f32 %v163, 1.4214138
  %v166 = vmul.f32 %v164, %v155
  %v167 = vmul.f32 %v165, %v157
  %v168 = vsub.f32 %v166, 0.28449672
  %v169 = vsub.f32 %v167, 0.28449672
  %v170 = vmul.f32 %v168, %v155
  %v171 = vmul.f32 %v169, %v157
  %v172 = vadd.f32 %v170, 0.2548296
  %v173 = vadd.f32 %v171, 0.2548296
  %v174 = vmul.f32 %v172, %v155
  %v175 = vmul.f32 %v173, %v157
  %v176 = vsub.f32 0.0, %v148
  %v177 = vsub.f32 0.0, %v149
  %v178 = vmul.f32 %v176, %v148
  %v179 = vmul.f32 %v177, %v149
  %v180 = vmul.f32 %v178, 1.442695
  %v181 = vpow.pop %v180
  %v182 = vmul.f32 %v179, 1.442695
  %v183 = vpow.pop %v182
  %v184 = vmul.f32 %v174, %v181
  %v185 = vmul.f32 %v175, %v183
  %v186 = vsub.f32 1.0, %v184
  %v187 = vsub.f32 1.0, %v185
  %vm188 = vcmp.ge.f32.partialorder %v146, 0.0
  %vm189 = vcmp.ge.f32.partialorder %v147, 0.0
  %v190 = vsub.f32 0.0, %v186
  %v191 = vsub.f32 0.0, %v187
  %v192 = vsel %vm188, %v186, %v190
  %v193 = vsel %vm189, %v187, %v191
  %v194 = vmul.f32 %v140, 0.5
  %v195 = vmul.f32 %v143, 0.5
  %v196 = vadd.f32 %v192, 1.0
  %v197 = vadd.f32 %v193, 1.0
  %v198 = vmul.f32 %v194, %v196
  %v199 = vmul.f32 %v195, %v197
  %v200 = vpack.c.bf16 %v199, %v198
  %v201 = vld [vmem:[%s6] sm:$0xf]
  %v202 = vld [vmem:[%s6 + $0x4] sm:$0xf]
  %v203 = vld [vmem:[%s6 + $0x8] sm:$0xf]
  %v204 = vld [vmem:[%s6 + $0xc] sm:$0xf]
  %v205 = vld [vmem:[%s6 + $0x10] sm:$0xf]
  %v206 = vld [vmem:[%s6 + $0x14] sm:$0xf]
  %v207 = vld [vmem:[%s6 + $0x18] sm:$0xf]
  %v208 = vld [vmem:[%s6 + $0x1c] sm:$0xf]
  %v209 = vld [vmem:[%s7] sm:$0x1]
  %v211 = vlaneseq
  %v212 = vshrl.u32 %v211, 7
  %v213 = vsub.s32 0, %v212
  %v214 = vrot.slane %v209, %v213
  %v224 = vunpack.c.l.b16 %v201
  %v225 = vunpack.c.l.b16 %v202
  %v226 = vunpack.c.l.b16 %v203
  %v227 = vunpack.c.l.b16 %v204
  %v228 = vunpack.c.l.b16 %v205
  %v229 = vunpack.c.l.b16 %v206
  %v230 = vunpack.c.l.b16 %v207
  %v231 = vunpack.c.l.b16 %v208
  %v232 = vpack.c.b16 %v225, %v224
  %v233 = vpack.c.b16 %v227, %v226
  %v234 = vpack.c.b16 %v229, %v228
  %v235 = vpack.c.b16 %v231, %v230
  %vm240 = vcmask 523264
  %v242 = vsel %vm240, %v200, 0
  %244 = vmatprep.subr.bf16.mxu0 0
  %245 = vmatpush1.bf16.msra.mxu0 %v232
  %246 = vmatprep.subr.bf16.mxu0 0
  %247 = vmatpush1.bf16.msra.mxu0 %v233
  %248 = vmatprep.subr.bf16.mxu0 0
  %249 = vmatpush1.bf16.msra.mxu0 %v234
  %250 = vmatprep.subr.bf16.mxu0 0
  %251 = vmatpush1.bf16.msra.mxu0 %v235
  %252 = vmatprep.subr.bf16.mxu0 0
  %253 = vmatpush1.bf16.msra.mxu0 0
  %254 = vmatprep.subr.bf16.mxu0 0
  %255 = vmatpush1.bf16.msra.mxu0 0
  %256 = vmatprep.subr.bf16.mxu0 0
  %257 = vmatpush1.bf16.msra.mxu0 0
  %258 = vmatprep.subr.bf16.mxu0 0
  %259 = vmatpush1.bf16.msra.mxu0 0
  %260 = vmatprep.subr.bf16.mxu0 0
  %261 = vmatpush1.bf16.msra.mxu0 0
  %262 = vmatprep.subr.bf16.mxu0 0
  %263 = vmatpush1.bf16.msra.mxu0 0
  %264 = vmatprep.subr.bf16.mxu0 0
  %265 = vmatpush1.bf16.msra.mxu0 0
  %266 = vmatprep.subr.bf16.mxu0 0
  %267 = vmatpush1.bf16.msra.mxu0 0
  %268 = vmatprep.subr.bf16.mxu0 0
  %269 = vmatpush1.bf16.msra.mxu0 0
  %270 = vmatprep.subr.bf16.mxu0 0
  %271 = vmatpush1.bf16.msra.mxu0 0
  %272 = vmatprep.subr.bf16.mxu0 0
  %273 = vmatpush1.bf16.msra.mxu0 0
  %274 = vmatprep.subr.bf16.mxu0 0
  %275 = vmatpush1.bf16.msra.mxu0 0
  %276 = vmatprep.mubr.bf16.mxu0 0
  %277 = vmatmul.mubr.bf16.gmra.mrb[0].mxu0 %v242
  %v278 = vpop.f32.mrb[0].mxu0
  %v279 = vadd.f32 %v214, %v278
  %v280 = vpop.f32.mrb[0].mxu0
  %v281 = vpop.f32.mrb[0].mxu0
  %v282 = vadd.f32 %v214, %v281
  %v283 = vpop.f32.mrb[0].mxu0
  %284 = vdwg.mxu0
  %v285 = vld [vmem:[%s1] sm:$0xff]
  %v286 = vld [vmem:[%s1 + $0x8] sm:$0xff]
  %288 = vset.pattern.permute.xlu0 0
  %289 = vperm.xlu0 %288, %v285
  %v290 = vpop.permute.xlu0 %289
  %293 = vset.pattern.permute.xlu0 0
  %294 = vperm.xlu0 %293, %v286
  %v295 = vpop.permute.xlu0 %294
  %v297 = vmul.f32 %v279, %v290
  %v298 = vmul.f32 %v282, %v295
  %v299 = vadd.f32 %v30, %v297
  %v300 = vadd.f32 %v31, %v298
  %301 = vst.msk [vmem:[%s8] sm:$0xff] %vm34, %v299
  %302 = vst.msk [vmem:[%s8 + $0x8] sm:$0xff] %vm34, %v300
  // Predicated region
  $region34: #{_lambda_.8} parent=0 // pred_check
    _
  $region35: #{_lambda_.8} parent=0 // pred_check_branch
    %304 = sbr.rel (0) target = $region37
  $region36: #{_lambda_.8} parent=0 // pred_region
    _
  $region37: #{_lambda_.8} parent=0 // pred_fallthru
    _
  // Predicated region
  $region38: #{_lambda_.8} parent=0 // pred_check
    _
  $region39: #{_lambda_.8} parent=0 // pred_check_branch
    %306 = sbr.rel (0) target = $region41
  $region40: #{_lambda_.8} parent=0 // pred_region
    _
  $region41: #{_lambda_.8} parent=0 // pred_fallthru
    _

// kernel: _lambda_.7
$region0: #{_lambda_.7}
  #allocation0 [shape = 'u32[]', space=smem, size = 0x4, offset = 0x4, fixed_abs, tag = 'smem constant byte address 0x4 - core index']
  #allocation1 [shape = 'u32[144,128]{1,0:T(1,128)}', space=vmem, size = 0x12000, scoped, tag = 'internal scratch']
  %s0 = inlined_call_operand.vmem [shape: f32[16,32], index: 0, kind: input, shape index: {}]
  %s1 = inlined_call_operand.vmem [shape: f32[16,1], index: 1, kind: input, shape index: {}]
  %s2 = inlined_call_operand.vmem [shape: f32[2,1,8], index: 2, kind: input, shape index: {}]
  %s3 = inlined_call_operand.vmem [shape: f32[1,32], index: 3, kind: input, shape index: {}]
  %s4 = inlined_call_operand.vmem [shape: f32[1,32], index: 4, kind: input, shape index: {}]
  %s5 = inlined_call_operand.vmem [shape: bf16[32,128], index: 5, kind: input, shape index: {}]
  %s6 = inlined_call_operand.vmem [shape: f32[1,128], index: 6, kind: input, shape index: {}]
  %s7 = inlined_call_operand.vmem [shape: bf16[32,64], index: 7, kind: input, shape index: {}]
  %s8 = inlined_call_operand.vmem [shape: f32[1,64], index: 8, kind: input, shape index: {}]
  %s9 = inlined_call_operand.vmem [shape: bf16[64,32], index: 9, kind: input, shape index: {}]
  %s10 = inlined_call_operand.vmem [shape: f32[1,32], index: 10, kind: input, shape index: {}]
  %s11 = inlined_call_operand.vmem [shape: f32[16,32], index: 11, kind: output, shape index: {}]
  %s12 = sld [smem:[#allocation0]]
  $region77: #{_lambda_.7} parent=0
    _
  %s14 = ssub.s32 1, %s12
  %s15 = scalar_select 0, %s14, %s12
  loop: start=0, step=1, limit=4
  $region2: #{_lambda_.7} parent=0 // loop_pre_header
    _
  $region3: #{_lambda_.7} parent=0 // loop_header
    %s17 = sphi 0, %s21
    %p18 = scmp.ge.s32.totalorder %s17, 4
    %s27 = sphi 0, %s29
    %s30 = sphi 0, %s27
    %s31 = sphi 0, %s30
    %s47 = sphi 0, %s31
    %s53 = sphi 0, %s55
    %s56 = sphi 0, %s53
    %s57 = sphi 0, %s56
    %s73 = sphi 0, %s57
    %s79 = sphi 0, %s81
    %s82 = sphi 0, %s79
    %s83 = sphi 0, %s82
    %s99 = sphi 0, %s83
    %s103 = sphi 0, %s103
    %s105 = sphi 0, %s103
    %s106 = sphi 0, %s105
    %s120 = sphi 0, %s106
    %s124 = sphi 0, %s124
    %s126 = sphi 0, %s124
    %s127 = sphi 0, %s126
    %s141 = sphi 0, %s127
    %s145 = sphi 0, %s145
    %s147 = sphi 0, %s145
    %s148 = sphi 0, %s147
    %s162 = sphi 0, %s148
    %s166 = sphi 0, %s166
    %s168 = sphi 0, %s166
    %s169 = sphi 0, %s168
    %s183 = sphi 0, %s169
    %s187 = sphi 0, %s187
    %s189 = sphi 0, %s187
    %s190 = sphi 0, %s189
    %s204 = sphi 0, %s190
    %s208 = sphi 0, %s208
    %s210 = sphi 0, %s208
    %s211 = sphi 0, %s210
    %s225 = sphi 0, %s211
    %s229 = sphi 0, %s229
    %s231 = sphi 0, %s229
    %s232 = sphi 0, %s231
    %s246 = sphi 0, %s232
    %s250 = sphi 0, %s250
    %s252 = sphi 0, %s250
    %s253 = sphi 0, %s252
    %s267 = sphi 0, %s253
    %s273 = sphi 0, %s275
    %s276 = sphi 0, %s273
    %s277 = sphi 0, %s276
    %s293 = sphi 0, %s277
  $region4: #{_lambda_.7} parent=0 // loop_header_branch
    %20 = sbr.rel (%p18) target = $region8
  $region5: #{_lambda_.7} parent=0 // loop_body
    %s22 = ssub.s32 %s17, 1
    %s23 = ssub.s32 %s17, 2
    %s24 = sadd.s32 %s17, 1
    %s25 = ssub.s32 %s17, %s24
    %p26 = scmp.eq.s32.totalorder %s25, 0
    %s28 = sadd.s32 %s27, 1
    %s29 = scalar_select %p26, %s27, %s28
    %p32 = pneg %p26
    %p33 = scmp.eq.s32.totalorder %s17, 1
    %p34 = por %p32, %p33
    %p35 = scmp.ne.s32.totalorder %s27, %s30
    %p36 = scmp.eq.s32.totalorder %s17, 0
    %p37 = por %p35, %p36
    %p38 = scmp.ne.s32.totalorder %s27, %s30
    %p39 = scmp.eq.s32.totalorder %s22, 1
    %p40 = por %p38, %p39
    %p41 = scmp.ne.s32.totalorder %s30, %s31
    %p42 = scmp.eq.s32.totalorder %s22, 0
    %p43 = por %p41, %p42
    %p44 = scmp.ne.s32.totalorder %s30, %s31
    %p45 = scmp.eq.s32.totalorder %s23, 1
    %p46 = por %p44, %p45
    %p48 = scmp.ne.s32.totalorder %s31, %s47
    %p49 = scmp.eq.s32.totalorder %s23, 0
    %p50 = por %p48, %p49
    %s51 = ssub.s32 %s17, %s24
    %p52 = scmp.eq.s32.totalorder %s51, 0
    %s54 = sadd.s32 %s53, 1
    %s55 = scalar_select %p52, %s53, %s54
    %p58 = pneg %p52
    %p59 = scmp.eq.s32.totalorder %s17, 1
    %p60 = por %p58, %p59
    %p61 = scmp.ne.s32.totalorder %s53, %s56
    %p62 = scmp.eq.s32.totalorder %s17, 0
    %p63 = por %p61, %p62
    %p64 = scmp.ne.s32.totalorder %s53, %s56
    %p65 = scmp.eq.s32.totalorder %s22, 1
    %p66 = por %p64, %p65
    %p67 = scmp.ne.s32.totalorder %s56, %s57
    %p68 = scmp.eq.s32.totalorder %s22, 0
    %p69 = por %p67, %p68
    %p70 = scmp.ne.s32.totalorder %s56, %s57
    %p71 = scmp.eq.s32.totalorder %s23, 1
    %p72 = por %p70, %p71
    %p74 = scmp.ne.s32.totalorder %s57, %s73
    %p75 = scmp.eq.s32.totalorder %s23, 0
    %p76 = por %p74, %p75
    %s77 = ssub.s32 %s17, %s24
    %p78 = scmp.eq.s32.totalorder %s77, 0
    %s80 = sadd.s32 %s79, 1
    %s81 = scalar_select %p78, %s79, %s80
    %p84 = pneg %p78
    %p85 = scmp.eq.s32.totalorder %s17, 1
    %p86 = por %p84, %p85
    %p87 = scmp.ne.s32.totalorder %s79, %s82
    %p88 = scmp.eq.s32.totalorder %s17, 0
    %p89 = por %p87, %p88
    %p90 = scmp.ne.s32.totalorder %s79, %s82
    %p91 = scmp.eq.s32.totalorder %s22, 1
    %p92 = por %p90, %p91
    %p93 = scmp.ne.s32.totalorder %s82, %s83
    %p94 = scmp.eq.s32.totalorder %s22, 0
    %p95 = por %p93, %p94
    %p96 = scmp.ne.s32.totalorder %s82, %s83
    %p97 = scmp.eq.s32.totalorder %s23, 1
    %p98 = por %p96, %p97
    %p100 = scmp.ne.s32.totalorder %s83, %s99
    %p101 = scmp.eq.s32.totalorder %s23, 0
    %p102 = por %p100, %p101
    %s104 = sadd.s32 %s103, 1
    %p107 = scmp.eq.s32.totalorder %s17, 1
    %p108 = scmp.ne.s32.totalorder %s103, %s105
    %p109 = scmp.eq.s32.totalorder %s17, 0
    %p110 = por %p108, %p109
    %p111 = scmp.ne.s32.totalorder %s103, %s105
    %p112 = scmp.eq.s32.totalorder %s22, 1
    %p113 = por %p111, %p112
    %p114 = scmp.ne.s32.totalorder %s105, %s106
    %p115 = scmp.eq.s32.totalorder %s22, 0
    %p116 = por %p114, %p115
    %p117 = scmp.ne.s32.totalorder %s105, %s106
    %p118 = scmp.eq.s32.totalorder %s23, 1
    %p119 = por %p117, %p118
    %p121 = scmp.ne.s32.totalorder %s106, %s120
    %p122 = scmp.eq.s32.totalorder %s23, 0
    %p123 = por %p121, %p122
    %s125 = sadd.s32 %s124, 1
    %p128 = scmp.eq.s32.totalorder %s17, 1
    %p129 = scmp.ne.s32.totalorder %s124, %s126
    %p130 = scmp.eq.s32.totalorder %s17, 0
    %p131 = por %p129, %p130
    %p132 = scmp.ne.s32.totalorder %s124, %s126
    %p133 = scmp.eq.s32.totalorder %s22, 1
    %p134 = por %p132, %p133
    %p135 = scmp.ne.s32.totalorder %s126, %s127
    %p136 = scmp.eq.s32.totalorder %s22, 0
    %p137 = por %p135, %p136
    %p138 = scmp.ne.s32.totalorder %s126, %s127
    %p139 = scmp.eq.s32.totalorder %s23, 1
    %p140 = por %p138, %p139
    %p142 = scmp.ne.s32.totalorder %s127, %s141
    %p143 = scmp.eq.s32.totalorder %s23, 0
    %p144 = por %p142, %p143
    %s146 = sadd.s32 %s145, 1
    %p149 = scmp.eq.s32.totalorder %s17, 1
    %p150 = scmp.ne.s32.totalorder %s145, %s147
    %p151 = scmp.eq.s32.totalorder %s17, 0
    %p152 = por %p150, %p151
    %p153 = scmp.ne.s32.totalorder %s145, %s147
    %p154 = scmp.eq.s32.totalorder %s22, 1
    %p155 = por %p153, %p154
    %p156 = scmp.ne.s32.totalorder %s147, %s148
    %p157 = scmp.eq.s32.totalorder %s22, 0
    %p158 = por %p156, %p157
    %p159 = scmp.ne.s32.totalorder %s147, %s148
    %p160 = scmp.eq.s32.totalorder %s23, 1
    %p161 = por %p159, %p160
    %p163 = scmp.ne.s32.totalorder %s148, %s162
    %p164 = scmp.eq.s32.totalorder %s23, 0
    %p165 = por %p163, %p164
    %s167 = sadd.s32 %s166, 1
    %p170 = scmp.eq.s32.totalorder %s17, 1
    %p171 = scmp.ne.s32.totalorder %s166, %s168
    %p172 = scmp.eq.s32.totalorder %s17, 0
    %p173 = por %p171, %p172
    %p174 = scmp.ne.s32.totalorder %s166, %s168
    %p175 = scmp.eq.s32.totalorder %s22, 1
    %p176 = por %p174, %p175
    %p177 = scmp.ne.s32.totalorder %s168, %s169
    %p178 = scmp.eq.s32.totalorder %s22, 0
    %p179 = por %p177, %p178
    %p180 = scmp.ne.s32.totalorder %s168, %s169
    %p181 = scmp.eq.s32.totalorder %s23, 1
    %p182 = por %p180, %p181
    %p184 = scmp.ne.s32.totalorder %s169, %s183
    %p185 = scmp.eq.s32.totalorder %s23, 0
    %p186 = por %p184, %p185
    %s188 = sadd.s32 %s187, 1
    %p191 = scmp.eq.s32.totalorder %s17, 1
    %p192 = scmp.ne.s32.totalorder %s187, %s189
    %p193 = scmp.eq.s32.totalorder %s17, 0
    %p194 = por %p192, %p193
    %p195 = scmp.ne.s32.totalorder %s187, %s189
    %p196 = scmp.eq.s32.totalorder %s22, 1
    %p197 = por %p195, %p196
    %p198 = scmp.ne.s32.totalorder %s189, %s190
    %p199 = scmp.eq.s32.totalorder %s22, 0
    %p200 = por %p198, %p199
    %p201 = scmp.ne.s32.totalorder %s189, %s190
    %p202 = scmp.eq.s32.totalorder %s23, 1
    %p203 = por %p201, %p202
    %p205 = scmp.ne.s32.totalorder %s190, %s204
    %p206 = scmp.eq.s32.totalorder %s23, 0
    %p207 = por %p205, %p206
    %s209 = sadd.s32 %s208, 1
    %p212 = scmp.eq.s32.totalorder %s17, 1
    %p213 = scmp.ne.s32.totalorder %s208, %s210
    %p214 = scmp.eq.s32.totalorder %s17, 0
    %p215 = por %p213, %p214
    %p216 = scmp.ne.s32.totalorder %s208, %s210
    %p217 = scmp.eq.s32.totalorder %s22, 1
    %p218 = por %p216, %p217
    %p219 = scmp.ne.s32.totalorder %s210, %s211
    %p220 = scmp.eq.s32.totalorder %s22, 0
    %p221 = por %p219, %p220
    %p222 = scmp.ne.s32.totalorder %s210, %s211
    %p223 = scmp.eq.s32.totalorder %s23, 1
    %p224 = por %p222, %p223
    %p226 = scmp.ne.s32.totalorder %s211, %s225
    %p227 = scmp.eq.s32.totalorder %s23, 0
    %p228 = por %p226, %p227
    %s230 = sadd.s32 %s229, 1
    %p233 = scmp.eq.s32.totalorder %s17, 1
    %p234 = scmp.ne.s32.totalorder %s229, %s231
    %p235 = scmp.eq.s32.totalorder %s17, 0
    %p236 = por %p234, %p235
    %p237 = scmp.ne.s32.totalorder %s229, %s231
    %p238 = scmp.eq.s32.totalorder %s22, 1
    %p239 = por %p237, %p238
    %p240 = scmp.ne.s32.totalorder %s231, %s232
    %p241 = scmp.eq.s32.totalorder %s22, 0
    %p242 = por %p240, %p241
    %p243 = scmp.ne.s32.totalorder %s231, %s232
    %p244 = scmp.eq.s32.totalorder %s23, 1
    %p245 = por %p243, %p244
    %p247 = scmp.ne.s32.totalorder %s232, %s246
    %p248 = scmp.eq.s32.totalorder %s23, 0
    %p249 = por %p247, %p248
    %s251 = sadd.s32 %s250, 1
    %p254 = scmp.eq.s32.totalorder %s17, 1
    %p255 = scmp.ne.s32.totalorder %s250, %s252
    %p256 = scmp.eq.s32.totalorder %s17, 0
    %p257 = por %p255, %p256
    %p258 = scmp.ne.s32.totalorder %s250, %s252
    %p259 = scmp.eq.s32.totalorder %s22, 1
    %p260 = por %p258, %p259
    %p261 = scmp.ne.s32.totalorder %s252, %s253
    %p262 = scmp.eq.s32.totalorder %s22, 0
    %p263 = por %p261, %p262
    %p264 = scmp.ne.s32.totalorder %s252, %s253
    %p265 = scmp.eq.s32.totalorder %s23, 1
    %p266 = por %p264, %p265
    %p268 = scmp.ne.s32.totalorder %s253, %s267
    %p269 = scmp.eq.s32.totalorder %s23, 0
    %p270 = por %p268, %p269
    %s271 = ssub.s32 %s17, %s24
    %p272 = scmp.eq.s32.totalorder %s271, 0
    %s274 = sadd.s32 %s273, 1
    %s275 = scalar_select %p272, %s273, %s274
    %p278 = pneg %p272
    %p279 = scmp.eq.s32.totalorder %s17, 1
    %p280 = por %p278, %p279
    %p281 = scmp.ne.s32.totalorder %s273, %s276
    %p282 = scmp.eq.s32.totalorder %s17, 0
    %p283 = por %p281, %p282
    %p284 = scmp.ne.s32.totalorder %s273, %s276
    %p285 = scmp.eq.s32.totalorder %s22, 1
    %p286 = por %p284, %p285
    %p287 = scmp.ne.s32.totalorder %s276, %s277
    %p288 = scmp.eq.s32.totalorder %s22, 0
    %p289 = por %p287, %p288
    %p290 = scmp.ne.s32.totalorder %s276, %s277
    %p291 = scmp.eq.s32.totalorder %s23, 1
    %p292 = por %p290, %p291
    %p294 = scmp.ne.s32.totalorder %s277, %s293
    %p295 = scmp.eq.s32.totalorder %s23, 0
    %p296 = por %p294, %p295
    %p297 = scmp.le.s32.totalorder 1, %s17
    %p298 = scmp.lt.s32.totalorder %s17, 3
    %p299 = pnand %p297, %p298
    %p300 = pneg %p299
    // Predicated region
    $region9: #{_lambda_.7} parent=5 // pred_check
      _
    $region10: #{_lambda_.7} parent=5 // pred_check_branch
      %302 = sbr.rel (%p299) target = $region12
    $region11: #{_lambda_.7} parent=5 // pred_region
      %s303 = ssub.s32 %s17, 1
      // Predicated region
      $region13: #{_lambda_.7} parent=11 // pred_check
        %p304 = pneg %p116
      $region14: #{_lambda_.7} parent=11 // pred_check_branch
        %306 = sbr.rel (%p304) target = $region16
      $region15: #{_lambda_.7} parent=11 // pred_region
        _
      $region16: #{_lambda_.7} parent=11 // pred_fallthru
        _
      // Predicated region
      $region17: #{_lambda_.7} parent=11 // pred_check
        %p307 = pneg %p137
      $region18: #{_lambda_.7} parent=11 // pred_check_branch
        %309 = sbr.rel (%p307) target = $region20
      $region19: #{_lambda_.7} parent=11 // pred_region
        _
      $region20: #{_lambda_.7} parent=11 // pred_fallthru
        _
      // Predicated region
      $region21: #{_lambda_.7} parent=11 // pred_check
        %p310 = pneg %p158
      $region22: #{_lambda_.7} parent=11 // pred_check_branch
        %312 = sbr.rel (%p310) target = $region24
      $region23: #{_lambda_.7} parent=11 // pred_region
        _
      $region24: #{_lambda_.7} parent=11 // pred_fallthru
        _
      // Predicated region
      $region25: #{_lambda_.7} parent=11 // pred_check
        %p313 = pneg %p179
      $region26: #{_lambda_.7} parent=11 // pred_check_branch
        %315 = sbr.rel (%p313) target = $region28
      $region27: #{_lambda_.7} parent=11 // pred_region
        _
      $region28: #{_lambda_.7} parent=11 // pred_fallthru
        _
      // Predicated region
      $region29: #{_lambda_.7} parent=11 // pred_check
        %p316 = pneg %p200
      $region30: #{_lambda_.7} parent=11 // pred_check_branch
        %318 = sbr.rel (%p316) target = $region32
      $region31: #{_lambda_.7} parent=11 // pred_region
        _
      $region32: #{_lambda_.7} parent=11 // pred_fallthru
        _
      // Predicated region
      $region33: #{_lambda_.7} parent=11 // pred_check
        %p319 = pneg %p221
      $region34: #{_lambda_.7} parent=11 // pred_check_branch
        %321 = sbr.rel (%p319) target = $region36
      $region35: #{_lambda_.7} parent=11 // pred_region
        _
      $region36: #{_lambda_.7} parent=11 // pred_fallthru
        _
      // Predicated region
      $region37: #{_lambda_.7} parent=11 // pred_check
        %p322 = pneg %p242
      $region38: #{_lambda_.7} parent=11 // pred_check_branch
        %324 = sbr.rel (%p322) target = $region40
      $region39: #{_lambda_.7} parent=11 // pred_region
        _
      $region40: #{_lambda_.7} parent=11 // pred_fallthru
        _
      // Predicated region
      $region41: #{_lambda_.7} parent=11 // pred_check
        %p325 = pneg %p263
      $region42: #{_lambda_.7} parent=11 // pred_check_branch
        %327 = sbr.rel (%p325) target = $region44
      $region43: #{_lambda_.7} parent=11 // pred_region
        _
      $region44: #{_lambda_.7} parent=11 // pred_fallthru
        _
    $region12: #{_lambda_.7} parent=5 // pred_fallthru
      _
    %p328 = scmp.lt.s32.totalorder %s17, 2
    // Predicated region
    $region45: #{_lambda_.7} parent=5 // pred_check
      %p329 = pneg %p328
    $region46: #{_lambda_.7} parent=5 // pred_check_branch
      %331 = sbr.rel (%p329) target = $region48
    $region47: #{_lambda_.7} parent=5 // pred_region
      // Predicated region
      $region49: #{_lambda_.7} parent=47 // pred_check
        %p332 = pneg %p37
      $region50: #{_lambda_.7} parent=47 // pred_check_branch
        %334 = sbr.rel (%p332) target = $region52
      $region51: #{_lambda_.7} parent=47 // pred_region
        %p335 = scmp.lt.s32.totalorder %s17, 1
        %s336 = scalar_select %p335, %s17, 1
        %s337 = smul.addr %s336, 8
        %s338 = scalar_lea.vmem %s0, %s337
      $region52: #{_lambda_.7} parent=47 // pred_fallthru
        _
      // Predicated region
      $region53: #{_lambda_.7} parent=47 // pred_check
        %p339 = pneg %p63
      $region54: #{_lambda_.7} parent=47 // pred_check_branch
        %341 = sbr.rel (%p339) target = $region56
      $region55: #{_lambda_.7} parent=47 // pred_region
        %p342 = scmp.lt.s32.totalorder %s17, 1
        %s343 = scalar_select %p342, %s17, 1
        %s344 = smul.addr %s343, 8
        %s345 = scalar_lea.vmem %s1, %s344
      $region56: #{_lambda_.7} parent=47 // pred_fallthru
        _
      // Predicated region
      $region57: #{_lambda_.7} parent=47 // pred_check
        %p346 = pneg %p89
      $region58: #{_lambda_.7} parent=47 // pred_check_branch
        %348 = sbr.rel (%p346) target = $region60
      $region59: #{_lambda_.7} parent=47 // pred_region
        %p349 = scmp.lt.s32.totalorder %s17, 1
        %s350 = scalar_select %p349, %s17, 1
        %s351 = scalar_lea.vmem %s2, %s350
      $region60: #{_lambda_.7} parent=47 // pred_fallthru
        _
    $region48: #{_lambda_.7} parent=5 // pred_fallthru
      _
    %p352 = scmp.le.s32.totalorder 1, %s17
    %p353 = scmp.lt.s32.totalorder %s17, 3
    %p354 = pnand %p352, %p353
    %p355 = pneg %p354
    // Predicated region
    $region61: #{_lambda_.7} parent=5 // pred_check
      _
    $region62: #{_lambda_.7} parent=5 // pred_check_branch
      %357 = sbr.rel (%p354) target = $region64
    $region63: #{_lambda_.7} parent=5 // pred_region
      %s358 = ssub.s32 %s17, 1
      %p359 = scmp.lt.s32.totalorder %s22, 1
      %s360 = scalar_select %p359, %s22, 1
      %s361 = smul.addr %s360, 8
      %s362 = scalar_lea.vmem %s0, %s361
      %p363 = pneg %p43
      %p364 = pneg %p40
      %p365 = scmp.lt.s32.totalorder %s22, 1
      %s366 = scalar_select %p365, %s22, 1
      %s367 = smul.addr %s366, 8
      %s368 = scalar_lea.vmem %s1, %s367
      %p369 = pneg %p69
      %p370 = pneg %p66
      %p371 = scmp.lt.s32.totalorder %s22, 1
      %s372 = scalar_select %p371, %s22, 1
      %s373 = scalar_lea.vmem %s2, %s372
      %p374 = pneg %p95
      %p375 = pneg %p92
      %p376 = pneg %p116
      %p377 = pneg %p113
      %p378 = pneg %p137
      %p379 = pneg %p134
      %p380 = pneg %p158
      %p381 = pneg %p155
      %p382 = pneg %p179
      %p383 = pneg %p176
      %p384 = pneg %p200
      %p385 = pneg %p197
      %p386 = pneg %p221
      %p387 = pneg %p218
      %p388 = pneg %p242
      %p389 = pneg %p239
      %p390 = pneg %p263
      %p391 = pneg %p260
      %p392 = pneg %p289
      %p393 = pneg %p286
      %p394 = scmp.lt.s32.totalorder %s22, 1
      %s395 = scalar_select %p394, %s22, 1
      %s396 = smul.addr %s395, 8
      %s397 = scalar_lea.vmem %s11, %s396
      %p398 = scmp.lt.s32.totalorder %s22, 1
      %s399 = scalar_select %p398, %s22, 1
      %s400 = smul.addr %s399, 8
      %s401 = scalar_lea.vmem %s0, %s400
      %p402 = scmp.lt.s32.totalorder %s22, 1
      %s403 = scalar_select %p402, %s22, 1
      %s404 = smul.addr %s403, 8
      %s405 = scalar_lea.vmem %s1, %s404
      %p406 = scmp.lt.s32.totalorder %s22, 1
      %s407 = scalar_select %p406, %s22, 1
      %s408 = scalar_lea.vmem %s2, %s407
      %p409 = scmp.lt.s32.totalorder %s22, 1
      %s410 = scalar_select %p409, %s22, 1
      %s411 = smul.addr %s410, 8
      %s412 = scalar_lea.vmem %s11, %s411
      %v414 = vld [vmem:[%s401] sm:$0xff]
      %v415 = vld [vmem:[%s405] sm:$0xff]
      %v416 = vld [vmem:[%s3] sm:$0x1]
      %v417 = vld [vmem:[%s4] sm:$0x1]
      %vm418 = vcmask 261120
      %v419 = vsel %vm418, %v414, 0.0
      %420 = vadd.xlane.f32.xlu0 %v419
      %v421 = vpop.xlane.xlu0 %420
      %v422 = vrcp.pop 32.0
      %v423 = vmul.f32 %v421, %v422
      %v424 = vsub.f32 %v414, %v423
      %v425 = vmul.f32 %v424, %v424
      %v426 = vsel %vm418, %v425, 0.0
      %427 = vadd.xlane.f32.xlu0 %v426
      %v428 = vpop.xlane.xlu0 %427
      %v429 = vmul.f32 %v428, %v422
      %v430 = vadd.f32 %v429, 1e-05
      %v431 = vrsqrt.pop %v430
      %v432 = vmul.f32 %v424, %v431
      %v434 = vlaneseq
      %v435 = vshrl.u32 %v434, 7
      %v436 = vsub.s32 0, %v435
      %v437 = vrot.slane %v416, %v436
      %v439 = vmul.f32 %v432, %v437
      %v441 = vlaneseq
      %v442 = vshrl.u32 %v441, 7
      %v443 = vsub.s32 0, %v442
      %v444 = vrot.slane %v417, %v443
      %v446 = vadd.f32 %v439, %v444
      %448 = vset.pattern.permute.xlu0 0
      %449 = vperm.xlu0 %448, %v415
      %v450 = vpop.permute.xlu0 %449
      %v452 = vmul.f32 %v446, %v450
      %v453 = vpack.c.bf16 %v452, %v452
      %v454 = vld [vmem:[%s5] sm:$0xf]
      %v455 = vld [vmem:[%s5 + $0x4] sm:$0xf]
      %v456 = vld [vmem:[%s5 + $0x8] sm:$0xf]
      %v457 = vld [vmem:[%s5 + $0xc] sm:$0xf]
      %v458 = vld [vmem:[%s6] sm:$0x1]
      %v460 = vlaneseq
      %v461 = vshrl.u32 %v460, 7
      %v462 = vsub.s32 0, %v461
      %v463 = vrot.slane %v458, %v462
      %v469 = vunpack.c.l.b16 %v454
      %v470 = vunpack.c.l.b16 %v455
      %v471 = vunpack.c.l.b16 %v456
      %v472 = vunpack.c.l.b16 %v457
      %v473 = vpack.c.b16 %v470, %v469
      %v474 = vpack.c.b16 %v472, %v471
      %v478 = vsel %vm418, %v453, 0
      %480 = vmatprep.subr.bf16.mxu0 0
      %481 = vmatpush1.bf16.msra.mxu0 %v473
      %482 = vmatprep.subr.bf16.mxu0 0
      %483 = vmatpush1.bf16.msra.mxu0 %v474
      %484 = vmatprep.subr.bf16.mxu0 0
      %485 = vmatpush1.bf16.msra.mxu0 0
      %486 = vmatprep.subr.bf16.mxu0 0
      %487 = vmatpush1.bf16.msra.mxu0 0
      %488 = vmatprep.subr.bf16.mxu0 0
      %489 = vmatpush1.bf16.msra.mxu0 0
      %490 = vmatprep.subr.bf16.mxu0 0
      %491 = vmatpush1.bf16.msra.mxu0 0
      %492 = vmatprep.subr.bf16.mxu0 0
      %493 = vmatpush1.bf16.msra.mxu0 0
      %494 = vmatprep.subr.bf16.mxu0 0
      %495 = vmatpush1.bf16.msra.mxu0 0
      %496 = vmatprep.subr.bf16.mxu0 0
      %497 = vmatpush1.bf16.msra.mxu0 0
      %498 = vmatprep.subr.bf16.mxu0 0
      %499 = vmatpush1.bf16.msra.mxu0 0
      %500 = vmatprep.subr.bf16.mxu0 0
      %501 = vmatpush1.bf16.msra.mxu0 0
      %502 = vmatprep.subr.bf16.mxu0 0
      %503 = vmatpush1.bf16.msra.mxu0 0
      %504 = vmatprep.subr.bf16.mxu0 0
      %505 = vmatpush1.bf16.msra.mxu0 0
      %506 = vmatprep.subr.bf16.mxu0 0
      %507 = vmatpush1.bf16.msra.mxu0 0
      %508 = vmatprep.subr.bf16.mxu0 0
      %509 = vmatpush1.bf16.msra.mxu0 0
      %510 = vmatprep.subr.bf16.mxu0 0
      %511 = vmatpush1.bf16.msra.mxu0 0
      %512 = vmatprep.mubr.bf16.mxu0 0
      %513 = vmatmul.mubr.bf16.gmra.mrb[0].mxu0 %v478
      %v514 = vpop.f32.mrb[0].mxu0
      %v515 = vadd.f32 %v463, %v514
      %v516 = vpop.f32.mrb[0].mxu0
      %v517 = vpop.f32.mrb[0].mxu0
      %v518 = vpop.f32.mrb[0].mxu0
      %519 = vdwg.mxu0
      %v520 = vld [vmem:[%s7] sm:$0xf]
      %v521 = vld [vmem:[%s7 + $0x4] sm:$0xf]
      %v522 = vld [vmem:[%s7 + $0x8] sm:$0xf]
      %v523 = vld [vmem:[%s7 + $0xc] sm:$0xf]
      %v524 = vld [vmem:[%s8] sm:$0x1]
      %v526 = vlaneseq
      %v527 = vshrl.u32 %v526, 7
      %v528 = vsub.s32 0, %v527
      %v529 = vrot.slane %v524, %v528
      %v535 = vunpack.c.l.b16 %v520
      %v536 = vunpack.c.l.b16 %v521
      %v537 = vunpack.c.l.b16 %v522
      %v538 = vunpack.c.l.b16 %v523
      %v539 = vpack.c.b16 %v536, %v535
      %v540 = vpack.c.b16 %v538, %v537
      %543 = vmatprep.subr.bf16.mxu0 0
      %544 = vmatpush1.bf16.msra.mxu0 %v539
      %545 = vmatprep.subr.bf16.mxu0 0
      %546 = vmatpush1.bf16.msra.mxu0 %v540
      %547 = vmatprep.subr.bf16.mxu0 0
      %548 = vmatpush1.bf16.msra.mxu0 0
      %549 = vmatprep.subr.bf16.mxu0 0
      %550 = vmatpush1.bf16.msra.mxu0 0
      %551 = vmatprep.subr.bf16.mxu0 0
      %552 = vmatpush1.bf16.msra.mxu0 0
      %553 = vmatprep.subr.bf16.mxu0 0
      %554 = vmatpush1.bf16.msra.mxu0 0
      %555 = vmatprep.subr.bf16.mxu0 0
      %556 = vmatpush1.bf16.msra.mxu0 0
      %557 = vmatprep.subr.bf16.mxu0 0
      %558 = vmatpush1.bf16.msra.mxu0 0
      %559 = vmatprep.subr.bf16.mxu0 0
      %560 = vmatpush1.bf16.msra.mxu0 0
      %561 = vmatprep.subr.bf16.mxu0 0
      %562 = vmatpush1.bf16.msra.mxu0 0
      %563 = vmatprep.subr.bf16.mxu0 0
      %564 = vmatpush1.bf16.msra.mxu0 0
      %565 = vmatprep.subr.bf16.mxu0 0
      %566 = vmatpush1.bf16.msra.mxu0 0
      %567 = vmatprep.subr.bf16.mxu0 0
      %568 = vmatpush1.bf16.msra.mxu0 0
      %569 = vmatprep.subr.bf16.mxu0 0
      %570 = vmatpush1.bf16.msra.mxu0 0
      %571 = vmatprep.subr.bf16.mxu0 0
      %572 = vmatpush1.bf16.msra.mxu0 0
      %573 = vmatprep.subr.bf16.mxu0 0
      %574 = vmatpush1.bf16.msra.mxu0 0
      %575 = vmatprep.mubr.bf16.mxu0 0
      %576 = vmatmul.mubr.bf16.gmra.mrb[0].mxu0 %v478
      %v577 = vpop.f32.mrb[0].mxu0
      %v578 = vadd.f32 %v529, %v577
      %v579 = vpop.f32.mrb[0].mxu0
      %v580 = vpop.f32.mrb[0].mxu0
      %v581 = vpop.f32.mrb[0].mxu0
      %582 = vdwg.mxu0
      %v583 = vmul.f32 %v578, %v450
      %v584 = vld [vmem:[%s408] sm:$0x1]
      %v585 = vsub.f32 %v584, 1.0
      %v586 = vmul.f32 %v585, 1e+09
      %v587 = vmul.f32 %v515, 0.25
      %v588 = vpack.c.bf16 %v587, %v587
      %v589 = vpack.c.bf16 %v515, %v515
      %v591 = vlaneseq
      %v592 = vshrl.u32 %v591, 7
      %v593 = vsub.s32 0, %v592
      %v594 = vrot.slane %v586, %v593
      %597 = vrot.lane.b32.xlu0 %v589, 64
      %v598 = vpop.permute.xlu0 %597
      %vm599 = vcmask 130048
      %v601 = vsel %vm599, %v588, 0
      %v604 = vsel %vm599, %v598, 0
      %606 = vmatprep.subr.bf16.mxu0 0
      %607 = vmatpush1.bf16.xpose.msra.mxu0 %v604
      %608 = vmatprep.subr.bf16.mxu0 0
      %609 = vmatpush1.bf16.xpose.msra.mxu0 0
      %610 = vmatprep.subr.bf16.mxu0 0
      %611 = vmatpush1.bf16.xpose.msra.mxu0 0
      %612 = vmatprep.subr.bf16.mxu0 0
      %613 = vmatpush1.bf16.xpose.msra.mxu0 0
      %614 = vmatprep.subr.bf16.mxu0 0
      %615 = vmatpush1.bf16.xpose.msra.mxu0 0
      %616 = vmatprep.subr.bf16.mxu0 0
      %617 = vmatpush1.bf16.xpose.msra.mxu0 0
      %618 = vmatprep.subr.bf16.mxu0 0
      %619 = vmatpush1.bf16.xpose.msra.mxu0 0
      %620 = vmatprep.subr.bf16.mxu0 0
      %621 = vmatpush1.bf16.xpose.msra.mxu0 0
      %622 = vmatprep.subr.bf16.mxu0 0
      %623 = vmatpush1.bf16.xpose.msra.mxu0 0
      %624 = vmatprep.subr.bf16.mxu0 0
      %625 = vmatpush1.bf16.xpose.msra.mxu0 0
      %626 = vmatprep.subr.bf16.mxu0 0
      %627 = vmatpush1.bf16.xpose.msra.mxu0 0
      %628 = vmatprep.subr.bf16.mxu0 0
      %629 = vmatpush1.bf16.xpose.msra.mxu0 0
      %630 = vmatprep.subr.bf16.mxu0 0
      %631 = vmatpush1.bf16.xpose.msra.mxu0 0
      %632 = vmatprep.subr.bf16.mxu0 0
      %633 = vmatpush1.bf16.xpose.msra.mxu0 0
      %634 = vmatprep.subr.bf16.mxu0 0
      %635 = vmatpush1.bf16.xpose.msra.mxu0 0
      %636 = vmatprep.subr.bf16.mxu0 0
      %637 = vmatpush1.bf16.xpose.msra.mxu0 0
      %638 = vmatprep.mubr.bf16.mxu0 0
      %639 = vmatmul.mubr.bf16.gmra.mrb[0].mxu0 %v601
      %v640 = vpop.f32.mrb[0].mxu0
      %v641 = vadd.f32 %v594, %v640
      %v642 = vpop.f32.mrb[0].mxu0
      %v643 = vpop.f32.mrb[0].mxu0
      %v644 = vpop.f32.mrb[0].mxu0
      %645 = vdwg.mxu0
      %vm646 = vcmask 64512
      %v647 = vsel %vm646, %v641, -inf
      %648 = vmax.xlane.f32.xlu0 %v647
      %v649 = vpop.xlane.xlu0 %648
      %v650 = vsub.f32 %v641, %v649
      %v651 = vmul.f32 %v650, 1.442695
      %v652 = vpow.pop %v651
      %v653 = vsel %vm646, %v652, 0.0
      %654 = vadd.xlane.f32.xlu0 %v653
      %v655 = vpop.xlane.xlu0 %654
      %v656 = vrcp.pop %v655
      %v657 = vmul.f32 %v652, %v656
      %v658 = vpack.c.bf16 %v657, %v657
      %v659 = vpack.c.bf16 %v583, %v583
      %v661 = vsel %vm646, %v658, 0
      %vm663 = vcmask 1043456
      %v665 = vsel %vm663, %v659, 0
      %667 = vmatprep.subr.bf16.mxu0 0
      %668 = vmatpush1.bf16.msra.mxu0 %v665
      %669 = vmatprep.subr.bf16.mxu0 0
      %670 = vmatpush1.bf16.msra.mxu0 0
      %671 = vmatprep.subr.bf16.mxu0 0
      %672 = vmatpush1.bf16.msra.mxu0 0
      %673 = vmatprep.subr.bf16.mxu0 0
      %674 = vmatpush1.bf16.msra.mxu0 0
      %675 = vmatprep.subr.bf16.mxu0 0
      %676 = vmatpush1.bf16.msra.mxu0 0
      %677 = vmatprep.subr.bf16.mxu0 0
      %678 = vmatpush1.bf16.msra.mxu0 0
      %679 = vmatprep.subr.bf16.mxu0 0
      %680 = vmatpush1.bf16.msra.mxu0 0
      %681 = vmatprep.subr.bf16.mxu0 0
      %682 = vmatpush1.bf16.msra.mxu0 0
      %683 = vmatprep.subr.bf16.mxu0 0
      %684 = vmatpush1.bf16.msra.mxu0 0
      %685 = vmatprep.subr.bf16.mxu0 0
      %686 = vmatpush1.bf16.msra.mxu0 0
      %687 = vmatprep.subr.bf16.mxu0 0
      %688 = vmatpush1.bf16.msra.mxu0 0
      %689 = vmatprep.subr.bf16.mxu0 0
      %690 = vmatpush1.bf16.msra.mxu0 0
      %691 = vmatprep.subr.bf16.mxu0 0
      %692 = vmatpush1.bf16.msra.mxu0 0
      %693 = vmatprep.subr.bf16.mxu0 0
      %694 = vmatpush1.bf16.msra.mxu0 0
      %695 = vmatprep.subr.bf16.mxu0 0
      %696 = vmatpush1.bf16.msra.mxu0 0
      %697 = vmatprep.subr.bf16.mxu0 0
      %698 = vmatpush1.bf16.msra.mxu0 0
      %699 = vmatprep.mubr.bf16.mxu0 0
      %700 = vmatmul.mubr.bf16.gmra.mrb[0].mxu0 %v661
      %v701 = vpop.f32.mrb[0].mxu0
      %v702 = vadd.f32 0.0, %v701
      %v703 = vpop.f32.mrb[0].mxu0
      %v704 = vpop.f32.mrb[0].mxu0
      %v705 = vpop.f32.mrb[0].mxu0
      %706 = vdwg.mxu0
      %v707 = vpack.c.bf16 %v702, %v702
      %v708 = vld [vmem:[%s9] sm:$0xf]
      %v709 = vld [vmem:[%s9 + $0x4] sm:$0xf]
      %711 = vrot.lane.b32.xlu0 %v588, 112
      %v712 = vpop.permute.xlu0 %711
      %713 = vrot.lane.b32.xlu0 %v589, 48
      %v714 = vpop.permute.xlu0 %713
      %v716 = vsel %vm599, %v712, 0
      %v719 = vsel %vm599, %v714, 0
      %721 = vmatprep.subr.bf16.mxu0 0
      %722 = vmatpush1.bf16.xpose.msra.mxu0 %v719
      %723 = vmatprep.subr.bf16.mxu0 0
      %724 = vmatpush1.bf16.xpose.msra.mxu0 0
      %725 = vmatprep.subr.bf16.mxu0 0
      %726 = vmatpush1.bf16.xpose.msra.mxu0 0
      %727 = vmatprep.subr.bf16.mxu0 0
      %728 = vmatpush1.bf16.xpose.msra.mxu0 0
      %729 = vmatprep.subr.bf16.mxu0 0
      %730 = vmatpush1.bf16.xpose.msra.mxu0 0
      %731 = vmatprep.subr.bf16.mxu0 0
      %732 = vmatpush1.bf16.xpose.msra.mxu0 0
      %733 = vmatprep.subr.bf16.mxu0 0
      %734 = vmatpush1.bf16.xpose.msra.mxu0 0
      %735 = vmatprep.subr.bf16.mxu0 0
      %736 = vmatpush1.bf16.xpose.msra.mxu0 0
      %737 = vmatprep.subr.bf16.mxu0 0
      %738 = vmatpush1.bf16.xpose.msra.mxu0 0
      %739 = vmatprep.subr.bf16.mxu0 0
      %740 = vmatpush1.bf16.xpose.msra.mxu0 0
      %741 = vmatprep.subr.bf16.mxu0 0
      %742 = vmatpush1.bf16.xpose.msra.mxu0 0
      %743 = vmatprep.subr.bf16.mxu0 0
      %744 = vmatpush1.bf16.xpose.msra.mxu0 0
      %745 = vmatprep.subr.bf16.mxu0 0
      %746 = vmatpush1.bf16.xpose.msra.mxu0 0
      %747 = vmatprep.subr.bf16.mxu0 0
      %748 = vmatpush1.bf16.xpose.msra.mxu0 0
      %749 = vmatprep.subr.bf16.mxu0 0
      %750 = vmatpush1.bf16.xpose.msra.mxu0 0
      %751 = vmatprep.subr.bf16.mxu0 0
      %752 = vmatpush1.bf16.xpose.msra.mxu0 0
      %753 = vmatprep.mubr.bf16.mxu0 0
      %754 = vmatmul.mubr.bf16.gmra.mrb[0].mxu0 %v716
      %v755 = vpop.f32.mrb[0].mxu0
      %v756 = vadd.f32 %v594, %v755
      %v757 = vpop.f32.mrb[0].mxu0
      %v758 = vpop.f32.mrb[0].mxu0
      %v759 = vpop.f32.mrb[0].mxu0
      %760 = vdwg.mxu0
      %v761 = vsel %vm646, %v756, -inf
      %762 = vmax.xlane.f32.xlu0 %v761
      %v763 = vpop.xlane.xlu0 %762
      %v764 = vsub.f32 %v756, %v763
      %v765 = vmul.f32 %v764, 1.442695
      %v766 = vpow.pop %v765
      %v767 = vsel %vm646, %v766, 0.0
      %768 = vadd.xlane.f32.xlu0 %v767
      %v769 = vpop.xlane.xlu0 %768
      %v770 = vrcp.pop %v769
      %v771 = vmul.f32 %v766, %v770
      %v772 = vpack.c.bf16 %v771, %v771
      %774 = vrot.lane.b32.xlu0 %v659, 112
      %v775 = vpop.permute.xlu0 %774
      %v777 = vsel %vm646, %v772, 0
      %v780 = vsel %vm663, %v775, 0
      %782 = vmatprep.subr.bf16.mxu0 0
      %783 = vmatpush1.bf16.msra.mxu0 %v780
      %784 = vmatprep.subr.bf16.mxu0 0
      %785 = vmatpush1.bf16.msra.mxu0 0
      %786 = vmatprep.subr.bf16.mxu0 0
      %787 = vmatpush1.bf16.msra.mxu0 0
      %788 = vmatprep.subr.bf16.mxu0 0
      %789 = vmatpush1.bf16.msra.mxu0 0
      %790 = vmatprep.subr.bf16.mxu0 0
      %791 = vmatpush1.bf16.msra.mxu0 0
      %792 = vmatprep.subr.bf16.mxu0 0
      %793 = vmatpush1.bf16.msra.mxu0 0
      %794 = vmatprep.subr.bf16.mxu0 0
      %795 = vmatpush1.bf16.msra.mxu0 0
      %796 = vmatprep.subr.bf16.mxu0 0
      %797 = vmatpush1.bf16.msra.mxu0 0
      %798 = vmatprep.subr.bf16.mxu0 0
      %799 = vmatpush1.bf16.msra.mxu0 0
      %800 = vmatprep.subr.bf16.mxu0 0
      %801 = vmatpush1.bf16.msra.mxu0 0
      %802 = vmatprep.subr.bf16.mxu0 0
      %803 = vmatpush1.bf16.msra.mxu0 0
      %804 = vmatprep.subr.bf16.mxu0 0
      %805 = vmatpush1.bf16.msra.mxu0 0
      %806 = vmatprep.subr.bf16.mxu0 0
      %807 = vmatpush1.bf16.msra.mxu0 0
      %808 = vmatprep.subr.bf16.mxu0 0
      %809 = vmatpush1.bf16.msra.mxu0 0
      %810 = vmatprep.subr.bf16.mxu0 0
      %811 = vmatpush1.bf16.msra.mxu0 0
      %812 = vmatprep.subr.bf16.mxu0 0
      %813 = vmatpush1.bf16.msra.mxu0 0
      %814 = vmatprep.mubr.bf16.mxu0 0
      %815 = vmatmul.mubr.bf16.gmra.mrb[0].mxu0 %v777
      %v816 = vpop.f32.mrb[0].mxu0
      %v817 = vadd.f32 0.0, %v816
      %v818 = vpop.f32.mrb[0].mxu0
      %v819 = vpop.f32.mrb[0].mxu0
      %v820 = vpop.f32.mrb[0].mxu0
      %821 = vdwg.mxu0
      %v822 = vpack.c.bf16 %v817, %v817
      %v823 = vld [vmem:[%s9 + $0x8] sm:$0xf]
      %v824 = vld [vmem:[%s9 + $0xc] sm:$0xf]
      %v827 = vunpack.c.l.b16 %v823
      %v828 = vunpack.c.l.b16 %v824
      %v829 = vpack.c.b16 %v828, %v827
      %v832 = vsel %vm599, %v822, 0
      %834 = vmatprep.subr.bf16.mxu0 0
      %835 = vmatpush1.bf16.msra.mxu0 %v829
      %836 = vmatprep.subr.bf16.mxu0 0
      %837 = vmatpush1.bf16.msra.mxu0 0
      %838 = vmatprep.subr.bf16.mxu0 0
      %839 = vmatpush1.bf16.msra.mxu0 0
      %840 = vmatprep.subr.bf16.mxu0 0
      %841 = vmatpush1.bf16.msra.mxu0 0
      %842 = vmatprep.subr.bf16.mxu0 0
      %843 = vmatpush1.bf16.msra.mxu0 0
      %844 = vmatprep.subr.bf16.mxu0 0
      %845 = vmatpush1.bf16.msra.mxu0 0
      %846 = vmatprep.subr.bf16.mxu0 0
      %847 = vmatpush1.bf16.msra.mxu0 0
      %848 = vmatprep.subr.bf16.mxu0 0
      %849 = vmatpush1.bf16.msra.mxu0 0
      %850 = vmatprep.subr.bf16.mxu0 0
      %851 = vmatpush1.bf16.msra.mxu0 0
      %852 = vmatprep.subr.bf16.mxu0 0
      %853 = vmatpush1.bf16.msra.mxu0 0
      %854 = vmatprep.subr.bf16.mxu0 0
      %855 = vmatpush1.bf16.msra.mxu0 0
      %856 = vmatprep.subr.bf16.mxu0 0
      %857 = vmatpush1.bf16.msra.mxu0 0
      %858 = vmatprep.subr.bf16.mxu0 0
      %859 = vmatpush1.bf16.msra.mxu0 0
      %860 = vmatprep.subr.bf16.mxu0 0
      %861 = vmatpush1.bf16.msra.mxu0 0
      %862 = vmatprep.subr.bf16.mxu0 0
      %863 = vmatpush1.bf16.msra.mxu0 0
      %864 = vmatprep.subr.bf16.mxu0 0
      %865 = vmatpush1.bf16.msra.mxu0 0
      %866 = vmatprep.mubr.bf16.mxu0 0
      %867 = vmatmul.mubr.bf16.gmra.mrb[0].mxu0 %v832
      %v868 = vpop.f32.mrb[0].mxu0
      %v869 = vadd.f32 0.0, %v868
      %v870 = vpop.f32.mrb[0].mxu0
      %v871 = vpop.f32.mrb[0].mxu0
      %v872 = vpop.f32.mrb[0].mxu0
      %873 = vdwg.mxu0
      %v876 = vunpack.c.l.b16 %v708
      %v877 = vunpack.c.l.b16 %v709
      %v878 = vpack.c.b16 %v877, %v876
      %v881 = vsel %vm599, %v707, 0
      %883 = vmatprep.subr.bf16.mxu0 0
      %884 = vmatpush1.bf16.msra.mxu0 %v878
      %885 = vmatprep.subr.bf16.mxu0 0
      %886 = vmatpush1.bf16.msra.mxu0 0
      %887 = vmatprep.subr.bf16.mxu0 0
      %888 = vmatpush1.bf16.msra.mxu0 0
      %889 = vmatprep.subr.bf16.mxu0 0
      %890 = vmatpush1.bf16.msra.mxu0 0
      %891 = vmatprep.subr.bf16.mxu0 0
      %892 = vmatpush1.bf16.msra.mxu0 0
      %893 = vmatprep.subr.bf16.mxu0 0
      %894 = vmatpush1.bf16.msra.mxu0 0
      %895 = vmatprep.subr.bf16.mxu0 0
      %896 = vmatpush1.bf16.msra.mxu0 0
      %897 = vmatprep.subr.bf16.mxu0 0
      %898 = vmatpush1.bf16.msra.mxu0 0
      %899 = vmatprep.subr.bf16.mxu0 0
      %900 = vmatpush1.bf16.msra.mxu0 0
      %901 = vmatprep.subr.bf16.mxu0 0
      %902 = vmatpush1.bf16.msra.mxu0 0
      %903 = vmatprep.subr.bf16.mxu0 0
      %904 = vmatpush1.bf16.msra.mxu0 0
      %905 = vmatprep.subr.bf16.mxu0 0
      %906 = vmatpush1.bf16.msra.mxu0 0
      %907 = vmatprep.subr.bf16.mxu0 0
      %908 = vmatpush1.bf16.msra.mxu0 0
      %909 = vmatprep.subr.bf16.mxu0 0
      %910 = vmatpush1.bf16.msra.mxu0 0
      %911 = vmatprep.subr.bf16.mxu0 0
      %912 = vmatpush1.bf16.msra.mxu0 0
      %913 = vmatprep.subr.bf16.mxu0 0
      %914 = vmatpush1.bf16.msra.mxu0 0
      %915 = vmatprep.mubr.bf16.mxu0 0
      %916 = vmatmul.mubr.bf16.gmra.mrb[0].mxu0 %v881
      %v917 = vpop.f32.mrb[0].mxu0
      %v918 = vadd.f32 %v869, %v917
      %v919 = vpop.f32.mrb[0].mxu0
      %v920 = vpop.f32.mrb[0].mxu0
      %v921 = vpop.f32.mrb[0].mxu0
      %922 = vdwg.mxu0
      %923 = vrot.lane.b32.xlu0 %v588, 96
      %v924 = vpop.permute.xlu0 %923
      %925 = vrot.lane.b32.xlu0 %v589, 32
      %v926 = vpop.permute.xlu0 %925
      %v928 = vsel %vm599, %v924, 0
      %v931 = vsel %vm599, %v926, 0
      %933 = vmatprep.subr.bf16.mxu0 0
      %934 = vmatpush1.bf16.xpose.msra.mxu0 %v931
      %935 = vmatprep.subr.bf16.mxu0 0
      %936 = vmatpush1.bf16.xpose.msra.mxu0 0
      %937 = vmatprep.subr.bf16.mxu0 0
      %938 = vmatpush1.bf16.xpose.msra.mxu0 0
      %939 = vmatprep.subr.bf16.mxu0 0
      %940 = vmatpush1.bf16.xpose.msra.mxu0 0
      %941 = vmatprep.subr.bf16.mxu0 0
      %942 = vmatpush1.bf16.xpose.msra.mxu0 0
      %943 = vmatprep.subr.bf16.mxu0 0
      %944 = vmatpush1.bf16.xpose.msra.mxu0 0
      %945 = vmatprep.subr.bf16.mxu0 0
      %946 = vmatpush1.bf16.xpose.msra.mxu0 0
      %947 = vmatprep.subr.bf16.mxu0 0
      %948 = vmatpush1.bf16.xpose.msra.mxu0 0
      %949 = vmatprep.subr.bf16.mxu0 0
      %950 = vmatpush1.bf16.xpose.msra.mxu0 0
      %951 = vmatprep.subr.bf16.mxu0 0
      %952 = vmatpush1.bf16.xpose.msra.mxu0 0
      %953 = vmatprep.subr.bf16.mxu0 0
      %954 = vmatpush1.bf16.xpose.msra.mxu0 0
      %955 = vmatprep.subr.bf16.mxu0 0
      %956 = vmatpush1.bf16.xpose.msra.mxu0 0
      %957 = vmatprep.subr.bf16.mxu0 0
      %958 = vmatpush1.bf16.xpose.msra.mxu0 0
      %959 = vmatprep.subr.bf16.mxu0 0
      %960 = vmatpush1.bf16.xpose.msra.mxu0 0
      %961 = vmatprep.subr.bf16.mxu0 0
      %962 = vmatpush1.bf16.xpose.msra.mxu0 0
      %963 = vmatprep.subr.bf16.mxu0 0
      %964 = vmatpush1.bf16.xpose.msra.mxu0 0
      %965 = vmatprep.mubr.bf16.mxu0 0
      %966 = vmatmul.mubr.bf16.gmra.mrb[0].mxu0 %v928
      %v967 = vpop.f32.mrb[0].mxu0
      %v968 = vadd.f32 %v594, %v967
      %v969 = vpop.f32.mrb[0].mxu0
      %v970 = vpop.f32.mrb[0].mxu0
      %v971 = vpop.f32.mrb[0].mxu0
      %972 = vdwg.mxu0
      %v973 = vsel %vm646, %v968, -inf
      %974 = vmax.xlane.f32.xlu0 %v973
      %v975 = vpop.xlane.xlu0 %974
      %v976 = vsub.f32 %v968, %v975
      %v977 = vmul.f32 %v976, 1.442695
      %v978 = vpow.pop %v977
      %v979 = vsel %vm646, %v978, 0.0
      %980 = vadd.xlane.f32.xlu0 %v979
      %v981 = vpop.xlane.xlu0 %980
      %v982 = vrcp.pop %v981
      %v983 = vmul.f32 %v978, %v982
      %v984 = vpack.c.bf16 %v983, %v983
      %985 = vrot.lane.b32.xlu0 %v659, 96
      %v986 = vpop.permute.xlu0 %985
      %v988 = vsel %vm646, %v984, 0
      %v991 = vsel %vm663, %v986, 0
      %993 = vmatprep.subr.bf16.mxu0 0
      %994 = vmatpush1.bf16.msra.mxu0 %v991
      %995 = vmatprep.subr.bf16.mxu0 0
      %996 = vmatpush1.bf16.msra.mxu0 0
      %997 = vmatprep.subr.bf16.mxu0 0
      %998 = vmatpush1.bf16.msra.mxu0 0
      %999 = vmatprep.subr.bf16.mxu0 0
      %1000 = vmatpush1.bf16.msra.mxu0 0
      %1001 = vmatprep.subr.bf16.mxu0 0
      %1002 = vmatpush1.bf16.msra.mxu0 0
      %1003 = vmatprep.subr.bf16.mxu0 0
      %1004 = vmatpush1.bf16.msra.mxu0 0
      %1005 = vmatprep.subr.bf16.mxu0 0
      %1006 = vmatpush1.bf16.msra.mxu0 0
      %1007 = vmatprep.subr.bf16.mxu0 0
      %1008 = vmatpush1.bf16.msra.mxu0 0
      %1009 = vmatprep.subr.bf16.mxu0 0
      %1010 = vmatpush1.bf16.msra.mxu0 0
      %1011 = vmatprep.subr.bf16.mxu0 0
      %1012 = vmatpush1.bf16.msra.mxu0 0
      %1013 = vmatprep.subr.bf16.mxu0 0
      %1014 = vmatpush1.bf16.msra.mxu0 0
      %1015 = vmatprep.subr.bf16.mxu0 0
      %1016 = vmatpush1.bf16.msra.mxu0 0
      %1017 = vmatprep.subr.bf16.mxu0 0
      %1018 = vmatpush1.bf16.msra.mxu0 0
      %1019 = vmatprep.subr.bf16.mxu0 0
      %1020 = vmatpush1.bf16.msra.mxu0 0
      %1021 = vmatprep.subr.bf16.mxu0 0
      %1022 = vmatpush1.bf16.msra.mxu0 0
      %1023 = vmatprep.subr.bf16.mxu0 0
      %1024 = vmatpush1.bf16.msra.mxu0 0
      %1025 = vmatprep.mubr.bf16.mxu0 0
      %1026 = vmatmul.mubr.bf16.gmra.mrb[0].mxu0 %v988
      %v1027 = vpop.f32.mrb[0].mxu0
      %v1028 = vadd.f32 0.0, %v1027
      %v1029 = vpop.f32.mrb[0].mxu0
      %v1030 = vpop.f32.mrb[0].mxu0
      %v1031 = vpop.f32.mrb[0].mxu0
      %1032 = vdwg.mxu0
      %v1033 = vpack.c.bf16 %v1028, %v1028
      %v1034 = vld [vmem:[%s9 + $0x10] sm:$0xf]
      %v1035 = vld [vmem:[%s9 + $0x14] sm:$0xf]
      %v1038 = vunpack.c.l.b16 %v1034
      %v1039 = vunpack.c.l.b16 %v1035
      %v1040 = vpack.c.b16 %v1039, %v1038
      %v1043 = vsel %vm599, %v1033, 0
      %1045 = vmatprep.subr.bf16.mxu0 0
      %1046 = vmatpush1.bf16.msra.mxu0 %v1040
      %1047 = vmatprep.subr.bf16.mxu0 0
      %1048 = vmatpush1.bf16.msra.mxu0 0
      %1049 = vmatprep.subr.bf16.mxu0 0
      %1050 = vmatpush1.bf16.msra.mxu0 0
      %1051 = vmatprep.subr.bf16.mxu0 0
      %1052 = vmatpush1.bf16.msra.mxu0 0
      %1053 = vmatprep.subr.bf16.mxu0 0
      %1054 = vmatpush1.bf16.msra.mxu0 0
      %1055 = vmatprep.subr.bf16.mxu0 0
      %1056 = vmatpush1.bf16.msra.mxu0 0
      %1057 = vmatprep.subr.bf16.mxu0 0
      %1058 = vmatpush1.bf16.msra.mxu0 0
      %1059 = vmatprep.subr.bf16.mxu0 0
      %1060 = vmatpush1.bf16.msra.mxu0 0
      %1061 = vmatprep.subr.bf16.mxu0 0
      %1062 = vmatpush1.bf16.msra.mxu0 0
      %1063 = vmatprep.subr.bf16.mxu0 0
      %1064 = vmatpush1.bf16.msra.mxu0 0
      %1065 = vmatprep.subr.bf16.mxu0 0
      %1066 = vmatpush1.bf16.msra.mxu0 0
      %1067 = vmatprep.subr.bf16.mxu0 0
      %1068 = vmatpush1.bf16.msra.mxu0 0
      %1069 = vmatprep.subr.bf16.mxu0 0
      %1070 = vmatpush1.bf16.msra.mxu0 0
      %1071 = vmatprep.subr.bf16.mxu0 0
      %1072 = vmatpush1.bf16.msra.mxu0 0
      %1073 = vmatprep.subr.bf16.mxu0 0
      %1074 = vmatpush1.bf16.msra.mxu0 0
      %1075 = vmatprep.subr.bf16.mxu0 0
      %1076 = vmatpush1.bf16.msra.mxu0 0
      %1077 = vmatprep.mubr.bf16.mxu0 0
      %1078 = vmatmul.mubr.bf16.gmra.mrb[0].mxu0 %v1043
      %v1079 = vpop.f32.mrb[0].mxu0
      %v1080 = vadd.f32 0.0, %v1079
      %v1081 = vpop.f32.mrb[0].mxu0
      %v1082 = vpop.f32.mrb[0].mxu0
      %v1083 = vpop.f32.mrb[0].mxu0
      %1084 = vdwg.mxu0
      %v1085 = vadd.f32 %v918, %v1080
      %1086 = vrot.lane.b32.xlu0 %v588, 80
      %v1087 = vpop.permute.xlu0 %1086
      %1088 = vrot.lane.b32.xlu0 %v589, 16
      %v1089 = vpop.permute.xlu0 %1088
      %v1091 = vsel %vm599, %v1087, 0
      %v1094 = vsel %vm599, %v1089, 0
      %1096 = vmatprep.subr.bf16.mxu0 0
      %1097 = vmatpush1.bf16.xpose.msra.mxu0 %v1094
      %1098 = vmatprep.subr.bf16.mxu0 0
      %1099 = vmatpush1.bf16.xpose.msra.mxu0 0
      %1100 = vmatprep.subr.bf16.mxu0 0
      %1101 = vmatpush1.bf16.xpose.msra.mxu0 0
      %1102 = vmatprep.subr.bf16.mxu0 0
      %1103 = vmatpush1.bf16.xpose.msra.mxu0 0
      %1104 = vmatprep.subr.bf16.mxu0 0
      %1105 = vmatpush1.bf16.xpose.msra.mxu0 0
      %1106 = vmatprep.subr.bf16.mxu0 0
      %1107 = vmatpush1.bf16.xpose.msra.mxu0 0
      %1108 = vmatprep.subr.bf16.mxu0 0
      %1109 = vmatpush1.bf16.xpose.msra.mxu0 0
      %1110 = vmatprep.subr.bf16.mxu0 0
      %1111 = vmatpush1.bf16.xpose.msra.mxu0 0
      %1112 = vmatprep.subr.bf16.mxu0 0
      %1113 = vmatpush1.bf16.xpose.msra.mxu0 0
      %1114 = vmatprep.subr.bf16.mxu0 0
      %1115 = vmatpush1.bf16.xpose.msra.mxu0 0
      %1116 = vmatprep.subr.bf16.mxu0 0
      %1117 = vmatpush1.bf16.xpose.msra.mxu0 0
      %1118 = vmatprep.subr.bf16.mxu0 0
      %1119 = vmatpush1.bf16.xpose.msra.mxu0 0
      %1120 = vmatprep.subr.bf16.mxu0 0
      %1121 = vmatpush1.bf16.xpose.msra.mxu0 0
      %1122 = vmatprep.subr.bf16.mxu0 0
      %1123 = vmatpush1.bf16.xpose.msra.mxu0 0
      %1124 = vmatprep.subr.bf16.mxu0 0
      %1125 = vmatpush1.bf16.xpose.msra.mxu0 0
      %1126 = vmatprep.subr.bf16.mxu0 0
      %1127 = vmatpush1.bf16.xpose.msra.mxu0 0
      %1128 = vmatprep.mubr.bf16.mxu0 0
      %1129 = vmatmul.mubr.bf16.gmra.mrb[0].mxu0 %v1091
      %v1130 = vpop.f32.mrb[0].mxu0
      %v1131 = vadd.f32 %v594, %v1130
      %v1132 = vpop.f32.mrb[0].mxu0
      %v1133 = vpop.f32.mrb[0].mxu0
      %v1134 = vpop.f32.mrb[0].mxu0
      %1135 = vdwg.mxu0
      %v1136 = vsel %vm646, %v1131, -inf
      %1137 = vmax.xlane.f32.xlu0 %v1136
      %v1138 = vpop.xlane.xlu0 %1137
      %v1139 = vsub.f32 %v1131, %v1138
      %v1140 = vmul.f32 %v1139, 1.442695
      %v1141 = vpow.pop %v1140
      %v1142 = vsel %vm646, %v1141, 0.0
      %1143 = vadd.xlane.f32.xlu0 %v1142
      %v1144 = vpop.xlane.xlu0 %1143
      %v1145 = vrcp.pop %v1144
      %v1146 = vmul.f32 %v1141, %v1145
      %v1147 = vpack.c.bf16 %v1146, %v1146
      %1148 = vrot.lane.b32.xlu0 %v659, 80
      %v1149 = vpop.permute.xlu0 %1148
      %v1151 = vsel %vm646, %v1147, 0
      %v1154 = vsel %vm663, %v1149, 0
      %1156 = vmatprep.subr.bf16.mxu0 0
      %1157 = vmatpush1.bf16.msra.mxu0 %v1154
      %1158 = vmatprep.subr.bf16.mxu0 0
      %1159 = vmatpush1.bf16.msra.mxu0 0
      %1160 = vmatprep.subr.bf16.mxu0 0
      %1161 = vmatpush1.bf16.msra.mxu0 0
      %1162 = vmatprep.subr.bf16.mxu0 0
      %1163 = vmatpush1.bf16.msra.mxu0 0
      %1164 = vmatprep.subr.bf16.mxu0 0
      %1165 = vmatpush1.bf16.msra.mxu0 0
      %1166 = vmatprep.subr.bf16.mxu0 0
      %1167 = vmatpush1.bf16.msra.mxu0 0
      %1168 = vmatprep.subr.bf16.mxu0 0
      %1169 = vmatpush1.bf16.msra.mxu0 0
      %1170 = vmatprep.subr.bf16.mxu0 0
      %1171 = vmatpush1.bf16.msra.mxu0 0
      %1172 = vmatprep.subr.bf16.mxu0 0
      %1173 = vmatpush1.bf16.msra.mxu0 0
      %1174 = vmatprep.subr.bf16.mxu0 0
      %1175 = vmatpush1.bf16.msra.mxu0 0
      %1176 = vmatprep.subr.bf16.mxu0 0
      %1177 = vmatpush1.bf16.msra.mxu0 0
      %1178 = vmatprep.subr.bf16.mxu0 0
      %1179 = vmatpush1.bf16.msra.mxu0 0
      %1180 = vmatprep.subr.bf16.mxu0 0
      %1181 = vmatpush1.bf16.msra.mxu0 0
      %1182 = vmatprep.subr.bf16.mxu0 0
      %1183 = vmatpush1.bf16.msra.mxu0 0
      %1184 = vmatprep.subr.bf16.mxu0 0
      %1185 = vmatpush1.bf16.msra.mxu0 0
      %1186 = vmatprep.subr.bf16.mxu0 0
      %1187 = vmatpush1.bf16.msra.mxu0 0
      %1188 = vmatprep.mubr.bf16.mxu0 0
      %1189 = vmatmul.mubr.bf16.gmra.mrb[0].mxu0 %v1151
      %v1190 = vpop.f32.mrb[0].mxu0
      %v1191 = vadd.f32 0.0, %v1190
      %v1192 = vpop.f32.mrb[0].mxu0
      %v1193 = vpop.f32.mrb[0].mxu0
      %v1194 = vpop.f32.mrb[0].mxu0
      %1195 = vdwg.mxu0
      %v1196 = vpack.c.bf16 %v1191, %v1191
      %v1197 = vld [vmem:[%s9 + $0x18] sm:$0xf]
      %v1198 = vld [vmem:[%s9 + $0x1c] sm:$0xf]
      %v1201 = vunpack.c.l.b16 %v1197
      %v1202 = vunpack.c.l.b16 %v1198
      %v1203 = vpack.c.b16 %v1202, %v1201
      %v1206 = vsel %vm599, %v1196, 0
      %1208 = vmatprep.subr.bf16.mxu0 0
      %1209 = vmatpush1.bf16.msra.mxu0 %v1203
      %1210 = vmatprep.subr.bf16.mxu0 0
      %1211 = vmatpush1.bf16.msra.mxu0 0
      %1212 = vmatprep.subr.bf16.mxu0 0
      %1213 = vmatpush1.bf16.msra.mxu0 0
      %1214 = vmatprep.subr.bf16.mxu0 0
      %1215 = vmatpush1.bf16.msra.mxu0 0
      %1216 = vmatprep.subr.bf16.mxu0 0
      %1217 = vmatpush1.bf16.msra.mxu0 0
      %1218 = vmatprep.subr.bf16.mxu0 0
      %1219 = vmatpush1.bf16.msra.mxu0 0
      %1220 = vmatprep.subr.bf16.mxu0 0
      %1221 = vmatpush1.bf16.msra.mxu0 0
      %1222 = vmatprep.subr.bf16.mxu0 0
      %1223 = vmatpush1.bf16.msra.mxu0 0
      %1224 = vmatprep.subr.bf16.mxu0 0
      %1225 = vmatpush1.bf16.msra.mxu0 0
      %1226 = vmatprep.subr.bf16.mxu0 0
      %1227 = vmatpush1.bf16.msra.mxu0 0
      %1228 = vmatprep.subr.bf16.mxu0 0
      %1229 = vmatpush1.bf16.msra.mxu0 0
      %1230 = vmatprep.subr.bf16.mxu0 0
      %1231 = vmatpush1.bf16.msra.mxu0 0
      %1232 = vmatprep.subr.bf16.mxu0 0
      %1233 = vmatpush1.bf16.msra.mxu0 0
      %1234 = vmatprep.subr.bf16.mxu0 0
      %1235 = vmatpush1.bf16.msra.mxu0 0
      %1236 = vmatprep.subr.bf16.mxu0 0
      %1237 = vmatpush1.bf16.msra.mxu0 0
      %1238 = vmatprep.subr.bf16.mxu0 0
      %1239 = vmatpush1.bf16.msra.mxu0 0
      %1240 = vmatprep.mubr.bf16.mxu0 0
      %1241 = vmatmul.mubr.bf16.gmra.mrb[0].mxu0 %v1206
      %v1242 = vpop.f32.mrb[0].mxu0
      %v1243 = vadd.f32 0.0, %v1242
      %v1244 = vpop.f32.mrb[0].mxu0
      %v1245 = vpop.f32.mrb[0].mxu0
      %v1246 = vpop.f32.mrb[0].mxu0
      %1247 = vdwg.mxu0
      %v1248 = vadd.f32 %v1085, %v1243
      %v1249 = vld [vmem:[%s10] sm:$0x1]
      %v1251 = vlaneseq
      %v1252 = vshrl.u32 %v1251, 7
      %v1253 = vsub.s32 0, %v1252
      %v1254 = vrot.slane %v1249, %v1253
      %v1256 = vadd.f32 %v1248, %v1254
      %v1257 = vmul.f32 %v1256, %v450
      %v1258 = vadd.f32 %v414, %v1257
      %1259 = vst.msk [vmem:[%s412] sm:$0xff] %vm418, %v1258
      %p1260 = scmp.lt.s32.totalorder %s22, 1
      %s1261 = scalar_select %p1260, %s22, 1
      %s1262 = smul.addr %s1261, 8
      %s1263 = scalar_lea.vmem %s11, %s1262
      // Predicated region
      $region65: #{_lambda_.7} parent=63 // pred_check
        %p1264 = pneg %p286
      $region66: #{_lambda_.7} parent=63 // pred_check_branch
        %1266 = sbr.rel (%p1264) target = $region68
      $region67: #{_lambda_.7} parent=63 // pred_region
        _
      $region68: #{_lambda_.7} parent=63 // pred_fallthru
        _
    $region64: #{_lambda_.7} parent=5 // pred_fallthru
      _
    %p1267 = scmp.le.s32.totalorder 2, %s17
    // Predicated region
    $region69: #{_lambda_.7} parent=5 // pred_check
      %p1268 = pneg %p1267
    $region70: #{_lambda_.7} parent=5 // pred_check_branch
      %1270 = sbr.rel (%p1268) target = $region72
    $region71: #{_lambda_.7} parent=5 // pred_region
      %s1271 = ssub.s32 %s17, 2
      // Predicated region
      $region73: #{_lambda_.7} parent=71 // pred_check
        %p1272 = pneg %p292
      $region74: #{_lambda_.7} parent=71 // pred_check_branch
        %1274 = sbr.rel (%p1272) target = $region76
      $region75: #{_lambda_.7} parent=71 // pred_region
        %p1275 = scmp.lt.s32.totalorder %s23, 1
        %s1276 = scalar_select %p1275, %s23, 1
        %s1277 = smul.addr %s1276, 8
        %s1278 = scalar_lea.vmem %s11, %s1277
      $region76: #{_lambda_.7} parent=71 // pred_fallthru
        _
    $region72: #{_lambda_.7} parent=5 // pred_fallthru
      _
  $region6: #{_lambda_.7} parent=0 // loop_footer
    %s21 = sadd.s32 1, %s17
  $region7: #{_lambda_.7} parent=0 // loop_footer_branch
    %16 = sbr.rel target = $region3
  $region8: #{_lambda_.7} parent=0 // loop_exit
    _

// kernel: _lambda_.11
$region0: #{_lambda_.11}
  #allocation0 [shape = 'u32[]', space=smem, size = 0x4, offset = 0x4, fixed_abs, tag = 'smem constant byte address 0x4 - core index']
  #allocation1 [shape = 'u32[144,128]{1,0:T(1,128)}', space=vmem, size = 0x12000, scoped, tag = 'internal scratch']
  %s0 = inlined_call_operand.vmem [shape: f32[16,32], index: 0, kind: input, shape index: {}]
  %s1 = inlined_call_operand.vmem [shape: f32[16,1], index: 1, kind: input, shape index: {}]
  %s2 = inlined_call_operand.vmem [shape: f32[1,32], index: 2, kind: input, shape index: {}]
  %s3 = inlined_call_operand.vmem [shape: f32[1,32], index: 3, kind: input, shape index: {}]
  %s4 = inlined_call_operand.vmem [shape: bf16[32,128], index: 4, kind: input, shape index: {}]
  %s5 = inlined_call_operand.vmem [shape: f32[1,128], index: 5, kind: input, shape index: {}]
  %s6 = inlined_call_operand.vmem [shape: f32[16,128], index: 6, kind: output, shape index: {}]
  %s7 = sld [smem:[#allocation0]]
  $region34: #{_lambda_.11} parent=0
    _
  %s9 = ssub.s32 1, %s7
  %s10 = scalar_select 0, %s9, %s7
  // Predicated region
  $region2: #{_lambda_.11} parent=0 // pred_check
    _
  $region3: #{_lambda_.11} parent=0 // pred_check_branch
    %12 = sbr.rel (0) target = $region5
  $region4: #{_lambda_.11} parent=0 // pred_region
    _
  $region5: #{_lambda_.11} parent=0 // pred_fallthru
    _
  // Predicated region
  $region6: #{_lambda_.11} parent=0 // pred_check
    _
  $region7: #{_lambda_.11} parent=0 // pred_check_branch
    %14 = sbr.rel (0) target = $region9
  $region8: #{_lambda_.11} parent=0 // pred_region
    _
  $region9: #{_lambda_.11} parent=0 // pred_fallthru
    _
  // Predicated region
  $region10: #{_lambda_.11} parent=0 // pred_check
    _
  $region11: #{_lambda_.11} parent=0 // pred_check_branch
    %16 = sbr.rel (0) target = $region13
  $region12: #{_lambda_.11} parent=0 // pred_region
    _
  $region13: #{_lambda_.11} parent=0 // pred_fallthru
    _
  // Predicated region
  $region14: #{_lambda_.11} parent=0 // pred_check
    _
  $region15: #{_lambda_.11} parent=0 // pred_check_branch
    %18 = sbr.rel (0) target = $region17
  $region16: #{_lambda_.11} parent=0 // pred_region
    _
  $region17: #{_lambda_.11} parent=0 // pred_fallthru
    _
  // Predicated region
  $region18: #{_lambda_.11} parent=0 // pred_check
    _
  $region19: #{_lambda_.11} parent=0 // pred_check_branch
    %20 = sbr.rel (0) target = $region21
  $region20: #{_lambda_.11} parent=0 // pred_region
    _
  $region21: #{_lambda_.11} parent=0 // pred_fallthru
    _
  // Predicated region
  $region22: #{_lambda_.11} parent=0 // pred_check
    _
  $region23: #{_lambda_.11} parent=0 // pred_check_branch
    %22 = sbr.rel (0) target = $region25
  $region24: #{_lambda_.11} parent=0 // pred_region
    _
  $region25: #{_lambda_.11} parent=0 // pred_fallthru
    _
  %v24 = vld [vmem:[%s0] sm:$0xff]
  %v25 = vld [vmem:[%s0 + $0x8] sm:$0xff]
  %v26 = vld [vmem:[%s2] sm:$0x1]
  %v27 = vld [vmem:[%s3] sm:$0x1]
  %vm28 = vcmask 261120
  %v29 = vsel %vm28, %v24, 0.0
  %30 = vadd.xlane.f32.xlu0 %v29
  %v31 = vpop.xlane.xlu0 %30
  %v32 = vsel %vm28, %v25, 0.0
  %33 = vadd.xlane.f32.xlu0 %v32
  %v34 = vpop.xlane.xlu0 %33
  %v35 = vrcp.pop 32.0
  %v36 = vmul.f32 %v31, %v35
  %v37 = vmul.f32 %v34, %v35
  %v38 = vsub.f32 %v24, %v36
  %v39 = vsub.f32 %v25, %v37
  %v40 = vmul.f32 %v38, %v38
  %v41 = vmul.f32 %v39, %v39
  %v42 = vsel %vm28, %v40, 0.0
  %43 = vadd.xlane.f32.xlu0 %v42
  %v44 = vpop.xlane.xlu0 %43
  %v45 = vsel %vm28, %v41, 0.0
  %46 = vadd.xlane.f32.xlu0 %v45
  %v47 = vpop.xlane.xlu0 %46
  %v48 = vmul.f32 %v44, %v35
  %v49 = vmul.f32 %v47, %v35
  %v50 = vadd.f32 %v48, 1e-05
  %v51 = vadd.f32 %v49, 1e-05
  %v52 = vrsqrt.pop %v50
  %v53 = vrsqrt.pop %v51
  %v54 = vmul.f32 %v38, %v52
  %v55 = vmul.f32 %v39, %v53
  %v57 = vlaneseq
  %v58 = vshrl.u32 %v57, 7
  %v59 = vsub.s32 0, %v58
  %v60 = vrot.slane %v26, %v59
  %v62 = vmul.f32 %v54, %v60
  %v63 = vmul.f32 %v55, %v60
  %v65 = vlaneseq
  %v66 = vshrl.u32 %v65, 7
  %v67 = vsub.s32 0, %v66
  %v68 = vrot.slane %v27, %v67
  %v70 = vadd.f32 %v62, %v68
  %v71 = vadd.f32 %v63, %v68
  %v72 = vpack.c.bf16 %v71, %v70
  %v73 = vld [vmem:[%s4] sm:$0xf]
  %v74 = vld [vmem:[%s4 + $0x4] sm:$0xf]
  %v75 = vld [vmem:[%s4 + $0x8] sm:$0xf]
  %v76 = vld [vmem:[%s4 + $0xc] sm:$0xf]
  %v77 = vld [vmem:[%s5] sm:$0x1]
  %v79 = vlaneseq
  %v80 = vshrl.u32 %v79, 7
  %v81 = vsub.s32 0, %v80
  %v82 = vrot.slane %v77, %v81
  %v88 = vunpack.c.l.b16 %v73
  %v89 = vunpack.c.l.b16 %v74
  %v90 = vunpack.c.l.b16 %v75
  %v91 = vunpack.c.l.b16 %v76
  %v92 = vpack.c.b16 %v89, %v88
  %v93 = vpack.c.b16 %v91, %v90
  %v97 = vsel %vm28, %v72, 0
  %99 = vmatprep.subr.bf16.mxu0 0
  %100 = vmatpush1.bf16.msra.mxu0 %v92
  %101 = vmatprep.subr.bf16.mxu0 0
  %102 = vmatpush1.bf16.msra.mxu0 %v93
  %103 = vmatprep.subr.bf16.mxu0 0
  %104 = vmatpush1.bf16.msra.mxu0 0
  %105 = vmatprep.subr.bf16.mxu0 0
  %106 = vmatpush1.bf16.msra.mxu0 0
  %107 = vmatprep.subr.bf16.mxu0 0
  %108 = vmatpush1.bf16.msra.mxu0 0
  %109 = vmatprep.subr.bf16.mxu0 0
  %110 = vmatpush1.bf16.msra.mxu0 0
  %111 = vmatprep.subr.bf16.mxu0 0
  %112 = vmatpush1.bf16.msra.mxu0 0
  %113 = vmatprep.subr.bf16.mxu0 0
  %114 = vmatpush1.bf16.msra.mxu0 0
  %115 = vmatprep.subr.bf16.mxu0 0
  %116 = vmatpush1.bf16.msra.mxu0 0
  %117 = vmatprep.subr.bf16.mxu0 0
  %118 = vmatpush1.bf16.msra.mxu0 0
  %119 = vmatprep.subr.bf16.mxu0 0
  %120 = vmatpush1.bf16.msra.mxu0 0
  %121 = vmatprep.subr.bf16.mxu0 0
  %122 = vmatpush1.bf16.msra.mxu0 0
  %123 = vmatprep.subr.bf16.mxu0 0
  %124 = vmatpush1.bf16.msra.mxu0 0
  %125 = vmatprep.subr.bf16.mxu0 0
  %126 = vmatpush1.bf16.msra.mxu0 0
  %127 = vmatprep.subr.bf16.mxu0 0
  %128 = vmatpush1.bf16.msra.mxu0 0
  %129 = vmatprep.subr.bf16.mxu0 0
  %130 = vmatpush1.bf16.msra.mxu0 0
  %131 = vmatprep.mubr.bf16.mxu0 0
  %132 = vmatmul.mubr.bf16.gmra.mrb[0].mxu0 %v97
  %v133 = vpop.f32.mrb[0].mxu0
  %v134 = vadd.f32 %v82, %v133
  %v135 = vpop.f32.mrb[0].mxu0
  %v136 = vpop.f32.mrb[0].mxu0
  %v137 = vadd.f32 %v82, %v136
  %v138 = vpop.f32.mrb[0].mxu0
  %139 = vdwg.mxu0
  %v140 = vld [vmem:[%s1] sm:$0xff]
  %v141 = vld [vmem:[%s1 + $0x8] sm:$0xff]
  %143 = vset.pattern.permute.xlu0 0
  %144 = vperm.xlu0 %143, %v140
  %v145 = vpop.permute.xlu0 %144
  %148 = vset.pattern.permute.xlu0 0
  %149 = vperm.xlu0 %148, %v141
  %v150 = vpop.permute.xlu0 %149
  %v152 = vmul.f32 %v134, %v145
  %v153 = vmul.f32 %v137, %v150
  %154 = vst [vmem:[%s6] sm:$0xff] %v152
  %155 = vst [vmem:[%s6 + $0x8] sm:$0xff] %v153
  // Predicated region
  $region26: #{_lambda_.11} parent=0 // pred_check
    _
  $region27: #{_lambda_.11} parent=0 // pred_check_branch
    %157 = sbr.rel (0) target = $region29
  $region28: #{_lambda_.11} parent=0 // pred_region
    _
  $region29: #{_lambda_.11} parent=0 // pred_fallthru
    _
  // Predicated region
  $region30: #{_lambda_.11} parent=0 // pred_check
    _
  $region31: #{_lambda_.11} parent=0 // pred_check_branch
    %159 = sbr.rel (0) target = $region33
  $region32: #{_lambda_.11} parent=0 // pred_region
    _
  $region33: #{_lambda_.11} parent=0 // pred_fallthru
    _

// kernel: _lambda_.9
$region0: #{_lambda_.9}
  #allocation0 [shape = 'u32[]', space=smem, size = 0x4, offset = 0x4, fixed_abs, tag = 'smem constant byte address 0x4 - core index']
  #allocation1 [shape = 'u32[144,128]{1,0:T(1,128)}', space=vmem, size = 0x12000, scoped, tag = 'internal scratch']
  %s0 = inlined_call_operand.vmem [shape: f32[16,32], index: 0, kind: input, shape index: {}]
  %s1 = inlined_call_operand.vmem [shape: f32[16,1], index: 1, kind: input, shape index: {}]
  %s2 = inlined_call_operand.vmem [shape: f32[2,1,8], index: 2, kind: input, shape index: {}]
  %s3 = inlined_call_operand.vmem [shape: f32[1,32], index: 3, kind: input, shape index: {}]
  %s4 = inlined_call_operand.vmem [shape: f32[1,32], index: 4, kind: input, shape index: {}]
  %s5 = inlined_call_operand.vmem [shape: bf16[32,512], index: 5, kind: input, shape index: {}]
  %s6 = inlined_call_operand.vmem [shape: f32[1,512], index: 6, kind: input, shape index: {}]
  %s7 = inlined_call_operand.vmem [shape: bf16[32,256], index: 7, kind: input, shape index: {}]
  %s8 = inlined_call_operand.vmem [shape: f32[1,256], index: 8, kind: input, shape index: {}]
  %s9 = inlined_call_operand.vmem [shape: bf16[256,32], index: 9, kind: input, shape index: {}]
  %s10 = inlined_call_operand.vmem [shape: f32[1,32], index: 10, kind: input, shape index: {}]
  %s11 = inlined_call_operand.vmem [shape: f32[16,32], index: 11, kind: output, shape index: {0}]
  %s12 = inlined_call_operand.vmem [shape: f32[2,128,8], index: 12, kind: output, shape index: {1}]
  %13 = xla_tuple %s11, %s12
  %s14 = sld [smem:[#allocation0]]
  $region85: #{_lambda_.9} parent=0
    _
  %s16 = ssub.s32 1, %s14
  %s17 = scalar_select 0, %s16, %s14
  loop: start=0, step=1, limit=4
  $region2: #{_lambda_.9} parent=0 // loop_pre_header
    _
  $region3: #{_lambda_.9} parent=0 // loop_header
    %s19 = sphi 0, %s23
    %p20 = scmp.ge.s32.totalorder %s19, 4
    %s29 = sphi 0, %s31
    %s32 = sphi 0, %s29
    %s33 = sphi 0, %s32
    %s49 = sphi 0, %s33
    %s55 = sphi 0, %s57
    %s58 = sphi 0, %s55
    %s59 = sphi 0, %s58
    %s75 = sphi 0, %s59
    %s81 = sphi 0, %s83
    %s84 = sphi 0, %s81
    %s85 = sphi 0, %s84
    %s101 = sphi 0, %s85
    %s105 = sphi 0, %s105
    %s107 = sphi 0, %s105
    %s108 = sphi 0, %s107
    %s122 = sphi 0, %s108
    %s126 = sphi 0, %s126
    %s128 = sphi 0, %s126
    %s129 = sphi 0, %s128
    %s143 = sphi 0, %s129
    %s147 = sphi 0, %s147
    %s149 = sphi 0, %s147
    %s150 = sphi 0, %s149
    %s164 = sphi 0, %s150
    %s168 = sphi 0, %s168
    %s170 = sphi 0, %s168
    %s171 = sphi 0, %s170
    %s185 = sphi 0, %s171
    %s189 = sphi 0, %s189
    %s191 = sphi 0, %s189
    %s192 = sphi 0, %s191
    %s206 = sphi 0, %s192
    %s210 = sphi 0, %s210
    %s212 = sphi 0, %s210
    %s213 = sphi 0, %s212
    %s227 = sphi 0, %s213
    %s231 = sphi 0, %s231
    %s233 = sphi 0, %s231
    %s234 = sphi 0, %s233
    %s248 = sphi 0, %s234
    %s252 = sphi 0, %s252
    %s254 = sphi 0, %s252
    %s255 = sphi 0, %s254
    %s269 = sphi 0, %s255
    %s275 = sphi 0, %s277
    %s278 = sphi 0, %s275
    %s279 = sphi 0, %s278
    %s295 = sphi 0, %s279
    %s301 = sphi 0, %s303
    %s304 = sphi 0, %s301
    %s305 = sphi 0, %s304
    %s321 = sphi 0, %s305
  $region4: #{_lambda_.9} parent=0 // loop_header_branch
    %22 = sbr.rel (%p20) target = $region8
  $region5: #{_lambda_.9} parent=0 // loop_body
    %s24 = ssub.s32 %s19, 1
    %s25 = ssub.s32 %s19, 2
    %s26 = sadd.s32 %s19, 1
    %s27 = ssub.s32 %s19, %s26
    %p28 = scmp.eq.s32.totalorder %s27, 0
    %s30 = sadd.s32 %s29, 1
    %s31 = scalar_select %p28, %s29, %s30
    %p34 = pneg %p28
    %p35 = scmp.eq.s32.totalorder %s19, 1
    %p36 = por %p34, %p35
    %p37 = scmp.ne.s32.totalorder %s29, %s32
    %p38 = scmp.eq.s32.totalorder %s19, 0
    %p39 = por %p37, %p38
    %p40 = scmp.ne.s32.totalorder %s29, %s32
    %p41 = scmp.eq.s32.totalorder %s24, 1
    %p42 = por %p40, %p41
    %p43 = scmp.ne.s32.totalorder %s32, %s33
    %p44 = scmp.eq.s32.totalorder %s24, 0
    %p45 = por %p43, %p44
    %p46 = scmp.ne.s32.totalorder %s32, %s33
    %p47 = scmp.eq.s32.totalorder %s25, 1
    %p48 = por %p46, %p47
    %p50 = scmp.ne.s32.totalorder %s33, %s49
    %p51 = scmp.eq.s32.totalorder %s25, 0
    %p52 = por %p50, %p51
    %s53 = ssub.s32 %s19, %s26
    %p54 = scmp.eq.s32.totalorder %s53, 0
    %s56 = sadd.s32 %s55, 1
    %s57 = scalar_select %p54, %s55, %s56
    %p60 = pneg %p54
    %p61 = scmp.eq.s32.totalorder %s19, 1
    %p62 = por %p60, %p61
    %p63 = scmp.ne.s32.totalorder %s55, %s58
    %p64 = scmp.eq.s32.totalorder %s19, 0
    %p65 = por %p63, %p64
    %p66 = scmp.ne.s32.totalorder %s55, %s58
    %p67 = scmp.eq.s32.totalorder %s24, 1
    %p68 = por %p66, %p67
    %p69 = scmp.ne.s32.totalorder %s58, %s59
    %p70 = scmp.eq.s32.totalorder %s24, 0
    %p71 = por %p69, %p70
    %p72 = scmp.ne.s32.totalorder %s58, %s59
    %p73 = scmp.eq.s32.totalorder %s25, 1
    %p74 = por %p72, %p73
    %p76 = scmp.ne.s32.totalorder %s59, %s75
    %p77 = scmp.eq.s32.totalorder %s25, 0
    %p78 = por %p76, %p77
    %s79 = ssub.s32 %s19, %s26
    %p80 = scmp.eq.s32.totalorder %s79, 0
    %s82 = sadd.s32 %s81, 1
    %s83 = scalar_select %p80, %s81, %s82
    %p86 = pneg %p80
    %p87 = scmp.eq.s32.totalorder %s19, 1
    %p88 = por %p86, %p87
    %p89 = scmp.ne.s32.totalorder %s81, %s84
    %p90 = scmp.eq.s32.totalorder %s19, 0
    %p91 = por %p89, %p90
    %p92 = scmp.ne.s32.totalorder %s81, %s84
    %p93 = scmp.eq.s32.totalorder %s24, 1
    %p94 = por %p92, %p93
    %p95 = scmp.ne.s32.totalorder %s84, %s85
    %p96 = scmp.eq.s32.totalorder %s24, 0
    %p97 = por %p95, %p96
    %p98 = scmp.ne.s32.totalorder %s84, %s85
    %p99 = scmp.eq.s32.totalorder %s25, 1
    %p100 = por %p98, %p99
    %p102 = scmp.ne.s32.totalorder %s85, %s101
    %p103 = scmp.eq.s32.totalorder %s25, 0
    %p104 = por %p102, %p103
    %s106 = sadd.s32 %s105, 1
    %p109 = scmp.eq.s32.totalorder %s19, 1
    %p110 = scmp.ne.s32.totalorder %s105, %s107
    %p111 = scmp.eq.s32.totalorder %s19, 0
    %p112 = por %p110, %p111
    %p113 = scmp.ne.s32.totalorder %s105, %s107
    %p114 = scmp.eq.s32.totalorder %s24, 1
    %p115 = por %p113, %p114
    %p116 = scmp.ne.s32.totalorder %s107, %s108
    %p117 = scmp.eq.s32.totalorder %s24, 0
    %p118 = por %p116, %p117
    %p119 = scmp.ne.s32.totalorder %s107, %s108
    %p120 = scmp.eq.s32.totalorder %s25, 1
    %p121 = por %p119, %p120
    %p123 = scmp.ne.s32.totalorder %s108, %s122
    %p124 = scmp.eq.s32.totalorder %s25, 0
    %p125 = por %p123, %p124
    %s127 = sadd.s32 %s126, 1
    %p130 = scmp.eq.s32.totalorder %s19, 1
    %p131 = scmp.ne.s32.totalorder %s126, %s128
    %p132 = scmp.eq.s32.totalorder %s19, 0
    %p133 = por %p131, %p132
    %p134 = scmp.ne.s32.totalorder %s126, %s128
    %p135 = scmp.eq.s32.totalorder %s24, 1
    %p136 = por %p134, %p135
    %p137 = scmp.ne.s32.totalorder %s128, %s129
    %p138 = scmp.eq.s32.totalorder %s24, 0
    %p139 = por %p137, %p138
    %p140 = scmp.ne.s32.totalorder %s128, %s129
    %p141 = scmp.eq.s32.totalorder %s25, 1
    %p142 = por %p140, %p141
    %p144 = scmp.ne.s32.totalorder %s129, %s143
    %p145 = scmp.eq.s32.totalorder %s25, 0
    %p146 = por %p144, %p145
    %s148 = sadd.s32 %s147, 1
    %p151 = scmp.eq.s32.totalorder %s19, 1
    %p152 = scmp.ne.s32.totalorder %s147, %s149
    %p153 = scmp.eq.s32.totalorder %s19, 0
    %p154 = por %p152, %p153
    %p155 = scmp.ne.s32.totalorder %s147, %s149
    %p156 = scmp.eq.s32.totalorder %s24, 1
    %p157 = por %p155, %p156
    %p158 = scmp.ne.s32.totalorder %s149, %s150
    %p159 = scmp.eq.s32.totalorder %s24, 0
    %p160 = por %p158, %p159
    %p161 = scmp.ne.s32.totalorder %s149, %s150
    %p162 = scmp.eq.s32.totalorder %s25, 1
    %p163 = por %p161, %p162
    %p165 = scmp.ne.s32.totalorder %s150, %s164
    %p166 = scmp.eq.s32.totalorder %s25, 0
    %p167 = por %p165, %p166
    %s169 = sadd.s32 %s168, 1
    %p172 = scmp.eq.s32.totalorder %s19, 1
    %p173 = scmp.ne.s32.totalorder %s168, %s170
    %p174 = scmp.eq.s32.totalorder %s19, 0
    %p175 = por %p173, %p174
    %p176 = scmp.ne.s32.totalorder %s168, %s170
    %p177 = scmp.eq.s32.totalorder %s24, 1
    %p178 = por %p176, %p177
    %p179 = scmp.ne.s32.totalorder %s170, %s171
    %p180 = scmp.eq.s32.totalorder %s24, 0
    %p181 = por %p179, %p180
    %p182 = scmp.ne.s32.totalorder %s170, %s171
    %p183 = scmp.eq.s32.totalorder %s25, 1
    %p184 = por %p182, %p183
    %p186 = scmp.ne.s32.totalorder %s171, %s185
    %p187 = scmp.eq.s32.totalorder %s25, 0
    %p188 = por %p186, %p187
    %s190 = sadd.s32 %s189, 1
    %p193 = scmp.eq.s32.totalorder %s19, 1
    %p194 = scmp.ne.s32.totalorder %s189, %s191
    %p195 = scmp.eq.s32.totalorder %s19, 0
    %p196 = por %p194, %p195
    %p197 = scmp.ne.s32.totalorder %s189, %s191
    %p198 = scmp.eq.s32.totalorder %s24, 1
    %p199 = por %p197, %p198
    %p200 = scmp.ne.s32.totalorder %s191, %s192
    %p201 = scmp.eq.s32.totalorder %s24, 0
    %p202 = por %p200, %p201
    %p203 = scmp.ne.s32.totalorder %s191, %s192
    %p204 = scmp.eq.s32.totalorder %s25, 1
    %p205 = por %p203, %p204
    %p207 = scmp.ne.s32.totalorder %s192, %s206
    %p208 = scmp.eq.s32.totalorder %s25, 0
    %p209 = por %p207, %p208
    %s211 = sadd.s32 %s210, 1
    %p214 = scmp.eq.s32.totalorder %s19, 1
    %p215 = scmp.ne.s32.totalorder %s210, %s212
    %p216 = scmp.eq.s32.totalorder %s19, 0
    %p217 = por %p215, %p216
    %p218 = scmp.ne.s32.totalorder %s210, %s212
    %p219 = scmp.eq.s32.totalorder %s24, 1
    %p220 = por %p218, %p219
    %p221 = scmp.ne.s32.totalorder %s212, %s213
    %p222 = scmp.eq.s32.totalorder %s24, 0
    %p223 = por %p221, %p222
    %p224 = scmp.ne.s32.totalorder %s212, %s213
    %p225 = scmp.eq.s32.totalorder %s25, 1
    %p226 = por %p224, %p225
    %p228 = scmp.ne.s32.totalorder %s213, %s227
    %p229 = scmp.eq.s32.totalorder %s25, 0
    %p230 = por %p228, %p229
    %s232 = sadd.s32 %s231, 1
    %p235 = scmp.eq.s32.totalorder %s19, 1
    %p236 = scmp.ne.s32.totalorder %s231, %s233
    %p237 = scmp.eq.s32.totalorder %s19, 0
    %p238 = por %p236, %p237
    %p239 = scmp.ne.s32.totalorder %s231, %s233
    %p240 = scmp.eq.s32.totalorder %s24, 1
    %p241 = por %p239, %p240
    %p242 = scmp.ne.s32.totalorder %s233, %s234
    %p243 = scmp.eq.s32.totalorder %s24, 0
    %p244 = por %p242, %p243
    %p245 = scmp.ne.s32.totalorder %s233, %s234
    %p246 = scmp.eq.s32.totalorder %s25, 1
    %p247 = por %p245, %p246
    %p249 = scmp.ne.s32.totalorder %s234, %s248
    %p250 = scmp.eq.s32.totalorder %s25, 0
    %p251 = por %p249, %p250
    %s253 = sadd.s32 %s252, 1
    %p256 = scmp.eq.s32.totalorder %s19, 1
    %p257 = scmp.ne.s32.totalorder %s252, %s254
    %p258 = scmp.eq.s32.totalorder %s19, 0
    %p259 = por %p257, %p258
    %p260 = scmp.ne.s32.totalorder %s252, %s254
    %p261 = scmp.eq.s32.totalorder %s24, 1
    %p262 = por %p260, %p261
    %p263 = scmp.ne.s32.totalorder %s254, %s255
    %p264 = scmp.eq.s32.totalorder %s24, 0
    %p265 = por %p263, %p264
    %p266 = scmp.ne.s32.totalorder %s254, %s255
    %p267 = scmp.eq.s32.totalorder %s25, 1
    %p268 = por %p266, %p267
    %p270 = scmp.ne.s32.totalorder %s255, %s269
    %p271 = scmp.eq.s32.totalorder %s25, 0
    %p272 = por %p270, %p271
    %s273 = ssub.s32 %s19, %s26
    %p274 = scmp.eq.s32.totalorder %s273, 0
    %s276 = sadd.s32 %s275, 1
    %s277 = scalar_select %p274, %s275, %s276
    %p280 = pneg %p274
    %p281 = scmp.eq.s32.totalorder %s19, 1
    %p282 = por %p280, %p281
    %p283 = scmp.ne.s32.totalorder %s275, %s278
    %p284 = scmp.eq.s32.totalorder %s19, 0
    %p285 = por %p283, %p284
    %p286 = scmp.ne.s32.totalorder %s275, %s278
    %p287 = scmp.eq.s32.totalorder %s24, 1
    %p288 = por %p286, %p287
    %p289 = scmp.ne.s32.totalorder %s278, %s279
    %p290 = scmp.eq.s32.totalorder %s24, 0
    %p291 = por %p289, %p290
    %p292 = scmp.ne.s32.totalorder %s278, %s279
    %p293 = scmp.eq.s32.totalorder %s25, 1
    %p294 = por %p292, %p293
    %p296 = scmp.ne.s32.totalorder %s279, %s295
    %p297 = scmp.eq.s32.totalorder %s25, 0
    %p298 = por %p296, %p297
    %s299 = ssub.s32 %s19, %s26
    %p300 = scmp.eq.s32.totalorder %s299, 0
    %s302 = sadd.s32 %s301, 1
    %s303 = scalar_select %p300, %s301, %s302
    %p306 = pneg %p300
    %p307 = scmp.eq.s32.totalorder %s19, 1
    %p308 = por %p306, %p307
    %p309 = scmp.ne.s32.totalorder %s301, %s304
    %p310 = scmp.eq.s32.totalorder %s19, 0
    %p311 = por %p309, %p310
    %p312 = scmp.ne.s32.totalorder %s301, %s304
    %p313 = scmp.eq.s32.totalorder %s24, 1
    %p314 = por %p312, %p313
    %p315 = scmp.ne.s32.totalorder %s304, %s305
    %p316 = scmp.eq.s32.totalorder %s24, 0
    %p317 = por %p315, %p316
    %p318 = scmp.ne.s32.totalorder %s304, %s305
    %p319 = scmp.eq.s32.totalorder %s25, 1
    %p320 = por %p318, %p319
    %p322 = scmp.ne.s32.totalorder %s305, %s321
    %p323 = scmp.eq.s32.totalorder %s25, 0
    %p324 = por %p322, %p323
    %p325 = scmp.le.s32.totalorder 1, %s19
    %p326 = scmp.lt.s32.totalorder %s19, 3
    %p327 = pnand %p325, %p326
    %p328 = pneg %p327
    // Predicated region
    $region9: #{_lambda_.9} parent=5 // pred_check
      _
    $region10: #{_lambda_.9} parent=5 // pred_check_branch
      %330 = sbr.rel (%p327) target = $region12
    $region11: #{_lambda_.9} parent=5 // pred_region
      %s331 = ssub.s32 %s19, 1
      // Predicated region
      $region13: #{_lambda_.9} parent=11 // pred_check
        %p332 = pneg %p118
      $region14: #{_lambda_.9} parent=11 // pred_check_branch
        %334 = sbr.rel (%p332) target = $region16
      $region15: #{_lambda_.9} parent=11 // pred_region
        _
      $region16: #{_lambda_.9} parent=11 // pred_fallthru
        _
      // Predicated region
      $region17: #{_lambda_.9} parent=11 // pred_check
        %p335 = pneg %p139
      $region18: #{_lambda_.9} parent=11 // pred_check_branch
        %337 = sbr.rel (%p335) target = $region20
      $region19: #{_lambda_.9} parent=11 // pred_region
        _
      $region20: #{_lambda_.9} parent=11 // pred_fallthru
        _
      // Predicated region
      $region21: #{_lambda_.9} parent=11 // pred_check
        %p338 = pneg %p160
      $region22: #{_lambda_.9} parent=11 // pred_check_branch
        %340 = sbr.rel (%p338) target = $region24
      $region23: #{_lambda_.9} parent=11 // pred_region
        _
      $region24: #{_lambda_.9} parent=11 // pred_fallthru
        _
      // Predicated region
      $region25: #{_lambda_.9} parent=11 // pred_check
        %p341 = pneg %p181
      $region26: #{_lambda_.9} parent=11 // pred_check_branch
        %343 = sbr.rel (%p341) target = $region28
      $region27: #{_lambda_.9} parent=11 // pred_region
        _
      $region28: #{_lambda_.9} parent=11 // pred_fallthru
        _
      // Predicated region
      $region29: #{_lambda_.9} parent=11 // pred_check
        %p344 = pneg %p202
      $region30: #{_lambda_.9} parent=11 // pred_check_branch
        %346 = sbr.rel (%p344) target = $region32
      $region31: #{_lambda_.9} parent=11 // pred_region
        _
      $region32: #{_lambda_.9} parent=11 // pred_fallthru
        _
      // Predicated region
      $region33: #{_lambda_.9} parent=11 // pred_check
        %p347 = pneg %p223
      $region34: #{_lambda_.9} parent=11 // pred_check_branch
        %349 = sbr.rel (%p347) target = $region36
      $region35: #{_lambda_.9} parent=11 // pred_region
        _
      $region36: #{_lambda_.9} parent=11 // pred_fallthru
        _
      // Predicated region
      $region37: #{_lambda_.9} parent=11 // pred_check
        %p350 = pneg %p244
      $region38: #{_lambda_.9} parent=11 // pred_check_branch
        %352 = sbr.rel (%p350) target = $region40
      $region39: #{_lambda_.9} parent=11 // pred_region
        _
      $region40: #{_lambda_.9} parent=11 // pred_fallthru
        _
      // Predicated region
      $region41: #{_lambda_.9} parent=11 // pred_check
        %p353 = pneg %p265
      $region42: #{_lambda_.9} parent=11 // pred_check_branch
        %355 = sbr.rel (%p353) target = $region44
      $region43: #{_lambda_.9} parent=11 // pred_region
        _
      $region44: #{_lambda_.9} parent=11 // pred_fallthru
        _
    $region12: #{_lambda_.9} parent=5 // pred_fallthru
      _
    %p356 = scmp.lt.s32.totalorder %s19, 2
    // Predicated region
    $region45: #{_lambda_.9} parent=5 // pred_check
      %p357 = pneg %p356
    $region46: #{_lambda_.9} parent=5 // pred_check_branch
      %359 = sbr.rel (%p357) target = $region48
    $region47: #{_lambda_.9} parent=5 // pred_region
      // Predicated region
      $region49: #{_lambda_.9} parent=47 // pred_check
        %p360 = pneg %p39
      $region50: #{_lambda_.9} parent=47 // pred_check_branch
        %362 = sbr.rel (%p360) target = $region52
      $region51: #{_lambda_.9} parent=47 // pred_region
        %p363 = scmp.lt.s32.totalorder %s19, 1
        %s364 = scalar_select %p363, %s19, 1
        %s365 = smul.addr %s364, 8
        %s366 = scalar_lea.vmem %s0, %s365
      $region52: #{_lambda_.9} parent=47 // pred_fallthru
        _
      // Predicated region
      $region53: #{_lambda_.9} parent=47 // pred_check
        %p367 = pneg %p65
      $region54: #{_lambda_.9} parent=47 // pred_check_branch
        %369 = sbr.rel (%p367) target = $region56
      $region55: #{_lambda_.9} parent=47 // pred_region
        %p370 = scmp.lt.s32.totalorder %s19, 1
        %s371 = scalar_select %p370, %s19, 1
        %s372 = smul.addr %s371, 8
        %s373 = scalar_lea.vmem %s1, %s372
      $region56: #{_lambda_.9} parent=47 // pred_fallthru
        _
      // Predicated region
      $region57: #{_lambda_.9} parent=47 // pred_check
        %p374 = pneg %p91
      $region58: #{_lambda_.9} parent=47 // pred_check_branch
        %376 = sbr.rel (%p374) target = $region60
      $region59: #{_lambda_.9} parent=47 // pred_region
        %p377 = scmp.lt.s32.totalorder %s19, 1
        %s378 = scalar_select %p377, %s19, 1
        %s379 = scalar_lea.vmem %s2, %s378
      $region60: #{_lambda_.9} parent=47 // pred_fallthru
        _
    $region48: #{_lambda_.9} parent=5 // pred_fallthru
      _
    %p380 = scmp.le.s32.totalorder 1, %s19
    %p381 = scmp.lt.s32.totalorder %s19, 3
    %p382 = pnand %p380, %p381
    %p383 = pneg %p382
    // Predicated region
    $region61: #{_lambda_.9} parent=5 // pred_check
      _
    $region62: #{_lambda_.9} parent=5 // pred_check_branch
      %385 = sbr.rel (%p382) target = $region64
    $region63: #{_lambda_.9} parent=5 // pred_region
      %s386 = ssub.s32 %s19, 1
      %p387 = scmp.lt.s32.totalorder %s24, 1
      %s388 = scalar_select %p387, %s24, 1
      %s389 = smul.addr %s388, 8
      %s390 = scalar_lea.vmem %s0, %s389
      %p391 = pneg %p45
      %p392 = pneg %p42
      %p393 = scmp.lt.s32.totalorder %s24, 1
      %s394 = scalar_select %p393, %s24, 1
      %s395 = smul.addr %s394, 8
      %s396 = scalar_lea.vmem %s1, %s395
      %p397 = pneg %p71
      %p398 = pneg %p68
      %p399 = scmp.lt.s32.totalorder %s24, 1
      %s400 = scalar_select %p399, %s24, 1
      %s401 = scalar_lea.vmem %s2, %s400
      %p402 = pneg %p97
      %p403 = pneg %p94
      %p404 = pneg %p118
      %p405 = pneg %p115
      %p406 = pneg %p139
      %p407 = pneg %p136
      %p408 = pneg %p160
      %p409 = pneg %p157
      %p410 = pneg %p181
      %p411 = pneg %p178
      %p412 = pneg %p202
      %p413 = pneg %p199
      %p414 = pneg %p223
      %p415 = pneg %p220
      %p416 = pneg %p244
      %p417 = pneg %p241
      %p418 = pneg %p265
      %p419 = pneg %p262
      %p420 = pneg %p291
      %p421 = pneg %p288
      %p422 = scmp.lt.s32.totalorder %s24, 1
      %s423 = scalar_select %p422, %s24, 1
      %s424 = smul.addr %s423, 8
      %s425 = scalar_lea.vmem %s11, %s424
      %p426 = pneg %p317
      %p427 = pneg %p314
      %p428 = scmp.lt.s32.totalorder %s24, 1
      %s429 = scalar_select %p428, %s24, 1
      %s430 = smul.addr %s429, 16
      %s431 = smul.addr %s430, 8
      %s432 = scalar_lea.vmem %s12, %s431
      %p433 = scmp.lt.s32.totalorder %s24, 1
      %s434 = scalar_select %p433, %s24, 1
      %s435 = smul.addr %s434, 8
      %s436 = scalar_lea.vmem %s0, %s435
      %p437 = scmp.lt.s32.totalorder %s24, 1
      %s438 = scalar_select %p437, %s24, 1
      %s439 = smul.addr %s438, 8
      %s440 = scalar_lea.vmem %s1, %s439
      %p441 = scmp.lt.s32.totalorder %s24, 1
      %s442 = scalar_select %p441, %s24, 1
      %s443 = scalar_lea.vmem %s2, %s442
      %p444 = scmp.lt.s32.totalorder %s24, 1
      %s445 = scalar_select %p444, %s24, 1
      %s446 = smul.addr %s445, 8
      %s447 = scalar_lea.vmem %s11, %s446
      %p448 = scmp.lt.s32.totalorder %s24, 1
      %s449 = scalar_select %p448, %s24, 1
      %s450 = smul.addr %s449, 16
      %s451 = smul.addr %s450, 8
      %s452 = scalar_lea.vmem %s12, %s451
      %v454 = vld [vmem:[%s436] sm:$0xff]
      %v455 = vld [vmem:[%s440] sm:$0xff]
      %v456 = vld [vmem:[%s3] sm:$0x1]
      %v457 = vld [vmem:[%s4] sm:$0x1]
      %vm458 = vcmask 261120
      %v459 = vsel %vm458, %v454, 0.0
      %460 = vadd.xlane.f32.xlu0 %v459
      %v461 = vpop.xlane.xlu0 %460
      %v462 = vrcp.pop 32.0
      %v463 = vmul.f32 %v461, %v462
      %v464 = vsub.f32 %v454, %v463
      %v465 = vmul.f32 %v464, %v464
      %v466 = vsel %vm458, %v465, 0.0
      %467 = vadd.xlane.f32.xlu0 %v466
      %v468 = vpop.xlane.xlu0 %467
      %v469 = vmul.f32 %v468, %v462
      %v470 = vadd.f32 %v469, 1e-05
      %v471 = vrsqrt.pop %v470
      %v472 = vmul.f32 %v464, %v471
      %v474 = vlaneseq
      %v475 = vshrl.u32 %v474, 7
      %v476 = vsub.s32 0, %v475
      %v477 = vrot.slane %v456, %v476
      %v479 = vmul.f32 %v472, %v477
      %v481 = vlaneseq
      %v482 = vshrl.u32 %v481, 7
      %v483 = vsub.s32 0, %v482
      %v484 = vrot.slane %v457, %v483
      %v486 = vadd.f32 %v479, %v484
      %488 = vset.pattern.permute.xlu0 0
      %489 = vperm.xlu0 %488, %v455
      %v490 = vpop.permute.xlu0 %489
      %v492 = vmul.f32 %v486, %v490
      %v493 = vpack.c.bf16 %v492, %v492
      %v494 = vld [vmem:[%s5] sm:$0xff]
      %v495 = vld [vmem:[%s5 + $0x8] sm:$0xff]
      %v496 = vld [vmem:[%s5 + $0x10] sm:$0xff]
      %v497 = vld [vmem:[%s5 + $0x18] sm:$0xff]
      %v498 = vld [vmem:[%s5 + $0x20] sm:$0xff]
      %v499 = vld [vmem:[%s5 + $0x28] sm:$0xff]
      %v500 = vld [vmem:[%s5 + $0x30] sm:$0xff]
      %v501 = vld [vmem:[%s5 + $0x38] sm:$0xff]
      %v502 = vld [vmem:[%s6] sm:$0xf]
      %v504 = vlaneseq
      %v505 = vshrl.u32 %v504, 7
      %v506 = vsub.s32 0, %v505
      %v507 = vrot.slane %v502, %v506
      %v508 = vlaneseq
      %v509 = vshrl.u32 %v508, 7
      %v510 = vsub.s32 1, %v509
      %v511 = vrot.slane %v502, %v510
      %v512 = vlaneseq
      %v513 = vshrl.u32 %v512, 7
      %v514 = vsub.s32 2, %v513
      %v515 = vrot.slane %v502, %v514
      %v516 = vlaneseq
      %v517 = vshrl.u32 %v516, 7
      %v518 = vsub.s32 3, %v517
      %v519 = vrot.slane %v502, %v518
      %v532 = vunpack.c.l.b16 %v494
      %v533 = vunpack.c.h.b16 %v494
      %v534 = vunpack.c.l.b16 %v495
      %v535 = vunpack.c.h.b16 %v495
      %v536 = vunpack.c.l.b16 %v496
      %v537 = vunpack.c.h.b16 %v496
      %v538 = vunpack.c.l.b16 %v497
      %v539 = vunpack.c.h.b16 %v497
      %v540 = vunpack.c.l.b16 %v498
      %v541 = vunpack.c.h.b16 %v498
      %v542 = vunpack.c.l.b16 %v499
      %v543 = vunpack.c.h.b16 %v499
      %v544 = vunpack.c.l.b16 %v500
      %v545 = vunpack.c.h.b16 %v500
      %v546 = vunpack.c.l.b16 %v501
      %v547 = vunpack.c.h.b16 %v501
      %v548 = vpack.c.b16 %v536, %v532
      %v549 = vpack.c.b16 %v537, %v533
      %v550 = vpack.c.b16 %v538, %v534
      %v551 = vpack.c.b16 %v539, %v535
      %v552 = vpack.c.b16 %v544, %v540
      %v553 = vpack.c.b16 %v545, %v541
      %v554 = vpack.c.b16 %v546, %v542
      %v555 = vpack.c.b16 %v547, %v543
      %v565 = vsel %vm458, %v493, 0
      %567 = vmatprep.subr.bf16.mxu0 %v549
      %568 = vmatpush1.bf16.msra.mxu0 %v548
      %569 = vmatprep.subr.bf16.mxu0 %v553
      %570 = vmatpush1.bf16.msra.mxu0 %v552
      %571 = vmatprep.subr.bf16.mxu0 0
      %572 = vmatpush1.bf16.msra.mxu0 0
      %573 = vmatprep.subr.bf16.mxu0 0
      %574 = vmatpush1.bf16.msra.mxu0 0
      %575 = vmatprep.subr.bf16.mxu0 0
      %576 = vmatpush1.bf16.msra.mxu0 0
      %577 = vmatprep.subr.bf16.mxu0 0
      %578 = vmatpush1.bf16.msra.mxu0 0
      %579 = vmatprep.subr.bf16.mxu0 0
      %580 = vmatpush1.bf16.msra.mxu0 0
      %581 = vmatprep.subr.bf16.mxu0 0
      %582 = vmatpush1.bf16.msra.mxu0 0
      %583 = vmatprep.subr.bf16.mxu0 0
      %584 = vmatpush1.bf16.msra.mxu0 0
      %585 = vmatprep.subr.bf16.mxu0 0
      %586 = vmatpush1.bf16.msra.mxu0 0
      %587 = vmatprep.subr.bf16.mxu0 0
      %588 = vmatpush1.bf16.msra.mxu0 0
      %589 = vmatprep.subr.bf16.mxu0 0
      %590 = vmatpush1.bf16.msra.mxu0 0
      %591 = vmatprep.subr.bf16.mxu0 0
      %592 = vmatpush1.bf16.msra.mxu0 0
      %593 = vmatprep.subr.bf16.mxu0 0
      %594 = vmatpush1.bf16.msra.mxu0 0
      %595 = vmatprep.subr.bf16.mxu0 0
      %596 = vmatpush1.bf16.msra.mxu0 0
      %597 = vmatprep.subr.bf16.mxu0 0
      %598 = vmatpush1.bf16.msra.mxu0 0
      %599 = vmatprep.mubr.bf16.mxu0 0
      %600 = vmatmul.mubr.bf16.gmra.mrb[0].mxu0 %v565
      %v601 = vpop.f32.mrb[0].mxu0
      %v602 = vadd.f32 %v507, %v601
      %v603 = vpop.f32.mrb[0].mxu0
      %v604 = vadd.f32 %v511, %v603
      %v605 = vpop.f32.mrb[0].mxu0
      %v606 = vpop.f32.mrb[0].mxu0
      %607 = vdwg.mxu0
      %608 = vmatprep.subr.bf16.mxu0 %v551
      %609 = vmatpush1.bf16.msra.mxu0 %v550
      %610 = vmatprep.subr.bf16.mxu0 %v555
      %611 = vmatpush1.bf16.msra.mxu0 %v554
      %612 = vmatprep.subr.bf16.mxu0 0
      %613 = vmatpush1.bf16.msra.mxu0 0
      %614 = vmatprep.subr.bf16.mxu0 0
      %615 = vmatpush1.bf16.msra.mxu0 0
      %616 = vmatprep.subr.bf16.mxu0 0
      %617 = vmatpush1.bf16.msra.mxu0 0
      %618 = vmatprep.subr.bf16.mxu0 0
      %619 = vmatpush1.bf16.msra.mxu0 0
      %620 = vmatprep.subr.bf16.mxu0 0
      %621 = vmatpush1.bf16.msra.mxu0 0
      %622 = vmatprep.subr.bf16.mxu0 0
      %623 = vmatpush1.bf16.msra.mxu0 0
      %624 = vmatprep.subr.bf16.mxu0 0
      %625 = vmatpush1.bf16.msra.mxu0 0
      %626 = vmatprep.subr.bf16.mxu0 0
      %627 = vmatpush1.bf16.msra.mxu0 0
      %628 = vmatprep.subr.bf16.mxu0 0
      %629 = vmatpush1.bf16.msra.mxu0 0
      %630 = vmatprep.subr.bf16.mxu0 0
      %631 = vmatpush1.bf16.msra.mxu0 0
      %632 = vmatprep.subr.bf16.mxu0 0
      %633 = vmatpush1.bf16.msra.mxu0 0
      %634 = vmatprep.subr.bf16.mxu0 0
      %635 = vmatpush1.bf16.msra.mxu0 0
      %636 = vmatprep.subr.bf16.mxu0 0
      %637 = vmatpush1.bf16.msra.mxu0 0
      %638 = vmatprep.subr.bf16.mxu0 0
      %639 = vmatpush1.bf16.msra.mxu0 0
      %640 = vmatprep.mubr.bf16.mxu0 0
      %641 = vmatmul.mubr.bf16.gmra.mrb[0].mxu0 %v565
      %v642 = vpop.f32.mrb[0].mxu0
      %v643 = vadd.f32 %v515, %v642
      %v644 = vpop.f32.mrb[0].mxu0
      %v645 = vadd.f32 %v519, %v644
      %v646 = vpop.f32.mrb[0].mxu0
      %v647 = vpop.f32.mrb[0].mxu0
      %648 = vdwg.mxu0
      %v649 = vld [vmem:[%s7] sm:$0xff]
      %v650 = vld [vmem:[%s7 + $0x8] sm:$0xff]
      %v651 = vld [vmem:[%s7 + $0x10] sm:$0xff]
      %v652 = vld [vmem:[%s7 + $0x18] sm:$0xff]
      %v653 = vld [vmem:[%s8] sm:$0x3]
      %v655 = vlaneseq
      %v656 = vshrl.u32 %v655, 7
      %v657 = vsub.s32 0, %v656
      %v658 = vrot.slane %v653, %v657
      %v659 = vlaneseq
      %v660 = vshrl.u32 %v659, 7
      %v661 = vsub.s32 1, %v660
      %v662 = vrot.slane %v653, %v661
      %v669 = vunpack.c.l.b16 %v649
      %v670 = vunpack.c.h.b16 %v649
      %v671 = vunpack.c.l.b16 %v650
      %v672 = vunpack.c.h.b16 %v650
      %v673 = vunpack.c.l.b16 %v651
      %v674 = vunpack.c.h.b16 %v651
      %v675 = vunpack.c.l.b16 %v652
      %v676 = vunpack.c.h.b16 %v652
      %v677 = vpack.c.b16 %v671, %v669
      %v678 = vpack.c.b16 %v672, %v670
      %v679 = vpack.c.b16 %v675, %v673
      %v680 = vpack.c.b16 %v676, %v674
      %685 = vmatprep.subr.bf16.mxu0 %v678
      %686 = vmatpush1.bf16.msra.mxu0 %v677
      %687 = vmatprep.subr.bf16.mxu0 %v680
      %688 = vmatpush1.bf16.msra.mxu0 %v679
      %689 = vmatprep.subr.bf16.mxu0 0
      %690 = vmatpush1.bf16.msra.mxu0 0
      %691 = vmatprep.subr.bf16.mxu0 0
      %692 = vmatpush1.bf16.msra.mxu0 0
      %693 = vmatprep.subr.bf16.mxu0 0
      %694 = vmatpush1.bf16.msra.mxu0 0
      %695 = vmatprep.subr.bf16.mxu0 0
      %696 = vmatpush1.bf16.msra.mxu0 0
      %697 = vmatprep.subr.bf16.mxu0 0
      %698 = vmatpush1.bf16.msra.mxu0 0
      %699 = vmatprep.subr.bf16.mxu0 0
      %700 = vmatpush1.bf16.msra.mxu0 0
      %701 = vmatprep.subr.bf16.mxu0 0
      %702 = vmatpush1.bf16.msra.mxu0 0
      %703 = vmatprep.subr.bf16.mxu0 0
      %704 = vmatpush1.bf16.msra.mxu0 0
      %705 = vmatprep.subr.bf16.mxu0 0
      %706 = vmatpush1.bf16.msra.mxu0 0
      %707 = vmatprep.subr.bf16.mxu0 0
      %708 = vmatpush1.bf16.msra.mxu0 0
      %709 = vmatprep.subr.bf16.mxu0 0
      %710 = vmatpush1.bf16.msra.mxu0 0
      %711 = vmatprep.subr.bf16.mxu0 0
      %712 = vmatpush1.bf16.msra.mxu0 0
      %713 = vmatprep.subr.bf16.mxu0 0
      %714 = vmatpush1.bf16.msra.mxu0 0
      %715 = vmatprep.subr.bf16.mxu0 0
      %716 = vmatpush1.bf16.msra.mxu0 0
      %717 = vmatprep.mubr.bf16.mxu0 0
      %718 = vmatmul.mubr.bf16.gmra.mrb[0].mxu0 %v565
      %v719 = vpop.f32.mrb[0].mxu0
      %v720 = vadd.f32 %v658, %v719
      %v721 = vpop.f32.mrb[0].mxu0
      %v722 = vadd.f32 %v662, %v721
      %v723 = vpop.f32.mrb[0].mxu0
      %v724 = vpop.f32.mrb[0].mxu0
      %725 = vdwg.mxu0
      %v726 = vmul.f32 %v720, %v490
      %v727 = vmul.f32 %v722, %v490
      %v728 = vld [vmem:[%s443] sm:$0x1]
      %v729 = vsub.f32 %v728, 1.0
      %v730 = vmul.f32 %v729, 1e+09
      %v731 = vmul.f32 %v602, 0.25
      %v732 = vpack.c.bf16 %v731, %v731
      %v733 = vpack.c.bf16 %v643, %v643
      %v735 = vlaneseq
      %v736 = vshrl.u32 %v735, 7
      %v737 = vsub.s32 0, %v736
      %v738 = vrot.slane %v730, %v737
      %vm740 = vcmask 130048
      %v742 = vsel %vm740, %v732, 0
      %v745 = vsel %vm740, %v733, 0
      %747 = vmatprep.subr.bf16.mxu0 0
      %748 = vmatpush1.bf16.xpose.msra.mxu0 %v745
      %749 = vmatprep.subr.bf16.mxu0 0
      %750 = vmatpush1.bf16.xpose.msra.mxu0 0
      %751 = vmatprep.subr.bf16.mxu0 0
      %752 = vmatpush1.bf16.xpose.msra.mxu0 0
      %753 = vmatprep.subr.bf16.mxu0 0
      %754 = vmatpush1.bf16.xpose.msra.mxu0 0
      %755 = vmatprep.subr.bf16.mxu0 0
      %756 = vmatpush1.bf16.xpose.msra.mxu0 0
      %757 = vmatprep.subr.bf16.mxu0 0
      %758 = vmatpush1.bf16.xpose.msra.mxu0 0
      %759 = vmatprep.subr.bf16.mxu0 0
      %760 = vmatpush1.bf16.xpose.msra.mxu0 0
      %761 = vmatprep.subr.bf16.mxu0 0
      %762 = vmatpush1.bf16.xpose.msra.mxu0 0
      %763 = vmatprep.subr.bf16.mxu0 0
      %764 = vmatpush1.bf16.xpose.msra.mxu0 0
      %765 = vmatprep.subr.bf16.mxu0 0
      %766 = vmatpush1.bf16.xpose.msra.mxu0 0
      %767 = vmatprep.subr.bf16.mxu0 0
      %768 = vmatpush1.bf16.xpose.msra.mxu0 0
      %769 = vmatprep.subr.bf16.mxu0 0
      %770 = vmatpush1.bf16.xpose.msra.mxu0 0
      %771 = vmatprep.subr.bf16.mxu0 0
      %772 = vmatpush1.bf16.xpose.msra.mxu0 0
      %773 = vmatprep.subr.bf16.mxu0 0
      %774 = vmatpush1.bf16.xpose.msra.mxu0 0
      %775 = vmatprep.subr.bf16.mxu0 0
      %776 = vmatpush1.bf16.xpose.msra.mxu0 0
      %777 = vmatprep.subr.bf16.mxu0 0
      %778 = vmatpush1.bf16.xpose.msra.mxu0 0
      %779 = vmatprep.mubr.bf16.mxu0 0
      %780 = vmatmul.mubr.bf16.gmra.mrb[0].mxu0 %v742
      %v781 = vpop.f32.mrb[0].mxu0
      %v782 = vadd.f32 %v738, %v781
      %v783 = vpop.f32.mrb[0].mxu0
      %v784 = vpop.f32.mrb[0].mxu0
      %v785 = vpop.f32.mrb[0].mxu0
      %786 = vdwg.mxu0
      %vm787 = vcmask 64512
      %v788 = vsel %vm787, %v782, -inf
      %789 = vmax.xlane.f32.xlu0 %v788
      %v790 = vpop.xlane.xlu0 %789
      %v791 = vsub.f32 %v782, %v790
      %v792 = vmul.f32 %v791, 1.442695
      %v793 = vpow.pop %v792
      %v794 = vsel %vm787, %v793, 0.0
      %795 = vadd.xlane.f32.xlu0 %v794
      %v796 = vpop.xlane.xlu0 %795
      %v797 = vrcp.pop %v796
      %v798 = vmul.f32 %v793, %v797
      %799 = vst.msk [vmem:[%s452] sm:$0xff] %vm787, %v798
      %v800 = vpack.c.bf16 %v798, %v798
      %v801 = vpack.c.bf16 %v726, %v726
      %v803 = vsel %vm787, %v800, 0
      %vm805 = vcmask 1043456
      %v807 = vsel %vm805, %v801, 0
      %809 = vmatprep.subr.bf16.mxu0 0
      %810 = vmatpush1.bf16.msra.mxu0 %v807
      %811 = vmatprep.subr.bf16.mxu0 0
      %812 = vmatpush1.bf16.msra.mxu0 0
      %813 = vmatprep.subr.bf16.mxu0 0
      %814 = vmatpush1.bf16.msra.mxu0 0
      %815 = vmatprep.subr.bf16.mxu0 0
      %816 = vmatpush1.bf16.msra.mxu0 0
      %817 = vmatprep.subr.bf16.mxu0 0
      %818 = vmatpush1.bf16.msra.mxu0 0
      %819 = vmatprep.subr.bf16.mxu0 0
      %820 = vmatpush1.bf16.msra.mxu0 0
      %821 = vmatprep.subr.bf16.mxu0 0
      %822 = vmatpush1.bf16.msra.mxu0 0
      %823 = vmatprep.subr.bf16.mxu0 0
      %824 = vmatpush1.bf16.msra.mxu0 0
      %825 = vmatprep.subr.bf16.mxu0 0
      %826 = vmatpush1.bf16.msra.mxu0 0
      %827 = vmatprep.subr.bf16.mxu0 0
      %828 = vmatpush1.bf16.msra.mxu0 0
      %829 = vmatprep.subr.bf16.mxu0 0
      %830 = vmatpush1.bf16.msra.mxu0 0
      %831 = vmatprep.subr.bf16.mxu0 0
      %832 = vmatpush1.bf16.msra.mxu0 0
      %833 = vmatprep.subr.bf16.mxu0 0
      %834 = vmatpush1.bf16.msra.mxu0 0
      %835 = vmatprep.subr.bf16.mxu0 0
      %836 = vmatpush1.bf16.msra.mxu0 0
      %837 = vmatprep.subr.bf16.mxu0 0
      %838 = vmatpush1.bf16.msra.mxu0 0
      %839 = vmatprep.subr.bf16.mxu0 0
      %840 = vmatpush1.bf16.msra.mxu0 0
      %841 = vmatprep.mubr.bf16.mxu0 0
      %842 = vmatmul.mubr.bf16.gmra.mrb[0].mxu0 %v803
      %v843 = vpop.f32.mrb[0].mxu0
      %v844 = vadd.f32 0.0, %v843
      %v845 = vpop.f32.mrb[0].mxu0
      %v846 = vpop.f32.mrb[0].mxu0
      %v847 = vpop.f32.mrb[0].mxu0
      %848 = vdwg.mxu0
      %v849 = vpack.c.bf16 %v844, %v844
      %v850 = vld [vmem:[%s9] sm:$0xf]
      %v851 = vld [vmem:[%s9 + $0x4] sm:$0xf]
      %853 = vrot.lane.b32.xlu0 %v732, 112
      %v854 = vpop.permute.xlu0 %853
      %856 = vrot.lane.b32.xlu0 %v733, 112
      %v857 = vpop.permute.xlu0 %856
      %v859 = vsel %vm740, %v854, 0
      %v862 = vsel %vm740, %v857, 0
      %864 = vmatprep.subr.bf16.mxu0 0
      %865 = vmatpush1.bf16.xpose.msra.mxu0 %v862
      %866 = vmatprep.subr.bf16.mxu0 0
      %867 = vmatpush1.bf16.xpose.msra.mxu0 0
      %868 = vmatprep.subr.bf16.mxu0 0
      %869 = vmatpush1.bf16.xpose.msra.mxu0 0
      %870 = vmatprep.subr.bf16.mxu0 0
      %871 = vmatpush1.bf16.xpose.msra.mxu0 0
      %872 = vmatprep.subr.bf16.mxu0 0
      %873 = vmatpush1.bf16.xpose.msra.mxu0 0
      %874 = vmatprep.subr.bf16.mxu0 0
      %875 = vmatpush1.bf16.xpose.msra.mxu0 0
      %876 = vmatprep.subr.bf16.mxu0 0
      %877 = vmatpush1.bf16.xpose.msra.mxu0 0
      %878 = vmatprep.subr.bf16.mxu0 0
      %879 = vmatpush1.bf16.xpose.msra.mxu0 0
      %880 = vmatprep.subr.bf16.mxu0 0
      %881 = vmatpush1.bf16.xpose.msra.mxu0 0
      %882 = vmatprep.subr.bf16.mxu0 0
      %883 = vmatpush1.bf16.xpose.msra.mxu0 0
      %884 = vmatprep.subr.bf16.mxu0 0
      %885 = vmatpush1.bf16.xpose.msra.mxu0 0
      %886 = vmatprep.subr.bf16.mxu0 0
      %887 = vmatpush1.bf16.xpose.msra.mxu0 0
      %888 = vmatprep.subr.bf16.mxu0 0
      %889 = vmatpush1.bf16.xpose.msra.mxu0 0
      %890 = vmatprep.subr.bf16.mxu0 0
      %891 = vmatpush1.bf16.xpose.msra.mxu0 0
      %892 = vmatprep.subr.bf16.mxu0 0
      %893 = vmatpush1.bf16.xpose.msra.mxu0 0
      %894 = vmatprep.subr.bf16.mxu0 0
      %895 = vmatpush1.bf16.xpose.msra.mxu0 0
      %896 = vmatprep.mubr.bf16.mxu0 0
      %897 = vmatmul.mubr.bf16.gmra.mrb[0].mxu0 %v859
      %v898 = vpop.f32.mrb[0].mxu0
      %v899 = vadd.f32 %v738, %v898
      %v900 = vpop.f32.mrb[0].mxu0
      %v901 = vpop.f32.mrb[0].mxu0
      %v902 = vpop.f32.mrb[0].mxu0
      %903 = vdwg.mxu0
      %v904 = vsel %vm787, %v899, -inf
      %905 = vmax.xlane.f32.xlu0 %v904
      %v906 = vpop.xlane.xlu0 %905
      %v907 = vsub.f32 %v899, %v906
      %v908 = vmul.f32 %v907, 1.442695
      %v909 = vpow.pop %v908
      %v910 = vsel %vm787, %v909, 0.0
      %911 = vadd.xlane.f32.xlu0 %v910
      %v912 = vpop.xlane.xlu0 %911
      %v913 = vrcp.pop %v912
      %v914 = vmul.f32 %v909, %v913
      %915 = vst.msk [vmem:[%s452 + $0x8] sm:$0xff] %vm787, %v914
      %v916 = vpack.c.bf16 %v914, %v914
      %918 = vrot.lane.b32.xlu0 %v801, 112
      %v919 = vpop.permute.xlu0 %918
      %v921 = vsel %vm787, %v916, 0
      %v924 = vsel %vm805, %v919, 0
      %926 = vmatprep.subr.bf16.mxu0 0
      %927 = vmatpush1.bf16.msra.mxu0 %v924
      %928 = vmatprep.subr.bf16.mxu0 0
      %929 = vmatpush1.bf16.msra.mxu0 0
      %930 = vmatprep.subr.bf16.mxu0 0
      %931 = vmatpush1.bf16.msra.mxu0 0
      %932 = vmatprep.subr.bf16.mxu0 0
      %933 = vmatpush1.bf16.msra.mxu0 0
      %934 = vmatprep.subr.bf16.mxu0 0
      %935 = vmatpush1.bf16.msra.mxu0 0
      %936 = vmatprep.subr.bf16.mxu0 0
      %937 = vmatpush1.bf16.msra.mxu0 0
      %938 = vmatprep.subr.bf16.mxu0 0
      %939 = vmatpush1.bf16.msra.mxu0 0
      %940 = vmatprep.subr.bf16.mxu0 0
      %941 = vmatpush1.bf16.msra.mxu0 0
      %942 = vmatprep.subr.bf16.mxu0 0
      %943 = vmatpush1.bf16.msra.mxu0 0
      %944 = vmatprep.subr.bf16.mxu0 0
      %945 = vmatpush1.bf16.msra.mxu0 0
      %946 = vmatprep.subr.bf16.mxu0 0
      %947 = vmatpush1.bf16.msra.mxu0 0
      %948 = vmatprep.subr.bf16.mxu0 0
      %949 = vmatpush1.bf16.msra.mxu0 0
      %950 = vmatprep.subr.bf16.mxu0 0
      %951 = vmatpush1.bf16.msra.mxu0 0
      %952 = vmatprep.subr.bf16.mxu0 0
      %953 = vmatpush1.bf16.msra.mxu0 0
      %954 = vmatprep.subr.bf16.mxu0 0
      %955 = vmatpush1.bf16.msra.mxu0 0
      %956 = vmatprep.subr.bf16.mxu0 0
      %957 = vmatpush1.bf16.msra.mxu0 0
      %958 = vmatprep.mubr.bf16.mxu0 0
      %959 = vmatmul.mubr.bf16.gmra.mrb[0].mxu0 %v921
      %v960 = vpop.f32.mrb[0].mxu0
      %v961 = vadd.f32 0.0, %v960
      %v962 = vpop.f32.mrb[0].mxu0
      %v963 = vpop.f32.mrb[0].mxu0
      %v964 = vpop.f32.mrb[0].mxu0
      %965 = vdwg.mxu0
      %v966 = vpack.c.bf16 %v961, %v961
      %v967 = vld [vmem:[%s9 + $0x8] sm:$0xf]
      %v968 = vld [vmem:[%s9 + $0xc] sm:$0xf]
      %v971 = vunpack.c.l.b16 %v967
      %v972 = vunpack.c.l.b16 %v968
      %v973 = vpack.c.b16 %v972, %v971
      %v976 = vsel %vm740, %v966, 0
      %978 = vmatprep.subr.bf16.mxu0 0
      %979 = vmatpush1.bf16.msra.mxu0 %v973
      %980 = vmatprep.subr.bf16.mxu0 0
      %981 = vmatpush1.bf16.msra.mxu0 0
      %982 = vmatprep.subr.bf16.mxu0 0
      %983 = vmatpush1.bf16.msra.mxu0 0
      %984 = vmatprep.subr.bf16.mxu0 0
      %985 = vmatpush1.bf16.msra.mxu0 0
      %986 = vmatprep.subr.bf16.mxu0 0
      %987 = vmatpush1.bf16.msra.mxu0 0
      %988 = vmatprep.subr.bf16.mxu0 0
      %989 = vmatpush1.bf16.msra.mxu0 0
      %990 = vmatprep.subr.bf16.mxu0 0
      %991 = vmatpush1.bf16.msra.mxu0 0
      %992 = vmatprep.subr.bf16.mxu0 0
      %993 = vmatpush1.bf16.msra.mxu0 0
      %994 = vmatprep.subr.bf16.mxu0 0
      %995 = vmatpush1.bf16.msra.mxu0 0
      %996 = vmatprep.subr.bf16.mxu0 0
      %997 = vmatpush1.bf16.msra.mxu0 0
      %998 = vmatprep.subr.bf16.mxu0 0
      %999 = vmatpush1.bf16.msra.mxu0 0
      %1000 = vmatprep.subr.bf16.mxu0 0
      %1001 = vmatpush1.bf16.msra.mxu0 0
      %1002 = vmatprep.subr.bf16.mxu0 0
      %1003 = vmatpush1.bf16.msra.mxu0 0
      %1004 = vmatprep.subr.bf16.mxu0 0
      %1005 = vmatpush1.bf16.msra.mxu0 0
      %1006 = vmatprep.subr.bf16.mxu0 0
      %1007 = vmatpush1.bf16.msra.mxu0 0
      %1008 = vmatprep.subr.bf16.mxu0 0
      %1009 = vmatpush1.bf16.msra.mxu0 0
      %1010 = vmatprep.mubr.bf16.mxu0 0
      %1011 = vmatmul.mubr.bf16.gmra.mrb[0].mxu0 %v976
      %v1012 = vpop.f32.mrb[0].mxu0
      %v1013 = vadd.f32 0.0, %v1012
      %v1014 = vpop.f32.mrb[0].mxu0
      %v1015 = vpop.f32.mrb[0].mxu0
      %v1016 = vpop.f32.mrb[0].mxu0
      %1017 = vdwg.mxu0
      %v1020 = vunpack.c.l.b16 %v850
      %v1021 = vunpack.c.l.b16 %v851
      %v1022 = vpack.c.b16 %v1021, %v1020
      %v1025 = vsel %vm740, %v849, 0
      %1027 = vmatprep.subr.bf16.mxu0 0
      %1028 = vmatpush1.bf16.msra.mxu0 %v1022
      %1029 = vmatprep.subr.bf16.mxu0 0
      %1030 = vmatpush1.bf16.msra.mxu0 0
      %1031 = vmatprep.subr.bf16.mxu0 0
      %1032 = vmatpush1.bf16.msra.mxu0 0
      %1033 = vmatprep.subr.bf16.mxu0 0
      %1034 = vmatpush1.bf16.msra.mxu0 0
      %1035 = vmatprep.subr.bf16.mxu0 0
      %1036 = vmatpush1.bf16.msra.mxu0 0
      %1037 = vmatprep.subr.bf16.mxu0 0
      %1038 = vmatpush1.bf16.msra.mxu0 0
      %1039 = vmatprep.subr.bf16.mxu0 0
      %1040 = vmatpush1.bf16.msra.mxu0 0
      %1041 = vmatprep.subr.bf16.mxu0 0
      %1042 = vmatpush1.bf16.msra.mxu0 0
      %1043 = vmatprep.subr.bf16.mxu0 0
      %1044 = vmatpush1.bf16.msra.mxu0 0
      %1045 = vmatprep.subr.bf16.mxu0 0
      %1046 = vmatpush1.bf16.msra.mxu0 0
      %1047 = vmatprep.subr.bf16.mxu0 0
      %1048 = vmatpush1.bf16.msra.mxu0 0
      %1049 = vmatprep.subr.bf16.mxu0 0
      %1050 = vmatpush1.bf16.msra.mxu0 0
      %1051 = vmatprep.subr.bf16.mxu0 0
      %1052 = vmatpush1.bf16.msra.mxu0 0
      %1053 = vmatprep.subr.bf16.mxu0 0
      %1054 = vmatpush1.bf16.msra.mxu0 0
      %1055 = vmatprep.subr.bf16.mxu0 0
      %1056 = vmatpush1.bf16.msra.mxu0 0
      %1057 = vmatprep.subr.bf16.mxu0 0
      %1058 = vmatpush1.bf16.msra.mxu0 0
      %1059 = vmatprep.mubr.bf16.mxu0 0
      %1060 = vmatmul.mubr.bf16.gmra.mrb[0].mxu0 %v1025
      %v1061 = vpop.f32.mrb[0].mxu0
      %v1062 = vadd.f32 %v1013, %v1061
      %v1063 = vpop.f32.mrb[0].mxu0
      %v1064 = vpop.f32.mrb[0].mxu0
      %v1065 = vpop.f32.mrb[0].mxu0
      %1066 = vdwg.mxu0
      %1067 = vrot.lane.b32.xlu0 %v732, 96
      %v1068 = vpop.permute.xlu0 %1067
      %1069 = vrot.lane.b32.xlu0 %v733, 96
      %v1070 = vpop.permute.xlu0 %1069
      %v1072 = vsel %vm740, %v1068, 0
      %v1075 = vsel %vm740, %v1070, 0
      %1077 = vmatprep.subr.bf16.mxu0 0
      %1078 = vmatpush1.bf16.xpose.msra.mxu0 %v1075
      %1079 = vmatprep.subr.bf16.mxu0 0
      %1080 = vmatpush1.bf16.xpose.msra.mxu0 0
      %1081 = vmatprep.subr.bf16.mxu0 0
      %1082 = vmatpush1.bf16.xpose.msra.mxu0 0
      %1083 = vmatprep.subr.bf16.mxu0 0
      %1084 = vmatpush1.bf16.xpose.msra.mxu0 0
      %1085 = vmatprep.subr.bf16.mxu0 0
      %1086 = vmatpush1.bf16.xpose.msra.mxu0 0
      %1087 = vmatprep.subr.bf16.mxu0 0
      %1088 = vmatpush1.bf16.xpose.msra.mxu0 0
      %1089 = vmatprep.subr.bf16.mxu0 0
      %1090 = vmatpush1.bf16.xpose.msra.mxu0 0
      %1091 = vmatprep.subr.bf16.mxu0 0
      %1092 = vmatpush1.bf16.xpose.msra.mxu0 0
      %1093 = vmatprep.subr.bf16.mxu0 0
      %1094 = vmatpush1.bf16.xpose.msra.mxu0 0
      %1095 = vmatprep.subr.bf16.mxu0 0
      %1096 = vmatpush1.bf16.xpose.msra.mxu0 0
      %1097 = vmatprep.subr.bf16.mxu0 0
      %1098 = vmatpush1.bf16.xpose.msra.mxu0 0
      %1099 = vmatprep.subr.bf16.mxu0 0
      %1100 = vmatpush1.bf16.xpose.msra.mxu0 0
      %1101 = vmatprep.subr.bf16.mxu0 0
      %1102 = vmatpush1.bf16.xpose.msra.mxu0 0
      %1103 = vmatprep.subr.bf16.mxu0 0
      %1104 = vmatpush1.bf16.xpose.msra.mxu0 0
      %1105 = vmatprep.subr.bf16.mxu0 0
      %1106 = vmatpush1.bf16.xpose.msra.mxu0 0
      %1107 = vmatprep.subr.bf16.mxu0 0
      %1108 = vmatpush1.bf16.xpose.msra.mxu0 0
      %1109 = vmatprep.mubr.bf16.mxu0 0
      %1110 = vmatmul.mubr.bf16.gmra.mrb[0].mxu0 %v1072
      %v1111 = vpop.f32.mrb[0].mxu0
      %v1112 = vadd.f32 %v738, %v1111
      %v1113 = vpop.f32.mrb[0].mxu0
      %v1114 = vpop.f32.mrb[0].mxu0
      %v1115 = vpop.f32.mrb[0].mxu0
      %1116 = vdwg.mxu0
      %v1117 = vsel %vm787, %v1112, -inf
      %1118 = vmax.xlane.f32.xlu0 %v1117
      %v1119 = vpop.xlane.xlu0 %1118
      %v1120 = vsub.f32 %v1112, %v1119
      %v1121 = vmul.f32 %v1120, 1.442695
      %v1122 = vpow.pop %v1121
      %v1123 = vsel %vm787, %v1122, 0.0
      %1124 = vadd.xlane.f32.xlu0 %v1123
      %v1125 = vpop.xlane.xlu0 %1124
      %v1126 = vrcp.pop %v1125
      %v1127 = vmul.f32 %v1122, %v1126
      %1128 = vst.msk [vmem:[%s452 + $0x10] sm:$0xff] %vm787, %v1127
      %v1129 = vpack.c.bf16 %v1127, %v1127
      %1130 = vrot.lane.b32.xlu0 %v801, 96
      %v1131 = vpop.permute.xlu0 %1130
      %v1133 = vsel %vm787, %v1129, 0
      %v1136 = vsel %vm805, %v1131, 0
      %1138 = vmatprep.subr.bf16.mxu0 0
      %1139 = vmatpush1.bf16.msra.mxu0 %v1136
      %1140 = vmatprep.subr.bf16.mxu0 0
      %1141 = vmatpush1.bf16.msra.mxu0 0
      %1142 = vmatprep.subr.bf16.mxu0 0
      %1143 = vmatpush1.bf16.msra.mxu0 0
      %1144 = vmatprep.subr.bf16.mxu0 0
      %1145 = vmatpush1.bf16.msra.mxu0 0
      %1146 = vmatprep.subr.bf16.mxu0 0
      %1147 = vmatpush1.bf16.msra.mxu0 0
      %1148 = vmatprep.subr.bf16.mxu0 0
      %1149 = vmatpush1.bf16.msra.mxu0 0
      %1150 = vmatprep.subr.bf16.mxu0 0
      %1151 = vmatpush1.bf16.msra.mxu0 0
      %1152 = vmatprep.subr.bf16.mxu0 0
      %1153 = vmatpush1.bf16.msra.mxu0 0
      %1154 = vmatprep.subr.bf16.mxu0 0
      %1155 = vmatpush1.bf16.msra.mxu0 0
      %1156 = vmatprep.subr.bf16.mxu0 0
      %1157 = vmatpush1.bf16.msra.mxu0 0
      %1158 = vmatprep.subr.bf16.mxu0 0
      %1159 = vmatpush1.bf16.msra.mxu0 0
      %1160 = vmatprep.subr.bf16.mxu0 0
      %1161 = vmatpush1.bf16.msra.mxu0 0
      %1162 = vmatprep.subr.bf16.mxu0 0
      %1163 = vmatpush1.bf16.msra.mxu0 0
      %1164 = vmatprep.subr.bf16.mxu0 0
      %1165 = vmatpush1.bf16.msra.mxu0 0
      %1166 = vmatprep.subr.bf16.mxu0 0
      %1167 = vmatpush1.bf16.msra.mxu0 0
      %1168 = vmatprep.subr.bf16.mxu0 0
      %1169 = vmatpush1.bf16.msra.mxu0 0
      %1170 = vmatprep.mubr.bf16.mxu0 0
      %1171 = vmatmul.mubr.bf16.gmra.mrb[0].mxu0 %v1133
      %v1172 = vpop.f32.mrb[0].mxu0
      %v1173 = vadd.f32 0.0, %v1172
      %v1174 = vpop.f32.mrb[0].mxu0
      %v1175 = vpop.f32.mrb[0].mxu0
      %v1176 = vpop.f32.mrb[0].mxu0
      %1177 = vdwg.mxu0
      %v1178 = vpack.c.bf16 %v1173, %v1173
      %v1179 = vld [vmem:[%s9 + $0x10] sm:$0xf]
      %v1180 = vld [vmem:[%s9 + $0x14] sm:$0xf]
      %v1183 = vunpack.c.l.b16 %v1179
      %v1184 = vunpack.c.l.b16 %v1180
      %v1185 = vpack.c.b16 %v1184, %v1183
      %v1188 = vsel %vm740, %v1178, 0
      %1190 = vmatprep.subr.bf16.mxu0 0
      %1191 = vmatpush1.bf16.msra.mxu0 %v1185
      %1192 = vmatprep.subr.bf16.mxu0 0
      %1193 = vmatpush1.bf16.msra.mxu0 0
      %1194 = vmatprep.subr.bf16.mxu0 0
      %1195 = vmatpush1.bf16.msra.mxu0 0
      %1196 = vmatprep.subr.bf16.mxu0 0
      %1197 = vmatpush1.bf16.msra.mxu0 0
      %1198 = vmatprep.subr.bf16.mxu0 0
      %1199 = vmatpush1.bf16.msra.mxu0 0
      %1200 = vmatprep.subr.bf16.mxu0 0
      %1201 = vmatpush1.bf16.msra.mxu0 0
      %1202 = vmatprep.subr.bf16.mxu0 0
      %1203 = vmatpush1.bf16.msra.mxu0 0
      %1204 = vmatprep.subr.bf16.mxu0 0
      %1205 = vmatpush1.bf16.msra.mxu0 0
      %1206 = vmatprep.subr.bf16.mxu0 0
      %1207 = vmatpush1.bf16.msra.mxu0 0
      %1208 = vmatprep.subr.bf16.mxu0 0
      %1209 = vmatpush1.bf16.msra.mxu0 0
      %1210 = vmatprep.subr.bf16.mxu0 0
      %1211 = vmatpush1.bf16.msra.mxu0 0
      %1212 = vmatprep.subr.bf16.mxu0 0
      %1213 = vmatpush1.bf16.msra.mxu0 0
      %1214 = vmatprep.subr.bf16.mxu0 0
      %1215 = vmatpush1.bf16.msra.mxu0 0
      %1216 = vmatprep.subr.bf16.mxu0 0
      %1217 = vmatpush1.bf16.msra.mxu0 0
      %1218 = vmatprep.subr.bf16.mxu0 0
      %1219 = vmatpush1.bf16.msra.mxu0 0
      %1220 = vmatprep.subr.bf16.mxu0 0
      %1221 = vmatpush1.bf16.msra.mxu0 0
      %1222 = vmatprep.mubr.bf16.mxu0 0
      %1223 = vmatmul.mubr.bf16.gmra.mrb[0].mxu0 %v1188
      %v1224 = vpop.f32.mrb[0].mxu0
      %v1225 = vadd.f32 0.0, %v1224
      %v1226 = vpop.f32.mrb[0].mxu0
      %v1227 = vpop.f32.mrb[0].mxu0
      %v1228 = vpop.f32.mrb[0].mxu0
      %1229 = vdwg.mxu0
      %v1230 = vadd.f32 %v1062, %v1225
      %1231 = vrot.lane.b32.xlu0 %v732, 80
      %v1232 = vpop.permute.xlu0 %1231
      %1233 = vrot.lane.b32.xlu0 %v733, 80
      %v1234 = vpop.permute.xlu0 %1233
      %v1236 = vsel %vm740, %v1232, 0
      %v1239 = vsel %vm740, %v1234, 0
      %1241 = vmatprep.subr.bf16.mxu0 0
      %1242 = vmatpush1.bf16.xpose.msra.mxu0 %v1239
      %1243 = vmatprep.subr.bf16.mxu0 0
      %1244 = vmatpush1.bf16.xpose.msra.mxu0 0
      %1245 = vmatprep.subr.bf16.mxu0 0
      %1246 = vmatpush1.bf16.xpose.msra.mxu0 0
      %1247 = vmatprep.subr.bf16.mxu0 0
      %1248 = vmatpush1.bf16.xpose.msra.mxu0 0
      %1249 = vmatprep.subr.bf16.mxu0 0
      %1250 = vmatpush1.bf16.xpose.msra.mxu0 0
      %1251 = vmatprep.subr.bf16.mxu0 0
      %1252 = vmatpush1.bf16.xpose.msra.mxu0 0
      %1253 = vmatprep.subr.bf16.mxu0 0
      %1254 = vmatpush1.bf16.xpose.msra.mxu0 0
      %1255 = vmatprep.subr.bf16.mxu0 0
      %1256 = vmatpush1.bf16.xpose.msra.mxu0 0
      %1257 = vmatprep.subr.bf16.mxu0 0
      %1258 = vmatpush1.bf16.xpose.msra.mxu0 0
      %1259 = vmatprep.subr.bf16.mxu0 0
      %1260 = vmatpush1.bf16.xpose.msra.mxu0 0
      %1261 = vmatprep.subr.bf16.mxu0 0
      %1262 = vmatpush1.bf16.xpose.msra.mxu0 0
      %1263 = vmatprep.subr.bf16.mxu0 0
      %1264 = vmatpush1.bf16.xpose.msra.mxu0 0
      %1265 = vmatprep.subr.bf16.mxu0 0
      %1266 = vmatpush1.bf16.xpose.msra.mxu0 0
      %1267 = vmatprep.subr.bf16.mxu0 0
      %1268 = vmatpush1.bf16.xpose.msra.mxu0 0
      %1269 = vmatprep.subr.bf16.mxu0 0
      %1270 = vmatpush1.bf16.xpose.msra.mxu0 0
      %1271 = vmatprep.subr.bf16.mxu0 0
      %1272 = vmatpush1.bf16.xpose.msra.mxu0 0
      %1273 = vmatprep.mubr.bf16.mxu0 0
      %1274 = vmatmul.mubr.bf16.gmra.mrb[0].mxu0 %v1236
      %v1275 = vpop.f32.mrb[0].mxu0
      %v1276 = vadd.f32 %v738, %v1275
      %v1277 = vpop.f32.mrb[0].mxu0
      %v1278 = vpop.f32.mrb[0].mxu0
      %v1279 = vpop.f32.mrb[0].mxu0
      %1280 = vdwg.mxu0
      %v1281 = vsel %vm787, %v1276, -inf
      %1282 = vmax.xlane.f32.xlu0 %v1281
      %v1283 = vpop.xlane.xlu0 %1282
      %v1284 = vsub.f32 %v1276, %v1283
      %v1285 = vmul.f32 %v1284, 1.442695
      %v1286 = vpow.pop %v1285
      %v1287 = vsel %vm787, %v1286, 0.0
      %1288 = vadd.xlane.f32.xlu0 %v1287
      %v1289 = vpop.xlane.xlu0 %1288
      %v1290 = vrcp.pop %v1289
      %v1291 = vmul.f32 %v1286, %v1290
      %1292 = vst.msk [vmem:[%s452 + $0x18] sm:$0xff] %vm787, %v1291
      %v1293 = vpack.c.bf16 %v1291, %v1291
      %1294 = vrot.lane.b32.xlu0 %v801, 80
      %v1295 = vpop.permute.xlu0 %1294
      %v1297 = vsel %vm787, %v1293, 0
      %v1300 = vsel %vm805, %v1295, 0
      %1302 = vmatprep.subr.bf16.mxu0 0
      %1303 = vmatpush1.bf16.msra.mxu0 %v1300
      %1304 = vmatprep.subr.bf16.mxu0 0
      %1305 = vmatpush1.bf16.msra.mxu0 0
      %1306 = vmatprep.subr.bf16.mxu0 0
      %1307 = vmatpush1.bf16.msra.mxu0 0
      %1308 = vmatprep.subr.bf16.mxu0 0
      %1309 = vmatpush1.bf16.msra.mxu0 0
      %1310 = vmatprep.subr.bf16.mxu0 0
      %1311 = vmatpush1.bf16.msra.mxu0 0
      %1312 = vmatprep.subr.bf16.mxu0 0
      %1313 = vmatpush1.bf16.msra.mxu0 0
      %1314 = vmatprep.subr.bf16.mxu0 0
      %1315 = vmatpush1.bf16.msra.mxu0 0
      %1316 = vmatprep.subr.bf16.mxu0 0
      %1317 = vmatpush1.bf16.msra.mxu0 0
      %1318 = vmatprep.subr.bf16.mxu0 0
      %1319 = vmatpush1.bf16.msra.mxu0 0
      %1320 = vmatprep.subr.bf16.mxu0 0
      %1321 = vmatpush1.bf16.msra.mxu0 0
      %1322 = vmatprep.subr.bf16.mxu0 0
      %1323 = vmatpush1.bf16.msra.mxu0 0
      %1324 = vmatprep.subr.bf16.mxu0 0
      %1325 = vmatpush1.bf16.msra.mxu0 0
      %1326 = vmatprep.subr.bf16.mxu0 0
      %1327 = vmatpush1.bf16.msra.mxu0 0
      %1328 = vmatprep.subr.bf16.mxu0 0
      %1329 = vmatpush1.bf16.msra.mxu0 0
      %1330 = vmatprep.subr.bf16.mxu0 0
      %1331 = vmatpush1.bf16.msra.mxu0 0
      %1332 = vmatprep.subr.bf16.mxu0 0
      %1333 = vmatpush1.bf16.msra.mxu0 0
      %1334 = vmatprep.mubr.bf16.mxu0 0
      %1335 = vmatmul.mubr.bf16.gmra.mrb[0].mxu0 %v1297
      %v1336 = vpop.f32.mrb[0].mxu0
      %v1337 = vadd.f32 0.0, %v1336
      %v1338 = vpop.f32.mrb[0].mxu0
      %v1339 = vpop.f32.mrb[0].mxu0
      %v1340 = vpop.f32.mrb[0].mxu0
      %1341 = vdwg.mxu0
      %v1342 = vpack.c.bf16 %v1337, %v1337
      %v1343 = vld [vmem:[%s9 + $0x18] sm:$0xf]
      %v1344 = vld [vmem:[%s9 + $0x1c] sm:$0xf]
      %v1347 = vunpack.c.l.b16 %v1343
      %v1348 = vunpack.c.l.b16 %v1344
      %v1349 = vpack.c.b16 %v1348, %v1347
      %v1352 = vsel %vm740, %v1342, 0
      %1354 = vmatprep.subr.bf16.mxu0 0
      %1355 = vmatpush1.bf16.msra.mxu0 %v1349
      %1356 = vmatprep.subr.bf16.mxu0 0
      %1357 = vmatpush1.bf16.msra.mxu0 0
      %1358 = vmatprep.subr.bf16.mxu0 0
      %1359 = vmatpush1.bf16.msra.mxu0 0
      %1360 = vmatprep.subr.bf16.mxu0 0
      %1361 = vmatpush1.bf16.msra.mxu0 0
      %1362 = vmatprep.subr.bf16.mxu0 0
      %1363 = vmatpush1.bf16.msra.mxu0 0
      %1364 = vmatprep.subr.bf16.mxu0 0
      %1365 = vmatpush1.bf16.msra.mxu0 0
      %1366 = vmatprep.subr.bf16.mxu0 0
      %1367 = vmatpush1.bf16.msra.mxu0 0
      %1368 = vmatprep.subr.bf16.mxu0 0
      %1369 = vmatpush1.bf16.msra.mxu0 0
      %1370 = vmatprep.subr.bf16.mxu0 0
      %1371 = vmatpush1.bf16.msra.mxu0 0
      %1372 = vmatprep.subr.bf16.mxu0 0
      %1373 = vmatpush1.bf16.msra.mxu0 0
      %1374 = vmatprep.subr.bf16.mxu0 0
      %1375 = vmatpush1.bf16.msra.mxu0 0
      %1376 = vmatprep.subr.bf16.mxu0 0
      %1377 = vmatpush1.bf16.msra.mxu0 0
      %1378 = vmatprep.subr.bf16.mxu0 0
      %1379 = vmatpush1.bf16.msra.mxu0 0
      %1380 = vmatprep.subr.bf16.mxu0 0
      %1381 = vmatpush1.bf16.msra.mxu0 0
      %1382 = vmatprep.subr.bf16.mxu0 0
      %1383 = vmatpush1.bf16.msra.mxu0 0
      %1384 = vmatprep.subr.bf16.mxu0 0
      %1385 = vmatpush1.bf16.msra.mxu0 0
      %1386 = vmatprep.mubr.bf16.mxu0 0
      %1387 = vmatmul.mubr.bf16.gmra.mrb[0].mxu0 %v1352
      %v1388 = vpop.f32.mrb[0].mxu0
      %v1389 = vadd.f32 0.0, %v1388
      %v1390 = vpop.f32.mrb[0].mxu0
      %v1391 = vpop.f32.mrb[0].mxu0
      %v1392 = vpop.f32.mrb[0].mxu0
      %1393 = vdwg.mxu0
      %v1394 = vadd.f32 %v1230, %v1389
      %1395 = vrot.lane.b32.xlu0 %v732, 64
      %v1396 = vpop.permute.xlu0 %1395
      %1397 = vrot.lane.b32.xlu0 %v733, 64
      %v1398 = vpop.permute.xlu0 %1397
      %v1400 = vsel %vm740, %v1396, 0
      %v1403 = vsel %vm740, %v1398, 0
      %1405 = vmatprep.subr.bf16.mxu0 0
      %1406 = vmatpush1.bf16.xpose.msra.mxu0 %v1403
      %1407 = vmatprep.subr.bf16.mxu0 0
      %1408 = vmatpush1.bf16.xpose.msra.mxu0 0
      %1409 = vmatprep.subr.bf16.mxu0 0
      %1410 = vmatpush1.bf16.xpose.msra.mxu0 0
      %1411 = vmatprep.subr.bf16.mxu0 0
      %1412 = vmatpush1.bf16.xpose.msra.mxu0 0
      %1413 = vmatprep.subr.bf16.mxu0 0
      %1414 = vmatpush1.bf16.xpose.msra.mxu0 0
      %1415 = vmatprep.subr.bf16.mxu0 0
      %1416 = vmatpush1.bf16.xpose.msra.mxu0 0
      %1417 = vmatprep.subr.bf16.mxu0 0
      %1418 = vmatpush1.bf16.xpose.msra.mxu0 0
      %1419 = vmatprep.subr.bf16.mxu0 0
      %1420 = vmatpush1.bf16.xpose.msra.mxu0 0
      %1421 = vmatprep.subr.bf16.mxu0 0
      %1422 = vmatpush1.bf16.xpose.msra.mxu0 0
      %1423 = vmatprep.subr.bf16.mxu0 0
      %1424 = vmatpush1.bf16.xpose.msra.mxu0 0
      %1425 = vmatprep.subr.bf16.mxu0 0
      %1426 = vmatpush1.bf16.xpose.msra.mxu0 0
      %1427 = vmatprep.subr.bf16.mxu0 0
      %1428 = vmatpush1.bf16.xpose.msra.mxu0 0
      %1429 = vmatprep.subr.bf16.mxu0 0
      %1430 = vmatpush1.bf16.xpose.msra.mxu0 0
      %1431 = vmatprep.subr.bf16.mxu0 0
      %1432 = vmatpush1.bf16.xpose.msra.mxu0 0
      %1433 = vmatprep.subr.bf16.mxu0 0
      %1434 = vmatpush1.bf16.xpose.msra.mxu0 0
      %1435 = vmatprep.subr.bf16.mxu0 0
      %1436 = vmatpush1.bf16.xpose.msra.mxu0 0
      %1437 = vmatprep.mubr.bf16.mxu0 0
      %1438 = vmatmul.mubr.bf16.gmra.mrb[0].mxu0 %v1400
      %v1439 = vpop.f32.mrb[0].mxu0
      %v1440 = vadd.f32 %v738, %v1439
      %v1441 = vpop.f32.mrb[0].mxu0
      %v1442 = vpop.f32.mrb[0].mxu0
      %v1443 = vpop.f32.mrb[0].mxu0
      %1444 = vdwg.mxu0
      %v1445 = vsel %vm787, %v1440, -inf
      %1446 = vmax.xlane.f32.xlu0 %v1445
      %v1447 = vpop.xlane.xlu0 %1446
      %v1448 = vsub.f32 %v1440, %v1447
      %v1449 = vmul.f32 %v1448, 1.442695
      %v1450 = vpow.pop %v1449
      %v1451 = vsel %vm787, %v1450, 0.0
      %1452 = vadd.xlane.f32.xlu0 %v1451
      %v1453 = vpop.xlane.xlu0 %1452
      %v1454 = vrcp.pop %v1453
      %v1455 = vmul.f32 %v1450, %v1454
      %1456 = vst.msk [vmem:[%s452 + $0x20] sm:$0xff] %vm787, %v1455
      %v1457 = vpack.c.bf16 %v1455, %v1455
      %1458 = vrot.lane.b32.xlu0 %v801, 64
      %v1459 = vpop.permute.xlu0 %1458
      %v1461 = vsel %vm787, %v1457, 0
      %v1464 = vsel %vm805, %v1459, 0
      %1466 = vmatprep.subr.bf16.mxu0 0
      %1467 = vmatpush1.bf16.msra.mxu0 %v1464
      %1468 = vmatprep.subr.bf16.mxu0 0
      %1469 = vmatpush1.bf16.msra.mxu0 0
      %1470 = vmatprep.subr.bf16.mxu0 0
      %1471 = vmatpush1.bf16.msra.mxu0 0
      %1472 = vmatprep.subr.bf16.mxu0 0
      %1473 = vmatpush1.bf16.msra.mxu0 0
      %1474 = vmatprep.subr.bf16.mxu0 0
      %1475 = vmatpush1.bf16.msra.mxu0 0
      %1476 = vmatprep.subr.bf16.mxu0 0
      %1477 = vmatpush1.bf16.msra.mxu0 0
      %1478 = vmatprep.subr.bf16.mxu0 0
      %1479 = vmatpush1.bf16.msra.mxu0 0
      %1480 = vmatprep.subr.bf16.mxu0 0
      %1481 = vmatpush1.bf16.msra.mxu0 0
      %1482 = vmatprep.subr.bf16.mxu0 0
      %1483 = vmatpush1.bf16.msra.mxu0 0
      %1484 = vmatprep.subr.bf16.mxu0 0
      %1485 = vmatpush1.bf16.msra.mxu0 0
      %1486 = vmatprep.subr.bf16.mxu0 0
      %1487 = vmatpush1.bf16.msra.mxu0 0
      %1488 = vmatprep.subr.bf16.mxu0 0
      %1489 = vmatpush1.bf16.msra.mxu0 0
      %1490 = vmatprep.subr.bf16.mxu0 0
      %1491 = vmatpush1.bf16.msra.mxu0 0
      %1492 = vmatprep.subr.bf16.mxu0 0
      %1493 = vmatpush1.bf16.msra.mxu0 0
      %1494 = vmatprep.subr.bf16.mxu0 0
      %1495 = vmatpush1.bf16.msra.mxu0 0
      %1496 = vmatprep.subr.bf16.mxu0 0
      %1497 = vmatpush1.bf16.msra.mxu0 0
      %1498 = vmatprep.mubr.bf16.mxu0 0
      %1499 = vmatmul.mubr.bf16.gmra.mrb[0].mxu0 %v1461
      %v1500 = vpop.f32.mrb[0].mxu0
      %v1501 = vadd.f32 0.0, %v1500
      %v1502 = vpop.f32.mrb[0].mxu0
      %v1503 = vpop.f32.mrb[0].mxu0
      %v1504 = vpop.f32.mrb[0].mxu0
      %1505 = vdwg.mxu0
      %v1506 = vpack.c.bf16 %v1501, %v1501
      %v1507 = vld [vmem:[%s9 + $0x20] sm:$0xf]
      %v1508 = vld [vmem:[%s9 + $0x24] sm:$0xf]
      %v1511 = vunpack.c.l.b16 %v1507
      %v1512 = vunpack.c.l.b16 %v1508
      %v1513 = vpack.c.b16 %v1512, %v1511
      %v1516 = vsel %vm740, %v1506, 0
      %1518 = vmatprep.subr.bf16.mxu0 0
      %1519 = vmatpush1.bf16.msra.mxu0 %v1513
      %1520 = vmatprep.subr.bf16.mxu0 0
      %1521 = vmatpush1.bf16.msra.mxu0 0
      %1522 = vmatprep.subr.bf16.mxu0 0
      %1523 = vmatpush1.bf16.msra.mxu0 0
      %1524 = vmatprep.subr.bf16.mxu0 0
      %1525 = vmatpush1.bf16.msra.mxu0 0
      %1526 = vmatprep.subr.bf16.mxu0 0
      %1527 = vmatpush1.bf16.msra.mxu0 0
      %1528 = vmatprep.subr.bf16.mxu0 0
      %1529 = vmatpush1.bf16.msra.mxu0 0
      %1530 = vmatprep.subr.bf16.mxu0 0
      %1531 = vmatpush1.bf16.msra.mxu0 0
      %1532 = vmatprep.subr.bf16.mxu0 0
      %1533 = vmatpush1.bf16.msra.mxu0 0
      %1534 = vmatprep.subr.bf16.mxu0 0
      %1535 = vmatpush1.bf16.msra.mxu0 0
      %1536 = vmatprep.subr.bf16.mxu0 0
      %1537 = vmatpush1.bf16.msra.mxu0 0
      %1538 = vmatprep.subr.bf16.mxu0 0
      %1539 = vmatpush1.bf16.msra.mxu0 0
      %1540 = vmatprep.subr.bf16.mxu0 0
      %1541 = vmatpush1.bf16.msra.mxu0 0
      %1542 = vmatprep.subr.bf16.mxu0 0
      %1543 = vmatpush1.bf16.msra.mxu0 0
      %1544 = vmatprep.subr.bf16.mxu0 0
      %1545 = vmatpush1.bf16.msra.mxu0 0
      %1546 = vmatprep.subr.bf16.mxu0 0
      %1547 = vmatpush1.bf16.msra.mxu0 0
      %1548 = vmatprep.subr.bf16.mxu0 0
      %1549 = vmatpush1.bf16.msra.mxu0 0
      %1550 = vmatprep.mubr.bf16.mxu0 0
      %1551 = vmatmul.mubr.bf16.gmra.mrb[0].mxu0 %v1516
      %v1552 = vpop.f32.mrb[0].mxu0
      %v1553 = vadd.f32 0.0, %v1552
      %v1554 = vpop.f32.mrb[0].mxu0
      %v1555 = vpop.f32.mrb[0].mxu0
      %v1556 = vpop.f32.mrb[0].mxu0
      %1557 = vdwg.mxu0
      %v1558 = vadd.f32 %v1394, %v1553
      %1559 = vrot.lane.b32.xlu0 %v732, 48
      %v1560 = vpop.permute.xlu0 %1559
      %1561 = vrot.lane.b32.xlu0 %v733, 48
      %v1562 = vpop.permute.xlu0 %1561
      %v1564 = vsel %vm740, %v1560, 0
      %v1567 = vsel %vm740, %v1562, 0
      %1569 = vmatprep.subr.bf16.mxu0 0
      %1570 = vmatpush1.bf16.xpose.msra.mxu0 %v1567
      %1571 = vmatprep.subr.bf16.mxu0 0
      %1572 = vmatpush1.bf16.xpose.msra.mxu0 0
      %1573 = vmatprep.subr.bf16.mxu0 0
      %1574 = vmatpush1.bf16.xpose.msra.mxu0 0
      %1575 = vmatprep.subr.bf16.mxu0 0
      %1576 = vmatpush1.bf16.xpose.msra.mxu0 0
      %1577 = vmatprep.subr.bf16.mxu0 0
      %1578 = vmatpush1.bf16.xpose.msra.mxu0 0
      %1579 = vmatprep.subr.bf16.mxu0 0
      %1580 = vmatpush1.bf16.xpose.msra.mxu0 0
      %1581 = vmatprep.subr.bf16.mxu0 0
      %1582 = vmatpush1.bf16.xpose.msra.mxu0 0
      %1583 = vmatprep.subr.bf16.mxu0 0
      %1584 = vmatpush1.bf16.xpose.msra.mxu0 0
      %1585 = vmatprep.subr.bf16.mxu0 0
      %1586 = vmatpush1.bf16.xpose.msra.mxu0 0
      %1587 = vmatprep.subr.bf16.mxu0 0
      %1588 = vmatpush1.bf16.xpose.msra.mxu0 0
      %1589 = vmatprep.subr.bf16.mxu0 0
      %1590 = vmatpush1.bf16.xpose.msra.mxu0 0
      %1591 = vmatprep.subr.bf16.mxu0 0
      %1592 = vmatpush1.bf16.xpose.msra.mxu0 0
      %1593 = vmatprep.subr.bf16.mxu0 0
      %1594 = vmatpush1.bf16.xpose.msra.mxu0 0
      %1595 = vmatprep.subr.bf16.mxu0 0
      %1596 = vmatpush1.bf16.xpose.msra.mxu0 0
      %1597 = vmatprep.subr.bf16.mxu0 0
      %1598 = vmatpush1.bf16.xpose.msra.mxu0 0
      %1599 = vmatprep.subr.bf16.mxu0 0
      %1600 = vmatpush1.bf16.xpose.msra.mxu0 0
      %1601 = vmatprep.mubr.bf16.mxu0 0
      %1602 = vmatmul.mubr.bf16.gmra.mrb[0].mxu0 %v1564
      %v1603 = vpop.f32.mrb[0].mxu0
      %v1604 = vadd.f32 %v738, %v1603
      %v1605 = vpop.f32.mrb[0].mxu0
      %v1606 = vpop.f32.mrb[0].mxu0
      %v1607 = vpop.f32.mrb[0].mxu0
      %1608 = vdwg.mxu0
      %v1609 = vsel %vm787, %v1604, -inf
      %1610 = vmax.xlane.f32.xlu0 %v1609
      %v1611 = vpop.xlane.xlu0 %1610
      %v1612 = vsub.f32 %v1604, %v1611
      %v1613 = vmul.f32 %v1612, 1.442695
      %v1614 = vpow.pop %v1613
      %v1615 = vsel %vm787, %v1614, 0.0
      %1616 = vadd.xlane.f32.xlu0 %v1615
      %v1617 = vpop.xlane.xlu0 %1616
      %v1618 = vrcp.pop %v1617
      %v1619 = vmul.f32 %v1614, %v1618
      %1620 = vst.msk [vmem:[%s452 + $0x28] sm:$0xff] %vm787, %v1619
      %v1621 = vpack.c.bf16 %v1619, %v1619
      %1622 = vrot.lane.b32.xlu0 %v801, 48
      %v1623 = vpop.permute.xlu0 %1622
      %v1625 = vsel %vm787, %v1621, 0
      %v1628 = vsel %vm805, %v1623, 0
      %1630 = vmatprep.subr.bf16.mxu0 0
      %1631 = vmatpush1.bf16.msra.mxu0 %v1628
      %1632 = vmatprep.subr.bf16.mxu0 0
      %1633 = vmatpush1.bf16.msra.mxu0 0
      %1634 = vmatprep.subr.bf16.mxu0 0
      %1635 = vmatpush1.bf16.msra.mxu0 0
      %1636 = vmatprep.subr.bf16.mxu0 0
      %1637 = vmatpush1.bf16.msra.mxu0 0
      %1638 = vmatprep.subr.bf16.mxu0 0
      %1639 = vmatpush1.bf16.msra.mxu0 0
      %1640 = vmatprep.subr.bf16.mxu0 0
      %1641 = vmatpush1.bf16.msra.mxu0 0
      %1642 = vmatprep.subr.bf16.mxu0 0
      %1643 = vmatpush1.bf16.msra.mxu0 0
      %1644 = vmatprep.subr.bf16.mxu0 0
      %1645 = vmatpush1.bf16.msra.mxu0 0
      %1646 = vmatprep.subr.bf16.mxu0 0
      %1647 = vmatpush1.bf16.msra.mxu0 0
      %1648 = vmatprep.subr.bf16.mxu0 0
      %1649 = vmatpush1.bf16.msra.mxu0 0
      %1650 = vmatprep.subr.bf16.mxu0 0
      %1651 = vmatpush1.bf16.msra.mxu0 0
      %1652 = vmatprep.subr.bf16.mxu0 0
      %1653 = vmatpush1.bf16.msra.mxu0 0
      %1654 = vmatprep.subr.bf16.mxu0 0
      %1655 = vmatpush1.bf16.msra.mxu0 0
      %1656 = vmatprep.subr.bf16.mxu0 0
      %1657 = vmatpush1.bf16.msra.mxu0 0
      %1658 = vmatprep.subr.bf16.mxu0 0
      %1659 = vmatpush1.bf16.msra.mxu0 0
      %1660 = vmatprep.subr.bf16.mxu0 0
      %1661 = vmatpush1.bf16.msra.mxu0 0
      %1662 = vmatprep.mubr.bf16.mxu0 0
      %1663 = vmatmul.mubr.bf16.gmra.mrb[0].mxu0 %v1625
      %v1664 = vpop.f32.mrb[0].mxu0
      %v1665 = vadd.f32 0.0, %v1664
      %v1666 = vpop.f32.mrb[0].mxu0
      %v1667 = vpop.f32.mrb[0].mxu0
      %v1668 = vpop.f32.mrb[0].mxu0
      %1669 = vdwg.mxu0
      %v1670 = vpack.c.bf16 %v1665, %v1665
      %v1671 = vld [vmem:[%s9 + $0x28] sm:$0xf]
      %v1672 = vld [vmem:[%s9 + $0x2c] sm:$0xf]
      %v1675 = vunpack.c.l.b16 %v1671
      %v1676 = vunpack.c.l.b16 %v1672
      %v1677 = vpack.c.b16 %v1676, %v1675
      %v1680 = vsel %vm740, %v1670, 0
      %1682 = vmatprep.subr.bf16.mxu0 0
      %1683 = vmatpush1.bf16.msra.mxu0 %v1677
      %1684 = vmatprep.subr.bf16.mxu0 0
      %1685 = vmatpush1.bf16.msra.mxu0 0
      %1686 = vmatprep.subr.bf16.mxu0 0
      %1687 = vmatpush1.bf16.msra.mxu0 0
      %1688 = vmatprep.subr.bf16.mxu0 0
      %1689 = vmatpush1.bf16.msra.mxu0 0
      %1690 = vmatprep.subr.bf16.mxu0 0
      %1691 = vmatpush1.bf16.msra.mxu0 0
      %1692 = vmatprep.subr.bf16.mxu0 0
      %1693 = vmatpush1.bf16.msra.mxu0 0
      %1694 = vmatprep.subr.bf16.mxu0 0
      %1695 = vmatpush1.bf16.msra.mxu0 0
      %1696 = vmatprep.subr.bf16.mxu0 0
      %1697 = vmatpush1.bf16.msra.mxu0 0
      %1698 = vmatprep.subr.bf16.mxu0 0
      %1699 = vmatpush1.bf16.msra.mxu0 0
      %1700 = vmatprep.subr.bf16.mxu0 0
      %1701 = vmatpush1.bf16.msra.mxu0 0
      %1702 = vmatprep.subr.bf16.mxu0 0
      %1703 = vmatpush1.bf16.msra.mxu0 0
      %1704 = vmatprep.subr.bf16.mxu0 0
      %1705 = vmatpush1.bf16.msra.mxu0 0
      %1706 = vmatprep.subr.bf16.mxu0 0
      %1707 = vmatpush1.bf16.msra.mxu0 0
      %1708 = vmatprep.subr.bf16.mxu0 0
      %1709 = vmatpush1.bf16.msra.mxu0 0
      %1710 = vmatprep.subr.bf16.mxu0 0
      %1711 = vmatpush1.bf16.msra.mxu0 0
      %1712 = vmatprep.subr.bf16.mxu0 0
      %1713 = vmatpush1.bf16.msra.mxu0 0
      %1714 = vmatprep.mubr.bf16.mxu0 0
      %1715 = vmatmul.mubr.bf16.gmra.mrb[0].mxu0 %v1680
      %v1716 = vpop.f32.mrb[0].mxu0
      %v1717 = vadd.f32 0.0, %v1716
      %v1718 = vpop.f32.mrb[0].mxu0
      %v1719 = vpop.f32.mrb[0].mxu0
      %v1720 = vpop.f32.mrb[0].mxu0
      %1721 = vdwg.mxu0
      %v1722 = vadd.f32 %v1558, %v1717
      %1723 = vrot.lane.b32.xlu0 %v732, 32
      %v1724 = vpop.permute.xlu0 %1723
      %1725 = vrot.lane.b32.xlu0 %v733, 32
      %v1726 = vpop.permute.xlu0 %1725
      %v1728 = vsel %vm740, %v1724, 0
      %v1731 = vsel %vm740, %v1726, 0
      %1733 = vmatprep.subr.bf16.mxu0 0
      %1734 = vmatpush1.bf16.xpose.msra.mxu0 %v1731
      %1735 = vmatprep.subr.bf16.mxu0 0
      %1736 = vmatpush1.bf16.xpose.msra.mxu0 0
      %1737 = vmatprep.subr.bf16.mxu0 0
      %1738 = vmatpush1.bf16.xpose.msra.mxu0 0
      %1739 = vmatprep.subr.bf16.mxu0 0
      %1740 = vmatpush1.bf16.xpose.msra.mxu0 0
      %1741 = vmatprep.subr.bf16.mxu0 0
      %1742 = vmatpush1.bf16.xpose.msra.mxu0 0
      %1743 = vmatprep.subr.bf16.mxu0 0
      %1744 = vmatpush1.bf16.xpose.msra.mxu0 0
      %1745 = vmatprep.subr.bf16.mxu0 0
      %1746 = vmatpush1.bf16.xpose.msra.mxu0 0
      %1747 = vmatprep.subr.bf16.mxu0 0
      %1748 = vmatpush1.bf16.xpose.msra.mxu0 0
      %1749 = vmatprep.subr.bf16.mxu0 0
      %1750 = vmatpush1.bf16.xpose.msra.mxu0 0
      %1751 = vmatprep.subr.bf16.mxu0 0
      %1752 = vmatpush1.bf16.xpose.msra.mxu0 0
      %1753 = vmatprep.subr.bf16.mxu0 0
      %1754 = vmatpush1.bf16.xpose.msra.mxu0 0
      %1755 = vmatprep.subr.bf16.mxu0 0
      %1756 = vmatpush1.bf16.xpose.msra.mxu0 0
      %1757 = vmatprep.subr.bf16.mxu0 0
      %1758 = vmatpush1.bf16.xpose.msra.mxu0 0
      %1759 = vmatprep.subr.bf16.mxu0 0
      %1760 = vmatpush1.bf16.xpose.msra.mxu0 0
      %1761 = vmatprep.subr.bf16.mxu0 0
      %1762 = vmatpush1.bf16.xpose.msra.mxu0 0
      %1763 = vmatprep.subr.bf16.mxu0 0
      %1764 = vmatpush1.bf16.xpose.msra.mxu0 0
      %1765 = vmatprep.mubr.bf16.mxu0 0
      %1766 = vmatmul.mubr.bf16.gmra.mrb[0].mxu0 %v1728
      %v1767 = vpop.f32.mrb[0].mxu0
      %v1768 = vadd.f32 %v738, %v1767
      %v1769 = vpop.f32.mrb[0].mxu0
      %v1770 = vpop.f32.mrb[0].mxu0
      %v1771 = vpop.f32.mrb[0].mxu0
      %1772 = vdwg.mxu0
      %v1773 = vsel %vm787, %v1768, -inf
      %1774 = vmax.xlane.f32.xlu0 %v1773
      %v1775 = vpop.xlane.xlu0 %1774
      %v1776 = vsub.f32 %v1768, %v1775
      %v1777 = vmul.f32 %v1776, 1.442695
      %v1778 = vpow.pop %v1777
      %v1779 = vsel %vm787, %v1778, 0.0
      %1780 = vadd.xlane.f32.xlu0 %v1779
      %v1781 = vpop.xlane.xlu0 %1780
      %v1782 = vrcp.pop %v1781
      %v1783 = vmul.f32 %v1778, %v1782
      %1784 = vst.msk [vmem:[%s452 + $0x30] sm:$0xff] %vm787, %v1783
      %v1785 = vpack.c.bf16 %v1783, %v1783
      %1786 = vrot.lane.b32.xlu0 %v801, 32
      %v1787 = vpop.permute.xlu0 %1786
      %v1789 = vsel %vm787, %v1785, 0
      %v1792 = vsel %vm805, %v1787, 0
      %1794 = vmatprep.subr.bf16.mxu0 0
      %1795 = vmatpush1.bf16.msra.mxu0 %v1792
      %1796 = vmatprep.subr.bf16.mxu0 0
      %1797 = vmatpush1.bf16.msra.mxu0 0
      %1798 = vmatprep.subr.bf16.mxu0 0
      %1799 = vmatpush1.bf16.msra.mxu0 0
      %1800 = vmatprep.subr.bf16.mxu0 0
      %1801 = vmatpush1.bf16.msra.mxu0 0
      %1802 = vmatprep.subr.bf16.mxu0 0
      %1803 = vmatpush1.bf16.msra.mxu0 0
      %1804 = vmatprep.subr.bf16.mxu0 0
      %1805 = vmatpush1.bf16.msra.mxu0 0
      %1806 = vmatprep.subr.bf16.mxu0 0
      %1807 = vmatpush1.bf16.msra.mxu0 0
      %1808 = vmatprep.subr.bf16.mxu0 0
      %1809 = vmatpush1.bf16.msra.mxu0 0
      %1810 = vmatprep.subr.bf16.mxu0 0
      %1811 = vmatpush1.bf16.msra.mxu0 0
      %1812 = vmatprep.subr.bf16.mxu0 0
      %1813 = vmatpush1.bf16.msra.mxu0 0
      %1814 = vmatprep.subr.bf16.mxu0 0
      %1815 = vmatpush1.bf16.msra.mxu0 0
      %1816 = vmatprep.subr.bf16.mxu0 0
      %1817 = vmatpush1.bf16.msra.mxu0 0
      %1818 = vmatprep.subr.bf16.mxu0 0
      %1819 = vmatpush1.bf16.msra.mxu0 0
      %1820 = vmatprep.subr.bf16.mxu0 0
      %1821 = vmatpush1.bf16.msra.mxu0 0
      %1822 = vmatprep.subr.bf16.mxu0 0
      %1823 = vmatpush1.bf16.msra.mxu0 0
      %1824 = vmatprep.subr.bf16.mxu0 0
      %1825 = vmatpush1.bf16.msra.mxu0 0
      %1826 = vmatprep.mubr.bf16.mxu0 0
      %1827 = vmatmul.mubr.bf16.gmra.mrb[0].mxu0 %v1789
      %v1828 = vpop.f32.mrb[0].mxu0
      %v1829 = vadd.f32 0.0, %v1828
      %v1830 = vpop.f32.mrb[0].mxu0
      %v1831 = vpop.f32.mrb[0].mxu0
      %v1832 = vpop.f32.mrb[0].mxu0
      %1833 = vdwg.mxu0
      %v1834 = vpack.c.bf16 %v1829, %v1829
      %v1835 = vld [vmem:[%s9 + $0x30] sm:$0xf]
      %v1836 = vld [vmem:[%s9 + $0x34] sm:$0xf]
      %v1839 = vunpack.c.l.b16 %v1835
      %v1840 = vunpack.c.l.b16 %v1836
      %v1841 = vpack.c.b16 %v1840, %v1839
      %v1844 = vsel %vm740, %v1834, 0
      %1846 = vmatprep.subr.bf16.mxu0 0
      %1847 = vmatpush1.bf16.msra.mxu0 %v1841
      %1848 = vmatprep.subr.bf16.mxu0 0
      %1849 = vmatpush1.bf16.msra.mxu0 0
      %1850 = vmatprep.subr.bf16.mxu0 0
      %1851 = vmatpush1.bf16.msra.mxu0 0
      %1852 = vmatprep.subr.bf16.mxu0 0
      %1853 = vmatpush1.bf16.msra.mxu0 0
      %1854 = vmatprep.subr.bf16.mxu0 0
      %1855 = vmatpush1.bf16.msra.mxu0 0
      %1856 = vmatprep.subr.bf16.mxu0 0
      %1857 = vmatpush1.bf16.msra.mxu0 0
      %1858 = vmatprep.subr.bf16.mxu0 0
      %1859 = vmatpush1.bf16.msra.mxu0 0
      %1860 = vmatprep.subr.bf16.mxu0 0
      %1861 = vmatpush1.bf16.msra.mxu0 0
      %1862 = vmatprep.subr.bf16.mxu0 0
      %1863 = vmatpush1.bf16.msra.mxu0 0
      %1864 = vmatprep.subr.bf16.mxu0 0
      %1865 = vmatpush1.bf16.msra.mxu0 0
      %1866 = vmatprep.subr.bf16.mxu0 0
      %1867 = vmatpush1.bf16.msra.mxu0 0
      %1868 = vmatprep.subr.bf16.mxu0 0
      %1869 = vmatpush1.bf16.msra.mxu0 0
      %1870 = vmatprep.subr.bf16.mxu0 0
      %1871 = vmatpush1.bf16.msra.mxu0 0
      %1872 = vmatprep.subr.bf16.mxu0 0
      %1873 = vmatpush1.bf16.msra.mxu0 0
      %1874 = vmatprep.subr.bf16.mxu0 0
      %1875 = vmatpush1.bf16.msra.mxu0 0
      %1876 = vmatprep.subr.bf16.mxu0 0
      %1877 = vmatpush1.bf16.msra.mxu0 0
      %1878 = vmatprep.mubr.bf16.mxu0 0
      %1879 = vmatmul.mubr.bf16.gmra.mrb[0].mxu0 %v1844
      %v1880 = vpop.f32.mrb[0].mxu0
      %v1881 = vadd.f32 0.0, %v1880
      %v1882 = vpop.f32.mrb[0].mxu0
      %v1883 = vpop.f32.mrb[0].mxu0
      %v1884 = vpop.f32.mrb[0].mxu0
      %1885 = vdwg.mxu0
      %v1886 = vadd.f32 %v1722, %v1881
      %1887 = vrot.lane.b32.xlu0 %v732, 16
      %v1888 = vpop.permute.xlu0 %1887
      %1889 = vrot.lane.b32.xlu0 %v733, 16
      %v1890 = vpop.permute.xlu0 %1889
      %v1892 = vsel %vm740, %v1888, 0
      %v1895 = vsel %vm740, %v1890, 0
      %1897 = vmatprep.subr.bf16.mxu0 0
      %1898 = vmatpush1.bf16.xpose.msra.mxu0 %v1895
      %1899 = vmatprep.subr.bf16.mxu0 0
      %1900 = vmatpush1.bf16.xpose.msra.mxu0 0
      %1901 = vmatprep.subr.bf16.mxu0 0
      %1902 = vmatpush1.bf16.xpose.msra.mxu0 0
      %1903 = vmatprep.subr.bf16.mxu0 0
      %1904 = vmatpush1.bf16.xpose.msra.mxu0 0
      %1905 = vmatprep.subr.bf16.mxu0 0
      %1906 = vmatpush1.bf16.xpose.msra.mxu0 0
      %1907 = vmatprep.subr.bf16.mxu0 0
      %1908 = vmatpush1.bf16.xpose.msra.mxu0 0
      %1909 = vmatprep.subr.bf16.mxu0 0
      %1910 = vmatpush1.bf16.xpose.msra.mxu0 0
      %1911 = vmatprep.subr.bf16.mxu0 0
      %1912 = vmatpush1.bf16.xpose.msra.mxu0 0
      %1913 = vmatprep.subr.bf16.mxu0 0
      %1914 = vmatpush1.bf16.xpose.msra.mxu0 0
      %1915 = vmatprep.subr.bf16.mxu0 0
      %1916 = vmatpush1.bf16.xpose.msra.mxu0 0
      %1917 = vmatprep.subr.bf16.mxu0 0
      %1918 = vmatpush1.bf16.xpose.msra.mxu0 0
      %1919 = vmatprep.subr.bf16.mxu0 0
      %1920 = vmatpush1.bf16.xpose.msra.mxu0 0
      %1921 = vmatprep.subr.bf16.mxu0 0
      %1922 = vmatpush1.bf16.xpose.msra.mxu0 0
      %1923 = vmatprep.subr.bf16.mxu0 0
      %1924 = vmatpush1.bf16.xpose.msra.mxu0 0
      %1925 = vmatprep.subr.bf16.mxu0 0
      %1926 = vmatpush1.bf16.xpose.msra.mxu0 0
      %1927 = vmatprep.subr.bf16.mxu0 0
      %1928 = vmatpush1.bf16.xpose.msra.mxu0 0
      %1929 = vmatprep.mubr.bf16.mxu0 0
      %1930 = vmatmul.mubr.bf16.gmra.mrb[0].mxu0 %v1892
      %v1931 = vpop.f32.mrb[0].mxu0
      %v1932 = vadd.f32 %v738, %v1931
      %v1933 = vpop.f32.mrb[0].mxu0
      %v1934 = vpop.f32.mrb[0].mxu0
      %v1935 = vpop.f32.mrb[0].mxu0
      %1936 = vdwg.mxu0
      %v1937 = vsel %vm787, %v1932, -inf
      %1938 = vmax.xlane.f32.xlu0 %v1937
      %v1939 = vpop.xlane.xlu0 %1938
      %v1940 = vsub.f32 %v1932, %v1939
      %v1941 = vmul.f32 %v1940, 1.442695
      %v1942 = vpow.pop %v1941
      %v1943 = vsel %vm787, %v1942, 0.0
      %1944 = vadd.xlane.f32.xlu0 %v1943
      %v1945 = vpop.xlane.xlu0 %1944
      %v1946 = vrcp.pop %v1945
      %v1947 = vmul.f32 %v1942, %v1946
      %1948 = vst.msk [vmem:[%s452 + $0x38] sm:$0xff] %vm787, %v1947
      %v1949 = vpack.c.bf16 %v1947, %v1947
      %1950 = vrot.lane.b32.xlu0 %v801, 16
      %v1951 = vpop.permute.xlu0 %1950
      %v1953 = vsel %vm787, %v1949, 0
      %v1956 = vsel %vm805, %v1951, 0
      %1958 = vmatprep.subr.bf16.mxu0 0
      %1959 = vmatpush1.bf16.msra.mxu0 %v1956
      %1960 = vmatprep.subr.bf16.mxu0 0
      %1961 = vmatpush1.bf16.msra.mxu0 0
      %1962 = vmatprep.subr.bf16.mxu0 0
      %1963 = vmatpush1.bf16.msra.mxu0 0
      %1964 = vmatprep.subr.bf16.mxu0 0
      %1965 = vmatpush1.bf16.msra.mxu0 0
      %1966 = vmatprep.subr.bf16.mxu0 0
      %1967 = vmatpush1.bf16.msra.mxu0 0
      %1968 = vmatprep.subr.bf16.mxu0 0
      %1969 = vmatpush1.bf16.msra.mxu0 0
      %1970 = vmatprep.subr.bf16.mxu0 0
      %1971 = vmatpush1.bf16.msra.mxu0 0
      %1972 = vmatprep.subr.bf16.mxu0 0
      %1973 = vmatpush1.bf16.msra.mxu0 0
      %1974 = vmatprep.subr.bf16.mxu0 0
      %1975 = vmatpush1.bf16.msra.mxu0 0
      %1976 = vmatprep.subr.bf16.mxu0 0
      %1977 = vmatpush1.bf16.msra.mxu0 0
      %1978 = vmatprep.subr.bf16.mxu0 0
      %1979 = vmatpush1.bf16.msra.mxu0 0
      %1980 = vmatprep.subr.bf16.mxu0 0
      %1981 = vmatpush1.bf16.msra.mxu0 0
      %1982 = vmatprep.subr.bf16.mxu0 0
      %1983 = vmatpush1.bf16.msra.mxu0 0
      %1984 = vmatprep.subr.bf16.mxu0 0
      %1985 = vmatpush1.bf16.msra.mxu0 0
      %1986 = vmatprep.subr.bf16.mxu0 0
      %1987 = vmatpush1.bf16.msra.mxu0 0
      %1988 = vmatprep.subr.bf16.mxu0 0
      %1989 = vmatpush1.bf16.msra.mxu0 0
      %1990 = vmatprep.mubr.bf16.mxu0 0
      %1991 = vmatmul.mubr.bf16.gmra.mrb[0].mxu0 %v1953
      %v1992 = vpop.f32.mrb[0].mxu0
      %v1993 = vadd.f32 0.0, %v1992
      %v1994 = vpop.f32.mrb[0].mxu0
      %v1995 = vpop.f32.mrb[0].mxu0
      %v1996 = vpop.f32.mrb[0].mxu0
      %1997 = vdwg.mxu0
      %v1998 = vpack.c.bf16 %v1993, %v1993
      %v1999 = vld [vmem:[%s9 + $0x38] sm:$0xf]
      %v2000 = vld [vmem:[%s9 + $0x3c] sm:$0xf]
      %v2003 = vunpack.c.l.b16 %v1999
      %v2004 = vunpack.c.l.b16 %v2000
      %v2005 = vpack.c.b16 %v2004, %v2003
      %v2008 = vsel %vm740, %v1998, 0
      %2010 = vmatprep.subr.bf16.mxu0 0
      %2011 = vmatpush1.bf16.msra.mxu0 %v2005
      %2012 = vmatprep.subr.bf16.mxu0 0
      %2013 = vmatpush1.bf16.msra.mxu0 0
      %2014 = vmatprep.subr.bf16.mxu0 0
      %2015 = vmatpush1.bf16.msra.mxu0 0
      %2016 = vmatprep.subr.bf16.mxu0 0
      %2017 = vmatpush1.bf16.msra.mxu0 0
      %2018 = vmatprep.subr.bf16.mxu0 0
      %2019 = vmatpush1.bf16.msra.mxu0 0
      %2020 = vmatprep.subr.bf16.mxu0 0
      %2021 = vmatpush1.bf16.msra.mxu0 0
      %2022 = vmatprep.subr.bf16.mxu0 0
      %2023 = vmatpush1.bf16.msra.mxu0 0
      %2024 = vmatprep.subr.bf16.mxu0 0
      %2025 = vmatpush1.bf16.msra.mxu0 0
      %2026 = vmatprep.subr.bf16.mxu0 0
      %2027 = vmatpush1.bf16.msra.mxu0 0
      %2028 = vmatprep.subr.bf16.mxu0 0
      %2029 = vmatpush1.bf16.msra.mxu0 0
      %2030 = vmatprep.subr.bf16.mxu0 0
      %2031 = vmatpush1.bf16.msra.mxu0 0
      %2032 = vmatprep.subr.bf16.mxu0 0
      %2033 = vmatpush1.bf16.msra.mxu0 0
      %2034 = vmatprep.subr.bf16.mxu0 0
      %2035 = vmatpush1.bf16.msra.mxu0 0
      %2036 = vmatprep.subr.bf16.mxu0 0
      %2037 = vmatpush1.bf16.msra.mxu0 0
      %2038 = vmatprep.subr.bf16.mxu0 0
      %2039 = vmatpush1.bf16.msra.mxu0 0
      %2040 = vmatprep.subr.bf16.mxu0 0
      %2041 = vmatpush1.bf16.msra.mxu0 0
      %2042 = vmatprep.mubr.bf16.mxu0 0
      %2043 = vmatmul.mubr.bf16.gmra.mrb[0].mxu0 %v2008
      %v2044 = vpop.f32.mrb[0].mxu0
      %v2045 = vadd.f32 0.0, %v2044
      %v2046 = vpop.f32.mrb[0].mxu0
      %v2047 = vpop.f32.mrb[0].mxu0
      %v2048 = vpop.f32.mrb[0].mxu0
      %2049 = vdwg.mxu0
      %v2050 = vadd.f32 %v1886, %v2045
      %v2051 = vmul.f32 %v604, 0.25
      %v2052 = vpack.c.bf16 %v2051, %v2051
      %v2053 = vpack.c.bf16 %v645, %v645
      %v2055 = vsel %vm740, %v2052, 0
      %v2058 = vsel %vm740, %v2053, 0
      %2060 = vmatprep.subr.bf16.mxu0 0
      %2061 = vmatpush1.bf16.xpose.msra.mxu0 %v2058
      %2062 = vmatprep.subr.bf16.mxu0 0
      %2063 = vmatpush1.bf16.xpose.msra.mxu0 0
      %2064 = vmatprep.subr.bf16.mxu0 0
      %2065 = vmatpush1.bf16.xpose.msra.mxu0 0
      %2066 = vmatprep.subr.bf16.mxu0 0
      %2067 = vmatpush1.bf16.xpose.msra.mxu0 0
      %2068 = vmatprep.subr.bf16.mxu0 0
      %2069 = vmatpush1.bf16.xpose.msra.mxu0 0
      %2070 = vmatprep.subr.bf16.mxu0 0
      %2071 = vmatpush1.bf16.xpose.msra.mxu0 0
      %2072 = vmatprep.subr.bf16.mxu0 0
      %2073 = vmatpush1.bf16.xpose.msra.mxu0 0
      %2074 = vmatprep.subr.bf16.mxu0 0
      %2075 = vmatpush1.bf16.xpose.msra.mxu0 0
      %2076 = vmatprep.subr.bf16.mxu0 0
      %2077 = vmatpush1.bf16.xpose.msra.mxu0 0
      %2078 = vmatprep.subr.bf16.mxu0 0
      %2079 = vmatpush1.bf16.xpose.msra.mxu0 0
      %2080 = vmatprep.subr.bf16.mxu0 0
      %2081 = vmatpush1.bf16.xpose.msra.mxu0 0
      %2082 = vmatprep.subr.bf16.mxu0 0
      %2083 = vmatpush1.bf16.xpose.msra.mxu0 0
      %2084 = vmatprep.subr.bf16.mxu0 0
      %2085 = vmatpush1.bf16.xpose.msra.mxu0 0
      %2086 = vmatprep.subr.bf16.mxu0 0
      %2087 = vmatpush1.bf16.xpose.msra.mxu0 0
      %2088 = vmatprep.subr.bf16.mxu0 0
      %2089 = vmatpush1.bf16.xpose.msra.mxu0 0
      %2090 = vmatprep.subr.bf16.mxu0 0
      %2091 = vmatpush1.bf16.xpose.msra.mxu0 0
      %2092 = vmatprep.mubr.bf16.mxu0 0
      %2093 = vmatmul.mubr.bf16.gmra.mrb[0].mxu0 %v2055
      %v2094 = vpop.f32.mrb[0].mxu0
      %v2095 = vadd.f32 %v738, %v2094
      %v2096 = vpop.f32.mrb[0].mxu0
      %v2097 = vpop.f32.mrb[0].mxu0
      %v2098 = vpop.f32.mrb[0].mxu0
      %2099 = vdwg.mxu0
      %v2100 = vsel %vm787, %v2095, -inf
      %2101 = vmax.xlane.f32.xlu0 %v2100
      %v2102 = vpop.xlane.xlu0 %2101
      %v2103 = vsub.f32 %v2095, %v2102
      %v2104 = vmul.f32 %v2103, 1.442695
      %v2105 = vpow.pop %v2104
      %v2106 = vsel %vm787, %v2105, 0.0
      %2107 = vadd.xlane.f32.xlu0 %v2106
      %v2108 = vpop.xlane.xlu0 %2107
      %v2109 = vrcp.pop %v2108
      %v2110 = vmul.f32 %v2105, %v2109
      %2111 = vst.msk [vmem:[%s452 + $0x40] sm:$0xff] %vm787, %v2110
      %v2112 = vpack.c.bf16 %v2110, %v2110
      %v2113 = vpack.c.bf16 %v727, %v727
      %v2115 = vsel %vm787, %v2112, 0
      %v2118 = vsel %vm805, %v2113, 0
      %2120 = vmatprep.subr.bf16.mxu0 0
      %2121 = vmatpush1.bf16.msra.mxu0 %v2118
      %2122 = vmatprep.subr.bf16.mxu0 0
      %2123 = vmatpush1.bf16.msra.mxu0 0
      %2124 = vmatprep.subr.bf16.mxu0 0
      %2125 = vmatpush1.bf16.msra.mxu0 0
      %2126 = vmatprep.subr.bf16.mxu0 0
      %2127 = vmatpush1.bf16.msra.mxu0 0
      %2128 = vmatprep.subr.bf16.mxu0 0
      %2129 = vmatpush1.bf16.msra.mxu0 0
      %2130 = vmatprep.subr.bf16.mxu0 0
      %2131 = vmatpush1.bf16.msra.mxu0 0
      %2132 = vmatprep.subr.bf16.mxu0 0
      %2133 = vmatpush1.bf16.msra.mxu0 0
      %2134 = vmatprep.subr.bf16.mxu0 0
      %2135 = vmatpush1.bf16.msra.mxu0 0
      %2136 = vmatprep.subr.bf16.mxu0 0
      %2137 = vmatpush1.bf16.msra.mxu0 0
      %2138 = vmatprep.subr.bf16.mxu0 0
      %2139 = vmatpush1.bf16.msra.mxu0 0
      %2140 = vmatprep.subr.bf16.mxu0 0
      %2141 = vmatpush1.bf16.msra.mxu0 0
      %2142 = vmatprep.subr.bf16.mxu0 0
      %2143 = vmatpush1.bf16.msra.mxu0 0
      %2144 = vmatprep.subr.bf16.mxu0 0
      %2145 = vmatpush1.bf16.msra.mxu0 0
      %2146 = vmatprep.subr.bf16.mxu0 0
      %2147 = vmatpush1.bf16.msra.mxu0 0
      %2148 = vmatprep.subr.bf16.mxu0 0
      %2149 = vmatpush1.bf16.msra.mxu0 0
      %2150 = vmatprep.subr.bf16.mxu0 0
      %2151 = vmatpush1.bf16.msra.mxu0 0
      %2152 = vmatprep.mubr.bf16.mxu0 0
      %2153 = vmatmul.mubr.bf16.gmra.mrb[0].mxu0 %v2115
      %v2154 = vpop.f32.mrb[0].mxu0
      %v2155 = vadd.f32 0.0, %v2154
      %v2156 = vpop.f32.mrb[0].mxu0
      %v2157 = vpop.f32.mrb[0].mxu0
      %v2158 = vpop.f32.mrb[0].mxu0
      %2159 = vdwg.mxu0
      %v2160 = vpack.c.bf16 %v2155, %v2155
      %v2161 = vld [vmem:[%s9 + $0x40] sm:$0xf]
      %v2162 = vld [vmem:[%s9 + $0x44] sm:$0xf]
      %v2165 = vunpack.c.l.b16 %v2161
      %v2166 = vunpack.c.l.b16 %v2162
      %v2167 = vpack.c.b16 %v2166, %v2165
      %v2170 = vsel %vm740, %v2160, 0
      %2172 = vmatprep.subr.bf16.mxu0 0
      %2173 = vmatpush1.bf16.msra.mxu0 %v2167
      %2174 = vmatprep.subr.bf16.mxu0 0
      %2175 = vmatpush1.bf16.msra.mxu0 0
      %2176 = vmatprep.subr.bf16.mxu0 0
      %2177 = vmatpush1.bf16.msra.mxu0 0
      %2178 = vmatprep.subr.bf16.mxu0 0
      %2179 = vmatpush1.bf16.msra.mxu0 0
      %2180 = vmatprep.subr.bf16.mxu0 0
      %2181 = vmatpush1.bf16.msra.mxu0 0
      %2182 = vmatprep.subr.bf16.mxu0 0
      %2183 = vmatpush1.bf16.msra.mxu0 0
      %2184 = vmatprep.subr.bf16.mxu0 0
      %2185 = vmatpush1.bf16.msra.mxu0 0
      %2186 = vmatprep.subr.bf16.mxu0 0
      %2187 = vmatpush1.bf16.msra.mxu0 0
      %2188 = vmatprep.subr.bf16.mxu0 0
      %2189 = vmatpush1.bf16.msra.mxu0 0
      %2190 = vmatprep.subr.bf16.mxu0 0
      %2191 = vmatpush1.bf16.msra.mxu0 0
      %2192 = vmatprep.subr.bf16.mxu0 0
      %2193 = vmatpush1.bf16.msra.mxu0 0
      %2194 = vmatprep.subr.bf16.mxu0 0
      %2195 = vmatpush1.bf16.msra.mxu0 0
      %2196 = vmatprep.subr.bf16.mxu0 0
      %2197 = vmatpush1.bf16.msra.mxu0 0
      %2198 = vmatprep.subr.bf16.mxu0 0
      %2199 = vmatpush1.bf16.msra.mxu0 0
      %2200 = vmatprep.subr.bf16.mxu0 0
      %2201 = vmatpush1.bf16.msra.mxu0 0
      %2202 = vmatprep.subr.bf16.mxu0 0
      %2203 = vmatpush1.bf16.msra.mxu0 0
      %2204 = vmatprep.mubr.bf16.mxu0 0
      %2205 = vmatmul.mubr.bf16.gmra.mrb[0].mxu0 %v2170
      %v2206 = vpop.f32.mrb[0].mxu0
      %v2207 = vadd.f32 0.0, %v2206
      %v2208 = vpop.f32.mrb[0].mxu0
      %v2209 = vpop.f32.mrb[0].mxu0
      %v2210 = vpop.f32.mrb[0].mxu0
      %2211 = vdwg.mxu0
      %v2212 = vadd.f32 %v2050, %v2207
      %2214 = vrot.lane.b32.xlu0 %v2052, 112
      %v2215 = vpop.permute.xlu0 %2214
      %2217 = vrot.lane.b32.xlu0 %v2053, 112
      %v2218 = vpop.permute.xlu0 %2217
      %v2220 = vsel %vm740, %v2215, 0
      %v2223 = vsel %vm740, %v2218, 0
      %2225 = vmatprep.subr.bf16.mxu0 0
      %2226 = vmatpush1.bf16.xpose.msra.mxu0 %v2223
      %2227 = vmatprep.subr.bf16.mxu0 0
      %2228 = vmatpush1.bf16.xpose.msra.mxu0 0
      %2229 = vmatprep.subr.bf16.mxu0 0
      %2230 = vmatpush1.bf16.xpose.msra.mxu0 0
      %2231 = vmatprep.subr.bf16.mxu0 0
      %2232 = vmatpush1.bf16.xpose.msra.mxu0 0
      %2233 = vmatprep.subr.bf16.mxu0 0
      %2234 = vmatpush1.bf16.xpose.msra.mxu0 0
      %2235 = vmatprep.subr.bf16.mxu0 0
      %2236 = vmatpush1.bf16.xpose.msra.mxu0 0
      %2237 = vmatprep.subr.bf16.mxu0 0
      %2238 = vmatpush1.bf16.xpose.msra.mxu0 0
      %2239 = vmatprep.subr.bf16.mxu0 0
      %2240 = vmatpush1.bf16.xpose.msra.mxu0 0
      %2241 = vmatprep.subr.bf16.mxu0 0
      %2242 = vmatpush1.bf16.xpose.msra.mxu0 0
      %2243 = vmatprep.subr.bf16.mxu0 0
      %2244 = vmatpush1.bf16.xpose.msra.mxu0 0
      %2245 = vmatprep.subr.bf16.mxu0 0
      %2246 = vmatpush1.bf16.xpose.msra.mxu0 0
      %2247 = vmatprep.subr.bf16.mxu0 0
      %2248 = vmatpush1.bf16.xpose.msra.mxu0 0
      %2249 = vmatprep.subr.bf16.mxu0 0
      %2250 = vmatpush1.bf16.xpose.msra.mxu0 0
      %2251 = vmatprep.subr.bf16.mxu0 0
      %2252 = vmatpush1.bf16.xpose.msra.mxu0 0
      %2253 = vmatprep.subr.bf16.mxu0 0
      %2254 = vmatpush1.bf16.xpose.msra.mxu0 0
      %2255 = vmatprep.subr.bf16.mxu0 0
      %2256 = vmatpush1.bf16.xpose.msra.mxu0 0
      %2257 = vmatprep.mubr.bf16.mxu0 0
      %2258 = vmatmul.mubr.bf16.gmra.mrb[0].mxu0 %v2220
      %v2259 = vpop.f32.mrb[0].mxu0
      %v2260 = vadd.f32 %v738, %v2259
      %v2261 = vpop.f32.mrb[0].mxu0
      %v2262 = vpop.f32.mrb[0].mxu0
      %v2263 = vpop.f32.mrb[0].mxu0
      %2264 = vdwg.mxu0
      %v2265 = vsel %vm787, %v2260, -inf
      %2266 = vmax.xlane.f32.xlu0 %v2265
      %v2267 = vpop.xlane.xlu0 %2266
      %v2268 = vsub.f32 %v2260, %v2267
      %v2269 = vmul.f32 %v2268, 1.442695
      %v2270 = vpow.pop %v2269
      %v2271 = vsel %vm787, %v2270, 0.0
      %2272 = vadd.xlane.f32.xlu0 %v2271
      %v2273 = vpop.xlane.xlu0 %2272
      %v2274 = vrcp.pop %v2273
      %v2275 = vmul.f32 %v2270, %v2274
      %2276 = vst.msk [vmem:[%s452 + $0x48] sm:$0xff] %vm787, %v2275
      %v2277 = vpack.c.bf16 %v2275, %v2275
      %2279 = vrot.lane.b32.xlu0 %v2113, 112
      %v2280 = vpop.permute.xlu0 %2279
      %v2282 = vsel %vm787, %v2277, 0
      %v2285 = vsel %vm805, %v2280, 0
      %2287 = vmatprep.subr.bf16.mxu0 0
      %2288 = vmatpush1.bf16.msra.mxu0 %v2285
      %2289 = vmatprep.subr.bf16.mxu0 0
      %2290 = vmatpush1.bf16.msra.mxu0 0
      %2291 = vmatprep.subr.bf16.mxu0 0
      %2292 = vmatpush1.bf16.msra.mxu0 0
      %2293 = vmatprep.subr.bf16.mxu0 0
      %2294 = vmatpush1.bf16.msra.mxu0 0
      %2295 = vmatprep.subr.bf16.mxu0 0
      %2296 = vmatpush1.bf16.msra.mxu0 0
      %2297 = vmatprep.subr.bf16.mxu0 0
      %2298 = vmatpush1.bf16.msra.mxu0 0
      %2299 = vmatprep.subr.bf16.mxu0 0
      %2300 = vmatpush1.bf16.msra.mxu0 0
      %2301 = vmatprep.subr.bf16.mxu0 0
      %2302 = vmatpush1.bf16.msra.mxu0 0
      %2303 = vmatprep.subr.bf16.mxu0 0
      %2304 = vmatpush1.bf16.msra.mxu0 0
      %2305 = vmatprep.subr.bf16.mxu0 0
      %2306 = vmatpush1.bf16.msra.mxu0 0
      %2307 = vmatprep.subr.bf16.mxu0 0
      %2308 = vmatpush1.bf16.msra.mxu0 0
      %2309 = vmatprep.subr.bf16.mxu0 0
      %2310 = vmatpush1.bf16.msra.mxu0 0
      %2311 = vmatprep.subr.bf16.mxu0 0
      %2312 = vmatpush1.bf16.msra.mxu0 0
      %2313 = vmatprep.subr.bf16.mxu0 0
      %2314 = vmatpush1.bf16.msra.mxu0 0
      %2315 = vmatprep.subr.bf16.mxu0 0
      %2316 = vmatpush1.bf16.msra.mxu0 0
      %2317 = vmatprep.subr.bf16.mxu0 0
      %2318 = vmatpush1.bf16.msra.mxu0 0
      %2319 = vmatprep.mubr.bf16.mxu0 0
      %2320 = vmatmul.mubr.bf16.gmra.mrb[0].mxu0 %v2282
      %v2321 = vpop.f32.mrb[0].mxu0
      %v2322 = vadd.f32 0.0, %v2321
      %v2323 = vpop.f32.mrb[0].mxu0
      %v2324 = vpop.f32.mrb[0].mxu0
      %v2325 = vpop.f32.mrb[0].mxu0
      %2326 = vdwg.mxu0
      %v2327 = vpack.c.bf16 %v2322, %v2322
      %v2328 = vld [vmem:[%s9 + $0x48] sm:$0xf]
      %v2329 = vld [vmem:[%s9 + $0x4c] sm:$0xf]
      %v2332 = vunpack.c.l.b16 %v2328
      %v2333 = vunpack.c.l.b16 %v2329
      %v2334 = vpack.c.b16 %v2333, %v2332
      %v2337 = vsel %vm740, %v2327, 0
      %2339 = vmatprep.subr.bf16.mxu0 0
      %2340 = vmatpush1.bf16.msra.mxu0 %v2334
      %2341 = vmatprep.subr.bf16.mxu0 0
      %2342 = vmatpush1.bf16.msra.mxu0 0
      %2343 = vmatprep.subr.bf16.mxu0 0
      %2344 = vmatpush1.bf16.msra.mxu0 0
      %2345 = vmatprep.subr.bf16.mxu0 0
      %2346 = vmatpush1.bf16.msra.mxu0 0
      %2347 = vmatprep.subr.bf16.mxu0 0
      %2348 = vmatpush1.bf16.msra.mxu0 0
      %2349 = vmatprep.subr.bf16.mxu0 0
      %2350 = vmatpush1.bf16.msra.mxu0 0
      %2351 = vmatprep.subr.bf16.mxu0 0
      %2352 = vmatpush1.bf16.msra.mxu0 0
      %2353 = vmatprep.subr.bf16.mxu0 0
      %2354 = vmatpush1.bf16.msra.mxu0 0
      %2355 = vmatprep.subr.bf16.mxu0 0
      %2356 = vmatpush1.bf16.msra.mxu0 0
      %2357 = vmatprep.subr.bf16.mxu0 0
      %2358 = vmatpush1.bf16.msra.mxu0 0
      %2359 = vmatprep.subr.bf16.mxu0 0
      %2360 = vmatpush1.bf16.msra.mxu0 0
      %2361 = vmatprep.subr.bf16.mxu0 0
      %2362 = vmatpush1.bf16.msra.mxu0 0
      %2363 = vmatprep.subr.bf16.mxu0 0
      %2364 = vmatpush1.bf16.msra.mxu0 0
      %2365 = vmatprep.subr.bf16.mxu0 0
      %2366 = vmatpush1.bf16.msra.mxu0 0
      %2367 = vmatprep.subr.bf16.mxu0 0
      %2368 = vmatpush1.bf16.msra.mxu0 0
      %2369 = vmatprep.subr.bf16.mxu0 0
      %2370 = vmatpush1.bf16.msra.mxu0 0
      %2371 = vmatprep.mubr.bf16.mxu0 0
      %2372 = vmatmul.mubr.bf16.gmra.mrb[0].mxu0 %v2337
      %v2373 = vpop.f32.mrb[0].mxu0
      %v2374 = vadd.f32 0.0, %v2373
      %v2375 = vpop.f32.mrb[0].mxu0
      %v2376 = vpop.f32.mrb[0].mxu0
      %v2377 = vpop.f32.mrb[0].mxu0
      %2378 = vdwg.mxu0
      %v2379 = vadd.f32 %v2212, %v2374
      %2380 = vrot.lane.b32.xlu0 %v2052, 96
      %v2381 = vpop.permute.xlu0 %2380
      %2382 = vrot.lane.b32.xlu0 %v2053, 96
      %v2383 = vpop.permute.xlu0 %2382
      %v2385 = vsel %vm740, %v2381, 0
      %v2388 = vsel %vm740, %v2383, 0
      %2390 = vmatprep.subr.bf16.mxu0 0
      %2391 = vmatpush1.bf16.xpose.msra.mxu0 %v2388
      %2392 = vmatprep.subr.bf16.mxu0 0
      %2393 = vmatpush1.bf16.xpose.msra.mxu0 0
      %2394 = vmatprep.subr.bf16.mxu0 0
      %2395 = vmatpush1.bf16.xpose.msra.mxu0 0
      %2396 = vmatprep.subr.bf16.mxu0 0
      %2397 = vmatpush1.bf16.xpose.msra.mxu0 0
      %2398 = vmatprep.subr.bf16.mxu0 0
      %2399 = vmatpush1.bf16.xpose.msra.mxu0 0
      %2400 = vmatprep.subr.bf16.mxu0 0
      %2401 = vmatpush1.bf16.xpose.msra.mxu0 0
      %2402 = vmatprep.subr.bf16.mxu0 0
      %2403 = vmatpush1.bf16.xpose.msra.mxu0 0
      %2404 = vmatprep.subr.bf16.mxu0 0
      %2405 = vmatpush1.bf16.xpose.msra.mxu0 0
      %2406 = vmatprep.subr.bf16.mxu0 0
      %2407 = vmatpush1.bf16.xpose.msra.mxu0 0
      %2408 = vmatprep.subr.bf16.mxu0 0
      %2409 = vmatpush1.bf16.xpose.msra.mxu0 0
      %2410 = vmatprep.subr.bf16.mxu0 0
      %2411 = vmatpush1.bf16.xpose.msra.mxu0 0
      %2412 = vmatprep.subr.bf16.mxu0 0
      %2413 = vmatpush1.bf16.xpose.msra.mxu0 0
      %2414 = vmatprep.subr.bf16.mxu0 0
      %2415 = vmatpush1.bf16.xpose.msra.mxu0 0
      %2416 = vmatprep.subr.bf16.mxu0 0
      %2417 = vmatpush1.bf16.xpose.msra.mxu0 0
      %2418 = vmatprep.subr.bf16.mxu0 0
      %2419 = vmatpush1.bf16.xpose.msra.mxu0 0
      %2420 = vmatprep.subr.bf16.mxu0 0
      %2421 = vmatpush1.bf16.xpose.msra.mxu0 0
      %2422 = vmatprep.mubr.bf16.mxu0 0
      %2423 = vmatmul.mubr.bf16.gmra.mrb[0].mxu0 %v2385
      %v2424 = vpop.f32.mrb[0].mxu0
      %v2425 = vadd.f32 %v738, %v2424
      %v2426 = vpop.f32.mrb[0].mxu0
      %v2427 = vpop.f32.mrb[0].mxu0
      %v2428 = vpop.f32.mrb[0].mxu0
      %2429 = vdwg.mxu0
      %v2430 = vsel %vm787, %v2425, -inf
      %2431 = vmax.xlane.f32.xlu0 %v2430
      %v2432 = vpop.xlane.xlu0 %2431
      %v2433 = vsub.f32 %v2425, %v2432
      %v2434 = vmul.f32 %v2433, 1.442695
      %v2435 = vpow.pop %v2434
      %v2436 = vsel %vm787, %v2435, 0.0
      %2437 = vadd.xlane.f32.xlu0 %v2436
      %v2438 = vpop.xlane.xlu0 %2437
      %v2439 = vrcp.pop %v2438
      %v2440 = vmul.f32 %v2435, %v2439
      %2441 = vst.msk [vmem:[%s452 + $0x50] sm:$0xff] %vm787, %v2440
      %v2442 = vpack.c.bf16 %v2440, %v2440
      %2443 = vrot.lane.b32.xlu0 %v2113, 96
      %v2444 = vpop.permute.xlu0 %2443
      %v2446 = vsel %vm787, %v2442, 0
      %v2449 = vsel %vm805, %v2444, 0
      %2451 = vmatprep.subr.bf16.mxu0 0
      %2452 = vmatpush1.bf16.msra.mxu0 %v2449
      %2453 = vmatprep.subr.bf16.mxu0 0
      %2454 = vmatpush1.bf16.msra.mxu0 0
      %2455 = vmatprep.subr.bf16.mxu0 0
      %2456 = vmatpush1.bf16.msra.mxu0 0
      %2457 = vmatprep.subr.bf16.mxu0 0
      %2458 = vmatpush1.bf16.msra.mxu0 0
      %2459 = vmatprep.subr.bf16.mxu0 0
      %2460 = vmatpush1.bf16.msra.mxu0 0
      %2461 = vmatprep.subr.bf16.mxu0 0
      %2462 = vmatpush1.bf16.msra.mxu0 0
      %2463 = vmatprep.subr.bf16.mxu0 0
      %2464 = vmatpush1.bf16.msra.mxu0 0
      %2465 = vmatprep.subr.bf16.mxu0 0
      %2466 = vmatpush1.bf16.msra.mxu0 0
      %2467 = vmatprep.subr.bf16.mxu0 0
      %2468 = vmatpush1.bf16.msra.mxu0 0
      %2469 = vmatprep.subr.bf16.mxu0 0
      %2470 = vmatpush1.bf16.msra.mxu0 0
      %2471 = vmatprep.subr.bf16.mxu0 0
      %2472 = vmatpush1.bf16.msra.mxu0 0
      %2473 = vmatprep.subr.bf16.mxu0 0
      %2474 = vmatpush1.bf16.msra.mxu0 0
      %2475 = vmatprep.subr.bf16.mxu0 0
      %2476 = vmatpush1.bf16.msra.mxu0 0
      %2477 = vmatprep.subr.bf16.mxu0 0
      %2478 = vmatpush1.bf16.msra.mxu0 0
      %2479 = vmatprep.subr.bf16.mxu0 0
      %2480 = vmatpush1.bf16.msra.mxu0 0
      %2481 = vmatprep.subr.bf16.mxu0 0
      %2482 = vmatpush1.bf16.msra.mxu0 0
      %2483 = vmatprep.mubr.bf16.mxu0 0
      %2484 = vmatmul.mubr.bf16.gmra.mrb[0].mxu0 %v2446
      %v2485 = vpop.f32.mrb[0].mxu0
      %v2486 = vadd.f32 0.0, %v2485
      %v2487 = vpop.f32.mrb[0].mxu0
      %v2488 = vpop.f32.mrb[0].mxu0
      %v2489 = vpop.f32.mrb[0].mxu0
      %2490 = vdwg.mxu0
      %v2491 = vpack.c.bf16 %v2486, %v2486
      %v2492 = vld [vmem:[%s9 + $0x50] sm:$0xf]
      %v2493 = vld [vmem:[%s9 + $0x54] sm:$0xf]
      %v2496 = vunpack.c.l.b16 %v2492
      %v2497 = vunpack.c.l.b16 %v2493
      %v2498 = vpack.c.b16 %v2497, %v2496
      %v2501 = vsel %vm740, %v2491, 0
      %2503 = vmatprep.subr.bf16.mxu0 0
      %2504 = vmatpush1.bf16.msra.mxu0 %v2498
      %2505 = vmatprep.subr.bf16.mxu0 0
      %2506 = vmatpush1.bf16.msra.mxu0 0
      %2507 = vmatprep.subr.bf16.mxu0 0
      %2508 = vmatpush1.bf16.msra.mxu0 0
      %2509 = vmatprep.subr.bf16.mxu0 0
      %2510 = vmatpush1.bf16.msra.mxu0 0
      %2511 = vmatprep.subr.bf16.mxu0 0
      %2512 = vmatpush1.bf16.msra.mxu0 0
      %2513 = vmatprep.subr.bf16.mxu0 0
      %2514 = vmatpush1.bf16.msra.mxu0 0
      %2515 = vmatprep.subr.bf16.mxu0 0
      %2516 = vmatpush1.bf16.msra.mxu0 0
      %2517 = vmatprep.subr.bf16.mxu0 0
      %2518 = vmatpush1.bf16.msra.mxu0 0
      %2519 = vmatprep.subr.bf16.mxu0 0
      %2520 = vmatpush1.bf16.msra.mxu0 0
      %2521 = vmatprep.subr.bf16.mxu0 0
      %2522 = vmatpush1.bf16.msra.mxu0 0
      %2523 = vmatprep.subr.bf16.mxu0 0
      %2524 = vmatpush1.bf16.msra.mxu0 0
      %2525 = vmatprep.subr.bf16.mxu0 0
      %2526 = vmatpush1.bf16.msra.mxu0 0
      %2527 = vmatprep.subr.bf16.mxu0 0
      %2528 = vmatpush1.bf16.msra.mxu0 0
      %2529 = vmatprep.subr.bf16.mxu0 0
      %2530 = vmatpush1.bf16.msra.mxu0 0
      %2531 = vmatprep.subr.bf16.mxu0 0
      %2532 = vmatpush1.bf16.msra.mxu0 0
      %2533 = vmatprep.subr.bf16.mxu0 0
      %2534 = vmatpush1.bf16.msra.mxu0 0
      %2535 = vmatprep.mubr.bf16.mxu0 0
      %2536 = vmatmul.mubr.bf16.gmra.mrb[0].mxu0 %v2501
      %v2537 = vpop.f32.mrb[0].mxu0
      %v2538 = vadd.f32 0.0, %v2537
      %v2539 = vpop.f32.mrb[0].mxu0
      %v2540 = vpop.f32.mrb[0].mxu0
      %v2541 = vpop.f32.mrb[0].mxu0
      %2542 = vdwg.mxu0
      %v2543 = vadd.f32 %v2379, %v2538
      %2544 = vrot.lane.b32.xlu0 %v2052, 80
      %v2545 = vpop.permute.xlu0 %2544
      %2546 = vrot.lane.b32.xlu0 %v2053, 80
      %v2547 = vpop.permute.xlu0 %2546
      %v2549 = vsel %vm740, %v2545, 0
      %v2552 = vsel %vm740, %v2547, 0
      %2554 = vmatprep.subr.bf16.mxu0 0
      %2555 = vmatpush1.bf16.xpose.msra.mxu0 %v2552
      %2556 = vmatprep.subr.bf16.mxu0 0
      %2557 = vmatpush1.bf16.xpose.msra.mxu0 0
      %2558 = vmatprep.subr.bf16.mxu0 0
      %2559 = vmatpush1.bf16.xpose.msra.mxu0 0
      %2560 = vmatprep.subr.bf16.mxu0 0
      %2561 = vmatpush1.bf16.xpose.msra.mxu0 0
      %2562 = vmatprep.subr.bf16.mxu0 0
      %2563 = vmatpush1.bf16.xpose.msra.mxu0 0
      %2564 = vmatprep.subr.bf16.mxu0 0
      %2565 = vmatpush1.bf16.xpose.msra.mxu0 0
      %2566 = vmatprep.subr.bf16.mxu0 0
      %2567 = vmatpush1.bf16.xpose.msra.mxu0 0
      %2568 = vmatprep.subr.bf16.mxu0 0
      %2569 = vmatpush1.bf16.xpose.msra.mxu0 0
      %2570 = vmatprep.subr.bf16.mxu0 0
      %2571 = vmatpush1.bf16.xpose.msra.mxu0 0
      %2572 = vmatprep.subr.bf16.mxu0 0
      %2573 = vmatpush1.bf16.xpose.msra.mxu0 0
      %2574 = vmatprep.subr.bf16.mxu0 0
      %2575 = vmatpush1.bf16.xpose.msra.mxu0 0
      %2576 = vmatprep.subr.bf16.mxu0 0
      %2577 = vmatpush1.bf16.xpose.msra.mxu0 0
      %2578 = vmatprep.subr.bf16.mxu0 0
      %2579 = vmatpush1.bf16.xpose.msra.mxu0 0
      %2580 = vmatprep.subr.bf16.mxu0 0
      %2581 = vmatpush1.bf16.xpose.msra.mxu0 0
      %2582 = vmatprep.subr.bf16.mxu0 0
      %2583 = vmatpush1.bf16.xpose.msra.mxu0 0
      %2584 = vmatprep.subr.bf16.mxu0 0
      %2585 = vmatpush1.bf16.xpose.msra.mxu0 0
      %2586 = vmatprep.mubr.bf16.mxu0 0
      %2587 = vmatmul.mubr.bf16.gmra.mrb[0].mxu0 %v2549
      %v2588 = vpop.f32.mrb[0].mxu0
      %v2589 = vadd.f32 %v738, %v2588
      %v2590 = vpop.f32.mrb[0].mxu0
      %v2591 = vpop.f32.mrb[0].mxu0
      %v2592 = vpop.f32.mrb[0].mxu0
      %2593 = vdwg.mxu0
      %v2594 = vsel %vm787, %v2589, -inf
      %2595 = vmax.xlane.f32.xlu0 %v2594
      %v2596 = vpop.xlane.xlu0 %2595
      %v2597 = vsub.f32 %v2589, %v2596
      %v2598 = vmul.f32 %v2597, 1.442695
      %v2599 = vpow.pop %v2598
      %v2600 = vsel %vm787, %v2599, 0.0
      %2601 = vadd.xlane.f32.xlu0 %v2600
      %v2602 = vpop.xlane.xlu0 %2601
      %v2603 = vrcp.pop %v2602
      %v2604 = vmul.f32 %v2599, %v2603
      %2605 = vst.msk [vmem:[%s452 + $0x58] sm:$0xff] %vm787, %v2604
      %v2606 = vpack.c.bf16 %v2604, %v2604
      %2607 = vrot.lane.b32.xlu0 %v2113, 80
      %v2608 = vpop.permute.xlu0 %2607
      %v2610 = vsel %vm787, %v2606, 0
      %v2613 = vsel %vm805, %v2608, 0
      %2615 = vmatprep.subr.bf16.mxu0 0
      %2616 = vmatpush1.bf16.msra.mxu0 %v2613
      %2617 = vmatprep.subr.bf16.mxu0 0
      %2618 = vmatpush1.bf16.msra.mxu0 0
      %2619 = vmatprep.subr.bf16.mxu0 0
      %2620 = vmatpush1.bf16.msra.mxu0 0
      %2621 = vmatprep.subr.bf16.mxu0 0
      %2622 = vmatpush1.bf16.msra.mxu0 0
      %2623 = vmatprep.subr.bf16.mxu0 0
      %2624 = vmatpush1.bf16.msra.mxu0 0
      %2625 = vmatprep.subr.bf16.mxu0 0
      %2626 = vmatpush1.bf16.msra.mxu0 0
      %2627 = vmatprep.subr.bf16.mxu0 0
      %2628 = vmatpush1.bf16.msra.mxu0 0
      %2629 = vmatprep.subr.bf16.mxu0 0
      %2630 = vmatpush1.bf16.msra.mxu0 0
      %2631 = vmatprep.subr.bf16.mxu0 0
      %2632 = vmatpush1.bf16.msra.mxu0 0
      %2633 = vmatprep.subr.bf16.mxu0 0
      %2634 = vmatpush1.bf16.msra.mxu0 0
      %2635 = vmatprep.subr.bf16.mxu0 0
      %2636 = vmatpush1.bf16.msra.mxu0 0
      %2637 = vmatprep.subr.bf16.mxu0 0
      %2638 = vmatpush1.bf16.msra.mxu0 0
      %2639 = vmatprep.subr.bf16.mxu0 0
      %2640 = vmatpush1.bf16.msra.mxu0 0
      %2641 = vmatprep.subr.bf16.mxu0 0
      %2642 = vmatpush1.bf16.msra.mxu0 0
      %2643 = vmatprep.subr.bf16.mxu0 0
      %2644 = vmatpush1.bf16.msra.mxu0 0
      %2645 = vmatprep.subr.bf16.mxu0 0
      %2646 = vmatpush1.bf16.msra.mxu0 0
      %2647 = vmatprep.mubr.bf16.mxu0 0
      %2648 = vmatmul.mubr.bf16.gmra.mrb[0].mxu0 %v2610
      %v2649 = vpop.f32.mrb[0].mxu0
      %v2650 = vadd.f32 0.0, %v2649
      %v2651 = vpop.f32.mrb[0].mxu0
      %v2652 = vpop.f32.mrb[0].mxu0
      %v2653 = vpop.f32.mrb[0].mxu0
      %2654 = vdwg.mxu0
      %v2655 = vpack.c.bf16 %v2650, %v2650
      %v2656 = vld [vmem:[%s9 + $0x58] sm:$0xf]
      %v2657 = vld [vmem:[%s9 + $0x5c] sm:$0xf]
      %v2660 = vunpack.c.l.b16 %v2656
      %v2661 = vunpack.c.l.b16 %v2657
      %v2662 = vpack.c.b16 %v2661, %v2660
      %v2665 = vsel %vm740, %v2655, 0
      %2667 = vmatprep.subr.bf16.mxu0 0
      %2668 = vmatpush1.bf16.msra.mxu0 %v2662
      %2669 = vmatprep.subr.bf16.mxu0 0
      %2670 = vmatpush1.bf16.msra.mxu0 0
      %2671 = vmatprep.subr.bf16.mxu0 0
      %2672 = vmatpush1.bf16.msra.mxu0 0
      %2673 = vmatprep.subr.bf16.mxu0 0
      %2674 = vmatpush1.bf16.msra.mxu0 0
      %2675 = vmatprep.subr.bf16.mxu0 0
      %2676 = vmatpush1.bf16.msra.mxu0 0
      %2677 = vmatprep.subr.bf16.mxu0 0
      %2678 = vmatpush1.bf16.msra.mxu0 0
      %2679 = vmatprep.subr.bf16.mxu0 0
      %2680 = vmatpush1.bf16.msra.mxu0 0
      %2681 = vmatprep.subr.bf16.mxu0 0
      %2682 = vmatpush1.bf16.msra.mxu0 0
      %2683 = vmatprep.subr.bf16.mxu0 0
      %2684 = vmatpush1.bf16.msra.mxu0 0
      %2685 = vmatprep.subr.bf16.mxu0 0
      %2686 = vmatpush1.bf16.msra.mxu0 0
      %2687 = vmatprep.subr.bf16.mxu0 0
      %2688 = vmatpush1.bf16.msra.mxu0 0
      %2689 = vmatprep.subr.bf16.mxu0 0
      %2690 = vmatpush1.bf16.msra.mxu0 0
      %2691 = vmatprep.subr.bf16.mxu0 0
      %2692 = vmatpush1.bf16.msra.mxu0 0
      %2693 = vmatprep.subr.bf16.mxu0 0
      %2694 = vmatpush1.bf16.msra.mxu0 0
      %2695 = vmatprep.subr.bf16.mxu0 0
      %2696 = vmatpush1.bf16.msra.mxu0 0
      %2697 = vmatprep.subr.bf16.mxu0 0
      %2698 = vmatpush1.bf16.msra.mxu0 0
      %2699 = vmatprep.mubr.bf16.mxu0 0
      %2700 = vmatmul.mubr.bf16.gmra.mrb[0].mxu0 %v2665
      %v2701 = vpop.f32.mrb[0].mxu0
      %v2702 = vadd.f32 0.0, %v2701
      %v2703 = vpop.f32.mrb[0].mxu0
      %v2704 = vpop.f32.mrb[0].mxu0
      %v2705 = vpop.f32.mrb[0].mxu0
      %2706 = vdwg.mxu0
      %v2707 = vadd.f32 %v2543, %v2702
      %2708 = vrot.lane.b32.xlu0 %v2052, 64
      %v2709 = vpop.permute.xlu0 %2708
      %2710 = vrot.lane.b32.xlu0 %v2053, 64
      %v2711 = vpop.permute.xlu0 %2710
      %v2713 = vsel %vm740, %v2709, 0
      %v2716 = vsel %vm740, %v2711, 0
      %2718 = vmatprep.subr.bf16.mxu0 0
      %2719 = vmatpush1.bf16.xpose.msra.mxu0 %v2716
      %2720 = vmatprep.subr.bf16.mxu0 0
      %2721 = vmatpush1.bf16.xpose.msra.mxu0 0
      %2722 = vmatprep.subr.bf16.mxu0 0
      %2723 = vmatpush1.bf16.xpose.msra.mxu0 0
      %2724 = vmatprep.subr.bf16.mxu0 0
      %2725 = vmatpush1.bf16.xpose.msra.mxu0 0
      %2726 = vmatprep.subr.bf16.mxu0 0
      %2727 = vmatpush1.bf16.xpose.msra.mxu0 0
      %2728 = vmatprep.subr.bf16.mxu0 0
      %2729 = vmatpush1.bf16.xpose.msra.mxu0 0
      %2730 = vmatprep.subr.bf16.mxu0 0
      %2731 = vmatpush1.bf16.xpose.msra.mxu0 0
      %2732 = vmatprep.subr.bf16.mxu0 0
      %2733 = vmatpush1.bf16.xpose.msra.mxu0 0
      %2734 = vmatprep.subr.bf16.mxu0 0
      %2735 = vmatpush1.bf16.xpose.msra.mxu0 0
      %2736 = vmatprep.subr.bf16.mxu0 0
      %2737 = vmatpush1.bf16.xpose.msra.mxu0 0
      %2738 = vmatprep.subr.bf16.mxu0 0
      %2739 = vmatpush1.bf16.xpose.msra.mxu0 0
      %2740 = vmatprep.subr.bf16.mxu0 0
      %2741 = vmatpush1.bf16.xpose.msra.mxu0 0
      %2742 = vmatprep.subr.bf16.mxu0 0
      %2743 = vmatpush1.bf16.xpose.msra.mxu0 0
      %2744 = vmatprep.subr.bf16.mxu0 0
      %2745 = vmatpush1.bf16.xpose.msra.mxu0 0
      %2746 = vmatprep.subr.bf16.mxu0 0
      %2747 = vmatpush1.bf16.xpose.msra.mxu0 0
      %2748 = vmatprep.subr.bf16.mxu0 0
      %2749 = vmatpush1.bf16.xpose.msra.mxu0 0
      %2750 = vmatprep.mubr.bf16.mxu0 0
      %2751 = vmatmul.mubr.bf16.gmra.mrb[0].mxu0 %v2713
      %v2752 = vpop.f32.mrb[0].mxu0
      %v2753 = vadd.f32 %v738, %v2752
      %v2754 = vpop.f32.mrb[0].mxu0
      %v2755 = vpop.f32.mrb[0].mxu0
      %v2756 = vpop.f32.mrb[0].mxu0
      %2757 = vdwg.mxu0
      %v2758 = vsel %vm787, %v2753, -inf
      %2759 = vmax.xlane.f32.xlu0 %v2758
      %v2760 = vpop.xlane.xlu0 %2759
      %v2761 = vsub.f32 %v2753, %v2760
      %v2762 = vmul.f32 %v2761, 1.442695
      %v2763 = vpow.pop %v2762
      %v2764 = vsel %vm787, %v2763, 0.0
      %2765 = vadd.xlane.f32.xlu0 %v2764
      %v2766 = vpop.xlane.xlu0 %2765
      %v2767 = vrcp.pop %v2766
      %v2768 = vmul.f32 %v2763, %v2767
      %2769 = vst.msk [vmem:[%s452 + $0x60] sm:$0xff] %vm787, %v2768
      %v2770 = vpack.c.bf16 %v2768, %v2768
      %2771 = vrot.lane.b32.xlu0 %v2113, 64
      %v2772 = vpop.permute.xlu0 %2771
      %v2774 = vsel %vm787, %v2770, 0
      %v2777 = vsel %vm805, %v2772, 0
      %2779 = vmatprep.subr.bf16.mxu0 0
      %2780 = vmatpush1.bf16.msra.mxu0 %v2777
      %2781 = vmatprep.subr.bf16.mxu0 0
      %2782 = vmatpush1.bf16.msra.mxu0 0
      %2783 = vmatprep.subr.bf16.mxu0 0
      %2784 = vmatpush1.bf16.msra.mxu0 0
      %2785 = vmatprep.subr.bf16.mxu0 0
      %2786 = vmatpush1.bf16.msra.mxu0 0
      %2787 = vmatprep.subr.bf16.mxu0 0
      %2788 = vmatpush1.bf16.msra.mxu0 0
      %2789 = vmatprep.subr.bf16.mxu0 0
      %2790 = vmatpush1.bf16.msra.mxu0 0
      %2791 = vmatprep.subr.bf16.mxu0 0
      %2792 = vmatpush1.bf16.msra.mxu0 0
      %2793 = vmatprep.subr.bf16.mxu0 0
      %2794 = vmatpush1.bf16.msra.mxu0 0
      %2795 = vmatprep.subr.bf16.mxu0 0
      %2796 = vmatpush1.bf16.msra.mxu0 0
      %2797 = vmatprep.subr.bf16.mxu0 0
      %2798 = vmatpush1.bf16.msra.mxu0 0
      %2799 = vmatprep.subr.bf16.mxu0 0
      %2800 = vmatpush1.bf16.msra.mxu0 0
      %2801 = vmatprep.subr.bf16.mxu0 0
      %2802 = vmatpush1.bf16.msra.mxu0 0
      %2803 = vmatprep.subr.bf16.mxu0 0
      %2804 = vmatpush1.bf16.msra.mxu0 0
      %2805 = vmatprep.subr.bf16.mxu0 0
      %2806 = vmatpush1.bf16.msra.mxu0 0
      %2807 = vmatprep.subr.bf16.mxu0 0
      %2808 = vmatpush1.bf16.msra.mxu0 0
      %2809 = vmatprep.subr.bf16.mxu0 0
      %2810 = vmatpush1.bf16.msra.mxu0 0
      %2811 = vmatprep.mubr.bf16.mxu0 0
      %2812 = vmatmul.mubr.bf16.gmra.mrb[0].mxu0 %v2774
      %v2813 = vpop.f32.mrb[0].mxu0
      %v2814 = vadd.f32 0.0, %v2813
      %v2815 = vpop.f32.mrb[0].mxu0
      %v2816 = vpop.f32.mrb[0].mxu0
      %v2817 = vpop.f32.mrb[0].mxu0
      %2818 = vdwg.mxu0
      %v2819 = vpack.c.bf16 %v2814, %v2814
      %v2820 = vld [vmem:[%s9 + $0x60] sm:$0xf]
      %v2821 = vld [vmem:[%s9 + $0x64] sm:$0xf]
      %v2824 = vunpack.c.l.b16 %v2820
      %v2825 = vunpack.c.l.b16 %v2821
      %v2826 = vpack.c.b16 %v2825, %v2824
      %v2829 = vsel %vm740, %v2819, 0
      %2831 = vmatprep.subr.bf16.mxu0 0
      %2832 = vmatpush1.bf16.msra.mxu0 %v2826
      %2833 = vmatprep.subr.bf16.mxu0 0
      %2834 = vmatpush1.bf16.msra.mxu0 0
      %2835 = vmatprep.subr.bf16.mxu0 0
      %2836 = vmatpush1.bf16.msra.mxu0 0
      %2837 = vmatprep.subr.bf16.mxu0 0
      %2838 = vmatpush1.bf16.msra.mxu0 0
      %2839 = vmatprep.subr.bf16.mxu0 0
      %2840 = vmatpush1.bf16.msra.mxu0 0
      %2841 = vmatprep.subr.bf16.mxu0 0
      %2842 = vmatpush1.bf16.msra.mxu0 0
      %2843 = vmatprep.subr.bf16.mxu0 0
      %2844 = vmatpush1.bf16.msra.mxu0 0
      %2845 = vmatprep.subr.bf16.mxu0 0
      %2846 = vmatpush1.bf16.msra.mxu0 0
      %2847 = vmatprep.subr.bf16.mxu0 0
      %2848 = vmatpush1.bf16.msra.mxu0 0
      %2849 = vmatprep.subr.bf16.mxu0 0
      %2850 = vmatpush1.bf16.msra.mxu0 0
      %2851 = vmatprep.subr.bf16.mxu0 0
      %2852 = vmatpush1.bf16.msra.mxu0 0
      %2853 = vmatprep.subr.bf16.mxu0 0
      %2854 = vmatpush1.bf16.msra.mxu0 0
      %2855 = vmatprep.subr.bf16.mxu0 0
      %2856 = vmatpush1.bf16.msra.mxu0 0
      %2857 = vmatprep.subr.bf16.mxu0 0
      %2858 = vmatpush1.bf16.msra.mxu0 0
      %2859 = vmatprep.subr.bf16.mxu0 0
      %2860 = vmatpush1.bf16.msra.mxu0 0
      %2861 = vmatprep.subr.bf16.mxu0 0
      %2862 = vmatpush1.bf16.msra.mxu0 0
      %2863 = vmatprep.mubr.bf16.mxu0 0
      %2864 = vmatmul.mubr.bf16.gmra.mrb[0].mxu0 %v2829
      %v2865 = vpop.f32.mrb[0].mxu0
      %v2866 = vadd.f32 0.0, %v2865
      %v2867 = vpop.f32.mrb[0].mxu0
      %v2868 = vpop.f32.mrb[0].mxu0
      %v2869 = vpop.f32.mrb[0].mxu0
      %2870 = vdwg.mxu0
      %v2871 = vadd.f32 %v2707, %v2866
      %2872 = vrot.lane.b32.xlu0 %v2052, 48
      %v2873 = vpop.permute.xlu0 %2872
      %2874 = vrot.lane.b32.xlu0 %v2053, 48
      %v2875 = vpop.permute.xlu0 %2874
      %v2877 = vsel %vm740, %v2873, 0
      %v2880 = vsel %vm740, %v2875, 0
      %2882 = vmatprep.subr.bf16.mxu0 0
      %2883 = vmatpush1.bf16.xpose.msra.mxu0 %v2880
      %2884 = vmatprep.subr.bf16.mxu0 0
      %2885 = vmatpush1.bf16.xpose.msra.mxu0 0
      %2886 = vmatprep.subr.bf16.mxu0 0
      %2887 = vmatpush1.bf16.xpose.msra.mxu0 0
      %2888 = vmatprep.subr.bf16.mxu0 0
      %2889 = vmatpush1.bf16.xpose.msra.mxu0 0
      %2890 = vmatprep.subr.bf16.mxu0 0
      %2891 = vmatpush1.bf16.xpose.msra.mxu0 0
      %2892 = vmatprep.subr.bf16.mxu0 0
      %2893 = vmatpush1.bf16.xpose.msra.mxu0 0
      %2894 = vmatprep.subr.bf16.mxu0 0
      %2895 = vmatpush1.bf16.xpose.msra.mxu0 0
      %2896 = vmatprep.subr.bf16.mxu0 0
      %2897 = vmatpush1.bf16.xpose.msra.mxu0 0
      %2898 = vmatprep.subr.bf16.mxu0 0
      %2899 = vmatpush1.bf16.xpose.msra.mxu0 0
      %2900 = vmatprep.subr.bf16.mxu0 0
      %2901 = vmatpush1.bf16.xpose.msra.mxu0 0
      %2902 = vmatprep.subr.bf16.mxu0 0
      %2903 = vmatpush1.bf16.xpose.msra.mxu0 0
      %2904 = vmatprep.subr.bf16.mxu0 0
      %2905 = vmatpush1.bf16.xpose.msra.mxu0 0
      %2906 = vmatprep.subr.bf16.mxu0 0
      %2907 = vmatpush1.bf16.xpose.msra.mxu0 0
      %2908 = vmatprep.subr.bf16.mxu0 0
      %2909 = vmatpush1.bf16.xpose.msra.mxu0 0
      %2910 = vmatprep.subr.bf16.mxu0 0
      %2911 = vmatpush1.bf16.xpose.msra.mxu0 0
      %2912 = vmatprep.subr.bf16.mxu0 0
      %2913 = vmatpush1.bf16.xpose.msra.mxu0 0
      %2914 = vmatprep.mubr.bf16.mxu0 0
      %2915 = vmatmul.mubr.bf16.gmra.mrb[0].mxu0 %v2877
      %v2916 = vpop.f32.mrb[0].mxu0
      %v2917 = vadd.f32 %v738, %v2916
      %v2918 = vpop.f32.mrb[0].mxu0
      %v2919 = vpop.f32.mrb[0].mxu0
      %v2920 = vpop.f32.mrb[0].mxu0
      %2921 = vdwg.mxu0
      %v2922 = vsel %vm787, %v2917, -inf
      %2923 = vmax.xlane.f32.xlu0 %v2922
      %v2924 = vpop.xlane.xlu0 %2923
      %v2925 = vsub.f32 %v2917, %v2924
      %v2926 = vmul.f32 %v2925, 1.442695
      %v2927 = vpow.pop %v2926
      %v2928 = vsel %vm787, %v2927, 0.0
      %2929 = vadd.xlane.f32.xlu0 %v2928
      %v2930 = vpop.xlane.xlu0 %2929
      %v2931 = vrcp.pop %v2930
      %v2932 = vmul.f32 %v2927, %v2931
      %2933 = vst.msk [vmem:[%s452 + $0x68] sm:$0xff] %vm787, %v2932
      %v2934 = vpack.c.bf16 %v2932, %v2932
      %2935 = vrot.lane.b32.xlu0 %v2113, 48
      %v2936 = vpop.permute.xlu0 %2935
      %v2938 = vsel %vm787, %v2934, 0
      %v2941 = vsel %vm805, %v2936, 0
      %2943 = vmatprep.subr.bf16.mxu0 0
      %2944 = vmatpush1.bf16.msra.mxu0 %v2941
      %2945 = vmatprep.subr.bf16.mxu0 0
      %2946 = vmatpush1.bf16.msra.mxu0 0
      %2947 = vmatprep.subr.bf16.mxu0 0
      %2948 = vmatpush1.bf16.msra.mxu0 0
      %2949 = vmatprep.subr.bf16.mxu0 0
      %2950 = vmatpush1.bf16.msra.mxu0 0
      %2951 = vmatprep.subr.bf16.mxu0 0
      %2952 = vmatpush1.bf16.msra.mxu0 0
      %2953 = vmatprep.subr.bf16.mxu0 0
      %2954 = vmatpush1.bf16.msra.mxu0 0
      %2955 = vmatprep.subr.bf16.mxu0 0
      %2956 = vmatpush1.bf16.msra.mxu0 0
      %2957 = vmatprep.subr.bf16.mxu0 0
      %2958 = vmatpush1.bf16.msra.mxu0 0
      %2959 = vmatprep.subr.bf16.mxu0 0
      %2960 = vmatpush1.bf16.msra.mxu0 0
      %2961 = vmatprep.subr.bf16.mxu0 0
      %2962 = vmatpush1.bf16.msra.mxu0 0
      %2963 = vmatprep.subr.bf16.mxu0 0
      %2964 = vmatpush1.bf16.msra.mxu0 0
      %2965 = vmatprep.subr.bf16.mxu0 0
      %2966 = vmatpush1.bf16.msra.mxu0 0
      %2967 = vmatprep.subr.bf16.mxu0 0
      %2968 = vmatpush1.bf16.msra.mxu0 0
      %2969 = vmatprep.subr.bf16.mxu0 0
      %2970 = vmatpush1.bf16.msra.mxu0 0
      %2971 = vmatprep.subr.bf16.mxu0 0
      %2972 = vmatpush1.bf16.msra.mxu0 0
      %2973 = vmatprep.subr.bf16.mxu0 0
      %2974 = vmatpush1.bf16.msra.mxu0 0
      %2975 = vmatprep.mubr.bf16.mxu0 0
      %2976 = vmatmul.mubr.bf16.gmra.mrb[0].mxu0 %v2938
      %v2977 = vpop.f32.mrb[0].mxu0
      %v2978 = vadd.f32 0.0, %v2977
      %v2979 = vpop.f32.mrb[0].mxu0
      %v2980 = vpop.f32.mrb[0].mxu0
      %v2981 = vpop.f32.mrb[0].mxu0
      %2982 = vdwg.mxu0
      %v2983 = vpack.c.bf16 %v2978, %v2978
      %v2984 = vld [vmem:[%s9 + $0x68] sm:$0xf]
      %v2985 = vld [vmem:[%s9 + $0x6c] sm:$0xf]
      %v2988 = vunpack.c.l.b16 %v2984
      %v2989 = vunpack.c.l.b16 %v2985
      %v2990 = vpack.c.b16 %v2989, %v2988
      %v2993 = vsel %vm740, %v2983, 0
      %2995 = vmatprep.subr.bf16.mxu0 0
      %2996 = vmatpush1.bf16.msra.mxu0 %v2990
      %2997 = vmatprep.subr.bf16.mxu0 0
      %2998 = vmatpush1.bf16.msra.mxu0 0
      %2999 = vmatprep.subr.bf16.mxu0 0
      %3000 = vmatpush1.bf16.msra.mxu0 0
      %3001 = vmatprep.subr.bf16.mxu0 0
      %3002 = vmatpush1.bf16.msra.mxu0 0
      %3003 = vmatprep.subr.bf16.mxu0 0
      %3004 = vmatpush1.bf16.msra.mxu0 0
      %3005 = vmatprep.subr.bf16.mxu0 0
      %3006 = vmatpush1.bf16.msra.mxu0 0
      %3007 = vmatprep.subr.bf16.mxu0 0
      %3008 = vmatpush1.bf16.msra.mxu0 0
      %3009 = vmatprep.subr.bf16.mxu0 0
      %3010 = vmatpush1.bf16.msra.mxu0 0
      %3011 = vmatprep.subr.bf16.mxu0 0
      %3012 = vmatpush1.bf16.msra.mxu0 0
      %3013 = vmatprep.subr.bf16.mxu0 0
      %3014 = vmatpush1.bf16.msra.mxu0 0
      %3015 = vmatprep.subr.bf16.mxu0 0
      %3016 = vmatpush1.bf16.msra.mxu0 0
      %3017 = vmatprep.subr.bf16.mxu0 0
      %3018 = vmatpush1.bf16.msra.mxu0 0
      %3019 = vmatprep.subr.bf16.mxu0 0
      %3020 = vmatpush1.bf16.msra.mxu0 0
      %3021 = vmatprep.subr.bf16.mxu0 0
      %3022 = vmatpush1.bf16.msra.mxu0 0
      %3023 = vmatprep.subr.bf16.mxu0 0
      %3024 = vmatpush1.bf16.msra.mxu0 0
      %3025 = vmatprep.subr.bf16.mxu0 0
      %3026 = vmatpush1.bf16.msra.mxu0 0
      %3027 = vmatprep.mubr.bf16.mxu0 0
      %3028 = vmatmul.mubr.bf16.gmra.mrb[0].mxu0 %v2993
      %v3029 = vpop.f32.mrb[0].mxu0
      %v3030 = vadd.f32 0.0, %v3029
      %v3031 = vpop.f32.mrb[0].mxu0
      %v3032 = vpop.f32.mrb[0].mxu0
      %v3033 = vpop.f32.mrb[0].mxu0
      %3034 = vdwg.mxu0
      %v3035 = vadd.f32 %v2871, %v3030
      %3036 = vrot.lane.b32.xlu0 %v2052, 32
      %v3037 = vpop.permute.xlu0 %3036
      %3038 = vrot.lane.b32.xlu0 %v2053, 32
      %v3039 = vpop.permute.xlu0 %3038
      %v3041 = vsel %vm740, %v3037, 0
      %v3044 = vsel %vm740, %v3039, 0
      %3046 = vmatprep.subr.bf16.mxu0 0
      %3047 = vmatpush1.bf16.xpose.msra.mxu0 %v3044
      %3048 = vmatprep.subr.bf16.mxu0 0
      %3049 = vmatpush1.bf16.xpose.msra.mxu0 0
      %3050 = vmatprep.subr.bf16.mxu0 0
      %3051 = vmatpush1.bf16.xpose.msra.mxu0 0
      %3052 = vmatprep.subr.bf16.mxu0 0
      %3053 = vmatpush1.bf16.xpose.msra.mxu0 0
      %3054 = vmatprep.subr.bf16.mxu0 0
      %3055 = vmatpush1.bf16.xpose.msra.mxu0 0
      %3056 = vmatprep.subr.bf16.mxu0 0
      %3057 = vmatpush1.bf16.xpose.msra.mxu0 0
      %3058 = vmatprep.subr.bf16.mxu0 0
      %3059 = vmatpush1.bf16.xpose.msra.mxu0 0
      %3060 = vmatprep.subr.bf16.mxu0 0
      %3061 = vmatpush1.bf16.xpose.msra.mxu0 0
      %3062 = vmatprep.subr.bf16.mxu0 0
      %3063 = vmatpush1.bf16.xpose.msra.mxu0 0
      %3064 = vmatprep.subr.bf16.mxu0 0
      %3065 = vmatpush1.bf16.xpose.msra.mxu0 0
      %3066 = vmatprep.subr.bf16.mxu0 0
      %3067 = vmatpush1.bf16.xpose.msra.mxu0 0
      %3068 = vmatprep.subr.bf16.mxu0 0
      %3069 = vmatpush1.bf16.xpose.msra.mxu0 0
      %3070 = vmatprep.subr.bf16.mxu0 0
      %3071 = vmatpush1.bf16.xpose.msra.mxu0 0
      %3072 = vmatprep.subr.bf16.mxu0 0
      %3073 = vmatpush1.bf16.xpose.msra.mxu0 0
      %3074 = vmatprep.subr.bf16.mxu0 0
      %3075 = vmatpush1.bf16.xpose.msra.mxu0 0
      %3076 = vmatprep.subr.bf16.mxu0 0
      %3077 = vmatpush1.bf16.xpose.msra.mxu0 0
      %3078 = vmatprep.mubr.bf16.mxu0 0
      %3079 = vmatmul.mubr.bf16.gmra.mrb[0].mxu0 %v3041
      %v3080 = vpop.f32.mrb[0].mxu0
      %v3081 = vadd.f32 %v738, %v3080
      %v3082 = vpop.f32.mrb[0].mxu0
      %v3083 = vpop.f32.mrb[0].mxu0
      %v3084 = vpop.f32.mrb[0].mxu0
      %3085 = vdwg.mxu0
      %v3086 = vsel %vm787, %v3081, -inf
      %3087 = vmax.xlane.f32.xlu0 %v3086
      %v3088 = vpop.xlane.xlu0 %3087
      %v3089 = vsub.f32 %v3081, %v3088
      %v3090 = vmul.f32 %v3089, 1.442695
      %v3091 = vpow.pop %v3090
      %v3092 = vsel %vm787, %v3091, 0.0
      %3093 = vadd.xlane.f32.xlu0 %v3092
      %v3094 = vpop.xlane.xlu0 %3093
      %v3095 = vrcp.pop %v3094
      %v3096 = vmul.f32 %v3091, %v3095
      %3097 = vst.msk [vmem:[%s452 + $0x70] sm:$0xff] %vm787, %v3096
      %v3098 = vpack.c.bf16 %v3096, %v3096
      %3099 = vrot.lane.b32.xlu0 %v2113, 32
      %v3100 = vpop.permute.xlu0 %3099
      %v3102 = vsel %vm787, %v3098, 0
      %v3105 = vsel %vm805, %v3100, 0
      %3107 = vmatprep.subr.bf16.mxu0 0
      %3108 = vmatpush1.bf16.msra.mxu0 %v3105
      %3109 = vmatprep.subr.bf16.mxu0 0
      %3110 = vmatpush1.bf16.msra.mxu0 0
      %3111 = vmatprep.subr.bf16.mxu0 0
      %3112 = vmatpush1.bf16.msra.mxu0 0
      %3113 = vmatprep.subr.bf16.mxu0 0
      %3114 = vmatpush1.bf16.msra.mxu0 0
      %3115 = vmatprep.subr.bf16.mxu0 0
      %3116 = vmatpush1.bf16.msra.mxu0 0
      %3117 = vmatprep.subr.bf16.mxu0 0
      %3118 = vmatpush1.bf16.msra.mxu0 0
      %3119 = vmatprep.subr.bf16.mxu0 0
      %3120 = vmatpush1.bf16.msra.mxu0 0
      %3121 = vmatprep.subr.bf16.mxu0 0
      %3122 = vmatpush1.bf16.msra.mxu0 0
      %3123 = vmatprep.subr.bf16.mxu0 0
      %3124 = vmatpush1.bf16.msra.mxu0 0
      %3125 = vmatprep.subr.bf16.mxu0 0
      %3126 = vmatpush1.bf16.msra.mxu0 0
      %3127 = vmatprep.subr.bf16.mxu0 0
      %3128 = vmatpush1.bf16.msra.mxu0 0
      %3129 = vmatprep.subr.bf16.mxu0 0
      %3130 = vmatpush1.bf16.msra.mxu0 0
      %3131 = vmatprep.subr.bf16.mxu0 0
      %3132 = vmatpush1.bf16.msra.mxu0 0
      %3133 = vmatprep.subr.bf16.mxu0 0
      %3134 = vmatpush1.bf16.msra.mxu0 0
      %3135 = vmatprep.subr.bf16.mxu0 0
      %3136 = vmatpush1.bf16.msra.mxu0 0
      %3137 = vmatprep.subr.bf16.mxu0 0
      %3138 = vmatpush1.bf16.msra.mxu0 0
      %3139 = vmatprep.mubr.bf16.mxu0 0
      %3140 = vmatmul.mubr.bf16.gmra.mrb[0].mxu0 %v3102
      %v3141 = vpop.f32.mrb[0].mxu0
      %v3142 = vadd.f32 0.0, %v3141
      %v3143 = vpop.f32.mrb[0].mxu0
      %v3144 = vpop.f32.mrb[0].mxu0
      %v3145 = vpop.f32.mrb[0].mxu0
      %3146 = vdwg.mxu0
      %v3147 = vpack.c.bf16 %v3142, %v3142
      %v3148 = vld [vmem:[%s9 + $0x70] sm:$0xf]
      %v3149 = vld [vmem:[%s9 + $0x74] sm:$0xf]
      %v3152 = vunpack.c.l.b16 %v3148
      %v3153 = vunpack.c.l.b16 %v3149
      %v3154 = vpack.c.b16 %v3153, %v3152
      %v3157 = vsel %vm740, %v3147, 0
      %3159 = vmatprep.subr.bf16.mxu0 0
      %3160 = vmatpush1.bf16.msra.mxu0 %v3154
      %3161 = vmatprep.subr.bf16.mxu0 0
      %3162 = vmatpush1.bf16.msra.mxu0 0
      %3163 = vmatprep.subr.bf16.mxu0 0
      %3164 = vmatpush1.bf16.msra.mxu0 0
      %3165 = vmatprep.subr.bf16.mxu0 0
      %3166 = vmatpush1.bf16.msra.mxu0 0
      %3167 = vmatprep.subr.bf16.mxu0 0
      %3168 = vmatpush1.bf16.msra.mxu0 0
      %3169 = vmatprep.subr.bf16.mxu0 0
      %3170 = vmatpush1.bf16.msra.mxu0 0
      %3171 = vmatprep.subr.bf16.mxu0 0
      %3172 = vmatpush1.bf16.msra.mxu0 0
      %3173 = vmatprep.subr.bf16.mxu0 0
      %3174 = vmatpush1.bf16.msra.mxu0 0
      %3175 = vmatprep.subr.bf16.mxu0 0
      %3176 = vmatpush1.bf16.msra.mxu0 0
      %3177 = vmatprep.subr.bf16.mxu0 0
      %3178 = vmatpush1.bf16.msra.mxu0 0
      %3179 = vmatprep.subr.bf16.mxu0 0
      %3180 = vmatpush1.bf16.msra.mxu0 0
      %3181 = vmatprep.subr.bf16.mxu0 0
      %3182 = vmatpush1.bf16.msra.mxu0 0
      %3183 = vmatprep.subr.bf16.mxu0 0
      %3184 = vmatpush1.bf16.msra.mxu0 0
      %3185 = vmatprep.subr.bf16.mxu0 0
      %3186 = vmatpush1.bf16.msra.mxu0 0
      %3187 = vmatprep.subr.bf16.mxu0 0
      %3188 = vmatpush1.bf16.msra.mxu0 0
      %3189 = vmatprep.subr.bf16.mxu0 0
      %3190 = vmatpush1.bf16.msra.mxu0 0
      %3191 = vmatprep.mubr.bf16.mxu0 0
      %3192 = vmatmul.mubr.bf16.gmra.mrb[0].mxu0 %v3157
      %v3193 = vpop.f32.mrb[0].mxu0
      %v3194 = vadd.f32 0.0, %v3193
      %v3195 = vpop.f32.mrb[0].mxu0
      %v3196 = vpop.f32.mrb[0].mxu0
      %v3197 = vpop.f32.mrb[0].mxu0
      %3198 = vdwg.mxu0
      %v3199 = vadd.f32 %v3035, %v3194
      %3200 = vrot.lane.b32.xlu0 %v2052, 16
      %v3201 = vpop.permute.xlu0 %3200
      %3202 = vrot.lane.b32.xlu0 %v2053, 16
      %v3203 = vpop.permute.xlu0 %3202
      %v3205 = vsel %vm740, %v3201, 0
      %v3208 = vsel %vm740, %v3203, 0
      %3210 = vmatprep.subr.bf16.mxu0 0
      %3211 = vmatpush1.bf16.xpose.msra.mxu0 %v3208
      %3212 = vmatprep.subr.bf16.mxu0 0
      %3213 = vmatpush1.bf16.xpose.msra.mxu0 0
      %3214 = vmatprep.subr.bf16.mxu0 0
      %3215 = vmatpush1.bf16.xpose.msra.mxu0 0
      %3216 = vmatprep.subr.bf16.mxu0 0
      %3217 = vmatpush1.bf16.xpose.msra.mxu0 0
      %3218 = vmatprep.subr.bf16.mxu0 0
      %3219 = vmatpush1.bf16.xpose.msra.mxu0 0
      %3220 = vmatprep.subr.bf16.mxu0 0
      %3221 = vmatpush1.bf16.xpose.msra.mxu0 0
      %3222 = vmatprep.subr.bf16.mxu0 0
      %3223 = vmatpush1.bf16.xpose.msra.mxu0 0
      %3224 = vmatprep.subr.bf16.mxu0 0
      %3225 = vmatpush1.bf16.xpose.msra.mxu0 0
      %3226 = vmatprep.subr.bf16.mxu0 0
      %3227 = vmatpush1.bf16.xpose.msra.mxu0 0
      %3228 = vmatprep.subr.bf16.mxu0 0
      %3229 = vmatpush1.bf16.xpose.msra.mxu0 0
      %3230 = vmatprep.subr.bf16.mxu0 0
      %3231 = vmatpush1.bf16.xpose.msra.mxu0 0
      %3232 = vmatprep.subr.bf16.mxu0 0
      %3233 = vmatpush1.bf16.xpose.msra.mxu0 0
      %3234 = vmatprep.subr.bf16.mxu0 0
      %3235 = vmatpush1.bf16.xpose.msra.mxu0 0
      %3236 = vmatprep.subr.bf16.mxu0 0
      %3237 = vmatpush1.bf16.xpose.msra.mxu0 0
      %3238 = vmatprep.subr.bf16.mxu0 0
      %3239 = vmatpush1.bf16.xpose.msra.mxu0 0
      %3240 = vmatprep.subr.bf16.mxu0 0
      %3241 = vmatpush1.bf16.xpose.msra.mxu0 0
      %3242 = vmatprep.mubr.bf16.mxu0 0
      %3243 = vmatmul.mubr.bf16.gmra.mrb[0].mxu0 %v3205
      %v3244 = vpop.f32.mrb[0].mxu0
      %v3245 = vadd.f32 %v738, %v3244
      %v3246 = vpop.f32.mrb[0].mxu0
      %v3247 = vpop.f32.mrb[0].mxu0
      %v3248 = vpop.f32.mrb[0].mxu0
      %3249 = vdwg.mxu0
      %v3250 = vsel %vm787, %v3245, -inf
      %3251 = vmax.xlane.f32.xlu0 %v3250
      %v3252 = vpop.xlane.xlu0 %3251
      %v3253 = vsub.f32 %v3245, %v3252
      %v3254 = vmul.f32 %v3253, 1.442695
      %v3255 = vpow.pop %v3254
      %v3256 = vsel %vm787, %v3255, 0.0
      %3257 = vadd.xlane.f32.xlu0 %v3256
      %v3258 = vpop.xlane.xlu0 %3257
      %v3259 = vrcp.pop %v3258
      %v3260 = vmul.f32 %v3255, %v3259
      %3261 = vst.msk [vmem:[%s452 + $0x78] sm:$0xff] %vm787, %v3260
      %v3262 = vpack.c.bf16 %v3260, %v3260
      %3263 = vrot.lane.b32.xlu0 %v2113, 16
      %v3264 = vpop.permute.xlu0 %3263
      %v3266 = vsel %vm787, %v3262, 0
      %v3269 = vsel %vm805, %v3264, 0
      %3271 = vmatprep.subr.bf16.mxu0 0
      %3272 = vmatpush1.bf16.msra.mxu0 %v3269
      %3273 = vmatprep.subr.bf16.mxu0 0
      %3274 = vmatpush1.bf16.msra.mxu0 0
      %3275 = vmatprep.subr.bf16.mxu0 0
      %3276 = vmatpush1.bf16.msra.mxu0 0
      %3277 = vmatprep.subr.bf16.mxu0 0
      %3278 = vmatpush1.bf16.msra.mxu0 0
      %3279 = vmatprep.subr.bf16.mxu0 0
      %3280 = vmatpush1.bf16.msra.mxu0 0
      %3281 = vmatprep.subr.bf16.mxu0 0
      %3282 = vmatpush1.bf16.msra.mxu0 0
      %3283 = vmatprep.subr.bf16.mxu0 0
      %3284 = vmatpush1.bf16.msra.mxu0 0
      %3285 = vmatprep.subr.bf16.mxu0 0
      %3286 = vmatpush1.bf16.msra.mxu0 0
      %3287 = vmatprep.subr.bf16.mxu0 0
      %3288 = vmatpush1.bf16.msra.mxu0 0
      %3289 = vmatprep.subr.bf16.mxu0 0
      %3290 = vmatpush1.bf16.msra.mxu0 0
      %3291 = vmatprep.subr.bf16.mxu0 0
      %3292 = vmatpush1.bf16.msra.mxu0 0
      %3293 = vmatprep.subr.bf16.mxu0 0
      %3294 = vmatpush1.bf16.msra.mxu0 0
      %3295 = vmatprep.subr.bf16.mxu0 0
      %3296 = vmatpush1.bf16.msra.mxu0 0
      %3297 = vmatprep.subr.bf16.mxu0 0
      %3298 = vmatpush1.bf16.msra.mxu0 0
      %3299 = vmatprep.subr.bf16.mxu0 0
      %3300 = vmatpush1.bf16.msra.mxu0 0
      %3301 = vmatprep.subr.bf16.mxu0 0
      %3302 = vmatpush1.bf16.msra.mxu0 0
      %3303 = vmatprep.mubr.bf16.mxu0 0
      %3304 = vmatmul.mubr.bf16.gmra.mrb[0].mxu0 %v3266
      %v3305 = vpop.f32.mrb[0].mxu0
      %v3306 = vadd.f32 0.0, %v3305
      %v3307 = vpop.f32.mrb[0].mxu0
      %v3308 = vpop.f32.mrb[0].mxu0
      %v3309 = vpop.f32.mrb[0].mxu0
      %3310 = vdwg.mxu0
      %v3311 = vpack.c.bf16 %v3306, %v3306
      %v3312 = vld [vmem:[%s9 + $0x78] sm:$0xf]
      %v3313 = vld [vmem:[%s9 + $0x7c] sm:$0xf]
      %v3316 = vunpack.c.l.b16 %v3312
      %v3317 = vunpack.c.l.b16 %v3313
      %v3318 = vpack.c.b16 %v3317, %v3316
      %v3321 = vsel %vm740, %v3311, 0
      %3323 = vmatprep.subr.bf16.mxu0 0
      %3324 = vmatpush1.bf16.msra.mxu0 %v3318
      %3325 = vmatprep.subr.bf16.mxu0 0
      %3326 = vmatpush1.bf16.msra.mxu0 0
      %3327 = vmatprep.subr.bf16.mxu0 0
      %3328 = vmatpush1.bf16.msra.mxu0 0
      %3329 = vmatprep.subr.bf16.mxu0 0
      %3330 = vmatpush1.bf16.msra.mxu0 0
      %3331 = vmatprep.subr.bf16.mxu0 0
      %3332 = vmatpush1.bf16.msra.mxu0 0
      %3333 = vmatprep.subr.bf16.mxu0 0
      %3334 = vmatpush1.bf16.msra.mxu0 0
      %3335 = vmatprep.subr.bf16.mxu0 0
      %3336 = vmatpush1.bf16.msra.mxu0 0
      %3337 = vmatprep.subr.bf16.mxu0 0
      %3338 = vmatpush1.bf16.msra.mxu0 0
      %3339 = vmatprep.subr.bf16.mxu0 0
      %3340 = vmatpush1.bf16.msra.mxu0 0
      %3341 = vmatprep.subr.bf16.mxu0 0
      %3342 = vmatpush1.bf16.msra.mxu0 0
      %3343 = vmatprep.subr.bf16.mxu0 0
      %3344 = vmatpush1.bf16.msra.mxu0 0
      %3345 = vmatprep.subr.bf16.mxu0 0
      %3346 = vmatpush1.bf16.msra.mxu0 0
      %3347 = vmatprep.subr.bf16.mxu0 0
      %3348 = vmatpush1.bf16.msra.mxu0 0
      %3349 = vmatprep.subr.bf16.mxu0 0
      %3350 = vmatpush1.bf16.msra.mxu0 0
      %3351 = vmatprep.subr.bf16.mxu0 0
      %3352 = vmatpush1.bf16.msra.mxu0 0
      %3353 = vmatprep.subr.bf16.mxu0 0
      %3354 = vmatpush1.bf16.msra.mxu0 0
      %3355 = vmatprep.mubr.bf16.mxu0 0
      %3356 = vmatmul.mubr.bf16.gmra.mrb[0].mxu0 %v3321
      %v3357 = vpop.f32.mrb[0].mxu0
      %v3358 = vadd.f32 0.0, %v3357
      %v3359 = vpop.f32.mrb[0].mxu0
      %v3360 = vpop.f32.mrb[0].mxu0
      %v3361 = vpop.f32.mrb[0].mxu0
      %3362 = vdwg.mxu0
      %v3363 = vadd.f32 %v3199, %v3358
      %v3364 = vld [vmem:[%s10] sm:$0x1]
      %v3366 = vlaneseq
      %v3367 = vshrl.u32 %v3366, 7
      %v3368 = vsub.s32 0, %v3367
      %v3369 = vrot.slane %v3364, %v3368
      %v3371 = vadd.f32 %v3363, %v3369
      %v3372 = vmul.f32 %v3371, %v490
      %v3373 = vadd.f32 %v454, %v3372
      %3374 = vst.msk [vmem:[%s447] sm:$0xff] %vm458, %v3373
      %p3375 = scmp.lt.s32.totalorder %s24, 1
      %s3376 = scalar_select %p3375, %s24, 1
      %s3377 = smul.addr %s3376, 8
      %s3378 = scalar_lea.vmem %s11, %s3377
      %p3379 = scmp.lt.s32.totalorder %s24, 1
      %s3380 = scalar_select %p3379, %s24, 1
      %s3381 = smul.addr %s3380, 16
      %s3382 = smul.addr %s3381, 8
      %s3383 = scalar_lea.vmem %s12, %s3382
      // Predicated region
      $region65: #{_lambda_.9} parent=63 // pred_check
        %p3384 = pneg %p288
      $region66: #{_lambda_.9} parent=63 // pred_check_branch
        %3386 = sbr.rel (%p3384) target = $region68
      $region67: #{_lambda_.9} parent=63 // pred_region
        _
      $region68: #{_lambda_.9} parent=63 // pred_fallthru
        _
      // Predicated region
      $region69: #{_lambda_.9} parent=63 // pred_check
        %p3387 = pneg %p314
      $region70: #{_lambda_.9} parent=63 // pred_check_branch
        %3389 = sbr.rel (%p3387) target = $region72
      $region71: #{_lambda_.9} parent=63 // pred_region
        _
      $region72: #{_lambda_.9} parent=63 // pred_fallthru
        _
    $region64: #{_lambda_.9} parent=5 // pred_fallthru
      _
    %p3390 = scmp.le.s32.totalorder 2, %s19
    // Predicated region
    $region73: #{_lambda_.9} parent=5 // pred_check
      %p3391 = pneg %p3390
    $region74: #{_lambda_.9} parent=5 // pred_check_branch
      %3393 = sbr.rel (%p3391) target = $region76
    $region75: #{_lambda_.9} parent=5 // pred_region
      %s3394 = ssub.s32 %s19, 2
      // Predicated region
      $region77: #{_lambda_.9} parent=75 // pred_check
        %p3395 = pneg %p294
      $region78: #{_lambda_.9} parent=75 // pred_check_branch
        %3397 = sbr.rel (%p3395) target = $region80
      $region79: #{_lambda_.9} parent=75 // pred_region
        %p3398 = scmp.lt.s32.totalorder %s25, 1
        %s3399 = scalar_select %p3398, %s25, 1
        %s3400 = smul.addr %s3399, 8
        %s3401 = scalar_lea.vmem %s11, %s3400
      $region80: #{_lambda_.9} parent=75 // pred_fallthru
        _
      // Predicated region
      $region81: #{_lambda_.9} parent=75 // pred_check
        %p3402 = pneg %p320
      $region82: #{_lambda_.9} parent=75 // pred_check_branch
        %3404 = sbr.rel (%p3402) target = $region84
      $region83: #{_lambda_.9} parent=75 // pred_region
        %p3405 = scmp.lt.s32.totalorder %s25, 1
        %s3406 = scalar_select %p3405, %s25, 1
        %s3407 = smul.addr %s3406, 16
        %s3408 = smul.addr %s3407, 8
        %s3409 = scalar_lea.vmem %s12, %s3408
      $region84: #{_lambda_.9} parent=75 // pred_fallthru
        _
    $region76: #{_lambda_.9} parent=5 // pred_fallthru
      _
  $region6: #{_lambda_.9} parent=0 // loop_footer
    %s23 = sadd.s32 1, %s19
  $region7: #{_lambda_.9} parent=0 // loop_footer_branch
    %18 = sbr.rel target = $region3
  $region8: #{_lambda_.9} parent=0 // loop_exit
    _

</llo_original>
